<compile_context>
chip_gen: v7x
topology: tpu7x:2x2x1
jax: 0.10.0
libtpu: 0.0.40
codegen_flags: <defaults>
</compile_context>

<pallas_src>
import functools

import jax
import jax.numpy as jnp
from jax.experimental import pallas as pl
from jax.experimental.pallas import tpu as pltpu


# -----------------------------------------------------------------------------
# Kernel 1: fused stand-in encoder + SA refinement + L2 norm, row-tiled over the
# stacked [im_q ; im_k] batch (2N rows).
# -----------------------------------------------------------------------------
def encoder_sa_kernel(x_ref,                     # (TR, C_in)  pooled skeleton tile
                      w0_ref, b0_ref,            # (C_in, H), (1, H)
                      w1_ref, b1_ref,            # (H, H),    (1, H)
                      w2_ref, b2_ref,            # (H, C),    (1, C)
                      wq_ref, bq_ref,            # (C, C),    (1, C)
                      wk_ref, bk_ref,
                      wv_ref, bv_ref,
                      scal_ref,                  # SMEM (2,): [a, b]
                      feat_ref):                 # out (TR, C): normalized features
    f32 = jnp.float32
    bf16 = jnp.bfloat16

    # ---- stand-in encoder: Linear/ReLU -> fc MLP head (Linear, ReLU, Linear)
    # bf16 MXU operands, f32 accumulation; elementwise math stays f32.
    x = x_ref[...].astype(bf16)
    h = jnp.maximum(
        jnp.dot(x, w0_ref[...].astype(bf16), preferred_element_type=f32)
        + b0_ref[...], 0.0)
    h = jnp.maximum(
        jnp.dot(h.astype(bf16), w1_ref[...].astype(bf16),
                preferred_element_type=f32) + b1_ref[...], 0.0)
    f = (jnp.dot(h.astype(bf16), w2_ref[...].astype(bf16),
                 preferred_element_type=f32) + b2_ref[...])              # (TR, C)

    # ---- SA projectors (ReLU -> Linear)
    r = jnp.maximum(f, 0.0).astype(bf16)
    qy = jnp.dot(r, wq_ref[...].astype(bf16), preferred_element_type=f32) + bq_ref[...]
    ky = jnp.dot(r, wk_ref[...].astype(bf16), preferred_element_type=f32) + bk_ref[...]
    vy = jnp.dot(r, wv_ref[...].astype(bf16), preferred_element_type=f32) + bv_ref[...]

    # ---- softmax over j of att[n,i,j] = qy[n,i] * ky[n,j]
    # rowwise max of the rank-1 score is max(qy*max(ky), qy*min(ky)); numerator
    # and denominator are VPU multiplies + last-axis (XLU) reduces -- no MXU,
    # no second (TR,C,C) materialization.
    ky_max = jnp.max(ky, axis=1, keepdims=True)                          # (TR, 1)
    ky_min = jnp.min(ky, axis=1, keepdims=True)
    m = jnp.maximum(qy * ky_max, qy * ky_min)                            # (TR, C)
    p = jnp.exp(qy[:, :, None] * ky[:, None, :] - m[:, :, None])         # (TR,C,C) f32
    num = jnp.sum(p * vy[:, None, :], axis=-1)                           # (TR, C)
    den = jnp.sum(p, axis=-1)                                            # (TR, C)
    q2 = num * pl.reciprocal(den, approx=True)

    a = scal_ref[0]
    b = scal_ref[1]
    out = a * f + b * q2
    inv_nrm = jax.lax.rsqrt(jnp.sum(out * out, axis=1, keepdims=True) + 1e-24)
    feat_ref[...] = out * inv_nrm


# -----------------------------------------------------------------------------
# Kernel 2: MoCo negatives, K-tiled grid, lane-dense (N, TN) output tiles.
# Queue is stored bf16 (halves HBM traffic on this memory-bound matmul).
# -----------------------------------------------------------------------------
def logits_neg_kernel(q_ref, queue_ref, invt_ref, lneg_ref):
    q = q_ref[...].astype(jnp.bfloat16)                 # (N, C)
    lneg_ref[...] = (jnp.dot(q, queue_ref[...], preferred_element_type=jnp.float32)
                     * invt_ref[0])


# -----------------------------------------------------------------------------
# pallas_call wrappers
# -----------------------------------------------------------------------------
_SMEM = pl.BlockSpec(memory_space=pltpu.MemorySpace.SMEM)


def run_encoder_sa(pooled, params, scal, *, row_tile=128):
    rows, c_in = pooled.shape
    h = params["enc_w0"].shape[1]
    c = params["fc_w2"].shape[1]
    tr = min(row_tile, rows)
    assert rows % tr == 0, "stacked batch must divide evenly into row tiles"
    assert tr % 8 == 0 or tr == rows

    # VMEM budget: (tr, C, C) exp intermediate dominates (allow ~3 live copies
    # plus weights / double-buffered IO); capped well under v7x's 64 MiB.
    vmem_bytes = int(min(48 * 1024 * 1024,
                         max(16 * 1024 * 1024, 3 * tr * c * c * 4 + 8 * 1024 * 1024)))

    pin = lambda shp: pl.BlockSpec(shp, lambda i: (0, 0))   # weights resident
    return pl.pallas_call(
        encoder_sa_kernel,
        out_shape=jax.ShapeDtypeStruct((rows, c), jnp.float32),
        grid=(rows // tr,),
        in_specs=[pl.BlockSpec((tr, c_in), lambda i: (i, 0)),
                  pin((c_in, h)), pin((1, h)),
                  pin((h, h)), pin((1, h)),
                  pin((h, c)), pin((1, c)),
                  pin((c, c)), pin((1, c)),
                  pin((c, c)), pin((1, c)),
                  pin((c, c)), pin((1, c)),
                  _SMEM],
        out_specs=pl.BlockSpec((tr, c), lambda i: (i, 0)),
        compiler_params=pltpu.CompilerParams(
            dimension_semantics=("parallel",),
            vmem_limit_bytes=vmem_bytes),
    )(pooled, params["enc_w0"], params["enc_b0"], params["fc_w1"],
      params["fc_b1"], params["fc_w2"], params["fc_b2"],
      params["wq"], params["bq"], params["wk"], params["bk"],
      params["wv"], params["bv"], scal)


def run_logits_neg(q, queue_feat_bf16, inv_t, *, tile_k=4096):
    n, c = q.shape
    k = queue_feat_bf16.shape[1]
    tn = min(tile_k, k)                 # bf16 (C, 4096) tile = 1 MiB; fits 16 MiB v5e
    assert k % tn == 0, "queue size must divide evenly into K tiles"
    return pl.pallas_call(
        logits_neg_kernel,
        out_shape=jax.ShapeDtypeStruct((n, k), jnp.float32),
        grid=(k // tn,),
        in_specs=[pl.BlockSpec((n, c), lambda j: (0, 0)),      # q resident
                  pl.BlockSpec((c, tn), lambda j: (0, j)),     # bf16 queue tiles
                  _SMEM],                                      # 1/T scalar
        out_specs=pl.BlockSpec((n, tn), lambda j: (0, j)),
        compiler_params=pltpu.CompilerParams(
            dimension_semantics=("parallel",)),
    )(q, queue_feat_bf16, inv_t)


# -----------------------------------------------------------------------------
# Parameters (deterministic synthetic init) and the full forward pass
# -----------------------------------------------------------------------------
def init_params(key, *, in_channels, hidden_dim, feature_dim, queue_size):
    ks = jax.random.split(key, 12)

    def lin(k, fan_in, fan_out):
        kw, kb = jax.random.split(k)
        scale = 1.0 / jnp.sqrt(jnp.float32(fan_in))
        w = jax.random.uniform(kw, (fan_in, fan_out), jnp.float32, -scale, scale)
        b = jax.random.uniform(kb, (1, fan_out), jnp.float32, -scale, scale)
        return w, b

    p = {}
    # stand-in encoder (encoder_k is a byte-copy of encoder_q at init)
    p["enc_w0"], p["enc_b0"] = lin(ks[0], in_channels, hidden_dim)
    p["fc_w1"], p["fc_b1"] = lin(ks[1], hidden_dim, hidden_dim)
    p["fc_w2"], p["fc_b2"] = lin(ks[2], hidden_dim, feature_dim)
    # SA projectors (key copies of query at init)
    p["wq"], p["bq"] = lin(ks[3], feature_dim, feature_dim)
    p["wk"], p["bk"] = lin(ks[4], feature_dim, feature_dim)
    p["wv"], p["bv"] = lin(ks[5], feature_dim, feature_dim)
    # a, b scalars (both init to 1.0)
    p["ab"] = jnp.array([1.0, 1.0], dtype=jnp.float32)
    # queue: randn(feature_dim, K), column-normalized; features stored bf16,
    # label row stored separately in f32 (values stay exact).
    qfeat = jax.random.normal(ks[6], (feature_dim, queue_size), jnp.float32)
    qfeat = qfeat / jnp.maximum(
        jnp.sqrt(jnp.sum(qfeat * qfeat, axis=0, keepdims=True)), 1e-12)
    queue_feat = qfeat.astype(jnp.bfloat16)                    # (C, K) bf16
    queue_label = jnp.zeros((queue_size,), jnp.float32)        # (K,)
    queue_ptr = jnp.zeros((), jnp.int32)
    return p, queue_feat, queue_label, queue_ptr


@functools.partial(jax.jit, static_argnames=("temperature",),
                   donate_argnums=(1, 2))   # in-place enqueue of the queue state
def sasoiclr_forward(params, queue_feat, queue_label, queue_ptr,
                     im_q, im_k, label, temperature=0.07):
    n, c_in, t, v = im_q.shape
    k_total = queue_feat.shape[1]
    assert k_total % n == 0, "MoCo requires K % batch_size == 0"

    # Stack query/key clips so encoder + SA run once over 2N rows; do the
    # global average pool here so kernel 1 only DMAs (2N, C_in).
    x = jnp.concatenate([im_q, im_k], axis=0).astype(jnp.float32)
    pooled = jnp.mean(x.reshape(2 * n, c_in, t * v), axis=-1)

    inv_t = jnp.float32(1.0) / jnp.float32(temperature)
    scal = jnp.stack([params["ab"][0], params["ab"][1]])                 # (2,)

    feat = run_encoder_sa(pooled, params, scal)                          # (2N, C)
    q = feat[:n]
    # key branch is a torch.no_grad momentum encoder; the momentum update is a
    # no-op at init (identical weights), so the same weights are used here.
    k = jax.lax.stop_gradient(feat[n:])

    # l_pos in the wrapper: row pairs (i, i+N) live in different grid tiles.
    l_pos = jnp.sum(q * k, axis=1, keepdims=True) * inv_t                # (N, 1)

    inv_t_arr = jnp.full((1,), inv_t, jnp.float32)
    l_neg = run_logits_neg(q, queue_feat, inv_t_arr)                     # (N, K)
    logits = jnp.concatenate([l_pos, l_neg], axis=1)                     # (N,1+K)

    # _dequeue_and_enqueue: return old label row, enqueue k.T / label at ptr.
    labels = queue_label
    ptr = queue_ptr
    # ptr is always a multiple of N and K % N == 0, so no wrap/clamp occurs.
    new_queue_feat = jax.lax.dynamic_update_slice(
        queue_feat, k.astype(jnp.bfloat16).T, (0, ptr))
    new_queue_label = jax.lax.dynamic_update_slice(
        queue_label, label.astype(jnp.float32), (ptr,))
    # update_ptr (a separate no_grad method in PyTorch, applied every step)
    new_ptr = (ptr + n) % k_total
    return logits, labels, new_queue_feat, new_queue_label, new_ptr


# -----------------------------------------------------------------------------
# Demo
# -----------------------------------------------------------------------------
if __name__ == "__main__":
    N, C_IN, T, V = 8, 3, 16, 25          # small skeleton clip (N, C, T, V)
    HIDDEN_DIM = 128                      # lane-dense hidden width
    FEATURE_DIM = 128
    QUEUE_SIZE = 256
    TEMPERATURE = 0.07

    root = jax.random.PRNGKey(0)
    k_params, k_q, k_k, k_lbl = jax.random.split(root, 4)

    params, queue_feat, queue_label, queue_ptr = init_params(
        k_params, in_channels=C_IN, hidden_dim=HIDDEN_DIM,
        feature_dim=FEATURE_DIM, queue_size=QUEUE_SIZE)
    im_q = jax.random.normal(k_q, (N, C_IN, T, V), jnp.float32)
    im_k = jax.random.normal(k_k, (N, C_IN, T, V), jnp.float32)
    label = jax.random.randint(k_lbl, (N,), 0, 60).astype(jnp.float32)

    logits, labels, new_queue_feat, new_queue_label, new_ptr = sasoiclr_forward(
        params, queue_feat, queue_label, queue_ptr, im_q, im_k, label,
        temperature=TEMPERATURE)
    jax.block_until_ready((logits, labels, new_queue_feat, new_queue_label, new_ptr))

    assert logits.shape == (N, 1 + QUEUE_SIZE)
    assert labels.shape == (QUEUE_SIZE,)
    assert new_queue_feat.shape == (FEATURE_DIM, QUEUE_SIZE)
    assert new_queue_label.shape == (QUEUE_SIZE,)
    assert int(new_ptr) == N % QUEUE_SIZE
    print("KERNEL_OK")
</pallas_src>

<mosaic_0001>
module attributes {stable_mosaic.version = 11 : i64} {
  func.func @encoder_sa_kernel(%arg0: i32, %arg1: memref<16x3xf32, #tpu.memory_space<vmem>>, %arg2: memref<3x128xf32, #tpu.memory_space<vmem>>, %arg3: memref<1x128xf32, #tpu.memory_space<vmem>>, %arg4: memref<128x128xf32, #tpu.memory_space<vmem>>, %arg5: memref<1x128xf32, #tpu.memory_space<vmem>>, %arg6: memref<128x128xf32, #tpu.memory_space<vmem>>, %arg7: memref<1x128xf32, #tpu.memory_space<vmem>>, %arg8: memref<128x128xf32, #tpu.memory_space<vmem>>, %arg9: memref<1x128xf32, #tpu.memory_space<vmem>>, %arg10: memref<128x128xf32, #tpu.memory_space<vmem>>, %arg11: memref<1x128xf32, #tpu.memory_space<vmem>>, %arg12: memref<128x128xf32, #tpu.memory_space<vmem>>, %arg13: memref<1x128xf32, #tpu.memory_space<vmem>>, %arg14: memref<2xf32, #tpu.memory_space<smem>>, %arg15: memref<16x128xf32, #tpu.memory_space<vmem>>) attributes {dimension_semantics = [#tpu.dimension_semantics<parallel>], iteration_bounds = array<i64: 1>, scalar_prefetch = 0 : i64, scratch_operands = 0 : i64, tpu.core_type = #tpu.core_type<tc>, window_params = [{transform_indices = @transform_0, window_bounds = array<i64: 16, 3>}, {pipeline_mode = #tpu.pipeline_mode<synchronous>, transform_indices = @transform_1, window_bounds = array<i64: 3, 128>}, {pipeline_mode = #tpu.pipeline_mode<synchronous>, transform_indices = @transform_2, window_bounds = array<i64: 1, 128>}, {pipeline_mode = #tpu.pipeline_mode<synchronous>, transform_indices = @transform_3, window_bounds = array<i64: 128, 128>}, {pipeline_mode = #tpu.pipeline_mode<synchronous>, transform_indices = @transform_4, window_bounds = array<i64: 1, 128>}, {pipeline_mode = #tpu.pipeline_mode<synchronous>, transform_indices = @transform_5, window_bounds = array<i64: 128, 128>}, {pipeline_mode = #tpu.pipeline_mode<synchronous>, transform_indices = @transform_6, window_bounds = array<i64: 1, 128>}, {pipeline_mode = #tpu.pipeline_mode<synchronous>, transform_indices = @transform_7, window_bounds = array<i64: 128, 128>}, {pipeline_mode = #tpu.pipeline_mode<synchronous>, transform_indices = @transform_8, window_bounds = array<i64: 1, 128>}, {pipeline_mode = #tpu.pipeline_mode<synchronous>, transform_indices = @transform_9, window_bounds = array<i64: 128, 128>}, {pipeline_mode = #tpu.pipeline_mode<synchronous>, transform_indices = @transform_10, window_bounds = array<i64: 1, 128>}, {pipeline_mode = #tpu.pipeline_mode<synchronous>, transform_indices = @transform_11, window_bounds = array<i64: 128, 128>}, {pipeline_mode = #tpu.pipeline_mode<synchronous>, transform_indices = @transform_12, window_bounds = array<i64: 1, 128>}, {transform_indices = @transform_13, window_bounds = array<i64: 2>}, {transform_indices = @transform_14, window_bounds = array<i64: 16, 128>}]} {
    %c0 = arith.constant 0 : index
    %c0_0 = arith.constant 0 : index
    %0 = vector.load %arg1[%c0, %c0_0] : memref<16x3xf32, #tpu.memory_space<vmem>>, vector<16x3xf32>
    %1 = arith.truncf %0 : vector<16x3xf32> to vector<16x3xbf16>
    %c0_1 = arith.constant 0 : index
    %c0_2 = arith.constant 0 : index
    %2 = vector.load %arg2[%c0_1, %c0_2] : memref<3x128xf32, #tpu.memory_space<vmem>>, vector<3x128xf32>
    %3 = arith.truncf %2 : vector<3x128xf32> to vector<3x128xbf16>
    %cst = arith.constant dense<0.000000e+00> : vector<16x128xf32>
    %4 = tpu.matmul %1, %3, %cst {dimension_numbers = #tpu.dot_dimension_numbers<[1], [0], [0], [1], [0, 0, 1, 1], [], []>} : vector<16x3xbf16>, vector<3x128xbf16>, vector<16x128xf32> -> vector<16x128xf32>
    %c0_3 = arith.constant 0 : index
    %c0_4 = arith.constant 0 : index
    %5 = vector.load %arg3[%c0_3, %c0_4] : memref<1x128xf32, #tpu.memory_space<vmem>>, vector<1x128xf32>
    %6 = vector.broadcast %5 : vector<1x128xf32> to vector<16x128xf32>
    %7 = arith.addf %4, %6 : vector<16x128xf32>
    %cst_5 = arith.constant 0.000000e+00 : f32
    %8 = vector.broadcast %cst_5 : f32 to vector<16x128xf32>
    %9 = arith.maximumf %7, %8 : vector<16x128xf32>
    %10 = arith.truncf %9 : vector<16x128xf32> to vector<16x128xbf16>
    %c0_6 = arith.constant 0 : index
    %c0_7 = arith.constant 0 : index
    %11 = vector.load %arg4[%c0_6, %c0_7] : memref<128x128xf32, #tpu.memory_space<vmem>>, vector<128x128xf32>
    %12 = arith.truncf %11 : vector<128x128xf32> to vector<128x128xbf16>
    %cst_8 = arith.constant dense<0.000000e+00> : vector<16x128xf32>
    %13 = tpu.matmul %10, %12, %cst_8 {dimension_numbers = #tpu.dot_dimension_numbers<[1], [0], [0], [1], [0, 0, 1, 1], [], []>} : vector<16x128xbf16>, vector<128x128xbf16>, vector<16x128xf32> -> vector<16x128xf32>
    %c0_9 = arith.constant 0 : index
    %c0_10 = arith.constant 0 : index
    %14 = vector.load %arg5[%c0_9, %c0_10] : memref<1x128xf32, #tpu.memory_space<vmem>>, vector<1x128xf32>
    %15 = vector.broadcast %14 : vector<1x128xf32> to vector<16x128xf32>
    %16 = arith.addf %13, %15 : vector<16x128xf32>
    %cst_11 = arith.constant 0.000000e+00 : f32
    %17 = vector.broadcast %cst_11 : f32 to vector<16x128xf32>
    %18 = arith.maximumf %16, %17 : vector<16x128xf32>
    %19 = arith.truncf %18 : vector<16x128xf32> to vector<16x128xbf16>
    %c0_12 = arith.constant 0 : index
    %c0_13 = arith.constant 0 : index
    %20 = vector.load %arg6[%c0_12, %c0_13] : memref<128x128xf32, #tpu.memory_space<vmem>>, vector<128x128xf32>
    %21 = arith.truncf %20 : vector<128x128xf32> to vector<128x128xbf16>
    %cst_14 = arith.constant dense<0.000000e+00> : vector<16x128xf32>
    %22 = tpu.matmul %19, %21, %cst_14 {dimension_numbers = #tpu.dot_dimension_numbers<[1], [0], [0], [1], [0, 0, 1, 1], [], []>} : vector<16x128xbf16>, vector<128x128xbf16>, vector<16x128xf32> -> vector<16x128xf32>
    %c0_15 = arith.constant 0 : index
    %c0_16 = arith.constant 0 : index
    %23 = vector.load %arg7[%c0_15, %c0_16] : memref<1x128xf32, #tpu.memory_space<vmem>>, vector<1x128xf32>
    %24 = vector.broadcast %23 : vector<1x128xf32> to vector<16x128xf32>
    %25 = arith.addf %22, %24 : vector<16x128xf32>
    %cst_17 = arith.constant 0.000000e+00 : f32
    %26 = vector.broadcast %cst_17 : f32 to vector<16x128xf32>
    %27 = arith.maximumf %25, %26 : vector<16x128xf32>
    %28 = arith.truncf %27 : vector<16x128xf32> to vector<16x128xbf16>
    %c0_18 = arith.constant 0 : index
    %c0_19 = arith.constant 0 : index
    %29 = vector.load %arg8[%c0_18, %c0_19] : memref<128x128xf32, #tpu.memory_space<vmem>>, vector<128x128xf32>
    %30 = arith.truncf %29 : vector<128x128xf32> to vector<128x128xbf16>
    %cst_20 = arith.constant dense<0.000000e+00> : vector<16x128xf32>
    %31 = tpu.matmul %28, %30, %cst_20 {dimension_numbers = #tpu.dot_dimension_numbers<[1], [0], [0], [1], [0, 0, 1, 1], [], []>} : vector<16x128xbf16>, vector<128x128xbf16>, vector<16x128xf32> -> vector<16x128xf32>
    %c0_21 = arith.constant 0 : index
    %c0_22 = arith.constant 0 : index
    %32 = vector.load %arg9[%c0_21, %c0_22] : memref<1x128xf32, #tpu.memory_space<vmem>>, vector<1x128xf32>
    %33 = vector.broadcast %32 : vector<1x128xf32> to vector<16x128xf32>
    %34 = arith.addf %31, %33 : vector<16x128xf32>
    %c0_23 = arith.constant 0 : index
    %c0_24 = arith.constant 0 : index
    %35 = vector.load %arg10[%c0_23, %c0_24] : memref<128x128xf32, #tpu.memory_space<vmem>>, vector<128x128xf32>
    %36 = arith.truncf %35 : vector<128x128xf32> to vector<128x128xbf16>
    %cst_25 = arith.constant dense<0.000000e+00> : vector<16x128xf32>
    %37 = tpu.matmul %28, %36, %cst_25 {dimension_numbers = #tpu.dot_dimension_numbers<[1], [0], [0], [1], [0, 0, 1, 1], [], []>} : vector<16x128xbf16>, vector<128x128xbf16>, vector<16x128xf32> -> vector<16x128xf32>
    %c0_26 = arith.constant 0 : index
    %c0_27 = arith.constant 0 : index
    %38 = vector.load %arg11[%c0_26, %c0_27] : memref<1x128xf32, #tpu.memory_space<vmem>>, vector<1x128xf32>
    %39 = vector.broadcast %38 : vector<1x128xf32> to vector<16x128xf32>
    %40 = arith.addf %37, %39 : vector<16x128xf32>
    %c0_28 = arith.constant 0 : index
    %c0_29 = arith.constant 0 : index
    %41 = vector.load %arg12[%c0_28, %c0_29] : memref<128x128xf32, #tpu.memory_space<vmem>>, vector<128x128xf32>
    %42 = arith.truncf %41 : vector<128x128xf32> to vector<128x128xbf16>
    %cst_30 = arith.constant dense<0.000000e+00> : vector<16x128xf32>
    %43 = tpu.matmul %28, %42, %cst_30 {dimension_numbers = #tpu.dot_dimension_numbers<[1], [0], [0], [1], [0, 0, 1, 1], [], []>} : vector<16x128xbf16>, vector<128x128xbf16>, vector<16x128xf32> -> vector<16x128xf32>
    %c0_31 = arith.constant 0 : index
    %c0_32 = arith.constant 0 : index
    %44 = vector.load %arg13[%c0_31, %c0_32] : memref<1x128xf32, #tpu.memory_space<vmem>>, vector<1x128xf32>
    %45 = vector.broadcast %44 : vector<1x128xf32> to vector<16x128xf32>
    %46 = arith.addf %43, %45 : vector<16x128xf32>
    %cst_33 = arith.constant dense<0xFF800000> : vector<16xf32>
    %47 = vector.multi_reduction <maximumf>, %40, %cst_33 [1] : vector<16x128xf32> to vector<16xf32>
    %48 = vector.shape_cast %47 : vector<16xf32> to vector<16x1xf32>
    %cst_34 = arith.constant dense<0x7F800000> : vector<16xf32>
    %49 = vector.multi_reduction <minimumf>, %40, %cst_34 [1] : vector<16x128xf32> to vector<16xf32>
    %50 = vector.shape_cast %49 : vector<16xf32> to vector<16x1xf32>
    %51 = vector.broadcast %48 : vector<16x1xf32> to vector<16x128xf32>
    %52 = arith.mulf %34, %51 : vector<16x128xf32>
    %53 = vector.broadcast %50 : vector<16x1xf32> to vector<16x128xf32>
    %54 = arith.mulf %34, %53 : vector<16x128xf32>
    %55 = arith.maximumf %52, %54 : vector<16x128xf32>
    %56 = vector.shape_cast %34 : vector<16x128xf32> to vector<16x128x1xf32>
    %57 = vector.shape_cast %40 : vector<16x128xf32> to vector<16x1x128xf32>
    %58 = vector.broadcast %56 : vector<16x128x1xf32> to vector<16x128x128xf32>
    %59 = vector.broadcast %57 : vector<16x1x128xf32> to vector<16x128x128xf32>
    %60 = arith.mulf %58, %59 : vector<16x128x128xf32>
    %61 = vector.shape_cast %55 : vector<16x128xf32> to vector<16x128x1xf32>
    %62 = vector.broadcast %61 : vector<16x128x1xf32> to vector<16x128x128xf32>
    %63 = arith.subf %60, %62 : vector<16x128x128xf32>
    %64 = math.exp %63 : vector<16x128x128xf32>
    %65 = vector.shape_cast %46 : vector<16x128xf32> to vector<16x1x128xf32>
    %66 = vector.broadcast %65 : vector<16x1x128xf32> to vector<16x128x128xf32>
    %67 = arith.mulf %64, %66 : vector<16x128x128xf32>
    %cst_35 = arith.constant dense<0.000000e+00> : vector<16x128xf32>
    %68 = vector.multi_reduction <add>, %67, %cst_35 [2] : vector<16x128x128xf32> to vector<16x128xf32>
    %cst_36 = arith.constant dense<0.000000e+00> : vector<16x128xf32>
    %69 = vector.multi_reduction <add>, %64, %cst_36 [2] : vector<16x128x128xf32> to vector<16x128xf32>
    %70 = tpu.reciprocal %69 {approx = true} : vector<16x128xf32> -> vector<16x128xf32>
    %71 = arith.mulf %68, %70 : vector<16x128xf32>
    %c0_37 = arith.constant 0 : index
    %72 = memref.load %arg14[%c0_37] : memref<2xf32, #tpu.memory_space<smem>>
    %c1 = arith.constant 1 : index
    %73 = memref.load %arg14[%c1] : memref<2xf32, #tpu.memory_space<smem>>
    %74 = vector.broadcast %72 : f32 to vector<16x128xf32>
    %75 = arith.mulf %74, %25 : vector<16x128xf32>
    %76 = vector.broadcast %73 : f32 to vector<16x128xf32>
    %77 = arith.mulf %76, %71 : vector<16x128xf32>
    %78 = arith.addf %75, %77 : vector<16x128xf32>
    %79 = arith.mulf %78, %78 : vector<16x128xf32>
    %cst_38 = arith.constant dense<0.000000e+00> : vector<16xf32>
    %80 = vector.multi_reduction <add>, %79, %cst_38 [1] : vector<16x128xf32> to vector<16xf32>
    %81 = vector.shape_cast %80 : vector<16xf32> to vector<16x1xf32>
    %cst_39 = arith.constant 1.000000e-24 : f32
    %82 = vector.broadcast %cst_39 : f32 to vector<16x1xf32>
    %83 = arith.addf %81, %82 : vector<16x1xf32>
    %84 = math.rsqrt %83 : vector<16x1xf32>
    %85 = vector.broadcast %84 : vector<16x1xf32> to vector<16x128xf32>
    %86 = arith.mulf %78, %85 : vector<16x128xf32>
    %c0_40 = arith.constant 0 : index
    %c0_41 = arith.constant 0 : index
    %87 = vector.load %arg15[%c0_40, %c0_41] : memref<16x128xf32, #tpu.memory_space<vmem>>, vector<16x128xf32>
    tpu.vector_store %arg15[%c0_40, %c0_41], %86 {strides = array<i32>} : memref<16x128xf32, #tpu.memory_space<vmem>>, vector<16x128xf32>,
    return
  }
  func.func @transform_0(%arg0: i32) -> (i32, i32) {
    %c0_i32 = arith.constant 0 : i32
    %c0_i32_0 = arith.constant 0 : i32
    return %arg0, %c0_i32 : i32, i32
  }
  func.func @transform_1(%arg0: i32) -> (i32, i32) {
    %c0_i32 = arith.constant 0 : i32
    %c0_i32_0 = arith.constant 0 : i32
    %c0_i32_1 = arith.constant 0 : i32
    return %c0_i32, %c0_i32_0 : i32, i32
  }
  func.func @transform_2(%arg0: i32) -> (i32, i32) {
    %c0_i32 = arith.constant 0 : i32
    %c0_i32_0 = arith.constant 0 : i32
    %c0_i32_1 = arith.constant 0 : i32
    return %c0_i32, %c0_i32_0 : i32, i32
  }
  func.func @transform_3(%arg0: i32) -> (i32, i32) {
    %c0_i32 = arith.constant 0 : i32
    %c0_i32_0 = arith.constant 0 : i32
    %c0_i32_1 = arith.constant 0 : i32
    return %c0_i32, %c0_i32_0 : i32, i32
  }
  func.func @transform_4(%arg0: i32) -> (i32, i32) {
    %c0_i32 = arith.constant 0 : i32
    %c0_i32_0 = arith.constant 0 : i32
    %c0_i32_1 = arith.constant 0 : i32
    return %c0_i32, %c0_i32_0 : i32, i32
  }
  func.func @transform_5(%arg0: i32) -> (i32, i32) {
    %c0_i32 = arith.constant 0 : i32
    %c0_i32_0 = arith.constant 0 : i32
    %c0_i32_1 = arith.constant 0 : i32
    return %c0_i32, %c0_i32_0 : i32, i32
  }
  func.func @transform_6(%arg0: i32) -> (i32, i32) {
    %c0_i32 = arith.constant 0 : i32
    %c0_i32_0 = arith.constant 0 : i32
    %c0_i32_1 = arith.constant 0 : i32
    return %c0_i32, %c0_i32_0 : i32, i32
  }
  func.func @transform_7(%arg0: i32) -> (i32, i32) {
    %c0_i32 = arith.constant 0 : i32
    %c0_i32_0 = arith.constant 0 : i32
    %c0_i32_1 = arith.constant 0 : i32
    return %c0_i32, %c0_i32_0 : i32, i32
  }
  func.func @transform_8(%arg0: i32) -> (i32, i32) {
    %c0_i32 = arith.constant 0 : i32
    %c0_i32_0 = arith.constant 0 : i32
    %c0_i32_1 = arith.constant 0 : i32
    return %c0_i32, %c0_i32_0 : i32, i32
  }
  func.func @transform_9(%arg0: i32) -> (i32, i32) {
    %c0_i32 = arith.constant 0 : i32
    %c0_i32_0 = arith.constant 0 : i32
    %c0_i32_1 = arith.constant 0 : i32
    return %c0_i32, %c0_i32_0 : i32, i32
  }
  func.func @transform_10(%arg0: i32) -> (i32, i32) {
    %c0_i32 = arith.constant 0 : i32
    %c0_i32_0 = arith.constant 0 : i32
    %c0_i32_1 = arith.constant 0 : i32
    return %c0_i32, %c0_i32_0 : i32, i32
  }
  func.func @transform_11(%arg0: i32) -> (i32, i32) {
    %c0_i32 = arith.constant 0 : i32
    %c0_i32_0 = arith.constant 0 : i32
    %c0_i32_1 = arith.constant 0 : i32
    return %c0_i32, %c0_i32_0 : i32, i32
  }
  func.func @transform_12(%arg0: i32) -> (i32, i32) {
    %c0_i32 = arith.constant 0 : i32
    %c0_i32_0 = arith.constant 0 : i32
    %c0_i32_1 = arith.constant 0 : i32
    return %c0_i32, %c0_i32_0 : i32, i32
  }
  func.func @transform_13(%arg0: i32) -> i32 {
    %c0_i32 = arith.constant 0 : i32
    %c0_i32_0 = arith.constant 0 : i32
    return %c0_i32 : i32
  }
  func.func @transform_14(%arg0: i32) -> (i32, i32) {
    %c0_i32 = arith.constant 0 : i32
    %c0_i32_0 = arith.constant 0 : i32
    return %arg0, %c0_i32 : i32, i32
  }
}

module attributes {stable_mosaic.version = 11 : i64} {
  func.func @logits_neg_kernel(%arg0: i32, %arg1: memref<8x128xf32, #tpu.memory_space<vmem>>, %arg2: memref<128x256xbf16, #tpu.memory_space<vmem>>, %arg3: memref<1xf32, #tpu.memory_space<smem>>, %arg4: memref<8x256xf32, #tpu.memory_space<vmem>>) attributes {dimension_semantics = [#tpu.dimension_semantics<parallel>], iteration_bounds = array<i64: 1>, scalar_prefetch = 0 : i64, scratch_operands = 0 : i64, tpu.core_type = #tpu.core_type<tc>, window_params = [{pipeline_mode = #tpu.pipeline_mode<synchronous>, transform_indices = @transform_0, window_bounds = array<i64: 8, 128>}, {transform_indices = @transform_1, window_bounds = array<i64: 128, 256>}, {transform_indices = @transform_2, window_bounds = array<i64: 1>}, {transform_indices = @transform_3, window_bounds = array<i64: 8, 256>}]} {
    %c0 = arith.constant 0 : index
    %c0_0 = arith.constant 0 : index
    %0 = vector.load %arg1[%c0, %c0_0] : memref<8x128xf32, #tpu.memory_space<vmem>>, vector<8x128xf32>
    %1 = arith.truncf %0 : vector<8x128xf32> to vector<8x128xbf16>
    %c0_1 = arith.constant 0 : index
    %c0_2 = arith.constant 0 : index
    %2 = vector.load %arg2[%c0_1, %c0_2] : memref<128x256xbf16, #tpu.memory_space<vmem>>, vector<128x256xbf16>
    %cst = arith.constant dense<0.000000e+00> : vector<8x256xf32>
    %3 = tpu.matmul %1, %2, %cst {dimension_numbers = #tpu.dot_dimension_numbers<[1], [0], [0], [1], [0, 0, 1, 1], [], []>} : vector<8x128xbf16>, vector<128x256xbf16>, vector<8x256xf32> -> vector<8x256xf32>
    %c0_3 = arith.constant 0 : index
    %4 = memref.load %arg3[%c0_3] : memref<1xf32, #tpu.memory_space<smem>>
    %5 = vector.broadcast %4 : f32 to vector<8x256xf32>
    %6 = arith.mulf %3, %5 : vector<8x256xf32>
    %c0_4 = arith.constant 0 : index
    %c0_5 = arith.constant 0 : index
    %7 = vector.load %arg4[%c0_4, %c0_5] : memref<8x256xf32, #tpu.memory_space<vmem>>, vector<8x256xf32>
    tpu.vector_store %arg4[%c0_4, %c0_5], %6 {strides = array<i32>} : memref<8x256xf32, #tpu.memory_space<vmem>>, vector<8x256xf32>,
    return
  }
  func.func @transform_0(%arg0: i32) -> (i32, i32) {
    %c0_i32 = arith.constant 0 : i32
    %c0_i32_0 = arith.constant 0 : i32
    %c0_i32_1 = arith.constant 0 : i32
    return %c0_i32, %c0_i32_0 : i32, i32
  }
  func.func @transform_1(%arg0: i32) -> (i32, i32) {
    %c0_i32 = arith.constant 0 : i32
    %c0_i32_0 = arith.constant 0 : i32
    return %c0_i32, %arg0 : i32, i32
  }
  func.func @transform_2(%arg0: i32) -> i32 {
    %c0_i32 = arith.constant 0 : i32
    %c0_i32_0 = arith.constant 0 : i32
    return %c0_i32 : i32
  }
  func.func @transform_3(%arg0: i32) -> (i32, i32) {
    %c0_i32 = arith.constant 0 : i32
    %c0_i32_0 = arith.constant 0 : i32
    return %c0_i32, %arg0 : i32, i32
  }
}

</mosaic_0001>

<llo_original>
// kernel: sasoiclr_forward.3
$region0: #{sasoiclr_forward.3}
  #allocation0 [shape = 'u32[]', space=smem, size = 0x4, offset = 0x4, fixed_abs, tag = 'smem constant byte address 0x4 - core index']
  #allocation1 [shape = 'u32[144,128]{1,0:T(1,128)}', space=vmem, size = 0x12000, scoped, tag = 'internal scratch']
  #allocation2 [shape = 'f32[1]{0:T(128)S(6)}', space=smem, size = 0x200, scoped, tag = 'scoped memory for sasoiclr_forward.3']
  %s0 = inlined_call_operand.vmem [shape: f32[8,128], index: 0, kind: input, shape index: {}]
  %s1 = inlined_call_operand.vmem [shape: bf16[128,256], index: 1, kind: input, shape index: {}]
  %s2 = inlined_call_operand.<no memory space> [shape: f32[1], index: 2, kind: input, shape index: {}]
  %s3 = inlined_call_operand.vmem [shape: f32[8,256], index: 3, kind: output, shape index: {}]
  %s4 = sld [smem:[#allocation0]]
  $region22: #{sasoiclr_forward.3} parent=0
    _
  %s6 = ssub.s32 1, %s4
  %s7 = scalar_select 0, %s6, %s4
  %8 = sst [smem:[#allocation2]] %s2
  // Predicated region
  $region2: #{sasoiclr_forward.3} parent=0 // pred_check
    _
  $region3: #{sasoiclr_forward.3} parent=0 // pred_check_branch
    %10 = sbr.rel (0) target = $region5
  $region4: #{sasoiclr_forward.3} parent=0 // pred_region
    _
  $region5: #{sasoiclr_forward.3} parent=0 // pred_fallthru
    _
  // Predicated region
  $region6: #{sasoiclr_forward.3} parent=0 // pred_check
    _
  $region7: #{sasoiclr_forward.3} parent=0 // pred_check_branch
    %12 = sbr.rel (0) target = $region9
  $region8: #{sasoiclr_forward.3} parent=0 // pred_region
    _
  $region9: #{sasoiclr_forward.3} parent=0 // pred_fallthru
    _
  // Predicated region
  $region10: #{sasoiclr_forward.3} parent=0 // pred_check
    _
  $region11: #{sasoiclr_forward.3} parent=0 // pred_check_branch
    %14 = sbr.rel (0) target = $region13
  $region12: #{sasoiclr_forward.3} parent=0 // pred_region
    _
  $region13: #{sasoiclr_forward.3} parent=0 // pred_fallthru
    _
  %v16 = vld [vmem:[%s0] sm:$0xff]
  %v17 = vpack.c.bf16 %v16, %v16
  %v18 = vld [vmem:[%s1] sm:$0xff]
  %v19 = vld [vmem:[%s1 + $0x8] sm:$0xff]
  %v20 = vld [vmem:[%s1 + $0x10] sm:$0xff]
  %v21 = vld [vmem:[%s1 + $0x18] sm:$0xff]
  %v22 = vld [vmem:[%s1 + $0x20] sm:$0xff]
  %v23 = vld [vmem:[%s1 + $0x28] sm:$0xff]
  %v24 = vld [vmem:[%s1 + $0x30] sm:$0xff]
  %v25 = vld [vmem:[%s1 + $0x38] sm:$0xff]
  %v26 = vld [vmem:[%s1 + $0x40] sm:$0xff]
  %v27 = vld [vmem:[%s1 + $0x48] sm:$0xff]
  %v28 = vld [vmem:[%s1 + $0x50] sm:$0xff]
  %v29 = vld [vmem:[%s1 + $0x58] sm:$0xff]
  %v30 = vld [vmem:[%s1 + $0x60] sm:$0xff]
  %v31 = vld [vmem:[%s1 + $0x68] sm:$0xff]
  %v32 = vld [vmem:[%s1 + $0x70] sm:$0xff]
  %v33 = vld [vmem:[%s1 + $0x78] sm:$0xff]
  %v50 = vunpack.c.l.b16 %v18
  %v51 = vunpack.c.h.b16 %v18
  %v52 = vunpack.c.l.b16 %v19
  %v53 = vunpack.c.h.b16 %v19
  %v54 = vunpack.c.l.b16 %v20
  %v55 = vunpack.c.h.b16 %v20
  %v56 = vunpack.c.l.b16 %v21
  %v57 = vunpack.c.h.b16 %v21
  %v58 = vunpack.c.l.b16 %v22
  %v59 = vunpack.c.h.b16 %v22
  %v60 = vunpack.c.l.b16 %v23
  %v61 = vunpack.c.h.b16 %v23
  %v62 = vunpack.c.l.b16 %v24
  %v63 = vunpack.c.h.b16 %v24
  %v64 = vunpack.c.l.b16 %v25
  %v65 = vunpack.c.h.b16 %v25
  %v66 = vunpack.c.l.b16 %v26
  %v67 = vunpack.c.h.b16 %v26
  %v68 = vunpack.c.l.b16 %v27
  %v69 = vunpack.c.h.b16 %v27
  %v70 = vunpack.c.l.b16 %v28
  %v71 = vunpack.c.h.b16 %v28
  %v72 = vunpack.c.l.b16 %v29
  %v73 = vunpack.c.h.b16 %v29
  %v74 = vunpack.c.l.b16 %v30
  %v75 = vunpack.c.h.b16 %v30
  %v76 = vunpack.c.l.b16 %v31
  %v77 = vunpack.c.h.b16 %v31
  %v78 = vunpack.c.l.b16 %v32
  %v79 = vunpack.c.h.b16 %v32
  %v80 = vunpack.c.l.b16 %v33
  %v81 = vunpack.c.h.b16 %v33
  %v82 = vpack.c.b16 %v52, %v50
  %v83 = vpack.c.b16 %v53, %v51
  %v84 = vpack.c.b16 %v56, %v54
  %v85 = vpack.c.b16 %v57, %v55
  %v86 = vpack.c.b16 %v60, %v58
  %v87 = vpack.c.b16 %v61, %v59
  %v88 = vpack.c.b16 %v64, %v62
  %v89 = vpack.c.b16 %v65, %v63
  %v90 = vpack.c.b16 %v68, %v66
  %v91 = vpack.c.b16 %v69, %v67
  %v92 = vpack.c.b16 %v72, %v70
  %v93 = vpack.c.b16 %v73, %v71
  %v94 = vpack.c.b16 %v76, %v74
  %v95 = vpack.c.b16 %v77, %v75
  %v96 = vpack.c.b16 %v80, %v78
  %v97 = vpack.c.b16 %v81, %v79
  %114 = vmatprep.subr.bf16.mxu0 %v83
  %115 = vmatpush1.bf16.msra.mxu0 %v82
  %116 = vmatprep.subr.bf16.mxu0 %v85
  %117 = vmatpush1.bf16.msra.mxu0 %v84
  %118 = vmatprep.subr.bf16.mxu0 %v87
  %119 = vmatpush1.bf16.msra.mxu0 %v86
  %120 = vmatprep.subr.bf16.mxu0 %v89
  %121 = vmatpush1.bf16.msra.mxu0 %v88
  %122 = vmatprep.subr.bf16.mxu0 %v91
  %123 = vmatpush1.bf16.msra.mxu0 %v90
  %124 = vmatprep.subr.bf16.mxu0 %v93
  %125 = vmatpush1.bf16.msra.mxu0 %v92
  %126 = vmatprep.subr.bf16.mxu0 %v95
  %127 = vmatpush1.bf16.msra.mxu0 %v94
  %128 = vmatprep.subr.bf16.mxu0 %v97
  %129 = vmatpush1.bf16.msra.mxu0 %v96
  %130 = vmatprep.subr.bf16.mxu0 0
  %131 = vmatpush1.bf16.msra.mxu0 0
  %132 = vmatprep.subr.bf16.mxu0 0
  %133 = vmatpush1.bf16.msra.mxu0 0
  %134 = vmatprep.subr.bf16.mxu0 0
  %135 = vmatpush1.bf16.msra.mxu0 0
  %136 = vmatprep.subr.bf16.mxu0 0
  %137 = vmatpush1.bf16.msra.mxu0 0
  %138 = vmatprep.subr.bf16.mxu0 0
  %139 = vmatpush1.bf16.msra.mxu0 0
  %140 = vmatprep.subr.bf16.mxu0 0
  %141 = vmatpush1.bf16.msra.mxu0 0
  %142 = vmatprep.subr.bf16.mxu0 0
  %143 = vmatpush1.bf16.msra.mxu0 0
  %144 = vmatprep.subr.bf16.mxu0 0
  %145 = vmatpush1.bf16.msra.mxu0 0
  %146 = vmatprep.mubr.bf16.mxu0 0
  %147 = vmatmul.mubr.bf16.gmra.mrb[0].mxu0 %v17
  %v148 = vpop.f32.mrb[0].mxu0
  %v149 = vadd.f32 0.0, %v148
  %v150 = vpop.f32.mrb[0].mxu0
  %v151 = vadd.f32 0.0, %v150
  %v152 = vpop.f32.mrb[0].mxu0
  %v153 = vpop.f32.mrb[0].mxu0
  %154 = vdwg.mxu0
  %s155 = sld [smem:[#allocation2]]
  %v156 = vstv %s155
  %v157 = vmul.f32 %v149, %v156
  %v158 = vmul.f32 %v151, %v156
  %159 = vst [vmem:[%s3] sm:$0xff] %v157
  %160 = vst [vmem:[%s3 + $0x8] sm:$0xff] %v158
  // Predicated region
  $region14: #{sasoiclr_forward.3} parent=0 // pred_check
    _
  $region15: #{sasoiclr_forward.3} parent=0 // pred_check_branch
    %162 = sbr.rel (0) target = $region17
  $region16: #{sasoiclr_forward.3} parent=0 // pred_region
    _
  $region17: #{sasoiclr_forward.3} parent=0 // pred_fallthru
    _
  // Predicated region
  $region18: #{sasoiclr_forward.3} parent=0 // pred_check
    _
  $region19: #{sasoiclr_forward.3} parent=0 // pred_check_branch
    %164 = sbr.rel (0) target = $region21
  $region20: #{sasoiclr_forward.3} parent=0 // pred_region
    _
  $region21: #{sasoiclr_forward.3} parent=0 // pred_fallthru
    _

// kernel: sasoiclr_forward.2
$region0: #{sasoiclr_forward.2}
  #allocation0 [shape = 'u32[]', space=smem, size = 0x4, offset = 0x4, fixed_abs, tag = 'smem constant byte address 0x4 - core index']
  #allocation1 [shape = 'u32[144,128]{1,0:T(1,128)}', space=vmem, size = 0x12000, scoped, tag = 'internal scratch']
  %s0 = inlined_call_operand.vmem [shape: f32[16,3], index: 0, kind: input, shape index: {}]
  %s1 = inlined_call_operand.vmem [shape: f32[3,128], index: 1, kind: input, shape index: {}]
  %s2 = inlined_call_operand.vmem [shape: f32[1,128], index: 2, kind: input, shape index: {}]
  %s3 = inlined_call_operand.vmem [shape: f32[128,128], index: 3, kind: input, shape index: {}]
  %s4 = inlined_call_operand.vmem [shape: f32[1,128], index: 4, kind: input, shape index: {}]
  %s5 = inlined_call_operand.vmem [shape: f32[128,128], index: 5, kind: input, shape index: {}]
  %s6 = inlined_call_operand.vmem [shape: f32[1,128], index: 6, kind: input, shape index: {}]
  %s7 = inlined_call_operand.vmem [shape: f32[128,128], index: 7, kind: input, shape index: {}]
  %s8 = inlined_call_operand.vmem [shape: f32[1,128], index: 8, kind: input, shape index: {}]
  %s9 = inlined_call_operand.vmem [shape: f32[128,128], index: 9, kind: input, shape index: {}]
  %s10 = inlined_call_operand.vmem [shape: f32[1,128], index: 10, kind: input, shape index: {}]
  %s11 = inlined_call_operand.vmem [shape: f32[128,128], index: 11, kind: input, shape index: {}]
  %s12 = inlined_call_operand.vmem [shape: f32[1,128], index: 12, kind: input, shape index: {}]
  %s13 = inlined_call_operand.vmem [shape: f32[2], index: 13, kind: input, shape index: {}]
  %s14 = inlined_call_operand.vmem [shape: f32[16,128], index: 14, kind: output, shape index: {}]
  %s15 = sld [smem:[#allocation0]]
  $region70: #{sasoiclr_forward.2} parent=0
    _
  %s17 = ssub.s32 1, %s15
  %s18 = scalar_select 0, %s17, %s15
  $region1: #{sasoiclr_forward.2} parent=0
    #allocation2 [shape = 'u8[512]{0}', space=smem, size = 0x200, scoped, tag = 'input window, operand 13, single buffered']
    #allocation3 [shape = 's32[1]{0}', space=sflag, size = 0x4, scoped, tag = 'scoped memory for sasoiclr_forward.2']
    %19 = vsyncpa [#allocation3], 0
    // Predicated region
    $region2: #{sasoiclr_forward.2} parent=1 // pred_check
      _
    $region3: #{sasoiclr_forward.2} parent=1 // pred_check_branch
      %21 = sbr.rel (0) target = $region5
    $region4: #{sasoiclr_forward.2} parent=1 // pred_region
      _
    $region5: #{sasoiclr_forward.2} parent=1 // pred_fallthru
      _
    // Predicated region
    $region6: #{sasoiclr_forward.2} parent=1 // pred_check
      _
    $region7: #{sasoiclr_forward.2} parent=1 // pred_check_branch
      %23 = sbr.rel (0) target = $region9
    $region8: #{sasoiclr_forward.2} parent=1 // pred_region
      _
    $region9: #{sasoiclr_forward.2} parent=1 // pred_fallthru
      _
    // Predicated region
    $region10: #{sasoiclr_forward.2} parent=1 // pred_check
      _
    $region11: #{sasoiclr_forward.2} parent=1 // pred_check_branch
      %25 = sbr.rel (0) target = $region13
    $region12: #{sasoiclr_forward.2} parent=1 // pred_region
      _
    $region13: #{sasoiclr_forward.2} parent=1 // pred_fallthru
      _
    // Predicated region
    $region14: #{sasoiclr_forward.2} parent=1 // pred_check
      _
    $region15: #{sasoiclr_forward.2} parent=1 // pred_check_branch
      %27 = sbr.rel (0) target = $region17
    $region16: #{sasoiclr_forward.2} parent=1 // pred_region
      _
    $region17: #{sasoiclr_forward.2} parent=1 // pred_fallthru
      _
    // Predicated region
    $region18: #{sasoiclr_forward.2} parent=1 // pred_check
      _
    $region19: #{sasoiclr_forward.2} parent=1 // pred_check_branch
      %29 = sbr.rel (0) target = $region21
    $region20: #{sasoiclr_forward.2} parent=1 // pred_region
      _
    $region21: #{sasoiclr_forward.2} parent=1 // pred_fallthru
      _
    // Predicated region
    $region22: #{sasoiclr_forward.2} parent=1 // pred_check
      _
    $region23: #{sasoiclr_forward.2} parent=1 // pred_check_branch
      %31 = sbr.rel (0) target = $region25
    $region24: #{sasoiclr_forward.2} parent=1 // pred_region
      _
    $region25: #{sasoiclr_forward.2} parent=1 // pred_fallthru
      _
    // Predicated region
    $region26: #{sasoiclr_forward.2} parent=1 // pred_check
      _
    $region27: #{sasoiclr_forward.2} parent=1 // pred_check_branch
      %33 = sbr.rel (0) target = $region29
    $region28: #{sasoiclr_forward.2} parent=1 // pred_region
      _
    $region29: #{sasoiclr_forward.2} parent=1 // pred_fallthru
      _
    // Predicated region
    $region30: #{sasoiclr_forward.2} parent=1 // pred_check
      _
    $region31: #{sasoiclr_forward.2} parent=1 // pred_check_branch
      %35 = sbr.rel (0) target = $region33
    $region32: #{sasoiclr_forward.2} parent=1 // pred_region
      _
    $region33: #{sasoiclr_forward.2} parent=1 // pred_fallthru
      _
    // Predicated region
    $region34: #{sasoiclr_forward.2} parent=1 // pred_check
      _
    $region35: #{sasoiclr_forward.2} parent=1 // pred_check_branch
      %37 = sbr.rel (0) target = $region37
    $region36: #{sasoiclr_forward.2} parent=1 // pred_region
      _
    $region37: #{sasoiclr_forward.2} parent=1 // pred_fallthru
      _
    // Predicated region
    $region38: #{sasoiclr_forward.2} parent=1 // pred_check
      _
    $region39: #{sasoiclr_forward.2} parent=1 // pred_check_branch
      %39 = sbr.rel (0) target = $region41
    $region40: #{sasoiclr_forward.2} parent=1 // pred_region
      _
    $region41: #{sasoiclr_forward.2} parent=1 // pred_fallthru
      _
    // Predicated region
    $region42: #{sasoiclr_forward.2} parent=1 // pred_check
      _
    $region43: #{sasoiclr_forward.2} parent=1 // pred_check_branch
      %41 = sbr.rel (0) target = $region45
    $region44: #{sasoiclr_forward.2} parent=1 // pred_region
      _
    $region45: #{sasoiclr_forward.2} parent=1 // pred_fallthru
      _
    // Predicated region
    $region46: #{sasoiclr_forward.2} parent=1 // pred_check
      _
    $region47: #{sasoiclr_forward.2} parent=1 // pred_check_branch
      %43 = sbr.rel (0) target = $region49
    $region48: #{sasoiclr_forward.2} parent=1 // pred_region
      _
    $region49: #{sasoiclr_forward.2} parent=1 // pred_fallthru
      _
    // Predicated region
    $region50: #{sasoiclr_forward.2} parent=1 // pred_check
      _
    $region51: #{sasoiclr_forward.2} parent=1 // pred_check_branch
      %45 = sbr.rel (0) target = $region53
    $region52: #{sasoiclr_forward.2} parent=1 // pred_region
      _
    $region53: #{sasoiclr_forward.2} parent=1 // pred_fallthru
      _
    // Predicated region
    $region54: #{sasoiclr_forward.2} parent=1 // pred_check
      _
    $region55: #{sasoiclr_forward.2} parent=1 // pred_check_branch
      %47 = sbr.rel (0) target = $region57
    $region56: #{sasoiclr_forward.2} parent=1 // pred_region
      %s49 = ssub.s32 16, 16
      %50 = vsyncadd [#allocation3], %s49
      %s52 = sshll.u32 %s13, 4
      %s53 = int_to_ptr.vmem [resolvable:$true] %s52
      %55 = dma.vmem_to_smem %s53, 16, [#allocation2], [#allocation3]
    $region57: #{sasoiclr_forward.2} parent=1 // pred_fallthru
      _
    // Predicated region
    $region58: #{sasoiclr_forward.2} parent=1 // pred_check
      _
    $region59: #{sasoiclr_forward.2} parent=1 // pred_check_branch
      %57 = sbr.rel (0) target = $region61
    $region60: #{sasoiclr_forward.2} parent=1 // pred_region
      %58 = dma.done [#allocation3], 16
    $region61: #{sasoiclr_forward.2} parent=1 // pred_fallthru
      _
    %59 = sfence
    %v61 = vld [vmem:[%s0] sm:$0xff]
    %v62 = vld [vmem:[%s0 + $0x8] sm:$0xff]
    %v63 = vpack.c.bf16 %v62, %v61
    %v64 = vld [vmem:[%s1] sm:$0x7]
    %v65 = vpack.c.bf16 %v64, %v64
    %v66 = vld [vmem:[%s2] sm:$0x1]
    %v68 = vlaneseq
    %v69 = vshrl.u32 %v68, 7
    %v70 = vsub.s32 0, %v69
    %v71 = vrot.slane %v66, %v70
    %vm73 = vcmask 23552
    %v75 = vsel %vm73, %v63, 0
    %vm77 = vcmask 1040384
    %vm78 = vcmask 1041408
    %v79 = vsel %vm77, 4294967295, 65535
    %v80 = vsel %vm78, %v79, 0
    %v82 = vand.u32 %v65, %v80
    %84 = vmatprep.subr.bf16.mxu0 0
    %85 = vmatpush1.bf16.msra.mxu0 %v82
    %86 = vmatprep.subr.bf16.mxu0 0
    %87 = vmatpush1.bf16.msra.mxu0 0
    %88 = vmatprep.subr.bf16.mxu0 0
    %89 = vmatpush1.bf16.msra.mxu0 0
    %90 = vmatprep.subr.bf16.mxu0 0
    %91 = vmatpush1.bf16.msra.mxu0 0
    %92 = vmatprep.subr.bf16.mxu0 0
    %93 = vmatpush1.bf16.msra.mxu0 0
    %94 = vmatprep.subr.bf16.mxu0 0
    %95 = vmatpush1.bf16.msra.mxu0 0
    %96 = vmatprep.subr.bf16.mxu0 0
    %97 = vmatpush1.bf16.msra.mxu0 0
    %98 = vmatprep.subr.bf16.mxu0 0
    %99 = vmatpush1.bf16.msra.mxu0 0
    %100 = vmatprep.subr.bf16.mxu0 0
    %101 = vmatpush1.bf16.msra.mxu0 0
    %102 = vmatprep.subr.bf16.mxu0 0
    %103 = vmatpush1.bf16.msra.mxu0 0
    %104 = vmatprep.subr.bf16.mxu0 0
    %105 = vmatpush1.bf16.msra.mxu0 0
    %106 = vmatprep.subr.bf16.mxu0 0
    %107 = vmatpush1.bf16.msra.mxu0 0
    %108 = vmatprep.subr.bf16.mxu0 0
    %109 = vmatpush1.bf16.msra.mxu0 0
    %110 = vmatprep.subr.bf16.mxu0 0
    %111 = vmatpush1.bf16.msra.mxu0 0
    %112 = vmatprep.subr.bf16.mxu0 0
    %113 = vmatpush1.bf16.msra.mxu0 0
    %114 = vmatprep.subr.bf16.mxu0 0
    %115 = vmatpush1.bf16.msra.mxu0 0
    %116 = vmatprep.mubr.bf16.mxu0 0
    %117 = vmatmul.mubr.bf16.gmra.mrb[0].mxu0 %v75
    %v118 = vpop.f32.mrb[0].mxu0
    %v119 = vadd.f32 %v71, %v118
    %v120 = vpop.f32.mrb[0].mxu0
    %v121 = vpop.f32.mrb[0].mxu0
    %v122 = vadd.f32 %v71, %v121
    %v123 = vpop.f32.mrb[0].mxu0
    %124 = vdwg.mxu0
    %v125 = vmax.f32 %v119, 0.0
    %v126 = vmax.f32 %v122, 0.0
    %v127 = vpack.c.bf16 %v126, %v125
    %v128 = vld [vmem:[%s3] sm:$0xff]
    %v129 = vld [vmem:[%s3 + $0x8] sm:$0xff]
    %v130 = vld [vmem:[%s3 + $0x10] sm:$0xff]
    %v131 = vld [vmem:[%s3 + $0x18] sm:$0xff]
    %v132 = vld [vmem:[%s3 + $0x20] sm:$0xff]
    %v133 = vld [vmem:[%s3 + $0x28] sm:$0xff]
    %v134 = vld [vmem:[%s3 + $0x30] sm:$0xff]
    %v135 = vld [vmem:[%s3 + $0x38] sm:$0xff]
    %v136 = vld [vmem:[%s3 + $0x40] sm:$0xff]
    %v137 = vld [vmem:[%s3 + $0x48] sm:$0xff]
    %v138 = vld [vmem:[%s3 + $0x50] sm:$0xff]
    %v139 = vld [vmem:[%s3 + $0x58] sm:$0xff]
    %v140 = vld [vmem:[%s3 + $0x60] sm:$0xff]
    %v141 = vld [vmem:[%s3 + $0x68] sm:$0xff]
    %v142 = vld [vmem:[%s3 + $0x70] sm:$0xff]
    %v143 = vld [vmem:[%s3 + $0x78] sm:$0xff]
    %v144 = vpack.c.bf16 %v129, %v128
    %v145 = vpack.c.bf16 %v131, %v130
    %v146 = vpack.c.bf16 %v133, %v132
    %v147 = vpack.c.bf16 %v135, %v134
    %v148 = vpack.c.bf16 %v137, %v136
    %v149 = vpack.c.bf16 %v139, %v138
    %v150 = vpack.c.bf16 %v141, %v140
    %v151 = vpack.c.bf16 %v143, %v142
    %v152 = vld [vmem:[%s4] sm:$0x1]
    %v154 = vlaneseq
    %v155 = vshrl.u32 %v154, 7
    %v156 = vsub.s32 0, %v155
    %v157 = vrot.slane %v152, %v156
    %159 = vmatprep.subr.bf16.mxu0 0
    %160 = vmatpush1.bf16.msra.mxu0 %v144
    %161 = vmatprep.subr.bf16.mxu0 0
    %162 = vmatpush1.bf16.msra.mxu0 %v145
    %163 = vmatprep.subr.bf16.mxu0 0
    %164 = vmatpush1.bf16.msra.mxu0 %v146
    %165 = vmatprep.subr.bf16.mxu0 0
    %166 = vmatpush1.bf16.msra.mxu0 %v147
    %167 = vmatprep.subr.bf16.mxu0 0
    %168 = vmatpush1.bf16.msra.mxu0 %v148
    %169 = vmatprep.subr.bf16.mxu0 0
    %170 = vmatpush1.bf16.msra.mxu0 %v149
    %171 = vmatprep.subr.bf16.mxu0 0
    %172 = vmatpush1.bf16.msra.mxu0 %v150
    %173 = vmatprep.subr.bf16.mxu0 0
    %174 = vmatpush1.bf16.msra.mxu0 %v151
    %175 = vmatprep.subr.bf16.mxu0 0
    %176 = vmatpush1.bf16.msra.mxu0 0
    %177 = vmatprep.subr.bf16.mxu0 0
    %178 = vmatpush1.bf16.msra.mxu0 0
    %179 = vmatprep.subr.bf16.mxu0 0
    %180 = vmatpush1.bf16.msra.mxu0 0
    %181 = vmatprep.subr.bf16.mxu0 0
    %182 = vmatpush1.bf16.msra.mxu0 0
    %183 = vmatprep.subr.bf16.mxu0 0
    %184 = vmatpush1.bf16.msra.mxu0 0
    %185 = vmatprep.subr.bf16.mxu0 0
    %186 = vmatpush1.bf16.msra.mxu0 0
    %187 = vmatprep.subr.bf16.mxu0 0
    %188 = vmatpush1.bf16.msra.mxu0 0
    %189 = vmatprep.subr.bf16.mxu0 0
    %190 = vmatpush1.bf16.msra.mxu0 0
    %191 = vmatprep.mubr.bf16.mxu0 0
    %192 = vmatmul.mubr.bf16.gmra.mrb[0].mxu0 %v127
    %v193 = vpop.f32.mrb[0].mxu0
    %v194 = vadd.f32 %v157, %v193
    %v195 = vpop.f32.mrb[0].mxu0
    %v196 = vpop.f32.mrb[0].mxu0
    %v197 = vadd.f32 %v157, %v196
    %v198 = vpop.f32.mrb[0].mxu0
    %199 = vdwg.mxu0
    %v200 = vmax.f32 %v194, 0.0
    %v201 = vmax.f32 %v197, 0.0
    %v202 = vpack.c.bf16 %v201, %v200
    %v203 = vld [vmem:[%s5] sm:$0xff]
    %v204 = vld [vmem:[%s5 + $0x8] sm:$0xff]
    %v205 = vld [vmem:[%s5 + $0x10] sm:$0xff]
    %v206 = vld [vmem:[%s5 + $0x18] sm:$0xff]
    %v207 = vld [vmem:[%s5 + $0x20] sm:$0xff]
    %v208 = vld [vmem:[%s5 + $0x28] sm:$0xff]
    %v209 = vld [vmem:[%s5 + $0x30] sm:$0xff]
    %v210 = vld [vmem:[%s5 + $0x38] sm:$0xff]
    %v211 = vld [vmem:[%s5 + $0x40] sm:$0xff]
    %v212 = vld [vmem:[%s5 + $0x48] sm:$0xff]
    %v213 = vld [vmem:[%s5 + $0x50] sm:$0xff]
    %v214 = vld [vmem:[%s5 + $0x58] sm:$0xff]
    %v215 = vld [vmem:[%s5 + $0x60] sm:$0xff]
    %v216 = vld [vmem:[%s5 + $0x68] sm:$0xff]
    %v217 = vld [vmem:[%s5 + $0x70] sm:$0xff]
    %v218 = vld [vmem:[%s5 + $0x78] sm:$0xff]
    %v219 = vpack.c.bf16 %v204, %v203
    %v220 = vpack.c.bf16 %v206, %v205
    %v221 = vpack.c.bf16 %v208, %v207
    %v222 = vpack.c.bf16 %v210, %v209
    %v223 = vpack.c.bf16 %v212, %v211
    %v224 = vpack.c.bf16 %v214, %v213
    %v225 = vpack.c.bf16 %v216, %v215
    %v226 = vpack.c.bf16 %v218, %v217
    %v227 = vld [vmem:[%s6] sm:$0x1]
    %v229 = vlaneseq
    %v230 = vshrl.u32 %v229, 7
    %v231 = vsub.s32 0, %v230
    %v232 = vrot.slane %v227, %v231
    %234 = vmatprep.subr.bf16.mxu0 0
    %235 = vmatpush1.bf16.msra.mxu0 %v219
    %236 = vmatprep.subr.bf16.mxu0 0
    %237 = vmatpush1.bf16.msra.mxu0 %v220
    %238 = vmatprep.subr.bf16.mxu0 0
    %239 = vmatpush1.bf16.msra.mxu0 %v221
    %240 = vmatprep.subr.bf16.mxu0 0
    %241 = vmatpush1.bf16.msra.mxu0 %v222
    %242 = vmatprep.subr.bf16.mxu0 0
    %243 = vmatpush1.bf16.msra.mxu0 %v223
    %244 = vmatprep.subr.bf16.mxu0 0
    %245 = vmatpush1.bf16.msra.mxu0 %v224
    %246 = vmatprep.subr.bf16.mxu0 0
    %247 = vmatpush1.bf16.msra.mxu0 %v225
    %248 = vmatprep.subr.bf16.mxu0 0
    %249 = vmatpush1.bf16.msra.mxu0 %v226
    %250 = vmatprep.subr.bf16.mxu0 0
    %251 = vmatpush1.bf16.msra.mxu0 0
    %252 = vmatprep.subr.bf16.mxu0 0
    %253 = vmatpush1.bf16.msra.mxu0 0
    %254 = vmatprep.subr.bf16.mxu0 0
    %255 = vmatpush1.bf16.msra.mxu0 0
    %256 = vmatprep.subr.bf16.mxu0 0
    %257 = vmatpush1.bf16.msra.mxu0 0
    %258 = vmatprep.subr.bf16.mxu0 0
    %259 = vmatpush1.bf16.msra.mxu0 0
    %260 = vmatprep.subr.bf16.mxu0 0
    %261 = vmatpush1.bf16.msra.mxu0 0
    %262 = vmatprep.subr.bf16.mxu0 0
    %263 = vmatpush1.bf16.msra.mxu0 0
    %264 = vmatprep.subr.bf16.mxu0 0
    %265 = vmatpush1.bf16.msra.mxu0 0
    %266 = vmatprep.mubr.bf16.mxu0 0
    %267 = vmatmul.mubr.bf16.gmra.mrb[0].mxu0 %v202
    %v268 = vpop.f32.mrb[0].mxu0
    %v269 = vadd.f32 %v232, %v268
    %v270 = vpop.f32.mrb[0].mxu0
    %v271 = vpop.f32.mrb[0].mxu0
    %v272 = vadd.f32 %v232, %v271
    %v273 = vpop.f32.mrb[0].mxu0
    %274 = vdwg.mxu0
    %v275 = vmax.f32 %v269, 0.0
    %v276 = vmax.f32 %v272, 0.0
    %v277 = vpack.c.bf16 %v276, %v275
    %v278 = vld [vmem:[%s7] sm:$0xff]
    %v279 = vld [vmem:[%s7 + $0x8] sm:$0xff]
    %v280 = vld [vmem:[%s7 + $0x10] sm:$0xff]
    %v281 = vld [vmem:[%s7 + $0x18] sm:$0xff]
    %v282 = vld [vmem:[%s7 + $0x20] sm:$0xff]
    %v283 = vld [vmem:[%s7 + $0x28] sm:$0xff]
    %v284 = vld [vmem:[%s7 + $0x30] sm:$0xff]
    %v285 = vld [vmem:[%s7 + $0x38] sm:$0xff]
    %v286 = vld [vmem:[%s7 + $0x40] sm:$0xff]
    %v287 = vld [vmem:[%s7 + $0x48] sm:$0xff]
    %v288 = vld [vmem:[%s7 + $0x50] sm:$0xff]
    %v289 = vld [vmem:[%s7 + $0x58] sm:$0xff]
    %v290 = vld [vmem:[%s7 + $0x60] sm:$0xff]
    %v291 = vld [vmem:[%s7 + $0x68] sm:$0xff]
    %v292 = vld [vmem:[%s7 + $0x70] sm:$0xff]
    %v293 = vld [vmem:[%s7 + $0x78] sm:$0xff]
    %v294 = vpack.c.bf16 %v279, %v278
    %v295 = vpack.c.bf16 %v281, %v280
    %v296 = vpack.c.bf16 %v283, %v282
    %v297 = vpack.c.bf16 %v285, %v284
    %v298 = vpack.c.bf16 %v287, %v286
    %v299 = vpack.c.bf16 %v289, %v288
    %v300 = vpack.c.bf16 %v291, %v290
    %v301 = vpack.c.bf16 %v293, %v292
    %v302 = vld [vmem:[%s8] sm:$0x1]
    %v304 = vlaneseq
    %v305 = vshrl.u32 %v304, 7
    %v306 = vsub.s32 0, %v305
    %v307 = vrot.slane %v302, %v306
    %309 = vmatprep.subr.bf16.mxu0 0
    %310 = vmatpush1.bf16.msra.mxu0 %v294
    %311 = vmatprep.subr.bf16.mxu0 0
    %312 = vmatpush1.bf16.msra.mxu0 %v295
    %313 = vmatprep.subr.bf16.mxu0 0
    %314 = vmatpush1.bf16.msra.mxu0 %v296
    %315 = vmatprep.subr.bf16.mxu0 0
    %316 = vmatpush1.bf16.msra.mxu0 %v297
    %317 = vmatprep.subr.bf16.mxu0 0
    %318 = vmatpush1.bf16.msra.mxu0 %v298
    %319 = vmatprep.subr.bf16.mxu0 0
    %320 = vmatpush1.bf16.msra.mxu0 %v299
    %321 = vmatprep.subr.bf16.mxu0 0
    %322 = vmatpush1.bf16.msra.mxu0 %v300
    %323 = vmatprep.subr.bf16.mxu0 0
    %324 = vmatpush1.bf16.msra.mxu0 %v301
    %325 = vmatprep.subr.bf16.mxu0 0
    %326 = vmatpush1.bf16.msra.mxu0 0
    %327 = vmatprep.subr.bf16.mxu0 0
    %328 = vmatpush1.bf16.msra.mxu0 0
    %329 = vmatprep.subr.bf16.mxu0 0
    %330 = vmatpush1.bf16.msra.mxu0 0
    %331 = vmatprep.subr.bf16.mxu0 0
    %332 = vmatpush1.bf16.msra.mxu0 0
    %333 = vmatprep.subr.bf16.mxu0 0
    %334 = vmatpush1.bf16.msra.mxu0 0
    %335 = vmatprep.subr.bf16.mxu0 0
    %336 = vmatpush1.bf16.msra.mxu0 0
    %337 = vmatprep.subr.bf16.mxu0 0
    %338 = vmatpush1.bf16.msra.mxu0 0
    %339 = vmatprep.subr.bf16.mxu0 0
    %340 = vmatpush1.bf16.msra.mxu0 0
    %341 = vmatprep.mubr.bf16.mxu0 0
    %342 = vmatmul.mubr.bf16.gmra.mrb[0].mxu0 %v277
    %v343 = vpop.f32.mrb[0].mxu0
    %v344 = vadd.f32 %v307, %v343
    %v345 = vpop.f32.mrb[0].mxu0
    %v346 = vpop.f32.mrb[0].mxu0
    %v347 = vadd.f32 %v307, %v346
    %v348 = vpop.f32.mrb[0].mxu0
    %349 = vdwg.mxu0
    %v350 = vld [vmem:[%s9] sm:$0xff]
    %v351 = vld [vmem:[%s9 + $0x8] sm:$0xff]
    %v352 = vld [vmem:[%s9 + $0x10] sm:$0xff]
    %v353 = vld [vmem:[%s9 + $0x18] sm:$0xff]
    %v354 = vld [vmem:[%s9 + $0x20] sm:$0xff]
    %v355 = vld [vmem:[%s9 + $0x28] sm:$0xff]
    %v356 = vld [vmem:[%s9 + $0x30] sm:$0xff]
    %v357 = vld [vmem:[%s9 + $0x38] sm:$0xff]
    %v358 = vld [vmem:[%s9 + $0x40] sm:$0xff]
    %v359 = vld [vmem:[%s9 + $0x48] sm:$0xff]
    %v360 = vld [vmem:[%s9 + $0x50] sm:$0xff]
    %v361 = vld [vmem:[%s9 + $0x58] sm:$0xff]
    %v362 = vld [vmem:[%s9 + $0x60] sm:$0xff]
    %v363 = vld [vmem:[%s9 + $0x68] sm:$0xff]
    %v364 = vld [vmem:[%s9 + $0x70] sm:$0xff]
    %v365 = vld [vmem:[%s9 + $0x78] sm:$0xff]
    %v366 = vpack.c.bf16 %v351, %v350
    %v367 = vpack.c.bf16 %v353, %v352
    %v368 = vpack.c.bf16 %v355, %v354
    %v369 = vpack.c.bf16 %v357, %v356
    %v370 = vpack.c.bf16 %v359, %v358
    %v371 = vpack.c.bf16 %v361, %v360
    %v372 = vpack.c.bf16 %v363, %v362
    %v373 = vpack.c.bf16 %v365, %v364
    %v374 = vld [vmem:[%s10] sm:$0x1]
    %v376 = vlaneseq
    %v377 = vshrl.u32 %v376, 7
    %v378 = vsub.s32 0, %v377
    %v379 = vrot.slane %v374, %v378
    %381 = vmatprep.subr.bf16.mxu0 0
    %382 = vmatpush1.bf16.msra.mxu0 %v366
    %383 = vmatprep.subr.bf16.mxu0 0
    %384 = vmatpush1.bf16.msra.mxu0 %v367
    %385 = vmatprep.subr.bf16.mxu0 0
    %386 = vmatpush1.bf16.msra.mxu0 %v368
    %387 = vmatprep.subr.bf16.mxu0 0
    %388 = vmatpush1.bf16.msra.mxu0 %v369
    %389 = vmatprep.subr.bf16.mxu0 0
    %390 = vmatpush1.bf16.msra.mxu0 %v370
    %391 = vmatprep.subr.bf16.mxu0 0
    %392 = vmatpush1.bf16.msra.mxu0 %v371
    %393 = vmatprep.subr.bf16.mxu0 0
    %394 = vmatpush1.bf16.msra.mxu0 %v372
    %395 = vmatprep.subr.bf16.mxu0 0
    %396 = vmatpush1.bf16.msra.mxu0 %v373
    %397 = vmatprep.subr.bf16.mxu0 0
    %398 = vmatpush1.bf16.msra.mxu0 0
    %399 = vmatprep.subr.bf16.mxu0 0
    %400 = vmatpush1.bf16.msra.mxu0 0
    %401 = vmatprep.subr.bf16.mxu0 0
    %402 = vmatpush1.bf16.msra.mxu0 0
    %403 = vmatprep.subr.bf16.mxu0 0
    %404 = vmatpush1.bf16.msra.mxu0 0
    %405 = vmatprep.subr.bf16.mxu0 0
    %406 = vmatpush1.bf16.msra.mxu0 0
    %407 = vmatprep.subr.bf16.mxu0 0
    %408 = vmatpush1.bf16.msra.mxu0 0
    %409 = vmatprep.subr.bf16.mxu0 0
    %410 = vmatpush1.bf16.msra.mxu0 0
    %411 = vmatprep.subr.bf16.mxu0 0
    %412 = vmatpush1.bf16.msra.mxu0 0
    %413 = vmatprep.mubr.bf16.mxu0 0
    %414 = vmatmul.mubr.bf16.gmra.mrb[0].mxu0 %v277
    %v415 = vpop.f32.mrb[0].mxu0
    %v416 = vadd.f32 %v379, %v415
    %v417 = vpop.f32.mrb[0].mxu0
    %v418 = vpop.f32.mrb[0].mxu0
    %v419 = vadd.f32 %v379, %v418
    %v420 = vpop.f32.mrb[0].mxu0
    %421 = vdwg.mxu0
    %v422 = vld [vmem:[%s11] sm:$0xff]
    %v423 = vld [vmem:[%s11 + $0x8] sm:$0xff]
    %v424 = vld [vmem:[%s11 + $0x10] sm:$0xff]
    %v425 = vld [vmem:[%s11 + $0x18] sm:$0xff]
    %v426 = vld [vmem:[%s11 + $0x20] sm:$0xff]
    %v427 = vld [vmem:[%s11 + $0x28] sm:$0xff]
    %v428 = vld [vmem:[%s11 + $0x30] sm:$0xff]
    %v429 = vld [vmem:[%s11 + $0x38] sm:$0xff]
    %v430 = vld [vmem:[%s11 + $0x40] sm:$0xff]
    %v431 = vld [vmem:[%s11 + $0x48] sm:$0xff]
    %v432 = vld [vmem:[%s11 + $0x50] sm:$0xff]
    %v433 = vld [vmem:[%s11 + $0x58] sm:$0xff]
    %v434 = vld [vmem:[%s11 + $0x60] sm:$0xff]
    %v435 = vld [vmem:[%s11 + $0x68] sm:$0xff]
    %v436 = vld [vmem:[%s11 + $0x70] sm:$0xff]
    %v437 = vld [vmem:[%s11 + $0x78] sm:$0xff]
    %v438 = vpack.c.bf16 %v423, %v422
    %v439 = vpack.c.bf16 %v425, %v424
    %v440 = vpack.c.bf16 %v427, %v426
    %v441 = vpack.c.bf16 %v429, %v428
    %v442 = vpack.c.bf16 %v431, %v430
    %v443 = vpack.c.bf16 %v433, %v432
    %v444 = vpack.c.bf16 %v435, %v434
    %v445 = vpack.c.bf16 %v437, %v436
    %v446 = vld [vmem:[%s12] sm:$0x1]
    %v448 = vlaneseq
    %v449 = vshrl.u32 %v448, 7
    %v450 = vsub.s32 0, %v449
    %v451 = vrot.slane %v446, %v450
    %453 = vmatprep.subr.bf16.mxu0 0
    %454 = vmatpush1.bf16.msra.mxu0 %v438
    %455 = vmatprep.subr.bf16.mxu0 0
    %456 = vmatpush1.bf16.msra.mxu0 %v439
    %457 = vmatprep.subr.bf16.mxu0 0
    %458 = vmatpush1.bf16.msra.mxu0 %v440
    %459 = vmatprep.subr.bf16.mxu0 0
    %460 = vmatpush1.bf16.msra.mxu0 %v441
    %461 = vmatprep.subr.bf16.mxu0 0
    %462 = vmatpush1.bf16.msra.mxu0 %v442
    %463 = vmatprep.subr.bf16.mxu0 0
    %464 = vmatpush1.bf16.msra.mxu0 %v443
    %465 = vmatprep.subr.bf16.mxu0 0
    %466 = vmatpush1.bf16.msra.mxu0 %v444
    %467 = vmatprep.subr.bf16.mxu0 0
    %468 = vmatpush1.bf16.msra.mxu0 %v445
    %469 = vmatprep.subr.bf16.mxu0 0
    %470 = vmatpush1.bf16.msra.mxu0 0
    %471 = vmatprep.subr.bf16.mxu0 0
    %472 = vmatpush1.bf16.msra.mxu0 0
    %473 = vmatprep.subr.bf16.mxu0 0
    %474 = vmatpush1.bf16.msra.mxu0 0
    %475 = vmatprep.subr.bf16.mxu0 0
    %476 = vmatpush1.bf16.msra.mxu0 0
    %477 = vmatprep.subr.bf16.mxu0 0
    %478 = vmatpush1.bf16.msra.mxu0 0
    %479 = vmatprep.subr.bf16.mxu0 0
    %480 = vmatpush1.bf16.msra.mxu0 0
    %481 = vmatprep.subr.bf16.mxu0 0
    %482 = vmatpush1.bf16.msra.mxu0 0
    %483 = vmatprep.subr.bf16.mxu0 0
    %484 = vmatpush1.bf16.msra.mxu0 0
    %485 = vmatprep.mubr.bf16.mxu0 0
    %486 = vmatmul.mubr.bf16.gmra.mrb[0].mxu0 %v277
    %v487 = vpop.f32.mrb[0].mxu0
    %v488 = vadd.f32 %v451, %v487
    %v489 = vpop.f32.mrb[0].mxu0
    %v490 = vpop.f32.mrb[0].mxu0
    %v491 = vadd.f32 %v451, %v490
    %v492 = vpop.f32.mrb[0].mxu0
    %493 = vdwg.mxu0
    %494 = vmax.xlane.f32.xlu0 %v416
    %v495 = vpop.xlane.xlu0 %494
    %496 = vmax.xlane.f32.xlu0 %v419
    %v497 = vpop.xlane.xlu0 %496
    %498 = vmin.xlane.f32.xlu0 %v416
    %v499 = vpop.xlane.xlu0 %498
    %500 = vmin.xlane.f32.xlu0 %v419
    %v501 = vpop.xlane.xlu0 %500
    %v502 = vmul.f32 %v344, %v495
    %v503 = vmul.f32 %v347, %v497
    %v504 = vmul.f32 %v344, %v499
    %v505 = vmul.f32 %v347, %v501
    %v506 = vmax.f32 %v502, %v504
    %v507 = vmax.f32 %v503, %v505
    %v508 = vlaneseq
    %v509 = vshrl.u32 %v508, 7
    %v510 = vsub.s32 0, %v509
    %v511 = vrot.slane %v344, %v510
    %513 = vbcast.lane.b32.xlu0 %v511, 256
    %v514 = vpop.permute.xlu0 %513
    %s516 = sor.u32 256, 8
    %517 = vbcast.lane.b32.xlu0 %v511, %s516
    %v518 = vpop.permute.xlu0 %517
    %s520 = sor.u32 256, 16
    %521 = vbcast.lane.b32.xlu0 %v511, %s520
    %v522 = vpop.permute.xlu0 %521
    %s524 = sor.u32 256, 24
    %525 = vbcast.lane.b32.xlu0 %v511, %s524
    %v526 = vpop.permute.xlu0 %525
    %s528 = sor.u32 256, 32
    %529 = vbcast.lane.b32.xlu0 %v511, %s528
    %v530 = vpop.permute.xlu0 %529
    %s532 = sor.u32 256, 40
    %533 = vbcast.lane.b32.xlu0 %v511, %s532
    %v534 = vpop.permute.xlu0 %533
    %s536 = sor.u32 256, 48
    %537 = vbcast.lane.b32.xlu0 %v511, %s536
    %v538 = vpop.permute.xlu0 %537
    %s540 = sor.u32 256, 56
    %541 = vbcast.lane.b32.xlu0 %v511, %s540
    %v542 = vpop.permute.xlu0 %541
    %s544 = sor.u32 256, 64
    %545 = vbcast.lane.b32.xlu0 %v511, %s544
    %v546 = vpop.permute.xlu0 %545
    %s548 = sor.u32 256, 72
    %549 = vbcast.lane.b32.xlu0 %v511, %s548
    %v550 = vpop.permute.xlu0 %549
    %s552 = sor.u32 256, 80
    %553 = vbcast.lane.b32.xlu0 %v511, %s552
    %v554 = vpop.permute.xlu0 %553
    %s556 = sor.u32 256, 88
    %557 = vbcast.lane.b32.xlu0 %v511, %s556
    %v558 = vpop.permute.xlu0 %557
    %s560 = sor.u32 256, 96
    %561 = vbcast.lane.b32.xlu0 %v511, %s560
    %v562 = vpop.permute.xlu0 %561
    %s564 = sor.u32 256, 104
    %565 = vbcast.lane.b32.xlu0 %v511, %s564
    %v566 = vpop.permute.xlu0 %565
    %s568 = sor.u32 256, 112
    %569 = vbcast.lane.b32.xlu0 %v511, %s568
    %v570 = vpop.permute.xlu0 %569
    %s572 = sor.u32 256, 120
    %573 = vbcast.lane.b32.xlu0 %v511, %s572
    %v574 = vpop.permute.xlu0 %573
    %v575 = vlaneseq
    %v576 = vshrl.u32 %v575, 7
    %v577 = vsub.s32 1, %v576
    %v578 = vrot.slane %v344, %v577
    %580 = vbcast.lane.b32.xlu0 %v578, 256
    %v581 = vpop.permute.xlu0 %580
    %s583 = sor.u32 256, 8
    %584 = vbcast.lane.b32.xlu0 %v578, %s583
    %v585 = vpop.permute.xlu0 %584
    %s587 = sor.u32 256, 16
    %588 = vbcast.lane.b32.xlu0 %v578, %s587
    %v589 = vpop.permute.xlu0 %588
    %s591 = sor.u32 256, 24
    %592 = vbcast.lane.b32.xlu0 %v578, %s591
    %v593 = vpop.permute.xlu0 %592
    %s595 = sor.u32 256, 32
    %596 = vbcast.lane.b32.xlu0 %v578, %s595
    %v597 = vpop.permute.xlu0 %596
    %s599 = sor.u32 256, 40
    %600 = vbcast.lane.b32.xlu0 %v578, %s599
    %v601 = vpop.permute.xlu0 %600
    %s603 = sor.u32 256, 48
    %604 = vbcast.lane.b32.xlu0 %v578, %s603
    %v605 = vpop.permute.xlu0 %604
    %s607 = sor.u32 256, 56
    %608 = vbcast.lane.b32.xlu0 %v578, %s607
    %v609 = vpop.permute.xlu0 %608
    %s611 = sor.u32 256, 64
    %612 = vbcast.lane.b32.xlu0 %v578, %s611
    %v613 = vpop.permute.xlu0 %612
    %s615 = sor.u32 256, 72
    %616 = vbcast.lane.b32.xlu0 %v578, %s615
    %v617 = vpop.permute.xlu0 %616
    %s619 = sor.u32 256, 80
    %620 = vbcast.lane.b32.xlu0 %v578, %s619
    %v621 = vpop.permute.xlu0 %620
    %s623 = sor.u32 256, 88
    %624 = vbcast.lane.b32.xlu0 %v578, %s623
    %v625 = vpop.permute.xlu0 %624
    %s627 = sor.u32 256, 96
    %628 = vbcast.lane.b32.xlu0 %v578, %s627
    %v629 = vpop.permute.xlu0 %628
    %s631 = sor.u32 256, 104
    %632 = vbcast.lane.b32.xlu0 %v578, %s631
    %v633 = vpop.permute.xlu0 %632
    %s635 = sor.u32 256, 112
    %636 = vbcast.lane.b32.xlu0 %v578, %s635
    %v637 = vpop.permute.xlu0 %636
    %s639 = sor.u32 256, 120
    %640 = vbcast.lane.b32.xlu0 %v578, %s639
    %v641 = vpop.permute.xlu0 %640
    %v642 = vlaneseq
    %v643 = vshrl.u32 %v642, 7
    %v644 = vsub.s32 2, %v643
    %v645 = vrot.slane %v344, %v644
    %647 = vbcast.lane.b32.xlu0 %v645, 256
    %v648 = vpop.permute.xlu0 %647
    %s650 = sor.u32 256, 8
    %651 = vbcast.lane.b32.xlu0 %v645, %s650
    %v652 = vpop.permute.xlu0 %651
    %s654 = sor.u32 256, 16
    %655 = vbcast.lane.b32.xlu0 %v645, %s654
    %v656 = vpop.permute.xlu0 %655
    %s658 = sor.u32 256, 24
    %659 = vbcast.lane.b32.xlu0 %v645, %s658
    %v660 = vpop.permute.xlu0 %659
    %s662 = sor.u32 256, 32
    %663 = vbcast.lane.b32.xlu0 %v645, %s662
    %v664 = vpop.permute.xlu0 %663
    %s666 = sor.u32 256, 40
    %667 = vbcast.lane.b32.xlu0 %v645, %s666
    %v668 = vpop.permute.xlu0 %667
    %s670 = sor.u32 256, 48
    %671 = vbcast.lane.b32.xlu0 %v645, %s670
    %v672 = vpop.permute.xlu0 %671
    %s674 = sor.u32 256, 56
    %675 = vbcast.lane.b32.xlu0 %v645, %s674
    %v676 = vpop.permute.xlu0 %675
    %s678 = sor.u32 256, 64
    %679 = vbcast.lane.b32.xlu0 %v645, %s678
    %v680 = vpop.permute.xlu0 %679
    %s682 = sor.u32 256, 72
    %683 = vbcast.lane.b32.xlu0 %v645, %s682
    %v684 = vpop.permute.xlu0 %683
    %s686 = sor.u32 256, 80
    %687 = vbcast.lane.b32.xlu0 %v645, %s686
    %v688 = vpop.permute.xlu0 %687
    %s690 = sor.u32 256, 88
    %691 = vbcast.lane.b32.xlu0 %v645, %s690
    %v692 = vpop.permute.xlu0 %691
    %s694 = sor.u32 256, 96
    %695 = vbcast.lane.b32.xlu0 %v645, %s694
    %v696 = vpop.permute.xlu0 %695
    %s698 = sor.u32 256, 104
    %699 = vbcast.lane.b32.xlu0 %v645, %s698
    %v700 = vpop.permute.xlu0 %699
    %s702 = sor.u32 256, 112
    %703 = vbcast.lane.b32.xlu0 %v645, %s702
    %v704 = vpop.permute.xlu0 %703
    %s706 = sor.u32 256, 120
    %707 = vbcast.lane.b32.xlu0 %v645, %s706
    %v708 = vpop.permute.xlu0 %707
    %v709 = vlaneseq
    %v710 = vshrl.u32 %v709, 7
    %v711 = vsub.s32 3, %v710
    %v712 = vrot.slane %v344, %v711
    %714 = vbcast.lane.b32.xlu0 %v712, 256
    %v715 = vpop.permute.xlu0 %714
    %s717 = sor.u32 256, 8
    %718 = vbcast.lane.b32.xlu0 %v712, %s717
    %v719 = vpop.permute.xlu0 %718
    %s721 = sor.u32 256, 16
    %722 = vbcast.lane.b32.xlu0 %v712, %s721
    %v723 = vpop.permute.xlu0 %722
    %s725 = sor.u32 256, 24
    %726 = vbcast.lane.b32.xlu0 %v712, %s725
    %v727 = vpop.permute.xlu0 %726
    %s729 = sor.u32 256, 32
    %730 = vbcast.lane.b32.xlu0 %v712, %s729
    %v731 = vpop.permute.xlu0 %730
    %s733 = sor.u32 256, 40
    %734 = vbcast.lane.b32.xlu0 %v712, %s733
    %v735 = vpop.permute.xlu0 %734
    %s737 = sor.u32 256, 48
    %738 = vbcast.lane.b32.xlu0 %v712, %s737
    %v739 = vpop.permute.xlu0 %738
    %s741 = sor.u32 256, 56
    %742 = vbcast.lane.b32.xlu0 %v712, %s741
    %v743 = vpop.permute.xlu0 %742
    %s745 = sor.u32 256, 64
    %746 = vbcast.lane.b32.xlu0 %v712, %s745
    %v747 = vpop.permute.xlu0 %746
    %s749 = sor.u32 256, 72
    %750 = vbcast.lane.b32.xlu0 %v712, %s749
    %v751 = vpop.permute.xlu0 %750
    %s753 = sor.u32 256, 80
    %754 = vbcast.lane.b32.xlu0 %v712, %s753
    %v755 = vpop.permute.xlu0 %754
    %s757 = sor.u32 256, 88
    %758 = vbcast.lane.b32.xlu0 %v712, %s757
    %v759 = vpop.permute.xlu0 %758
    %s761 = sor.u32 256, 96
    %762 = vbcast.lane.b32.xlu0 %v712, %s761
    %v763 = vpop.permute.xlu0 %762
    %s765 = sor.u32 256, 104
    %766 = vbcast.lane.b32.xlu0 %v712, %s765
    %v767 = vpop.permute.xlu0 %766
    %s769 = sor.u32 256, 112
    %770 = vbcast.lane.b32.xlu0 %v712, %s769
    %v771 = vpop.permute.xlu0 %770
    %s773 = sor.u32 256, 120
    %774 = vbcast.lane.b32.xlu0 %v712, %s773
    %v775 = vpop.permute.xlu0 %774
    %v776 = vlaneseq
    %v777 = vshrl.u32 %v776, 7
    %v778 = vsub.s32 4, %v777
    %v779 = vrot.slane %v344, %v778
    %781 = vbcast.lane.b32.xlu0 %v779, 256
    %v782 = vpop.permute.xlu0 %781
    %s784 = sor.u32 256, 8
    %785 = vbcast.lane.b32.xlu0 %v779, %s784
    %v786 = vpop.permute.xlu0 %785
    %s788 = sor.u32 256, 16
    %789 = vbcast.lane.b32.xlu0 %v779, %s788
    %v790 = vpop.permute.xlu0 %789
    %s792 = sor.u32 256, 24
    %793 = vbcast.lane.b32.xlu0 %v779, %s792
    %v794 = vpop.permute.xlu0 %793
    %s796 = sor.u32 256, 32
    %797 = vbcast.lane.b32.xlu0 %v779, %s796
    %v798 = vpop.permute.xlu0 %797
    %s800 = sor.u32 256, 40
    %801 = vbcast.lane.b32.xlu0 %v779, %s800
    %v802 = vpop.permute.xlu0 %801
    %s804 = sor.u32 256, 48
    %805 = vbcast.lane.b32.xlu0 %v779, %s804
    %v806 = vpop.permute.xlu0 %805
    %s808 = sor.u32 256, 56
    %809 = vbcast.lane.b32.xlu0 %v779, %s808
    %v810 = vpop.permute.xlu0 %809
    %s812 = sor.u32 256, 64
    %813 = vbcast.lane.b32.xlu0 %v779, %s812
    %v814 = vpop.permute.xlu0 %813
    %s816 = sor.u32 256, 72
    %817 = vbcast.lane.b32.xlu0 %v779, %s816
    %v818 = vpop.permute.xlu0 %817
    %s820 = sor.u32 256, 80
    %821 = vbcast.lane.b32.xlu0 %v779, %s820
    %v822 = vpop.permute.xlu0 %821
    %s824 = sor.u32 256, 88
    %825 = vbcast.lane.b32.xlu0 %v779, %s824
    %v826 = vpop.permute.xlu0 %825
    %s828 = sor.u32 256, 96
    %829 = vbcast.lane.b32.xlu0 %v779, %s828
    %v830 = vpop.permute.xlu0 %829
    %s832 = sor.u32 256, 104
    %833 = vbcast.lane.b32.xlu0 %v779, %s832
    %v834 = vpop.permute.xlu0 %833
    %s836 = sor.u32 256, 112
    %837 = vbcast.lane.b32.xlu0 %v779, %s836
    %v838 = vpop.permute.xlu0 %837
    %s840 = sor.u32 256, 120
    %841 = vbcast.lane.b32.xlu0 %v779, %s840
    %v842 = vpop.permute.xlu0 %841
    %v843 = vlaneseq
    %v844 = vshrl.u32 %v843, 7
    %v845 = vsub.s32 5, %v844
    %v846 = vrot.slane %v344, %v845
    %848 = vbcast.lane.b32.xlu0 %v846, 256
    %v849 = vpop.permute.xlu0 %848
    %s851 = sor.u32 256, 8
    %852 = vbcast.lane.b32.xlu0 %v846, %s851
    %v853 = vpop.permute.xlu0 %852
    %s855 = sor.u32 256, 16
    %856 = vbcast.lane.b32.xlu0 %v846, %s855
    %v857 = vpop.permute.xlu0 %856
    %s859 = sor.u32 256, 24
    %860 = vbcast.lane.b32.xlu0 %v846, %s859
    %v861 = vpop.permute.xlu0 %860
    %s863 = sor.u32 256, 32
    %864 = vbcast.lane.b32.xlu0 %v846, %s863
    %v865 = vpop.permute.xlu0 %864
    %s867 = sor.u32 256, 40
    %868 = vbcast.lane.b32.xlu0 %v846, %s867
    %v869 = vpop.permute.xlu0 %868
    %s871 = sor.u32 256, 48
    %872 = vbcast.lane.b32.xlu0 %v846, %s871
    %v873 = vpop.permute.xlu0 %872
    %s875 = sor.u32 256, 56
    %876 = vbcast.lane.b32.xlu0 %v846, %s875
    %v877 = vpop.permute.xlu0 %876
    %s879 = sor.u32 256, 64
    %880 = vbcast.lane.b32.xlu0 %v846, %s879
    %v881 = vpop.permute.xlu0 %880
    %s883 = sor.u32 256, 72
    %884 = vbcast.lane.b32.xlu0 %v846, %s883
    %v885 = vpop.permute.xlu0 %884
    %s887 = sor.u32 256, 80
    %888 = vbcast.lane.b32.xlu0 %v846, %s887
    %v889 = vpop.permute.xlu0 %888
    %s891 = sor.u32 256, 88
    %892 = vbcast.lane.b32.xlu0 %v846, %s891
    %v893 = vpop.permute.xlu0 %892
    %s895 = sor.u32 256, 96
    %896 = vbcast.lane.b32.xlu0 %v846, %s895
    %v897 = vpop.permute.xlu0 %896
    %s899 = sor.u32 256, 104
    %900 = vbcast.lane.b32.xlu0 %v846, %s899
    %v901 = vpop.permute.xlu0 %900
    %s903 = sor.u32 256, 112
    %904 = vbcast.lane.b32.xlu0 %v846, %s903
    %v905 = vpop.permute.xlu0 %904
    %s907 = sor.u32 256, 120
    %908 = vbcast.lane.b32.xlu0 %v846, %s907
    %v909 = vpop.permute.xlu0 %908
    %v910 = vlaneseq
    %v911 = vshrl.u32 %v910, 7
    %v912 = vsub.s32 6, %v911
    %v913 = vrot.slane %v344, %v912
    %915 = vbcast.lane.b32.xlu0 %v913, 256
    %v916 = vpop.permute.xlu0 %915
    %s918 = sor.u32 256, 8
    %919 = vbcast.lane.b32.xlu0 %v913, %s918
    %v920 = vpop.permute.xlu0 %919
    %s922 = sor.u32 256, 16
    %923 = vbcast.lane.b32.xlu0 %v913, %s922
    %v924 = vpop.permute.xlu0 %923
    %s926 = sor.u32 256, 24
    %927 = vbcast.lane.b32.xlu0 %v913, %s926
    %v928 = vpop.permute.xlu0 %927
    %s930 = sor.u32 256, 32
    %931 = vbcast.lane.b32.xlu0 %v913, %s930
    %v932 = vpop.permute.xlu0 %931
    %s934 = sor.u32 256, 40
    %935 = vbcast.lane.b32.xlu0 %v913, %s934
    %v936 = vpop.permute.xlu0 %935
    %s938 = sor.u32 256, 48
    %939 = vbcast.lane.b32.xlu0 %v913, %s938
    %v940 = vpop.permute.xlu0 %939
    %s942 = sor.u32 256, 56
    %943 = vbcast.lane.b32.xlu0 %v913, %s942
    %v944 = vpop.permute.xlu0 %943
    %s946 = sor.u32 256, 64
    %947 = vbcast.lane.b32.xlu0 %v913, %s946
    %v948 = vpop.permute.xlu0 %947
    %s950 = sor.u32 256, 72
    %951 = vbcast.lane.b32.xlu0 %v913, %s950
    %v952 = vpop.permute.xlu0 %951
    %s954 = sor.u32 256, 80
    %955 = vbcast.lane.b32.xlu0 %v913, %s954
    %v956 = vpop.permute.xlu0 %955
    %s958 = sor.u32 256, 88
    %959 = vbcast.lane.b32.xlu0 %v913, %s958
    %v960 = vpop.permute.xlu0 %959
    %s962 = sor.u32 256, 96
    %963 = vbcast.lane.b32.xlu0 %v913, %s962
    %v964 = vpop.permute.xlu0 %963
    %s966 = sor.u32 256, 104
    %967 = vbcast.lane.b32.xlu0 %v913, %s966
    %v968 = vpop.permute.xlu0 %967
    %s970 = sor.u32 256, 112
    %971 = vbcast.lane.b32.xlu0 %v913, %s970
    %v972 = vpop.permute.xlu0 %971
    %s974 = sor.u32 256, 120
    %975 = vbcast.lane.b32.xlu0 %v913, %s974
    %v976 = vpop.permute.xlu0 %975
    %v977 = vlaneseq
    %v978 = vshrl.u32 %v977, 7
    %v979 = vsub.s32 7, %v978
    %v980 = vrot.slane %v344, %v979
    %982 = vbcast.lane.b32.xlu0 %v980, 256
    %v983 = vpop.permute.xlu0 %982
    %s985 = sor.u32 256, 8
    %986 = vbcast.lane.b32.xlu0 %v980, %s985
    %v987 = vpop.permute.xlu0 %986
    %s989 = sor.u32 256, 16
    %990 = vbcast.lane.b32.xlu0 %v980, %s989
    %v991 = vpop.permute.xlu0 %990
    %s993 = sor.u32 256, 24
    %994 = vbcast.lane.b32.xlu0 %v980, %s993
    %v995 = vpop.permute.xlu0 %994
    %s997 = sor.u32 256, 32
    %998 = vbcast.lane.b32.xlu0 %v980, %s997
    %v999 = vpop.permute.xlu0 %998
    %s1001 = sor.u32 256, 40
    %1002 = vbcast.lane.b32.xlu0 %v980, %s1001
    %v1003 = vpop.permute.xlu0 %1002
    %s1005 = sor.u32 256, 48
    %1006 = vbcast.lane.b32.xlu0 %v980, %s1005
    %v1007 = vpop.permute.xlu0 %1006
    %s1009 = sor.u32 256, 56
    %1010 = vbcast.lane.b32.xlu0 %v980, %s1009
    %v1011 = vpop.permute.xlu0 %1010
    %s1013 = sor.u32 256, 64
    %1014 = vbcast.lane.b32.xlu0 %v980, %s1013
    %v1015 = vpop.permute.xlu0 %1014
    %s1017 = sor.u32 256, 72
    %1018 = vbcast.lane.b32.xlu0 %v980, %s1017
    %v1019 = vpop.permute.xlu0 %1018
    %s1021 = sor.u32 256, 80
    %1022 = vbcast.lane.b32.xlu0 %v980, %s1021
    %v1023 = vpop.permute.xlu0 %1022
    %s1025 = sor.u32 256, 88
    %1026 = vbcast.lane.b32.xlu0 %v980, %s1025
    %v1027 = vpop.permute.xlu0 %1026
    %s1029 = sor.u32 256, 96
    %1030 = vbcast.lane.b32.xlu0 %v980, %s1029
    %v1031 = vpop.permute.xlu0 %1030
    %s1033 = sor.u32 256, 104
    %1034 = vbcast.lane.b32.xlu0 %v980, %s1033
    %v1035 = vpop.permute.xlu0 %1034
    %s1037 = sor.u32 256, 112
    %1038 = vbcast.lane.b32.xlu0 %v980, %s1037
    %v1039 = vpop.permute.xlu0 %1038
    %s1041 = sor.u32 256, 120
    %1042 = vbcast.lane.b32.xlu0 %v980, %s1041
    %v1043 = vpop.permute.xlu0 %1042
    %v1044 = vlaneseq
    %v1045 = vshrl.u32 %v1044, 7
    %v1046 = vsub.s32 0, %v1045
    %v1047 = vrot.slane %v347, %v1046
    %1049 = vbcast.lane.b32.xlu0 %v1047, 256
    %v1050 = vpop.permute.xlu0 %1049
    %s1052 = sor.u32 256, 8
    %1053 = vbcast.lane.b32.xlu0 %v1047, %s1052
    %v1054 = vpop.permute.xlu0 %1053
    %s1056 = sor.u32 256, 16
    %1057 = vbcast.lane.b32.xlu0 %v1047, %s1056
    %v1058 = vpop.permute.xlu0 %1057
    %s1060 = sor.u32 256, 24
    %1061 = vbcast.lane.b32.xlu0 %v1047, %s1060
    %v1062 = vpop.permute.xlu0 %1061
    %s1064 = sor.u32 256, 32
    %1065 = vbcast.lane.b32.xlu0 %v1047, %s1064
    %v1066 = vpop.permute.xlu0 %1065
    %s1068 = sor.u32 256, 40
    %1069 = vbcast.lane.b32.xlu0 %v1047, %s1068
    %v1070 = vpop.permute.xlu0 %1069
    %s1072 = sor.u32 256, 48
    %1073 = vbcast.lane.b32.xlu0 %v1047, %s1072
    %v1074 = vpop.permute.xlu0 %1073
    %s1076 = sor.u32 256, 56
    %1077 = vbcast.lane.b32.xlu0 %v1047, %s1076
    %v1078 = vpop.permute.xlu0 %1077
    %s1080 = sor.u32 256, 64
    %1081 = vbcast.lane.b32.xlu0 %v1047, %s1080
    %v1082 = vpop.permute.xlu0 %1081
    %s1084 = sor.u32 256, 72
    %1085 = vbcast.lane.b32.xlu0 %v1047, %s1084
    %v1086 = vpop.permute.xlu0 %1085
    %s1088 = sor.u32 256, 80
    %1089 = vbcast.lane.b32.xlu0 %v1047, %s1088
    %v1090 = vpop.permute.xlu0 %1089
    %s1092 = sor.u32 256, 88
    %1093 = vbcast.lane.b32.xlu0 %v1047, %s1092
    %v1094 = vpop.permute.xlu0 %1093
    %s1096 = sor.u32 256, 96
    %1097 = vbcast.lane.b32.xlu0 %v1047, %s1096
    %v1098 = vpop.permute.xlu0 %1097
    %s1100 = sor.u32 256, 104
    %1101 = vbcast.lane.b32.xlu0 %v1047, %s1100
    %v1102 = vpop.permute.xlu0 %1101
    %s1104 = sor.u32 256, 112
    %1105 = vbcast.lane.b32.xlu0 %v1047, %s1104
    %v1106 = vpop.permute.xlu0 %1105
    %s1108 = sor.u32 256, 120
    %1109 = vbcast.lane.b32.xlu0 %v1047, %s1108
    %v1110 = vpop.permute.xlu0 %1109
    %v1111 = vlaneseq
    %v1112 = vshrl.u32 %v1111, 7
    %v1113 = vsub.s32 1, %v1112
    %v1114 = vrot.slane %v347, %v1113
    %1116 = vbcast.lane.b32.xlu0 %v1114, 256
    %v1117 = vpop.permute.xlu0 %1116
    %s1119 = sor.u32 256, 8
    %1120 = vbcast.lane.b32.xlu0 %v1114, %s1119
    %v1121 = vpop.permute.xlu0 %1120
    %s1123 = sor.u32 256, 16
    %1124 = vbcast.lane.b32.xlu0 %v1114, %s1123
    %v1125 = vpop.permute.xlu0 %1124
    %s1127 = sor.u32 256, 24
    %1128 = vbcast.lane.b32.xlu0 %v1114, %s1127
    %v1129 = vpop.permute.xlu0 %1128
    %s1131 = sor.u32 256, 32
    %1132 = vbcast.lane.b32.xlu0 %v1114, %s1131
    %v1133 = vpop.permute.xlu0 %1132
    %s1135 = sor.u32 256, 40
    %1136 = vbcast.lane.b32.xlu0 %v1114, %s1135
    %v1137 = vpop.permute.xlu0 %1136
    %s1139 = sor.u32 256, 48
    %1140 = vbcast.lane.b32.xlu0 %v1114, %s1139
    %v1141 = vpop.permute.xlu0 %1140
    %s1143 = sor.u32 256, 56
    %1144 = vbcast.lane.b32.xlu0 %v1114, %s1143
    %v1145 = vpop.permute.xlu0 %1144
    %s1147 = sor.u32 256, 64
    %1148 = vbcast.lane.b32.xlu0 %v1114, %s1147
    %v1149 = vpop.permute.xlu0 %1148
    %s1151 = sor.u32 256, 72
    %1152 = vbcast.lane.b32.xlu0 %v1114, %s1151
    %v1153 = vpop.permute.xlu0 %1152
    %s1155 = sor.u32 256, 80
    %1156 = vbcast.lane.b32.xlu0 %v1114, %s1155
    %v1157 = vpop.permute.xlu0 %1156
    %s1159 = sor.u32 256, 88
    %1160 = vbcast.lane.b32.xlu0 %v1114, %s1159
    %v1161 = vpop.permute.xlu0 %1160
    %s1163 = sor.u32 256, 96
    %1164 = vbcast.lane.b32.xlu0 %v1114, %s1163
    %v1165 = vpop.permute.xlu0 %1164
    %s1167 = sor.u32 256, 104
    %1168 = vbcast.lane.b32.xlu0 %v1114, %s1167
    %v1169 = vpop.permute.xlu0 %1168
    %s1171 = sor.u32 256, 112
    %1172 = vbcast.lane.b32.xlu0 %v1114, %s1171
    %v1173 = vpop.permute.xlu0 %1172
    %s1175 = sor.u32 256, 120
    %1176 = vbcast.lane.b32.xlu0 %v1114, %s1175
    %v1177 = vpop.permute.xlu0 %1176
    %v1178 = vlaneseq
    %v1179 = vshrl.u32 %v1178, 7
    %v1180 = vsub.s32 2, %v1179
    %v1181 = vrot.slane %v347, %v1180
    %1183 = vbcast.lane.b32.xlu0 %v1181, 256
    %v1184 = vpop.permute.xlu0 %1183
    %s1186 = sor.u32 256, 8
    %1187 = vbcast.lane.b32.xlu0 %v1181, %s1186
    %v1188 = vpop.permute.xlu0 %1187
    %s1190 = sor.u32 256, 16
    %1191 = vbcast.lane.b32.xlu0 %v1181, %s1190
    %v1192 = vpop.permute.xlu0 %1191
    %s1194 = sor.u32 256, 24
    %1195 = vbcast.lane.b32.xlu0 %v1181, %s1194
    %v1196 = vpop.permute.xlu0 %1195
    %s1198 = sor.u32 256, 32
    %1199 = vbcast.lane.b32.xlu0 %v1181, %s1198
    %v1200 = vpop.permute.xlu0 %1199
    %s1202 = sor.u32 256, 40
    %1203 = vbcast.lane.b32.xlu0 %v1181, %s1202
    %v1204 = vpop.permute.xlu0 %1203
    %s1206 = sor.u32 256, 48
    %1207 = vbcast.lane.b32.xlu0 %v1181, %s1206
    %v1208 = vpop.permute.xlu0 %1207
    %s1210 = sor.u32 256, 56
    %1211 = vbcast.lane.b32.xlu0 %v1181, %s1210
    %v1212 = vpop.permute.xlu0 %1211
    %s1214 = sor.u32 256, 64
    %1215 = vbcast.lane.b32.xlu0 %v1181, %s1214
    %v1216 = vpop.permute.xlu0 %1215
    %s1218 = sor.u32 256, 72
    %1219 = vbcast.lane.b32.xlu0 %v1181, %s1218
    %v1220 = vpop.permute.xlu0 %1219
    %s1222 = sor.u32 256, 80
    %1223 = vbcast.lane.b32.xlu0 %v1181, %s1222
    %v1224 = vpop.permute.xlu0 %1223
    %s1226 = sor.u32 256, 88
    %1227 = vbcast.lane.b32.xlu0 %v1181, %s1226
    %v1228 = vpop.permute.xlu0 %1227
    %s1230 = sor.u32 256, 96
    %1231 = vbcast.lane.b32.xlu0 %v1181, %s1230
    %v1232 = vpop.permute.xlu0 %1231
    %s1234 = sor.u32 256, 104
    %1235 = vbcast.lane.b32.xlu0 %v1181, %s1234
    %v1236 = vpop.permute.xlu0 %1235
    %s1238 = sor.u32 256, 112
    %1239 = vbcast.lane.b32.xlu0 %v1181, %s1238
    %v1240 = vpop.permute.xlu0 %1239
    %s1242 = sor.u32 256, 120
    %1243 = vbcast.lane.b32.xlu0 %v1181, %s1242
    %v1244 = vpop.permute.xlu0 %1243
    %v1245 = vlaneseq
    %v1246 = vshrl.u32 %v1245, 7
    %v1247 = vsub.s32 3, %v1246
    %v1248 = vrot.slane %v347, %v1247
    %1250 = vbcast.lane.b32.xlu0 %v1248, 256
    %v1251 = vpop.permute.xlu0 %1250
    %s1253 = sor.u32 256, 8
    %1254 = vbcast.lane.b32.xlu0 %v1248, %s1253
    %v1255 = vpop.permute.xlu0 %1254
    %s1257 = sor.u32 256, 16
    %1258 = vbcast.lane.b32.xlu0 %v1248, %s1257
    %v1259 = vpop.permute.xlu0 %1258
    %s1261 = sor.u32 256, 24
    %1262 = vbcast.lane.b32.xlu0 %v1248, %s1261
    %v1263 = vpop.permute.xlu0 %1262
    %s1265 = sor.u32 256, 32
    %1266 = vbcast.lane.b32.xlu0 %v1248, %s1265
    %v1267 = vpop.permute.xlu0 %1266
    %s1269 = sor.u32 256, 40
    %1270 = vbcast.lane.b32.xlu0 %v1248, %s1269
    %v1271 = vpop.permute.xlu0 %1270
    %s1273 = sor.u32 256, 48
    %1274 = vbcast.lane.b32.xlu0 %v1248, %s1273
    %v1275 = vpop.permute.xlu0 %1274
    %s1277 = sor.u32 256, 56
    %1278 = vbcast.lane.b32.xlu0 %v1248, %s1277
    %v1279 = vpop.permute.xlu0 %1278
    %s1281 = sor.u32 256, 64
    %1282 = vbcast.lane.b32.xlu0 %v1248, %s1281
    %v1283 = vpop.permute.xlu0 %1282
    %s1285 = sor.u32 256, 72
    %1286 = vbcast.lane.b32.xlu0 %v1248, %s1285
    %v1287 = vpop.permute.xlu0 %1286
    %s1289 = sor.u32 256, 80
    %1290 = vbcast.lane.b32.xlu0 %v1248, %s1289
    %v1291 = vpop.permute.xlu0 %1290
    %s1293 = sor.u32 256, 88
    %1294 = vbcast.lane.b32.xlu0 %v1248, %s1293
    %v1295 = vpop.permute.xlu0 %1294
    %s1297 = sor.u32 256, 96
    %1298 = vbcast.lane.b32.xlu0 %v1248, %s1297
    %v1299 = vpop.permute.xlu0 %1298
    %s1301 = sor.u32 256, 104
    %1302 = vbcast.lane.b32.xlu0 %v1248, %s1301
    %v1303 = vpop.permute.xlu0 %1302
    %s1305 = sor.u32 256, 112
    %1306 = vbcast.lane.b32.xlu0 %v1248, %s1305
    %v1307 = vpop.permute.xlu0 %1306
    %s1309 = sor.u32 256, 120
    %1310 = vbcast.lane.b32.xlu0 %v1248, %s1309
    %v1311 = vpop.permute.xlu0 %1310
    %v1312 = vlaneseq
    %v1313 = vshrl.u32 %v1312, 7
    %v1314 = vsub.s32 4, %v1313
    %v1315 = vrot.slane %v347, %v1314
    %1317 = vbcast.lane.b32.xlu0 %v1315, 256
    %v1318 = vpop.permute.xlu0 %1317
    %s1320 = sor.u32 256, 8
    %1321 = vbcast.lane.b32.xlu0 %v1315, %s1320
    %v1322 = vpop.permute.xlu0 %1321
    %s1324 = sor.u32 256, 16
    %1325 = vbcast.lane.b32.xlu0 %v1315, %s1324
    %v1326 = vpop.permute.xlu0 %1325
    %s1328 = sor.u32 256, 24
    %1329 = vbcast.lane.b32.xlu0 %v1315, %s1328
    %v1330 = vpop.permute.xlu0 %1329
    %s1332 = sor.u32 256, 32
    %1333 = vbcast.lane.b32.xlu0 %v1315, %s1332
    %v1334 = vpop.permute.xlu0 %1333
    %s1336 = sor.u32 256, 40
    %1337 = vbcast.lane.b32.xlu0 %v1315, %s1336
    %v1338 = vpop.permute.xlu0 %1337
    %s1340 = sor.u32 256, 48
    %1341 = vbcast.lane.b32.xlu0 %v1315, %s1340
    %v1342 = vpop.permute.xlu0 %1341
    %s1344 = sor.u32 256, 56
    %1345 = vbcast.lane.b32.xlu0 %v1315, %s1344
    %v1346 = vpop.permute.xlu0 %1345
    %s1348 = sor.u32 256, 64
    %1349 = vbcast.lane.b32.xlu0 %v1315, %s1348
    %v1350 = vpop.permute.xlu0 %1349
    %s1352 = sor.u32 256, 72
    %1353 = vbcast.lane.b32.xlu0 %v1315, %s1352
    %v1354 = vpop.permute.xlu0 %1353
    %s1356 = sor.u32 256, 80
    %1357 = vbcast.lane.b32.xlu0 %v1315, %s1356
    %v1358 = vpop.permute.xlu0 %1357
    %s1360 = sor.u32 256, 88
    %1361 = vbcast.lane.b32.xlu0 %v1315, %s1360
    %v1362 = vpop.permute.xlu0 %1361
    %s1364 = sor.u32 256, 96
    %1365 = vbcast.lane.b32.xlu0 %v1315, %s1364
    %v1366 = vpop.permute.xlu0 %1365
    %s1368 = sor.u32 256, 104
    %1369 = vbcast.lane.b32.xlu0 %v1315, %s1368
    %v1370 = vpop.permute.xlu0 %1369
    %s1372 = sor.u32 256, 112
    %1373 = vbcast.lane.b32.xlu0 %v1315, %s1372
    %v1374 = vpop.permute.xlu0 %1373
    %s1376 = sor.u32 256, 120
    %1377 = vbcast.lane.b32.xlu0 %v1315, %s1376
    %v1378 = vpop.permute.xlu0 %1377
    %v1379 = vlaneseq
    %v1380 = vshrl.u32 %v1379, 7
    %v1381 = vsub.s32 5, %v1380
    %v1382 = vrot.slane %v347, %v1381
    %1384 = vbcast.lane.b32.xlu0 %v1382, 256
    %v1385 = vpop.permute.xlu0 %1384
    %s1387 = sor.u32 256, 8
    %1388 = vbcast.lane.b32.xlu0 %v1382, %s1387
    %v1389 = vpop.permute.xlu0 %1388
    %s1391 = sor.u32 256, 16
    %1392 = vbcast.lane.b32.xlu0 %v1382, %s1391
    %v1393 = vpop.permute.xlu0 %1392
    %s1395 = sor.u32 256, 24
    %1396 = vbcast.lane.b32.xlu0 %v1382, %s1395
    %v1397 = vpop.permute.xlu0 %1396
    %s1399 = sor.u32 256, 32
    %1400 = vbcast.lane.b32.xlu0 %v1382, %s1399
    %v1401 = vpop.permute.xlu0 %1400
    %s1403 = sor.u32 256, 40
    %1404 = vbcast.lane.b32.xlu0 %v1382, %s1403
    %v1405 = vpop.permute.xlu0 %1404
    %s1407 = sor.u32 256, 48
    %1408 = vbcast.lane.b32.xlu0 %v1382, %s1407
    %v1409 = vpop.permute.xlu0 %1408
    %s1411 = sor.u32 256, 56
    %1412 = vbcast.lane.b32.xlu0 %v1382, %s1411
    %v1413 = vpop.permute.xlu0 %1412
    %s1415 = sor.u32 256, 64
    %1416 = vbcast.lane.b32.xlu0 %v1382, %s1415
    %v1417 = vpop.permute.xlu0 %1416
    %s1419 = sor.u32 256, 72
    %1420 = vbcast.lane.b32.xlu0 %v1382, %s1419
    %v1421 = vpop.permute.xlu0 %1420
    %s1423 = sor.u32 256, 80
    %1424 = vbcast.lane.b32.xlu0 %v1382, %s1423
    %v1425 = vpop.permute.xlu0 %1424
    %s1427 = sor.u32 256, 88
    %1428 = vbcast.lane.b32.xlu0 %v1382, %s1427
    %v1429 = vpop.permute.xlu0 %1428
    %s1431 = sor.u32 256, 96
    %1432 = vbcast.lane.b32.xlu0 %v1382, %s1431
    %v1433 = vpop.permute.xlu0 %1432
    %s1435 = sor.u32 256, 104
    %1436 = vbcast.lane.b32.xlu0 %v1382, %s1435
    %v1437 = vpop.permute.xlu0 %1436
    %s1439 = sor.u32 256, 112
    %1440 = vbcast.lane.b32.xlu0 %v1382, %s1439
    %v1441 = vpop.permute.xlu0 %1440
    %s1443 = sor.u32 256, 120
    %1444 = vbcast.lane.b32.xlu0 %v1382, %s1443
    %v1445 = vpop.permute.xlu0 %1444
    %v1446 = vlaneseq
    %v1447 = vshrl.u32 %v1446, 7
    %v1448 = vsub.s32 6, %v1447
    %v1449 = vrot.slane %v347, %v1448
    %1451 = vbcast.lane.b32.xlu0 %v1449, 256
    %v1452 = vpop.permute.xlu0 %1451
    %s1454 = sor.u32 256, 8
    %1455 = vbcast.lane.b32.xlu0 %v1449, %s1454
    %v1456 = vpop.permute.xlu0 %1455
    %s1458 = sor.u32 256, 16
    %1459 = vbcast.lane.b32.xlu0 %v1449, %s1458
    %v1460 = vpop.permute.xlu0 %1459
    %s1462 = sor.u32 256, 24
    %1463 = vbcast.lane.b32.xlu0 %v1449, %s1462
    %v1464 = vpop.permute.xlu0 %1463
    %s1466 = sor.u32 256, 32
    %1467 = vbcast.lane.b32.xlu0 %v1449, %s1466
    %v1468 = vpop.permute.xlu0 %1467
    %s1470 = sor.u32 256, 40
    %1471 = vbcast.lane.b32.xlu0 %v1449, %s1470
    %v1472 = vpop.permute.xlu0 %1471
    %s1474 = sor.u32 256, 48
    %1475 = vbcast.lane.b32.xlu0 %v1449, %s1474
    %v1476 = vpop.permute.xlu0 %1475
    %s1478 = sor.u32 256, 56
    %1479 = vbcast.lane.b32.xlu0 %v1449, %s1478
    %v1480 = vpop.permute.xlu0 %1479
    %s1482 = sor.u32 256, 64
    %1483 = vbcast.lane.b32.xlu0 %v1449, %s1482
    %v1484 = vpop.permute.xlu0 %1483
    %s1486 = sor.u32 256, 72
    %1487 = vbcast.lane.b32.xlu0 %v1449, %s1486
    %v1488 = vpop.permute.xlu0 %1487
    %s1490 = sor.u32 256, 80
    %1491 = vbcast.lane.b32.xlu0 %v1449, %s1490
    %v1492 = vpop.permute.xlu0 %1491
    %s1494 = sor.u32 256, 88
    %1495 = vbcast.lane.b32.xlu0 %v1449, %s1494
    %v1496 = vpop.permute.xlu0 %1495
    %s1498 = sor.u32 256, 96
    %1499 = vbcast.lane.b32.xlu0 %v1449, %s1498
    %v1500 = vpop.permute.xlu0 %1499
    %s1502 = sor.u32 256, 104
    %1503 = vbcast.lane.b32.xlu0 %v1449, %s1502
    %v1504 = vpop.permute.xlu0 %1503
    %s1506 = sor.u32 256, 112
    %1507 = vbcast.lane.b32.xlu0 %v1449, %s1506
    %v1508 = vpop.permute.xlu0 %1507
    %s1510 = sor.u32 256, 120
    %1511 = vbcast.lane.b32.xlu0 %v1449, %s1510
    %v1512 = vpop.permute.xlu0 %1511
    %v1513 = vlaneseq
    %v1514 = vshrl.u32 %v1513, 7
    %v1515 = vsub.s32 7, %v1514
    %v1516 = vrot.slane %v347, %v1515
    %1518 = vbcast.lane.b32.xlu0 %v1516, 256
    %v1519 = vpop.permute.xlu0 %1518
    %s1521 = sor.u32 256, 8
    %1522 = vbcast.lane.b32.xlu0 %v1516, %s1521
    %v1523 = vpop.permute.xlu0 %1522
    %s1525 = sor.u32 256, 16
    %1526 = vbcast.lane.b32.xlu0 %v1516, %s1525
    %v1527 = vpop.permute.xlu0 %1526
    %s1529 = sor.u32 256, 24
    %1530 = vbcast.lane.b32.xlu0 %v1516, %s1529
    %v1531 = vpop.permute.xlu0 %1530
    %s1533 = sor.u32 256, 32
    %1534 = vbcast.lane.b32.xlu0 %v1516, %s1533
    %v1535 = vpop.permute.xlu0 %1534
    %s1537 = sor.u32 256, 40
    %1538 = vbcast.lane.b32.xlu0 %v1516, %s1537
    %v1539 = vpop.permute.xlu0 %1538
    %s1541 = sor.u32 256, 48
    %1542 = vbcast.lane.b32.xlu0 %v1516, %s1541
    %v1543 = vpop.permute.xlu0 %1542
    %s1545 = sor.u32 256, 56
    %1546 = vbcast.lane.b32.xlu0 %v1516, %s1545
    %v1547 = vpop.permute.xlu0 %1546
    %s1549 = sor.u32 256, 64
    %1550 = vbcast.lane.b32.xlu0 %v1516, %s1549
    %v1551 = vpop.permute.xlu0 %1550
    %s1553 = sor.u32 256, 72
    %1554 = vbcast.lane.b32.xlu0 %v1516, %s1553
    %v1555 = vpop.permute.xlu0 %1554
    %s1557 = sor.u32 256, 80
    %1558 = vbcast.lane.b32.xlu0 %v1516, %s1557
    %v1559 = vpop.permute.xlu0 %1558
    %s1561 = sor.u32 256, 88
    %1562 = vbcast.lane.b32.xlu0 %v1516, %s1561
    %v1563 = vpop.permute.xlu0 %1562
    %s1565 = sor.u32 256, 96
    %1566 = vbcast.lane.b32.xlu0 %v1516, %s1565
    %v1567 = vpop.permute.xlu0 %1566
    %s1569 = sor.u32 256, 104
    %1570 = vbcast.lane.b32.xlu0 %v1516, %s1569
    %v1571 = vpop.permute.xlu0 %1570
    %s1573 = sor.u32 256, 112
    %1574 = vbcast.lane.b32.xlu0 %v1516, %s1573
    %v1575 = vpop.permute.xlu0 %1574
    %s1577 = sor.u32 256, 120
    %1578 = vbcast.lane.b32.xlu0 %v1516, %s1577
    %v1579 = vpop.permute.xlu0 %1578
    %v1582 = vcombine.high %v416, %v416
    %v1584 = vunpack.c.l.s4 1966171168
    %v1585 = vunpack.c.0.s8 %v1584
    %v1586 = vlaneseq
    %v1587 = vshrl.u32 %v1586, 7
    %v1588 = vsub.s32 %v1585, %v1587
    %v1589 = vrot.slane %v416, %v1588
    %v1591 = vunpack.c.l.s4 1966171168
    %v1592 = vunpack.c.0.s8 %v1591
    %v1593 = vlaneseq
    %v1594 = vshrl.u32 %v1593, 7
    %v1595 = vsub.s32 %v1592, %v1594
    %v1596 = vrot.slane %v1582, %v1595
    %v1597 = vcombine.high %v1589, %v1589
    %v1598 = vcombine.high %v1596, %v1596
    %v1600 = vunpack.c.l.s4 1966171168
    %v1601 = vunpack.c.0.s8 %v1600
    %v1602 = vlaneseq
    %v1603 = vshrl.u32 %v1602, 7
    %v1604 = vsub.s32 %v1601, %v1603
    %v1605 = vrot.slane %v1589, %v1604
    %v1607 = vunpack.c.l.s4 1966171168
    %v1608 = vunpack.c.0.s8 %v1607
    %v1609 = vlaneseq
    %v1610 = vshrl.u32 %v1609, 7
    %v1611 = vsub.s32 %v1608, %v1610
    %v1612 = vrot.slane %v1596, %v1611
    %v1614 = vunpack.c.l.s4 1966171168
    %v1615 = vunpack.c.0.s8 %v1614
    %v1616 = vlaneseq
    %v1617 = vshrl.u32 %v1616, 7
    %v1618 = vsub.s32 %v1615, %v1617
    %v1619 = vrot.slane %v1597, %v1618
    %v1621 = vunpack.c.l.s4 1966171168
    %v1622 = vunpack.c.0.s8 %v1621
    %v1623 = vlaneseq
    %v1624 = vshrl.u32 %v1623, 7
    %v1625 = vsub.s32 %v1622, %v1624
    %v1626 = vrot.slane %v1598, %v1625
    %v1627 = vcombine.high %v1605, %v1605
    %v1628 = vcombine.high %v1612, %v1612
    %v1629 = vcombine.high %v1619, %v1619
    %v1630 = vcombine.high %v1626, %v1626
    %v1631 = vcombine.high %v419, %v419
    %v1633 = vunpack.c.l.s4 1966171168
    %v1634 = vunpack.c.0.s8 %v1633
    %v1635 = vlaneseq
    %v1636 = vshrl.u32 %v1635, 7
    %v1637 = vsub.s32 %v1634, %v1636
    %v1638 = vrot.slane %v419, %v1637
    %v1640 = vunpack.c.l.s4 1966171168
    %v1641 = vunpack.c.0.s8 %v1640
    %v1642 = vlaneseq
    %v1643 = vshrl.u32 %v1642, 7
    %v1644 = vsub.s32 %v1641, %v1643
    %v1645 = vrot.slane %v1631, %v1644
    %v1646 = vcombine.high %v1638, %v1638
    %v1647 = vcombine.high %v1645, %v1645
    %v1649 = vunpack.c.l.s4 1966171168
    %v1650 = vunpack.c.0.s8 %v1649
    %v1651 = vlaneseq
    %v1652 = vshrl.u32 %v1651, 7
    %v1653 = vsub.s32 %v1650, %v1652
    %v1654 = vrot.slane %v1638, %v1653
    %v1656 = vunpack.c.l.s4 1966171168
    %v1657 = vunpack.c.0.s8 %v1656
    %v1658 = vlaneseq
    %v1659 = vshrl.u32 %v1658, 7
    %v1660 = vsub.s32 %v1657, %v1659
    %v1661 = vrot.slane %v1645, %v1660
    %v1663 = vunpack.c.l.s4 1966171168
    %v1664 = vunpack.c.0.s8 %v1663
    %v1665 = vlaneseq
    %v1666 = vshrl.u32 %v1665, 7
    %v1667 = vsub.s32 %v1664, %v1666
    %v1668 = vrot.slane %v1646, %v1667
    %v1670 = vunpack.c.l.s4 1966171168
    %v1671 = vunpack.c.0.s8 %v1670
    %v1672 = vlaneseq
    %v1673 = vshrl.u32 %v1672, 7
    %v1674 = vsub.s32 %v1671, %v1673
    %v1675 = vrot.slane %v1647, %v1674
    %v1676 = vcombine.high %v1654, %v1654
    %v1677 = vcombine.high %v1661, %v1661
    %v1678 = vcombine.high %v1668, %v1668
    %v1679 = vcombine.high %v1675, %v1675
    %v1680 = vlaneseq
    %v1681 = vshrl.u32 %v1680, 7
    %v1682 = vsub.s32 0, %v1681
    %v1683 = vrot.slane %v1605, %v1682
    %v1684 = vlaneseq
    %v1685 = vshrl.u32 %v1684, 7
    %v1686 = vsub.s32 0, %v1685
    %v1687 = vrot.slane %v1619, %v1686
    %v1688 = vlaneseq
    %v1689 = vshrl.u32 %v1688, 7
    %v1690 = vsub.s32 0, %v1689
    %v1691 = vrot.slane %v1627, %v1690
    %v1692 = vlaneseq
    %v1693 = vshrl.u32 %v1692, 7
    %v1694 = vsub.s32 0, %v1693
    %v1695 = vrot.slane %v1629, %v1694
    %v1696 = vlaneseq
    %v1697 = vshrl.u32 %v1696, 7
    %v1698 = vsub.s32 0, %v1697
    %v1699 = vrot.slane %v1612, %v1698
    %v1700 = vlaneseq
    %v1701 = vshrl.u32 %v1700, 7
    %v1702 = vsub.s32 0, %v1701
    %v1703 = vrot.slane %v1626, %v1702
    %v1704 = vlaneseq
    %v1705 = vshrl.u32 %v1704, 7
    %v1706 = vsub.s32 0, %v1705
    %v1707 = vrot.slane %v1628, %v1706
    %v1708 = vlaneseq
    %v1709 = vshrl.u32 %v1708, 7
    %v1710 = vsub.s32 0, %v1709
    %v1711 = vrot.slane %v1630, %v1710
    %v1712 = vlaneseq
    %v1713 = vshrl.u32 %v1712, 7
    %v1714 = vsub.s32 0, %v1713
    %v1715 = vrot.slane %v1654, %v1714
    %v1716 = vlaneseq
    %v1717 = vshrl.u32 %v1716, 7
    %v1718 = vsub.s32 0, %v1717
    %v1719 = vrot.slane %v1668, %v1718
    %v1720 = vlaneseq
    %v1721 = vshrl.u32 %v1720, 7
    %v1722 = vsub.s32 0, %v1721
    %v1723 = vrot.slane %v1676, %v1722
    %v1724 = vlaneseq
    %v1725 = vshrl.u32 %v1724, 7
    %v1726 = vsub.s32 0, %v1725
    %v1727 = vrot.slane %v1678, %v1726
    %v1728 = vlaneseq
    %v1729 = vshrl.u32 %v1728, 7
    %v1730 = vsub.s32 0, %v1729
    %v1731 = vrot.slane %v1661, %v1730
    %v1732 = vlaneseq
    %v1733 = vshrl.u32 %v1732, 7
    %v1734 = vsub.s32 0, %v1733
    %v1735 = vrot.slane %v1675, %v1734
    %v1736 = vlaneseq
    %v1737 = vshrl.u32 %v1736, 7
    %v1738 = vsub.s32 0, %v1737
    %v1739 = vrot.slane %v1677, %v1738
    %v1740 = vlaneseq
    %v1741 = vshrl.u32 %v1740, 7
    %v1742 = vsub.s32 0, %v1741
    %v1743 = vrot.slane %v1679, %v1742
    %v1760 = vmul.f32 %v514, %v1683
    %v1761 = vmul.f32 %v518, %v1683
    %v1762 = vmul.f32 %v522, %v1683
    %v1763 = vmul.f32 %v526, %v1683
    %v1764 = vmul.f32 %v530, %v1683
    %v1765 = vmul.f32 %v534, %v1683
    %v1766 = vmul.f32 %v538, %v1683
    %v1767 = vmul.f32 %v542, %v1683
    %v1768 = vmul.f32 %v546, %v1683
    %v1769 = vmul.f32 %v550, %v1683
    %v1770 = vmul.f32 %v554, %v1683
    %v1771 = vmul.f32 %v558, %v1683
    %v1772 = vmul.f32 %v562, %v1683
    %v1773 = vmul.f32 %v566, %v1683
    %v1774 = vmul.f32 %v570, %v1683
    %v1775 = vmul.f32 %v574, %v1683
    %v1776 = vmul.f32 %v581, %v1687
    %v1777 = vmul.f32 %v585, %v1687
    %v1778 = vmul.f32 %v589, %v1687
    %v1779 = vmul.f32 %v593, %v1687
    %v1780 = vmul.f32 %v597, %v1687
    %v1781 = vmul.f32 %v601, %v1687
    %v1782 = vmul.f32 %v605, %v1687
    %v1783 = vmul.f32 %v609, %v1687
    %v1784 = vmul.f32 %v613, %v1687
    %v1785 = vmul.f32 %v617, %v1687
    %v1786 = vmul.f32 %v621, %v1687
    %v1787 = vmul.f32 %v625, %v1687
    %v1788 = vmul.f32 %v629, %v1687
    %v1789 = vmul.f32 %v633, %v1687
    %v1790 = vmul.f32 %v637, %v1687
    %v1791 = vmul.f32 %v641, %v1687
    %v1792 = vmul.f32 %v648, %v1691
    %v1793 = vmul.f32 %v652, %v1691
    %v1794 = vmul.f32 %v656, %v1691
    %v1795 = vmul.f32 %v660, %v1691
    %v1796 = vmul.f32 %v664, %v1691
    %v1797 = vmul.f32 %v668, %v1691
    %v1798 = vmul.f32 %v672, %v1691
    %v1799 = vmul.f32 %v676, %v1691
    %v1800 = vmul.f32 %v680, %v1691
    %v1801 = vmul.f32 %v684, %v1691
    %v1802 = vmul.f32 %v688, %v1691
    %v1803 = vmul.f32 %v692, %v1691
    %v1804 = vmul.f32 %v696, %v1691
    %v1805 = vmul.f32 %v700, %v1691
    %v1806 = vmul.f32 %v704, %v1691
    %v1807 = vmul.f32 %v708, %v1691
    %v1808 = vmul.f32 %v715, %v1695
    %v1809 = vmul.f32 %v719, %v1695
    %v1810 = vmul.f32 %v723, %v1695
    %v1811 = vmul.f32 %v727, %v1695
    %v1812 = vmul.f32 %v731, %v1695
    %v1813 = vmul.f32 %v735, %v1695
    %v1814 = vmul.f32 %v739, %v1695
    %v1815 = vmul.f32 %v743, %v1695
    %v1816 = vmul.f32 %v747, %v1695
    %v1817 = vmul.f32 %v751, %v1695
    %v1818 = vmul.f32 %v755, %v1695
    %v1819 = vmul.f32 %v759, %v1695
    %v1820 = vmul.f32 %v763, %v1695
    %v1821 = vmul.f32 %v767, %v1695
    %v1822 = vmul.f32 %v771, %v1695
    %v1823 = vmul.f32 %v775, %v1695
    %v1824 = vmul.f32 %v782, %v1699
    %v1825 = vmul.f32 %v786, %v1699
    %v1826 = vmul.f32 %v790, %v1699
    %v1827 = vmul.f32 %v794, %v1699
    %v1828 = vmul.f32 %v798, %v1699
    %v1829 = vmul.f32 %v802, %v1699
    %v1830 = vmul.f32 %v806, %v1699
    %v1831 = vmul.f32 %v810, %v1699
    %v1832 = vmul.f32 %v814, %v1699
    %v1833 = vmul.f32 %v818, %v1699
    %v1834 = vmul.f32 %v822, %v1699
    %v1835 = vmul.f32 %v826, %v1699
    %v1836 = vmul.f32 %v830, %v1699
    %v1837 = vmul.f32 %v834, %v1699
    %v1838 = vmul.f32 %v838, %v1699
    %v1839 = vmul.f32 %v842, %v1699
    %v1840 = vmul.f32 %v849, %v1703
    %v1841 = vmul.f32 %v853, %v1703
    %v1842 = vmul.f32 %v857, %v1703
    %v1843 = vmul.f32 %v861, %v1703
    %v1844 = vmul.f32 %v865, %v1703
    %v1845 = vmul.f32 %v869, %v1703
    %v1846 = vmul.f32 %v873, %v1703
    %v1847 = vmul.f32 %v877, %v1703
    %v1848 = vmul.f32 %v881, %v1703
    %v1849 = vmul.f32 %v885, %v1703
    %v1850 = vmul.f32 %v889, %v1703
    %v1851 = vmul.f32 %v893, %v1703
    %v1852 = vmul.f32 %v897, %v1703
    %v1853 = vmul.f32 %v901, %v1703
    %v1854 = vmul.f32 %v905, %v1703
    %v1855 = vmul.f32 %v909, %v1703
    %v1856 = vmul.f32 %v916, %v1707
    %v1857 = vmul.f32 %v920, %v1707
    %v1858 = vmul.f32 %v924, %v1707
    %v1859 = vmul.f32 %v928, %v1707
    %v1860 = vmul.f32 %v932, %v1707
    %v1861 = vmul.f32 %v936, %v1707
    %v1862 = vmul.f32 %v940, %v1707
    %v1863 = vmul.f32 %v944, %v1707
    %v1864 = vmul.f32 %v948, %v1707
    %v1865 = vmul.f32 %v952, %v1707
    %v1866 = vmul.f32 %v956, %v1707
    %v1867 = vmul.f32 %v960, %v1707
    %v1868 = vmul.f32 %v964, %v1707
    %v1869 = vmul.f32 %v968, %v1707
    %v1870 = vmul.f32 %v972, %v1707
    %v1871 = vmul.f32 %v976, %v1707
    %v1872 = vmul.f32 %v983, %v1711
    %v1873 = vmul.f32 %v987, %v1711
    %v1874 = vmul.f32 %v991, %v1711
    %v1875 = vmul.f32 %v995, %v1711
    %v1876 = vmul.f32 %v999, %v1711
    %v1877 = vmul.f32 %v1003, %v1711
    %v1878 = vmul.f32 %v1007, %v1711
    %v1879 = vmul.f32 %v1011, %v1711
    %v1880 = vmul.f32 %v1015, %v1711
    %v1881 = vmul.f32 %v1019, %v1711
    %v1882 = vmul.f32 %v1023, %v1711
    %v1883 = vmul.f32 %v1027, %v1711
    %v1884 = vmul.f32 %v1031, %v1711
    %v1885 = vmul.f32 %v1035, %v1711
    %v1886 = vmul.f32 %v1039, %v1711
    %v1887 = vmul.f32 %v1043, %v1711
    %v1888 = vmul.f32 %v1050, %v1715
    %v1889 = vmul.f32 %v1054, %v1715
    %v1890 = vmul.f32 %v1058, %v1715
    %v1891 = vmul.f32 %v1062, %v1715
    %v1892 = vmul.f32 %v1066, %v1715
    %v1893 = vmul.f32 %v1070, %v1715
    %v1894 = vmul.f32 %v1074, %v1715
    %v1895 = vmul.f32 %v1078, %v1715
    %v1896 = vmul.f32 %v1082, %v1715
    %v1897 = vmul.f32 %v1086, %v1715
    %v1898 = vmul.f32 %v1090, %v1715
    %v1899 = vmul.f32 %v1094, %v1715
    %v1900 = vmul.f32 %v1098, %v1715
    %v1901 = vmul.f32 %v1102, %v1715
    %v1902 = vmul.f32 %v1106, %v1715
    %v1903 = vmul.f32 %v1110, %v1715
    %v1904 = vmul.f32 %v1117, %v1719
    %v1905 = vmul.f32 %v1121, %v1719
    %v1906 = vmul.f32 %v1125, %v1719
    %v1907 = vmul.f32 %v1129, %v1719
    %v1908 = vmul.f32 %v1133, %v1719
    %v1909 = vmul.f32 %v1137, %v1719
    %v1910 = vmul.f32 %v1141, %v1719
    %v1911 = vmul.f32 %v1145, %v1719
    %v1912 = vmul.f32 %v1149, %v1719
    %v1913 = vmul.f32 %v1153, %v1719
    %v1914 = vmul.f32 %v1157, %v1719
    %v1915 = vmul.f32 %v1161, %v1719
    %v1916 = vmul.f32 %v1165, %v1719
    %v1917 = vmul.f32 %v1169, %v1719
    %v1918 = vmul.f32 %v1173, %v1719
    %v1919 = vmul.f32 %v1177, %v1719
    %v1920 = vmul.f32 %v1184, %v1723
    %v1921 = vmul.f32 %v1188, %v1723
    %v1922 = vmul.f32 %v1192, %v1723
    %v1923 = vmul.f32 %v1196, %v1723
    %v1924 = vmul.f32 %v1200, %v1723
    %v1925 = vmul.f32 %v1204, %v1723
    %v1926 = vmul.f32 %v1208, %v1723
    %v1927 = vmul.f32 %v1212, %v1723
    %v1928 = vmul.f32 %v1216, %v1723
    %v1929 = vmul.f32 %v1220, %v1723
    %v1930 = vmul.f32 %v1224, %v1723
    %v1931 = vmul.f32 %v1228, %v1723
    %v1932 = vmul.f32 %v1232, %v1723
    %v1933 = vmul.f32 %v1236, %v1723
    %v1934 = vmul.f32 %v1240, %v1723
    %v1935 = vmul.f32 %v1244, %v1723
    %v1936 = vmul.f32 %v1251, %v1727
    %v1937 = vmul.f32 %v1255, %v1727
    %v1938 = vmul.f32 %v1259, %v1727
    %v1939 = vmul.f32 %v1263, %v1727
    %v1940 = vmul.f32 %v1267, %v1727
    %v1941 = vmul.f32 %v1271, %v1727
    %v1942 = vmul.f32 %v1275, %v1727
    %v1943 = vmul.f32 %v1279, %v1727
    %v1944 = vmul.f32 %v1283, %v1727
    %v1945 = vmul.f32 %v1287, %v1727
    %v1946 = vmul.f32 %v1291, %v1727
    %v1947 = vmul.f32 %v1295, %v1727
    %v1948 = vmul.f32 %v1299, %v1727
    %v1949 = vmul.f32 %v1303, %v1727
    %v1950 = vmul.f32 %v1307, %v1727
    %v1951 = vmul.f32 %v1311, %v1727
    %v1952 = vmul.f32 %v1318, %v1731
    %v1953 = vmul.f32 %v1322, %v1731
    %v1954 = vmul.f32 %v1326, %v1731
    %v1955 = vmul.f32 %v1330, %v1731
    %v1956 = vmul.f32 %v1334, %v1731
    %v1957 = vmul.f32 %v1338, %v1731
    %v1958 = vmul.f32 %v1342, %v1731
    %v1959 = vmul.f32 %v1346, %v1731
    %v1960 = vmul.f32 %v1350, %v1731
    %v1961 = vmul.f32 %v1354, %v1731
    %v1962 = vmul.f32 %v1358, %v1731
    %v1963 = vmul.f32 %v1362, %v1731
    %v1964 = vmul.f32 %v1366, %v1731
    %v1965 = vmul.f32 %v1370, %v1731
    %v1966 = vmul.f32 %v1374, %v1731
    %v1967 = vmul.f32 %v1378, %v1731
    %v1968 = vmul.f32 %v1385, %v1735
    %v1969 = vmul.f32 %v1389, %v1735
    %v1970 = vmul.f32 %v1393, %v1735
    %v1971 = vmul.f32 %v1397, %v1735
    %v1972 = vmul.f32 %v1401, %v1735
    %v1973 = vmul.f32 %v1405, %v1735
    %v1974 = vmul.f32 %v1409, %v1735
    %v1975 = vmul.f32 %v1413, %v1735
    %v1976 = vmul.f32 %v1417, %v1735
    %v1977 = vmul.f32 %v1421, %v1735
    %v1978 = vmul.f32 %v1425, %v1735
    %v1979 = vmul.f32 %v1429, %v1735
    %v1980 = vmul.f32 %v1433, %v1735
    %v1981 = vmul.f32 %v1437, %v1735
    %v1982 = vmul.f32 %v1441, %v1735
    %v1983 = vmul.f32 %v1445, %v1735
    %v1984 = vmul.f32 %v1452, %v1739
    %v1985 = vmul.f32 %v1456, %v1739
    %v1986 = vmul.f32 %v1460, %v1739
    %v1987 = vmul.f32 %v1464, %v1739
    %v1988 = vmul.f32 %v1468, %v1739
    %v1989 = vmul.f32 %v1472, %v1739
    %v1990 = vmul.f32 %v1476, %v1739
    %v1991 = vmul.f32 %v1480, %v1739
    %v1992 = vmul.f32 %v1484, %v1739
    %v1993 = vmul.f32 %v1488, %v1739
    %v1994 = vmul.f32 %v1492, %v1739
    %v1995 = vmul.f32 %v1496, %v1739
    %v1996 = vmul.f32 %v1500, %v1739
    %v1997 = vmul.f32 %v1504, %v1739
    %v1998 = vmul.f32 %v1508, %v1739
    %v1999 = vmul.f32 %v1512, %v1739
    %v2000 = vmul.f32 %v1519, %v1743
    %v2001 = vmul.f32 %v1523, %v1743
    %v2002 = vmul.f32 %v1527, %v1743
    %v2003 = vmul.f32 %v1531, %v1743
    %v2004 = vmul.f32 %v1535, %v1743
    %v2005 = vmul.f32 %v1539, %v1743
    %v2006 = vmul.f32 %v1543, %v1743
    %v2007 = vmul.f32 %v1547, %v1743
    %v2008 = vmul.f32 %v1551, %v1743
    %v2009 = vmul.f32 %v1555, %v1743
    %v2010 = vmul.f32 %v1559, %v1743
    %v2011 = vmul.f32 %v1563, %v1743
    %v2012 = vmul.f32 %v1567, %v1743
    %v2013 = vmul.f32 %v1571, %v1743
    %v2014 = vmul.f32 %v1575, %v1743
    %v2015 = vmul.f32 %v1579, %v1743
    %v2016 = vlaneseq
    %v2017 = vshrl.u32 %v2016, 7
    %v2018 = vsub.s32 0, %v2017
    %v2019 = vrot.slane %v506, %v2018
    %2021 = vbcast.lane.b32.xlu0 %v2019, 256
    %v2022 = vpop.permute.xlu0 %2021
    %s2024 = sor.u32 256, 8
    %2025 = vbcast.lane.b32.xlu0 %v2019, %s2024
    %v2026 = vpop.permute.xlu0 %2025
    %s2028 = sor.u32 256, 16
    %2029 = vbcast.lane.b32.xlu0 %v2019, %s2028
    %v2030 = vpop.permute.xlu0 %2029
    %s2032 = sor.u32 256, 24
    %2033 = vbcast.lane.b32.xlu0 %v2019, %s2032
    %v2034 = vpop.permute.xlu0 %2033
    %s2036 = sor.u32 256, 32
    %2037 = vbcast.lane.b32.xlu0 %v2019, %s2036
    %v2038 = vpop.permute.xlu0 %2037
    %s2040 = sor.u32 256, 40
    %2041 = vbcast.lane.b32.xlu0 %v2019, %s2040
    %v2042 = vpop.permute.xlu0 %2041
    %s2044 = sor.u32 256, 48
    %2045 = vbcast.lane.b32.xlu0 %v2019, %s2044
    %v2046 = vpop.permute.xlu0 %2045
    %s2048 = sor.u32 256, 56
    %2049 = vbcast.lane.b32.xlu0 %v2019, %s2048
    %v2050 = vpop.permute.xlu0 %2049
    %s2052 = sor.u32 256, 64
    %2053 = vbcast.lane.b32.xlu0 %v2019, %s2052
    %v2054 = vpop.permute.xlu0 %2053
    %s2056 = sor.u32 256, 72
    %2057 = vbcast.lane.b32.xlu0 %v2019, %s2056
    %v2058 = vpop.permute.xlu0 %2057
    %s2060 = sor.u32 256, 80
    %2061 = vbcast.lane.b32.xlu0 %v2019, %s2060
    %v2062 = vpop.permute.xlu0 %2061
    %s2064 = sor.u32 256, 88
    %2065 = vbcast.lane.b32.xlu0 %v2019, %s2064
    %v2066 = vpop.permute.xlu0 %2065
    %s2068 = sor.u32 256, 96
    %2069 = vbcast.lane.b32.xlu0 %v2019, %s2068
    %v2070 = vpop.permute.xlu0 %2069
    %s2072 = sor.u32 256, 104
    %2073 = vbcast.lane.b32.xlu0 %v2019, %s2072
    %v2074 = vpop.permute.xlu0 %2073
    %s2076 = sor.u32 256, 112
    %2077 = vbcast.lane.b32.xlu0 %v2019, %s2076
    %v2078 = vpop.permute.xlu0 %2077
    %s2080 = sor.u32 256, 120
    %2081 = vbcast.lane.b32.xlu0 %v2019, %s2080
    %v2082 = vpop.permute.xlu0 %2081
    %v2083 = vlaneseq
    %v2084 = vshrl.u32 %v2083, 7
    %v2085 = vsub.s32 1, %v2084
    %v2086 = vrot.slane %v506, %v2085
    %2088 = vbcast.lane.b32.xlu0 %v2086, 256
    %v2089 = vpop.permute.xlu0 %2088
    %s2091 = sor.u32 256, 8
    %2092 = vbcast.lane.b32.xlu0 %v2086, %s2091
    %v2093 = vpop.permute.xlu0 %2092
    %s2095 = sor.u32 256, 16
    %2096 = vbcast.lane.b32.xlu0 %v2086, %s2095
    %v2097 = vpop.permute.xlu0 %2096
    %s2099 = sor.u32 256, 24
    %2100 = vbcast.lane.b32.xlu0 %v2086, %s2099
    %v2101 = vpop.permute.xlu0 %2100
    %s2103 = sor.u32 256, 32
    %2104 = vbcast.lane.b32.xlu0 %v2086, %s2103
    %v2105 = vpop.permute.xlu0 %2104
    %s2107 = sor.u32 256, 40
    %2108 = vbcast.lane.b32.xlu0 %v2086, %s2107
    %v2109 = vpop.permute.xlu0 %2108
    %s2111 = sor.u32 256, 48
    %2112 = vbcast.lane.b32.xlu0 %v2086, %s2111
    %v2113 = vpop.permute.xlu0 %2112
    %s2115 = sor.u32 256, 56
    %2116 = vbcast.lane.b32.xlu0 %v2086, %s2115
    %v2117 = vpop.permute.xlu0 %2116
    %s2119 = sor.u32 256, 64
    %2120 = vbcast.lane.b32.xlu0 %v2086, %s2119
    %v2121 = vpop.permute.xlu0 %2120
    %s2123 = sor.u32 256, 72
    %2124 = vbcast.lane.b32.xlu0 %v2086, %s2123
    %v2125 = vpop.permute.xlu0 %2124
    %s2127 = sor.u32 256, 80
    %2128 = vbcast.lane.b32.xlu0 %v2086, %s2127
    %v2129 = vpop.permute.xlu0 %2128
    %s2131 = sor.u32 256, 88
    %2132 = vbcast.lane.b32.xlu0 %v2086, %s2131
    %v2133 = vpop.permute.xlu0 %2132
    %s2135 = sor.u32 256, 96
    %2136 = vbcast.lane.b32.xlu0 %v2086, %s2135
    %v2137 = vpop.permute.xlu0 %2136
    %s2139 = sor.u32 256, 104
    %2140 = vbcast.lane.b32.xlu0 %v2086, %s2139
    %v2141 = vpop.permute.xlu0 %2140
    %s2143 = sor.u32 256, 112
    %2144 = vbcast.lane.b32.xlu0 %v2086, %s2143
    %v2145 = vpop.permute.xlu0 %2144
    %s2147 = sor.u32 256, 120
    %2148 = vbcast.lane.b32.xlu0 %v2086, %s2147
    %v2149 = vpop.permute.xlu0 %2148
    %v2150 = vlaneseq
    %v2151 = vshrl.u32 %v2150, 7
    %v2152 = vsub.s32 2, %v2151
    %v2153 = vrot.slane %v506, %v2152
    %2155 = vbcast.lane.b32.xlu0 %v2153, 256
    %v2156 = vpop.permute.xlu0 %2155
    %s2158 = sor.u32 256, 8
    %2159 = vbcast.lane.b32.xlu0 %v2153, %s2158
    %v2160 = vpop.permute.xlu0 %2159
    %s2162 = sor.u32 256, 16
    %2163 = vbcast.lane.b32.xlu0 %v2153, %s2162
    %v2164 = vpop.permute.xlu0 %2163
    %s2166 = sor.u32 256, 24
    %2167 = vbcast.lane.b32.xlu0 %v2153, %s2166
    %v2168 = vpop.permute.xlu0 %2167
    %s2170 = sor.u32 256, 32
    %2171 = vbcast.lane.b32.xlu0 %v2153, %s2170
    %v2172 = vpop.permute.xlu0 %2171
    %s2174 = sor.u32 256, 40
    %2175 = vbcast.lane.b32.xlu0 %v2153, %s2174
    %v2176 = vpop.permute.xlu0 %2175
    %s2178 = sor.u32 256, 48
    %2179 = vbcast.lane.b32.xlu0 %v2153, %s2178
    %v2180 = vpop.permute.xlu0 %2179
    %s2182 = sor.u32 256, 56
    %2183 = vbcast.lane.b32.xlu0 %v2153, %s2182
    %v2184 = vpop.permute.xlu0 %2183
    %s2186 = sor.u32 256, 64
    %2187 = vbcast.lane.b32.xlu0 %v2153, %s2186
    %v2188 = vpop.permute.xlu0 %2187
    %s2190 = sor.u32 256, 72
    %2191 = vbcast.lane.b32.xlu0 %v2153, %s2190
    %v2192 = vpop.permute.xlu0 %2191
    %s2194 = sor.u32 256, 80
    %2195 = vbcast.lane.b32.xlu0 %v2153, %s2194
    %v2196 = vpop.permute.xlu0 %2195
    %s2198 = sor.u32 256, 88
    %2199 = vbcast.lane.b32.xlu0 %v2153, %s2198
    %v2200 = vpop.permute.xlu0 %2199
    %s2202 = sor.u32 256, 96
    %2203 = vbcast.lane.b32.xlu0 %v2153, %s2202
    %v2204 = vpop.permute.xlu0 %2203
    %s2206 = sor.u32 256, 104
    %2207 = vbcast.lane.b32.xlu0 %v2153, %s2206
    %v2208 = vpop.permute.xlu0 %2207
    %s2210 = sor.u32 256, 112
    %2211 = vbcast.lane.b32.xlu0 %v2153, %s2210
    %v2212 = vpop.permute.xlu0 %2211
    %s2214 = sor.u32 256, 120
    %2215 = vbcast.lane.b32.xlu0 %v2153, %s2214
    %v2216 = vpop.permute.xlu0 %2215
    %v2217 = vlaneseq
    %v2218 = vshrl.u32 %v2217, 7
    %v2219 = vsub.s32 3, %v2218
    %v2220 = vrot.slane %v506, %v2219
    %2222 = vbcast.lane.b32.xlu0 %v2220, 256
    %v2223 = vpop.permute.xlu0 %2222
    %s2225 = sor.u32 256, 8
    %2226 = vbcast.lane.b32.xlu0 %v2220, %s2225
    %v2227 = vpop.permute.xlu0 %2226
    %s2229 = sor.u32 256, 16
    %2230 = vbcast.lane.b32.xlu0 %v2220, %s2229
    %v2231 = vpop.permute.xlu0 %2230
    %s2233 = sor.u32 256, 24
    %2234 = vbcast.lane.b32.xlu0 %v2220, %s2233
    %v2235 = vpop.permute.xlu0 %2234
    %s2237 = sor.u32 256, 32
    %2238 = vbcast.lane.b32.xlu0 %v2220, %s2237
    %v2239 = vpop.permute.xlu0 %2238
    %s2241 = sor.u32 256, 40
    %2242 = vbcast.lane.b32.xlu0 %v2220, %s2241
    %v2243 = vpop.permute.xlu0 %2242
    %s2245 = sor.u32 256, 48
    %2246 = vbcast.lane.b32.xlu0 %v2220, %s2245
    %v2247 = vpop.permute.xlu0 %2246
    %s2249 = sor.u32 256, 56
    %2250 = vbcast.lane.b32.xlu0 %v2220, %s2249
    %v2251 = vpop.permute.xlu0 %2250
    %s2253 = sor.u32 256, 64
    %2254 = vbcast.lane.b32.xlu0 %v2220, %s2253
    %v2255 = vpop.permute.xlu0 %2254
    %s2257 = sor.u32 256, 72
    %2258 = vbcast.lane.b32.xlu0 %v2220, %s2257
    %v2259 = vpop.permute.xlu0 %2258
    %s2261 = sor.u32 256, 80
    %2262 = vbcast.lane.b32.xlu0 %v2220, %s2261
    %v2263 = vpop.permute.xlu0 %2262
    %s2265 = sor.u32 256, 88
    %2266 = vbcast.lane.b32.xlu0 %v2220, %s2265
    %v2267 = vpop.permute.xlu0 %2266
    %s2269 = sor.u32 256, 96
    %2270 = vbcast.lane.b32.xlu0 %v2220, %s2269
    %v2271 = vpop.permute.xlu0 %2270
    %s2273 = sor.u32 256, 104
    %2274 = vbcast.lane.b32.xlu0 %v2220, %s2273
    %v2275 = vpop.permute.xlu0 %2274
    %s2277 = sor.u32 256, 112
    %2278 = vbcast.lane.b32.xlu0 %v2220, %s2277
    %v2279 = vpop.permute.xlu0 %2278
    %s2281 = sor.u32 256, 120
    %2282 = vbcast.lane.b32.xlu0 %v2220, %s2281
    %v2283 = vpop.permute.xlu0 %2282
    %v2284 = vlaneseq
    %v2285 = vshrl.u32 %v2284, 7
    %v2286 = vsub.s32 4, %v2285
    %v2287 = vrot.slane %v506, %v2286
    %2289 = vbcast.lane.b32.xlu0 %v2287, 256
    %v2290 = vpop.permute.xlu0 %2289
    %s2292 = sor.u32 256, 8
    %2293 = vbcast.lane.b32.xlu0 %v2287, %s2292
    %v2294 = vpop.permute.xlu0 %2293
    %s2296 = sor.u32 256, 16
    %2297 = vbcast.lane.b32.xlu0 %v2287, %s2296
    %v2298 = vpop.permute.xlu0 %2297
    %s2300 = sor.u32 256, 24
    %2301 = vbcast.lane.b32.xlu0 %v2287, %s2300
    %v2302 = vpop.permute.xlu0 %2301
    %s2304 = sor.u32 256, 32
    %2305 = vbcast.lane.b32.xlu0 %v2287, %s2304
    %v2306 = vpop.permute.xlu0 %2305
    %s2308 = sor.u32 256, 40
    %2309 = vbcast.lane.b32.xlu0 %v2287, %s2308
    %v2310 = vpop.permute.xlu0 %2309
    %s2312 = sor.u32 256, 48
    %2313 = vbcast.lane.b32.xlu0 %v2287, %s2312
    %v2314 = vpop.permute.xlu0 %2313
    %s2316 = sor.u32 256, 56
    %2317 = vbcast.lane.b32.xlu0 %v2287, %s2316
    %v2318 = vpop.permute.xlu0 %2317
    %s2320 = sor.u32 256, 64
    %2321 = vbcast.lane.b32.xlu0 %v2287, %s2320
    %v2322 = vpop.permute.xlu0 %2321
    %s2324 = sor.u32 256, 72
    %2325 = vbcast.lane.b32.xlu0 %v2287, %s2324
    %v2326 = vpop.permute.xlu0 %2325
    %s2328 = sor.u32 256, 80
    %2329 = vbcast.lane.b32.xlu0 %v2287, %s2328
    %v2330 = vpop.permute.xlu0 %2329
    %s2332 = sor.u32 256, 88
    %2333 = vbcast.lane.b32.xlu0 %v2287, %s2332
    %v2334 = vpop.permute.xlu0 %2333
    %s2336 = sor.u32 256, 96
    %2337 = vbcast.lane.b32.xlu0 %v2287, %s2336
    %v2338 = vpop.permute.xlu0 %2337
    %s2340 = sor.u32 256, 104
    %2341 = vbcast.lane.b32.xlu0 %v2287, %s2340
    %v2342 = vpop.permute.xlu0 %2341
    %s2344 = sor.u32 256, 112
    %2345 = vbcast.lane.b32.xlu0 %v2287, %s2344
    %v2346 = vpop.permute.xlu0 %2345
    %s2348 = sor.u32 256, 120
    %2349 = vbcast.lane.b32.xlu0 %v2287, %s2348
    %v2350 = vpop.permute.xlu0 %2349
    %v2351 = vlaneseq
    %v2352 = vshrl.u32 %v2351, 7
    %v2353 = vsub.s32 5, %v2352
    %v2354 = vrot.slane %v506, %v2353
    %2356 = vbcast.lane.b32.xlu0 %v2354, 256
    %v2357 = vpop.permute.xlu0 %2356
    %s2359 = sor.u32 256, 8
    %2360 = vbcast.lane.b32.xlu0 %v2354, %s2359
    %v2361 = vpop.permute.xlu0 %2360
    %s2363 = sor.u32 256, 16
    %2364 = vbcast.lane.b32.xlu0 %v2354, %s2363
    %v2365 = vpop.permute.xlu0 %2364
    %s2367 = sor.u32 256, 24
    %2368 = vbcast.lane.b32.xlu0 %v2354, %s2367
    %v2369 = vpop.permute.xlu0 %2368
    %s2371 = sor.u32 256, 32
    %2372 = vbcast.lane.b32.xlu0 %v2354, %s2371
    %v2373 = vpop.permute.xlu0 %2372
    %s2375 = sor.u32 256, 40
    %2376 = vbcast.lane.b32.xlu0 %v2354, %s2375
    %v2377 = vpop.permute.xlu0 %2376
    %s2379 = sor.u32 256, 48
    %2380 = vbcast.lane.b32.xlu0 %v2354, %s2379
    %v2381 = vpop.permute.xlu0 %2380
    %s2383 = sor.u32 256, 56
    %2384 = vbcast.lane.b32.xlu0 %v2354, %s2383
    %v2385 = vpop.permute.xlu0 %2384
    %s2387 = sor.u32 256, 64
    %2388 = vbcast.lane.b32.xlu0 %v2354, %s2387
    %v2389 = vpop.permute.xlu0 %2388
    %s2391 = sor.u32 256, 72
    %2392 = vbcast.lane.b32.xlu0 %v2354, %s2391
    %v2393 = vpop.permute.xlu0 %2392
    %s2395 = sor.u32 256, 80
    %2396 = vbcast.lane.b32.xlu0 %v2354, %s2395
    %v2397 = vpop.permute.xlu0 %2396
    %s2399 = sor.u32 256, 88
    %2400 = vbcast.lane.b32.xlu0 %v2354, %s2399
    %v2401 = vpop.permute.xlu0 %2400
    %s2403 = sor.u32 256, 96
    %2404 = vbcast.lane.b32.xlu0 %v2354, %s2403
    %v2405 = vpop.permute.xlu0 %2404
    %s2407 = sor.u32 256, 104
    %2408 = vbcast.lane.b32.xlu0 %v2354, %s2407
    %v2409 = vpop.permute.xlu0 %2408
    %s2411 = sor.u32 256, 112
    %2412 = vbcast.lane.b32.xlu0 %v2354, %s2411
    %v2413 = vpop.permute.xlu0 %2412
    %s2415 = sor.u32 256, 120
    %2416 = vbcast.lane.b32.xlu0 %v2354, %s2415
    %v2417 = vpop.permute.xlu0 %2416
    %v2418 = vlaneseq
    %v2419 = vshrl.u32 %v2418, 7
    %v2420 = vsub.s32 6, %v2419
    %v2421 = vrot.slane %v506, %v2420
    %2423 = vbcast.lane.b32.xlu0 %v2421, 256
    %v2424 = vpop.permute.xlu0 %2423
    %s2426 = sor.u32 256, 8
    %2427 = vbcast.lane.b32.xlu0 %v2421, %s2426
    %v2428 = vpop.permute.xlu0 %2427
    %s2430 = sor.u32 256, 16
    %2431 = vbcast.lane.b32.xlu0 %v2421, %s2430
    %v2432 = vpop.permute.xlu0 %2431
    %s2434 = sor.u32 256, 24
    %2435 = vbcast.lane.b32.xlu0 %v2421, %s2434
    %v2436 = vpop.permute.xlu0 %2435
    %s2438 = sor.u32 256, 32
    %2439 = vbcast.lane.b32.xlu0 %v2421, %s2438
    %v2440 = vpop.permute.xlu0 %2439
    %s2442 = sor.u32 256, 40
    %2443 = vbcast.lane.b32.xlu0 %v2421, %s2442
    %v2444 = vpop.permute.xlu0 %2443
    %s2446 = sor.u32 256, 48
    %2447 = vbcast.lane.b32.xlu0 %v2421, %s2446
    %v2448 = vpop.permute.xlu0 %2447
    %s2450 = sor.u32 256, 56
    %2451 = vbcast.lane.b32.xlu0 %v2421, %s2450
    %v2452 = vpop.permute.xlu0 %2451
    %s2454 = sor.u32 256, 64
    %2455 = vbcast.lane.b32.xlu0 %v2421, %s2454
    %v2456 = vpop.permute.xlu0 %2455
    %s2458 = sor.u32 256, 72
    %2459 = vbcast.lane.b32.xlu0 %v2421, %s2458
    %v2460 = vpop.permute.xlu0 %2459
    %s2462 = sor.u32 256, 80
    %2463 = vbcast.lane.b32.xlu0 %v2421, %s2462
    %v2464 = vpop.permute.xlu0 %2463
    %s2466 = sor.u32 256, 88
    %2467 = vbcast.lane.b32.xlu0 %v2421, %s2466
    %v2468 = vpop.permute.xlu0 %2467
    %s2470 = sor.u32 256, 96
    %2471 = vbcast.lane.b32.xlu0 %v2421, %s2470
    %v2472 = vpop.permute.xlu0 %2471
    %s2474 = sor.u32 256, 104
    %2475 = vbcast.lane.b32.xlu0 %v2421, %s2474
    %v2476 = vpop.permute.xlu0 %2475
    %s2478 = sor.u32 256, 112
    %2479 = vbcast.lane.b32.xlu0 %v2421, %s2478
    %v2480 = vpop.permute.xlu0 %2479
    %s2482 = sor.u32 256, 120
    %2483 = vbcast.lane.b32.xlu0 %v2421, %s2482
    %v2484 = vpop.permute.xlu0 %2483
    %v2485 = vlaneseq
    %v2486 = vshrl.u32 %v2485, 7
    %v2487 = vsub.s32 7, %v2486
    %v2488 = vrot.slane %v506, %v2487
    %2490 = vbcast.lane.b32.xlu0 %v2488, 256
    %v2491 = vpop.permute.xlu0 %2490
    %s2493 = sor.u32 256, 8
    %2494 = vbcast.lane.b32.xlu0 %v2488, %s2493
    %v2495 = vpop.permute.xlu0 %2494
    %s2497 = sor.u32 256, 16
    %2498 = vbcast.lane.b32.xlu0 %v2488, %s2497
    %v2499 = vpop.permute.xlu0 %2498
    %s2501 = sor.u32 256, 24
    %2502 = vbcast.lane.b32.xlu0 %v2488, %s2501
    %v2503 = vpop.permute.xlu0 %2502
    %s2505 = sor.u32 256, 32
    %2506 = vbcast.lane.b32.xlu0 %v2488, %s2505
    %v2507 = vpop.permute.xlu0 %2506
    %s2509 = sor.u32 256, 40
    %2510 = vbcast.lane.b32.xlu0 %v2488, %s2509
    %v2511 = vpop.permute.xlu0 %2510
    %s2513 = sor.u32 256, 48
    %2514 = vbcast.lane.b32.xlu0 %v2488, %s2513
    %v2515 = vpop.permute.xlu0 %2514
    %s2517 = sor.u32 256, 56
    %2518 = vbcast.lane.b32.xlu0 %v2488, %s2517
    %v2519 = vpop.permute.xlu0 %2518
    %s2521 = sor.u32 256, 64
    %2522 = vbcast.lane.b32.xlu0 %v2488, %s2521
    %v2523 = vpop.permute.xlu0 %2522
    %s2525 = sor.u32 256, 72
    %2526 = vbcast.lane.b32.xlu0 %v2488, %s2525
    %v2527 = vpop.permute.xlu0 %2526
    %s2529 = sor.u32 256, 80
    %2530 = vbcast.lane.b32.xlu0 %v2488, %s2529
    %v2531 = vpop.permute.xlu0 %2530
    %s2533 = sor.u32 256, 88
    %2534 = vbcast.lane.b32.xlu0 %v2488, %s2533
    %v2535 = vpop.permute.xlu0 %2534
    %s2537 = sor.u32 256, 96
    %2538 = vbcast.lane.b32.xlu0 %v2488, %s2537
    %v2539 = vpop.permute.xlu0 %2538
    %s2541 = sor.u32 256, 104
    %2542 = vbcast.lane.b32.xlu0 %v2488, %s2541
    %v2543 = vpop.permute.xlu0 %2542
    %s2545 = sor.u32 256, 112
    %2546 = vbcast.lane.b32.xlu0 %v2488, %s2545
    %v2547 = vpop.permute.xlu0 %2546
    %s2549 = sor.u32 256, 120
    %2550 = vbcast.lane.b32.xlu0 %v2488, %s2549
    %v2551 = vpop.permute.xlu0 %2550
    %v2552 = vlaneseq
    %v2553 = vshrl.u32 %v2552, 7
    %v2554 = vsub.s32 0, %v2553
    %v2555 = vrot.slane %v507, %v2554
    %2557 = vbcast.lane.b32.xlu0 %v2555, 256
    %v2558 = vpop.permute.xlu0 %2557
    %s2560 = sor.u32 256, 8
    %2561 = vbcast.lane.b32.xlu0 %v2555, %s2560
    %v2562 = vpop.permute.xlu0 %2561
    %s2564 = sor.u32 256, 16
    %2565 = vbcast.lane.b32.xlu0 %v2555, %s2564
    %v2566 = vpop.permute.xlu0 %2565
    %s2568 = sor.u32 256, 24
    %2569 = vbcast.lane.b32.xlu0 %v2555, %s2568
    %v2570 = vpop.permute.xlu0 %2569
    %s2572 = sor.u32 256, 32
    %2573 = vbcast.lane.b32.xlu0 %v2555, %s2572
    %v2574 = vpop.permute.xlu0 %2573
    %s2576 = sor.u32 256, 40
    %2577 = vbcast.lane.b32.xlu0 %v2555, %s2576
    %v2578 = vpop.permute.xlu0 %2577
    %s2580 = sor.u32 256, 48
    %2581 = vbcast.lane.b32.xlu0 %v2555, %s2580
    %v2582 = vpop.permute.xlu0 %2581
    %s2584 = sor.u32 256, 56
    %2585 = vbcast.lane.b32.xlu0 %v2555, %s2584
    %v2586 = vpop.permute.xlu0 %2585
    %s2588 = sor.u32 256, 64
    %2589 = vbcast.lane.b32.xlu0 %v2555, %s2588
    %v2590 = vpop.permute.xlu0 %2589
    %s2592 = sor.u32 256, 72
    %2593 = vbcast.lane.b32.xlu0 %v2555, %s2592
    %v2594 = vpop.permute.xlu0 %2593
    %s2596 = sor.u32 256, 80
    %2597 = vbcast.lane.b32.xlu0 %v2555, %s2596
    %v2598 = vpop.permute.xlu0 %2597
    %s2600 = sor.u32 256, 88
    %2601 = vbcast.lane.b32.xlu0 %v2555, %s2600
    %v2602 = vpop.permute.xlu0 %2601
    %s2604 = sor.u32 256, 96
    %2605 = vbcast.lane.b32.xlu0 %v2555, %s2604
    %v2606 = vpop.permute.xlu0 %2605
    %s2608 = sor.u32 256, 104
    %2609 = vbcast.lane.b32.xlu0 %v2555, %s2608
    %v2610 = vpop.permute.xlu0 %2609
    %s2612 = sor.u32 256, 112
    %2613 = vbcast.lane.b32.xlu0 %v2555, %s2612
    %v2614 = vpop.permute.xlu0 %2613
    %s2616 = sor.u32 256, 120
    %2617 = vbcast.lane.b32.xlu0 %v2555, %s2616
    %v2618 = vpop.permute.xlu0 %2617
    %v2619 = vlaneseq
    %v2620 = vshrl.u32 %v2619, 7
    %v2621 = vsub.s32 1, %v2620
    %v2622 = vrot.slane %v507, %v2621
    %2624 = vbcast.lane.b32.xlu0 %v2622, 256
    %v2625 = vpop.permute.xlu0 %2624
    %s2627 = sor.u32 256, 8
    %2628 = vbcast.lane.b32.xlu0 %v2622, %s2627
    %v2629 = vpop.permute.xlu0 %2628
    %s2631 = sor.u32 256, 16
    %2632 = vbcast.lane.b32.xlu0 %v2622, %s2631
    %v2633 = vpop.permute.xlu0 %2632
    %s2635 = sor.u32 256, 24
    %2636 = vbcast.lane.b32.xlu0 %v2622, %s2635
    %v2637 = vpop.permute.xlu0 %2636
    %s2639 = sor.u32 256, 32
    %2640 = vbcast.lane.b32.xlu0 %v2622, %s2639
    %v2641 = vpop.permute.xlu0 %2640
    %s2643 = sor.u32 256, 40
    %2644 = vbcast.lane.b32.xlu0 %v2622, %s2643
    %v2645 = vpop.permute.xlu0 %2644
    %s2647 = sor.u32 256, 48
    %2648 = vbcast.lane.b32.xlu0 %v2622, %s2647
    %v2649 = vpop.permute.xlu0 %2648
    %s2651 = sor.u32 256, 56
    %2652 = vbcast.lane.b32.xlu0 %v2622, %s2651
    %v2653 = vpop.permute.xlu0 %2652
    %s2655 = sor.u32 256, 64
    %2656 = vbcast.lane.b32.xlu0 %v2622, %s2655
    %v2657 = vpop.permute.xlu0 %2656
    %s2659 = sor.u32 256, 72
    %2660 = vbcast.lane.b32.xlu0 %v2622, %s2659
    %v2661 = vpop.permute.xlu0 %2660
    %s2663 = sor.u32 256, 80
    %2664 = vbcast.lane.b32.xlu0 %v2622, %s2663
    %v2665 = vpop.permute.xlu0 %2664
    %s2667 = sor.u32 256, 88
    %2668 = vbcast.lane.b32.xlu0 %v2622, %s2667
    %v2669 = vpop.permute.xlu0 %2668
    %s2671 = sor.u32 256, 96
    %2672 = vbcast.lane.b32.xlu0 %v2622, %s2671
    %v2673 = vpop.permute.xlu0 %2672
    %s2675 = sor.u32 256, 104
    %2676 = vbcast.lane.b32.xlu0 %v2622, %s2675
    %v2677 = vpop.permute.xlu0 %2676
    %s2679 = sor.u32 256, 112
    %2680 = vbcast.lane.b32.xlu0 %v2622, %s2679
    %v2681 = vpop.permute.xlu0 %2680
    %s2683 = sor.u32 256, 120
    %2684 = vbcast.lane.b32.xlu0 %v2622, %s2683
    %v2685 = vpop.permute.xlu0 %2684
    %v2686 = vlaneseq
    %v2687 = vshrl.u32 %v2686, 7
    %v2688 = vsub.s32 2, %v2687
    %v2689 = vrot.slane %v507, %v2688
    %2691 = vbcast.lane.b32.xlu0 %v2689, 256
    %v2692 = vpop.permute.xlu0 %2691
    %s2694 = sor.u32 256, 8
    %2695 = vbcast.lane.b32.xlu0 %v2689, %s2694
    %v2696 = vpop.permute.xlu0 %2695
    %s2698 = sor.u32 256, 16
    %2699 = vbcast.lane.b32.xlu0 %v2689, %s2698
    %v2700 = vpop.permute.xlu0 %2699
    %s2702 = sor.u32 256, 24
    %2703 = vbcast.lane.b32.xlu0 %v2689, %s2702
    %v2704 = vpop.permute.xlu0 %2703
    %s2706 = sor.u32 256, 32
    %2707 = vbcast.lane.b32.xlu0 %v2689, %s2706
    %v2708 = vpop.permute.xlu0 %2707
    %s2710 = sor.u32 256, 40
    %2711 = vbcast.lane.b32.xlu0 %v2689, %s2710
    %v2712 = vpop.permute.xlu0 %2711
    %s2714 = sor.u32 256, 48
    %2715 = vbcast.lane.b32.xlu0 %v2689, %s2714
    %v2716 = vpop.permute.xlu0 %2715
    %s2718 = sor.u32 256, 56
    %2719 = vbcast.lane.b32.xlu0 %v2689, %s2718
    %v2720 = vpop.permute.xlu0 %2719
    %s2722 = sor.u32 256, 64
    %2723 = vbcast.lane.b32.xlu0 %v2689, %s2722
    %v2724 = vpop.permute.xlu0 %2723
    %s2726 = sor.u32 256, 72
    %2727 = vbcast.lane.b32.xlu0 %v2689, %s2726
    %v2728 = vpop.permute.xlu0 %2727
    %s2730 = sor.u32 256, 80
    %2731 = vbcast.lane.b32.xlu0 %v2689, %s2730
    %v2732 = vpop.permute.xlu0 %2731
    %s2734 = sor.u32 256, 88
    %2735 = vbcast.lane.b32.xlu0 %v2689, %s2734
    %v2736 = vpop.permute.xlu0 %2735
    %s2738 = sor.u32 256, 96
    %2739 = vbcast.lane.b32.xlu0 %v2689, %s2738
    %v2740 = vpop.permute.xlu0 %2739
    %s2742 = sor.u32 256, 104
    %2743 = vbcast.lane.b32.xlu0 %v2689, %s2742
    %v2744 = vpop.permute.xlu0 %2743
    %s2746 = sor.u32 256, 112
    %2747 = vbcast.lane.b32.xlu0 %v2689, %s2746
    %v2748 = vpop.permute.xlu0 %2747
    %s2750 = sor.u32 256, 120
    %2751 = vbcast.lane.b32.xlu0 %v2689, %s2750
    %v2752 = vpop.permute.xlu0 %2751
    %v2753 = vlaneseq
    %v2754 = vshrl.u32 %v2753, 7
    %v2755 = vsub.s32 3, %v2754
    %v2756 = vrot.slane %v507, %v2755
    %2758 = vbcast.lane.b32.xlu0 %v2756, 256
    %v2759 = vpop.permute.xlu0 %2758
    %s2761 = sor.u32 256, 8
    %2762 = vbcast.lane.b32.xlu0 %v2756, %s2761
    %v2763 = vpop.permute.xlu0 %2762
    %s2765 = sor.u32 256, 16
    %2766 = vbcast.lane.b32.xlu0 %v2756, %s2765
    %v2767 = vpop.permute.xlu0 %2766
    %s2769 = sor.u32 256, 24
    %2770 = vbcast.lane.b32.xlu0 %v2756, %s2769
    %v2771 = vpop.permute.xlu0 %2770
    %s2773 = sor.u32 256, 32
    %2774 = vbcast.lane.b32.xlu0 %v2756, %s2773
    %v2775 = vpop.permute.xlu0 %2774
    %s2777 = sor.u32 256, 40
    %2778 = vbcast.lane.b32.xlu0 %v2756, %s2777
    %v2779 = vpop.permute.xlu0 %2778
    %s2781 = sor.u32 256, 48
    %2782 = vbcast.lane.b32.xlu0 %v2756, %s2781
    %v2783 = vpop.permute.xlu0 %2782
    %s2785 = sor.u32 256, 56
    %2786 = vbcast.lane.b32.xlu0 %v2756, %s2785
    %v2787 = vpop.permute.xlu0 %2786
    %s2789 = sor.u32 256, 64
    %2790 = vbcast.lane.b32.xlu0 %v2756, %s2789
    %v2791 = vpop.permute.xlu0 %2790
    %s2793 = sor.u32 256, 72
    %2794 = vbcast.lane.b32.xlu0 %v2756, %s2793
    %v2795 = vpop.permute.xlu0 %2794
    %s2797 = sor.u32 256, 80
    %2798 = vbcast.lane.b32.xlu0 %v2756, %s2797
    %v2799 = vpop.permute.xlu0 %2798
    %s2801 = sor.u32 256, 88
    %2802 = vbcast.lane.b32.xlu0 %v2756, %s2801
    %v2803 = vpop.permute.xlu0 %2802
    %s2805 = sor.u32 256, 96
    %2806 = vbcast.lane.b32.xlu0 %v2756, %s2805
    %v2807 = vpop.permute.xlu0 %2806
    %s2809 = sor.u32 256, 104
    %2810 = vbcast.lane.b32.xlu0 %v2756, %s2809
    %v2811 = vpop.permute.xlu0 %2810
    %s2813 = sor.u32 256, 112
    %2814 = vbcast.lane.b32.xlu0 %v2756, %s2813
    %v2815 = vpop.permute.xlu0 %2814
    %s2817 = sor.u32 256, 120
    %2818 = vbcast.lane.b32.xlu0 %v2756, %s2817
    %v2819 = vpop.permute.xlu0 %2818
    %v2820 = vlaneseq
    %v2821 = vshrl.u32 %v2820, 7
    %v2822 = vsub.s32 4, %v2821
    %v2823 = vrot.slane %v507, %v2822
    %2825 = vbcast.lane.b32.xlu0 %v2823, 256
    %v2826 = vpop.permute.xlu0 %2825
    %s2828 = sor.u32 256, 8
    %2829 = vbcast.lane.b32.xlu0 %v2823, %s2828
    %v2830 = vpop.permute.xlu0 %2829
    %s2832 = sor.u32 256, 16
    %2833 = vbcast.lane.b32.xlu0 %v2823, %s2832
    %v2834 = vpop.permute.xlu0 %2833
    %s2836 = sor.u32 256, 24
    %2837 = vbcast.lane.b32.xlu0 %v2823, %s2836
    %v2838 = vpop.permute.xlu0 %2837
    %s2840 = sor.u32 256, 32
    %2841 = vbcast.lane.b32.xlu0 %v2823, %s2840
    %v2842 = vpop.permute.xlu0 %2841
    %s2844 = sor.u32 256, 40
    %2845 = vbcast.lane.b32.xlu0 %v2823, %s2844
    %v2846 = vpop.permute.xlu0 %2845
    %s2848 = sor.u32 256, 48
    %2849 = vbcast.lane.b32.xlu0 %v2823, %s2848
    %v2850 = vpop.permute.xlu0 %2849
    %s2852 = sor.u32 256, 56
    %2853 = vbcast.lane.b32.xlu0 %v2823, %s2852
    %v2854 = vpop.permute.xlu0 %2853
    %s2856 = sor.u32 256, 64
    %2857 = vbcast.lane.b32.xlu0 %v2823, %s2856
    %v2858 = vpop.permute.xlu0 %2857
    %s2860 = sor.u32 256, 72
    %2861 = vbcast.lane.b32.xlu0 %v2823, %s2860
    %v2862 = vpop.permute.xlu0 %2861
    %s2864 = sor.u32 256, 80
    %2865 = vbcast.lane.b32.xlu0 %v2823, %s2864
    %v2866 = vpop.permute.xlu0 %2865
    %s2868 = sor.u32 256, 88
    %2869 = vbcast.lane.b32.xlu0 %v2823, %s2868
    %v2870 = vpop.permute.xlu0 %2869
    %s2872 = sor.u32 256, 96
    %2873 = vbcast.lane.b32.xlu0 %v2823, %s2872
    %v2874 = vpop.permute.xlu0 %2873
    %s2876 = sor.u32 256, 104
    %2877 = vbcast.lane.b32.xlu0 %v2823, %s2876
    %v2878 = vpop.permute.xlu0 %2877
    %s2880 = sor.u32 256, 112
    %2881 = vbcast.lane.b32.xlu0 %v2823, %s2880
    %v2882 = vpop.permute.xlu0 %2881
    %s2884 = sor.u32 256, 120
    %2885 = vbcast.lane.b32.xlu0 %v2823, %s2884
    %v2886 = vpop.permute.xlu0 %2885
    %v2887 = vlaneseq
    %v2888 = vshrl.u32 %v2887, 7
    %v2889 = vsub.s32 5, %v2888
    %v2890 = vrot.slane %v507, %v2889
    %2892 = vbcast.lane.b32.xlu0 %v2890, 256
    %v2893 = vpop.permute.xlu0 %2892
    %s2895 = sor.u32 256, 8
    %2896 = vbcast.lane.b32.xlu0 %v2890, %s2895
    %v2897 = vpop.permute.xlu0 %2896
    %s2899 = sor.u32 256, 16
    %2900 = vbcast.lane.b32.xlu0 %v2890, %s2899
    %v2901 = vpop.permute.xlu0 %2900
    %s2903 = sor.u32 256, 24
    %2904 = vbcast.lane.b32.xlu0 %v2890, %s2903
    %v2905 = vpop.permute.xlu0 %2904
    %s2907 = sor.u32 256, 32
    %2908 = vbcast.lane.b32.xlu0 %v2890, %s2907
    %v2909 = vpop.permute.xlu0 %2908
    %s2911 = sor.u32 256, 40
    %2912 = vbcast.lane.b32.xlu0 %v2890, %s2911
    %v2913 = vpop.permute.xlu0 %2912
    %s2915 = sor.u32 256, 48
    %2916 = vbcast.lane.b32.xlu0 %v2890, %s2915
    %v2917 = vpop.permute.xlu0 %2916
    %s2919 = sor.u32 256, 56
    %2920 = vbcast.lane.b32.xlu0 %v2890, %s2919
    %v2921 = vpop.permute.xlu0 %2920
    %s2923 = sor.u32 256, 64
    %2924 = vbcast.lane.b32.xlu0 %v2890, %s2923
    %v2925 = vpop.permute.xlu0 %2924
    %s2927 = sor.u32 256, 72
    %2928 = vbcast.lane.b32.xlu0 %v2890, %s2927
    %v2929 = vpop.permute.xlu0 %2928
    %s2931 = sor.u32 256, 80
    %2932 = vbcast.lane.b32.xlu0 %v2890, %s2931
    %v2933 = vpop.permute.xlu0 %2932
    %s2935 = sor.u32 256, 88
    %2936 = vbcast.lane.b32.xlu0 %v2890, %s2935
    %v2937 = vpop.permute.xlu0 %2936
    %s2939 = sor.u32 256, 96
    %2940 = vbcast.lane.b32.xlu0 %v2890, %s2939
    %v2941 = vpop.permute.xlu0 %2940
    %s2943 = sor.u32 256, 104
    %2944 = vbcast.lane.b32.xlu0 %v2890, %s2943
    %v2945 = vpop.permute.xlu0 %2944
    %s2947 = sor.u32 256, 112
    %2948 = vbcast.lane.b32.xlu0 %v2890, %s2947
    %v2949 = vpop.permute.xlu0 %2948
    %s2951 = sor.u32 256, 120
    %2952 = vbcast.lane.b32.xlu0 %v2890, %s2951
    %v2953 = vpop.permute.xlu0 %2952
    %v2954 = vlaneseq
    %v2955 = vshrl.u32 %v2954, 7
    %v2956 = vsub.s32 6, %v2955
    %v2957 = vrot.slane %v507, %v2956
    %2959 = vbcast.lane.b32.xlu0 %v2957, 256
    %v2960 = vpop.permute.xlu0 %2959
    %s2962 = sor.u32 256, 8
    %2963 = vbcast.lane.b32.xlu0 %v2957, %s2962
    %v2964 = vpop.permute.xlu0 %2963
    %s2966 = sor.u32 256, 16
    %2967 = vbcast.lane.b32.xlu0 %v2957, %s2966
    %v2968 = vpop.permute.xlu0 %2967
    %s2970 = sor.u32 256, 24
    %2971 = vbcast.lane.b32.xlu0 %v2957, %s2970
    %v2972 = vpop.permute.xlu0 %2971
    %s2974 = sor.u32 256, 32
    %2975 = vbcast.lane.b32.xlu0 %v2957, %s2974
    %v2976 = vpop.permute.xlu0 %2975
    %s2978 = sor.u32 256, 40
    %2979 = vbcast.lane.b32.xlu0 %v2957, %s2978
    %v2980 = vpop.permute.xlu0 %2979
    %s2982 = sor.u32 256, 48
    %2983 = vbcast.lane.b32.xlu0 %v2957, %s2982
    %v2984 = vpop.permute.xlu0 %2983
    %s2986 = sor.u32 256, 56
    %2987 = vbcast.lane.b32.xlu0 %v2957, %s2986
    %v2988 = vpop.permute.xlu0 %2987
    %s2990 = sor.u32 256, 64
    %2991 = vbcast.lane.b32.xlu0 %v2957, %s2990
    %v2992 = vpop.permute.xlu0 %2991
    %s2994 = sor.u32 256, 72
    %2995 = vbcast.lane.b32.xlu0 %v2957, %s2994
    %v2996 = vpop.permute.xlu0 %2995
    %s2998 = sor.u32 256, 80
    %2999 = vbcast.lane.b32.xlu0 %v2957, %s2998
    %v3000 = vpop.permute.xlu0 %2999
    %s3002 = sor.u32 256, 88
    %3003 = vbcast.lane.b32.xlu0 %v2957, %s3002
    %v3004 = vpop.permute.xlu0 %3003
    %s3006 = sor.u32 256, 96
    %3007 = vbcast.lane.b32.xlu0 %v2957, %s3006
    %v3008 = vpop.permute.xlu0 %3007
    %s3010 = sor.u32 256, 104
    %3011 = vbcast.lane.b32.xlu0 %v2957, %s3010
    %v3012 = vpop.permute.xlu0 %3011
    %s3014 = sor.u32 256, 112
    %3015 = vbcast.lane.b32.xlu0 %v2957, %s3014
    %v3016 = vpop.permute.xlu0 %3015
    %s3018 = sor.u32 256, 120
    %3019 = vbcast.lane.b32.xlu0 %v2957, %s3018
    %v3020 = vpop.permute.xlu0 %3019
    %v3021 = vlaneseq
    %v3022 = vshrl.u32 %v3021, 7
    %v3023 = vsub.s32 7, %v3022
    %v3024 = vrot.slane %v507, %v3023
    %3026 = vbcast.lane.b32.xlu0 %v3024, 256
    %v3027 = vpop.permute.xlu0 %3026
    %s3029 = sor.u32 256, 8
    %3030 = vbcast.lane.b32.xlu0 %v3024, %s3029
    %v3031 = vpop.permute.xlu0 %3030
    %s3033 = sor.u32 256, 16
    %3034 = vbcast.lane.b32.xlu0 %v3024, %s3033
    %v3035 = vpop.permute.xlu0 %3034
    %s3037 = sor.u32 256, 24
    %3038 = vbcast.lane.b32.xlu0 %v3024, %s3037
    %v3039 = vpop.permute.xlu0 %3038
    %s3041 = sor.u32 256, 32
    %3042 = vbcast.lane.b32.xlu0 %v3024, %s3041
    %v3043 = vpop.permute.xlu0 %3042
    %s3045 = sor.u32 256, 40
    %3046 = vbcast.lane.b32.xlu0 %v3024, %s3045
    %v3047 = vpop.permute.xlu0 %3046
    %s3049 = sor.u32 256, 48
    %3050 = vbcast.lane.b32.xlu0 %v3024, %s3049
    %v3051 = vpop.permute.xlu0 %3050
    %s3053 = sor.u32 256, 56
    %3054 = vbcast.lane.b32.xlu0 %v3024, %s3053
    %v3055 = vpop.permute.xlu0 %3054
    %s3057 = sor.u32 256, 64
    %3058 = vbcast.lane.b32.xlu0 %v3024, %s3057
    %v3059 = vpop.permute.xlu0 %3058
    %s3061 = sor.u32 256, 72
    %3062 = vbcast.lane.b32.xlu0 %v3024, %s3061
    %v3063 = vpop.permute.xlu0 %3062
    %s3065 = sor.u32 256, 80
    %3066 = vbcast.lane.b32.xlu0 %v3024, %s3065
    %v3067 = vpop.permute.xlu0 %3066
    %s3069 = sor.u32 256, 88
    %3070 = vbcast.lane.b32.xlu0 %v3024, %s3069
    %v3071 = vpop.permute.xlu0 %3070
    %s3073 = sor.u32 256, 96
    %3074 = vbcast.lane.b32.xlu0 %v3024, %s3073
    %v3075 = vpop.permute.xlu0 %3074
    %s3077 = sor.u32 256, 104
    %3078 = vbcast.lane.b32.xlu0 %v3024, %s3077
    %v3079 = vpop.permute.xlu0 %3078
    %s3081 = sor.u32 256, 112
    %3082 = vbcast.lane.b32.xlu0 %v3024, %s3081
    %v3083 = vpop.permute.xlu0 %3082
    %s3085 = sor.u32 256, 120
    %3086 = vbcast.lane.b32.xlu0 %v3024, %s3085
    %v3087 = vpop.permute.xlu0 %3086
    %v3088 = vsub.f32 %v1760, %v2022
    %v3089 = vsub.f32 %v1761, %v2026
    %v3090 = vsub.f32 %v1762, %v2030
    %v3091 = vsub.f32 %v1763, %v2034
    %v3092 = vsub.f32 %v1764, %v2038
    %v3093 = vsub.f32 %v1765, %v2042
    %v3094 = vsub.f32 %v1766, %v2046
    %v3095 = vsub.f32 %v1767, %v2050
    %v3096 = vsub.f32 %v1768, %v2054
    %v3097 = vsub.f32 %v1769, %v2058
    %v3098 = vsub.f32 %v1770, %v2062
    %v3099 = vsub.f32 %v1771, %v2066
    %v3100 = vsub.f32 %v1772, %v2070
    %v3101 = vsub.f32 %v1773, %v2074
    %v3102 = vsub.f32 %v1774, %v2078
    %v3103 = vsub.f32 %v1775, %v2082
    %v3104 = vsub.f32 %v1776, %v2089
    %v3105 = vsub.f32 %v1777, %v2093
    %v3106 = vsub.f32 %v1778, %v2097
    %v3107 = vsub.f32 %v1779, %v2101
    %v3108 = vsub.f32 %v1780, %v2105
    %v3109 = vsub.f32 %v1781, %v2109
    %v3110 = vsub.f32 %v1782, %v2113
    %v3111 = vsub.f32 %v1783, %v2117
    %v3112 = vsub.f32 %v1784, %v2121
    %v3113 = vsub.f32 %v1785, %v2125
    %v3114 = vsub.f32 %v1786, %v2129
    %v3115 = vsub.f32 %v1787, %v2133
    %v3116 = vsub.f32 %v1788, %v2137
    %v3117 = vsub.f32 %v1789, %v2141
    %v3118 = vsub.f32 %v1790, %v2145
    %v3119 = vsub.f32 %v1791, %v2149
    %v3120 = vsub.f32 %v1792, %v2156
    %v3121 = vsub.f32 %v1793, %v2160
    %v3122 = vsub.f32 %v1794, %v2164
    %v3123 = vsub.f32 %v1795, %v2168
    %v3124 = vsub.f32 %v1796, %v2172
    %v3125 = vsub.f32 %v1797, %v2176
    %v3126 = vsub.f32 %v1798, %v2180
    %v3127 = vsub.f32 %v1799, %v2184
    %v3128 = vsub.f32 %v1800, %v2188
    %v3129 = vsub.f32 %v1801, %v2192
    %v3130 = vsub.f32 %v1802, %v2196
    %v3131 = vsub.f32 %v1803, %v2200
    %v3132 = vsub.f32 %v1804, %v2204
    %v3133 = vsub.f32 %v1805, %v2208
    %v3134 = vsub.f32 %v1806, %v2212
    %v3135 = vsub.f32 %v1807, %v2216
    %v3136 = vsub.f32 %v1808, %v2223
    %v3137 = vsub.f32 %v1809, %v2227
    %v3138 = vsub.f32 %v1810, %v2231
    %v3139 = vsub.f32 %v1811, %v2235
    %v3140 = vsub.f32 %v1812, %v2239
    %v3141 = vsub.f32 %v1813, %v2243
    %v3142 = vsub.f32 %v1814, %v2247
    %v3143 = vsub.f32 %v1815, %v2251
    %v3144 = vsub.f32 %v1816, %v2255
    %v3145 = vsub.f32 %v1817, %v2259
    %v3146 = vsub.f32 %v1818, %v2263
    %v3147 = vsub.f32 %v1819, %v2267
    %v3148 = vsub.f32 %v1820, %v2271
    %v3149 = vsub.f32 %v1821, %v2275
    %v3150 = vsub.f32 %v1822, %v2279
    %v3151 = vsub.f32 %v1823, %v2283
    %v3152 = vsub.f32 %v1824, %v2290
    %v3153 = vsub.f32 %v1825, %v2294
    %v3154 = vsub.f32 %v1826, %v2298
    %v3155 = vsub.f32 %v1827, %v2302
    %v3156 = vsub.f32 %v1828, %v2306
    %v3157 = vsub.f32 %v1829, %v2310
    %v3158 = vsub.f32 %v1830, %v2314
    %v3159 = vsub.f32 %v1831, %v2318
    %v3160 = vsub.f32 %v1832, %v2322
    %v3161 = vsub.f32 %v1833, %v2326
    %v3162 = vsub.f32 %v1834, %v2330
    %v3163 = vsub.f32 %v1835, %v2334
    %v3164 = vsub.f32 %v1836, %v2338
    %v3165 = vsub.f32 %v1837, %v2342
    %v3166 = vsub.f32 %v1838, %v2346
    %v3167 = vsub.f32 %v1839, %v2350
    %v3168 = vsub.f32 %v1840, %v2357
    %v3169 = vsub.f32 %v1841, %v2361
    %v3170 = vsub.f32 %v1842, %v2365
    %v3171 = vsub.f32 %v1843, %v2369
    %v3172 = vsub.f32 %v1844, %v2373
    %v3173 = vsub.f32 %v1845, %v2377
    %v3174 = vsub.f32 %v1846, %v2381
    %v3175 = vsub.f32 %v1847, %v2385
    %v3176 = vsub.f32 %v1848, %v2389
    %v3177 = vsub.f32 %v1849, %v2393
    %v3178 = vsub.f32 %v1850, %v2397
    %v3179 = vsub.f32 %v1851, %v2401
    %v3180 = vsub.f32 %v1852, %v2405
    %v3181 = vsub.f32 %v1853, %v2409
    %v3182 = vsub.f32 %v1854, %v2413
    %v3183 = vsub.f32 %v1855, %v2417
    %v3184 = vsub.f32 %v1856, %v2424
    %v3185 = vsub.f32 %v1857, %v2428
    %v3186 = vsub.f32 %v1858, %v2432
    %v3187 = vsub.f32 %v1859, %v2436
    %v3188 = vsub.f32 %v1860, %v2440
    %v3189 = vsub.f32 %v1861, %v2444
    %v3190 = vsub.f32 %v1862, %v2448
    %v3191 = vsub.f32 %v1863, %v2452
    %v3192 = vsub.f32 %v1864, %v2456
    %v3193 = vsub.f32 %v1865, %v2460
    %v3194 = vsub.f32 %v1866, %v2464
    %v3195 = vsub.f32 %v1867, %v2468
    %v3196 = vsub.f32 %v1868, %v2472
    %v3197 = vsub.f32 %v1869, %v2476
    %v3198 = vsub.f32 %v1870, %v2480
    %v3199 = vsub.f32 %v1871, %v2484
    %v3200 = vsub.f32 %v1872, %v2491
    %v3201 = vsub.f32 %v1873, %v2495
    %v3202 = vsub.f32 %v1874, %v2499
    %v3203 = vsub.f32 %v1875, %v2503
    %v3204 = vsub.f32 %v1876, %v2507
    %v3205 = vsub.f32 %v1877, %v2511
    %v3206 = vsub.f32 %v1878, %v2515
    %v3207 = vsub.f32 %v1879, %v2519
    %v3208 = vsub.f32 %v1880, %v2523
    %v3209 = vsub.f32 %v1881, %v2527
    %v3210 = vsub.f32 %v1882, %v2531
    %v3211 = vsub.f32 %v1883, %v2535
    %v3212 = vsub.f32 %v1884, %v2539
    %v3213 = vsub.f32 %v1885, %v2543
    %v3214 = vsub.f32 %v1886, %v2547
    %v3215 = vsub.f32 %v1887, %v2551
    %v3216 = vsub.f32 %v1888, %v2558
    %v3217 = vsub.f32 %v1889, %v2562
    %v3218 = vsub.f32 %v1890, %v2566
    %v3219 = vsub.f32 %v1891, %v2570
    %v3220 = vsub.f32 %v1892, %v2574
    %v3221 = vsub.f32 %v1893, %v2578
    %v3222 = vsub.f32 %v1894, %v2582
    %v3223 = vsub.f32 %v1895, %v2586
    %v3224 = vsub.f32 %v1896, %v2590
    %v3225 = vsub.f32 %v1897, %v2594
    %v3226 = vsub.f32 %v1898, %v2598
    %v3227 = vsub.f32 %v1899, %v2602
    %v3228 = vsub.f32 %v1900, %v2606
    %v3229 = vsub.f32 %v1901, %v2610
    %v3230 = vsub.f32 %v1902, %v2614
    %v3231 = vsub.f32 %v1903, %v2618
    %v3232 = vsub.f32 %v1904, %v2625
    %v3233 = vsub.f32 %v1905, %v2629
    %v3234 = vsub.f32 %v1906, %v2633
    %v3235 = vsub.f32 %v1907, %v2637
    %v3236 = vsub.f32 %v1908, %v2641
    %v3237 = vsub.f32 %v1909, %v2645
    %v3238 = vsub.f32 %v1910, %v2649
    %v3239 = vsub.f32 %v1911, %v2653
    %v3240 = vsub.f32 %v1912, %v2657
    %v3241 = vsub.f32 %v1913, %v2661
    %v3242 = vsub.f32 %v1914, %v2665
    %v3243 = vsub.f32 %v1915, %v2669
    %v3244 = vsub.f32 %v1916, %v2673
    %v3245 = vsub.f32 %v1917, %v2677
    %v3246 = vsub.f32 %v1918, %v2681
    %v3247 = vsub.f32 %v1919, %v2685
    %v3248 = vsub.f32 %v1920, %v2692
    %v3249 = vsub.f32 %v1921, %v2696
    %v3250 = vsub.f32 %v1922, %v2700
    %v3251 = vsub.f32 %v1923, %v2704
    %v3252 = vsub.f32 %v1924, %v2708
    %v3253 = vsub.f32 %v1925, %v2712
    %v3254 = vsub.f32 %v1926, %v2716
    %v3255 = vsub.f32 %v1927, %v2720
    %v3256 = vsub.f32 %v1928, %v2724
    %v3257 = vsub.f32 %v1929, %v2728
    %v3258 = vsub.f32 %v1930, %v2732
    %v3259 = vsub.f32 %v1931, %v2736
    %v3260 = vsub.f32 %v1932, %v2740
    %v3261 = vsub.f32 %v1933, %v2744
    %v3262 = vsub.f32 %v1934, %v2748
    %v3263 = vsub.f32 %v1935, %v2752
    %v3264 = vsub.f32 %v1936, %v2759
    %v3265 = vsub.f32 %v1937, %v2763
    %v3266 = vsub.f32 %v1938, %v2767
    %v3267 = vsub.f32 %v1939, %v2771
    %v3268 = vsub.f32 %v1940, %v2775
    %v3269 = vsub.f32 %v1941, %v2779
    %v3270 = vsub.f32 %v1942, %v2783
    %v3271 = vsub.f32 %v1943, %v2787
    %v3272 = vsub.f32 %v1944, %v2791
    %v3273 = vsub.f32 %v1945, %v2795
    %v3274 = vsub.f32 %v1946, %v2799
    %v3275 = vsub.f32 %v1947, %v2803
    %v3276 = vsub.f32 %v1948, %v2807
    %v3277 = vsub.f32 %v1949, %v2811
    %v3278 = vsub.f32 %v1950, %v2815
    %v3279 = vsub.f32 %v1951, %v2819
    %v3280 = vsub.f32 %v1952, %v2826
    %v3281 = vsub.f32 %v1953, %v2830
    %v3282 = vsub.f32 %v1954, %v2834
    %v3283 = vsub.f32 %v1955, %v2838
    %v3284 = vsub.f32 %v1956, %v2842
    %v3285 = vsub.f32 %v1957, %v2846
    %v3286 = vsub.f32 %v1958, %v2850
    %v3287 = vsub.f32 %v1959, %v2854
    %v3288 = vsub.f32 %v1960, %v2858
    %v3289 = vsub.f32 %v1961, %v2862
    %v3290 = vsub.f32 %v1962, %v2866
    %v3291 = vsub.f32 %v1963, %v2870
    %v3292 = vsub.f32 %v1964, %v2874
    %v3293 = vsub.f32 %v1965, %v2878
    %v3294 = vsub.f32 %v1966, %v2882
    %v3295 = vsub.f32 %v1967, %v2886
    %v3296 = vsub.f32 %v1968, %v2893
    %v3297 = vsub.f32 %v1969, %v2897
    %v3298 = vsub.f32 %v1970, %v2901
    %v3299 = vsub.f32 %v1971, %v2905
    %v3300 = vsub.f32 %v1972, %v2909
    %v3301 = vsub.f32 %v1973, %v2913
    %v3302 = vsub.f32 %v1974, %v2917
    %v3303 = vsub.f32 %v1975, %v2921
    %v3304 = vsub.f32 %v1976, %v2925
    %v3305 = vsub.f32 %v1977, %v2929
    %v3306 = vsub.f32 %v1978, %v2933
    %v3307 = vsub.f32 %v1979, %v2937
    %v3308 = vsub.f32 %v1980, %v2941
    %v3309 = vsub.f32 %v1981, %v2945
    %v3310 = vsub.f32 %v1982, %v2949
    %v3311 = vsub.f32 %v1983, %v2953
    %v3312 = vsub.f32 %v1984, %v2960
    %v3313 = vsub.f32 %v1985, %v2964
    %v3314 = vsub.f32 %v1986, %v2968
    %v3315 = vsub.f32 %v1987, %v2972
    %v3316 = vsub.f32 %v1988, %v2976
    %v3317 = vsub.f32 %v1989, %v2980
    %v3318 = vsub.f32 %v1990, %v2984
    %v3319 = vsub.f32 %v1991, %v2988
    %v3320 = vsub.f32 %v1992, %v2992
    %v3321 = vsub.f32 %v1993, %v2996
    %v3322 = vsub.f32 %v1994, %v3000
    %v3323 = vsub.f32 %v1995, %v3004
    %v3324 = vsub.f32 %v1996, %v3008
    %v3325 = vsub.f32 %v1997, %v3012
    %v3326 = vsub.f32 %v1998, %v3016
    %v3327 = vsub.f32 %v1999, %v3020
    %v3328 = vsub.f32 %v2000, %v3027
    %v3329 = vsub.f32 %v2001, %v3031
    %v3330 = vsub.f32 %v2002, %v3035
    %v3331 = vsub.f32 %v2003, %v3039
    %v3332 = vsub.f32 %v2004, %v3043
    %v3333 = vsub.f32 %v2005, %v3047
    %v3334 = vsub.f32 %v2006, %v3051
    %v3335 = vsub.f32 %v2007, %v3055
    %v3336 = vsub.f32 %v2008, %v3059
    %v3337 = vsub.f32 %v2009, %v3063
    %v3338 = vsub.f32 %v2010, %v3067
    %v3339 = vsub.f32 %v2011, %v3071
    %v3340 = vsub.f32 %v2012, %v3075
    %v3341 = vsub.f32 %v2013, %v3079
    %v3342 = vsub.f32 %v2014, %v3083
    %v3343 = vsub.f32 %v2015, %v3087
    %v3344 = vmul.f32 %v3088, 1.442695
    %v3345 = vpow.pop %v3344
    %v3346 = vmul.f32 %v3089, 1.442695
    %v3347 = vpow.pop %v3346
    %v3348 = vmul.f32 %v3090, 1.442695
    %v3349 = vpow.pop %v3348
    %v3350 = vmul.f32 %v3091, 1.442695
    %v3351 = vpow.pop %v3350
    %v3352 = vmul.f32 %v3092, 1.442695
    %v3353 = vpow.pop %v3352
    %v3354 = vmul.f32 %v3093, 1.442695
    %v3355 = vpow.pop %v3354
    %v3356 = vmul.f32 %v3094, 1.442695
    %v3357 = vpow.pop %v3356
    %v3358 = vmul.f32 %v3095, 1.442695
    %v3359 = vpow.pop %v3358
    %v3360 = vmul.f32 %v3096, 1.442695
    %v3361 = vpow.pop %v3360
    %v3362 = vmul.f32 %v3097, 1.442695
    %v3363 = vpow.pop %v3362
    %v3364 = vmul.f32 %v3098, 1.442695
    %v3365 = vpow.pop %v3364
    %v3366 = vmul.f32 %v3099, 1.442695
    %v3367 = vpow.pop %v3366
    %v3368 = vmul.f32 %v3100, 1.442695
    %v3369 = vpow.pop %v3368
    %v3370 = vmul.f32 %v3101, 1.442695
    %v3371 = vpow.pop %v3370
    %v3372 = vmul.f32 %v3102, 1.442695
    %v3373 = vpow.pop %v3372
    %v3374 = vmul.f32 %v3103, 1.442695
    %v3375 = vpow.pop %v3374
    %v3376 = vmul.f32 %v3104, 1.442695
    %v3377 = vpow.pop %v3376
    %v3378 = vmul.f32 %v3105, 1.442695
    %v3379 = vpow.pop %v3378
    %v3380 = vmul.f32 %v3106, 1.442695
    %v3381 = vpow.pop %v3380
    %v3382 = vmul.f32 %v3107, 1.442695
    %v3383 = vpow.pop %v3382
    %v3384 = vmul.f32 %v3108, 1.442695
    %v3385 = vpow.pop %v3384
    %v3386 = vmul.f32 %v3109, 1.442695
    %v3387 = vpow.pop %v3386
    %v3388 = vmul.f32 %v3110, 1.442695
    %v3389 = vpow.pop %v3388
    %v3390 = vmul.f32 %v3111, 1.442695
    %v3391 = vpow.pop %v3390
    %v3392 = vmul.f32 %v3112, 1.442695
    %v3393 = vpow.pop %v3392
    %v3394 = vmul.f32 %v3113, 1.442695
    %v3395 = vpow.pop %v3394
    %v3396 = vmul.f32 %v3114, 1.442695
    %v3397 = vpow.pop %v3396
    %v3398 = vmul.f32 %v3115, 1.442695
    %v3399 = vpow.pop %v3398
    %v3400 = vmul.f32 %v3116, 1.442695
    %v3401 = vpow.pop %v3400
    %v3402 = vmul.f32 %v3117, 1.442695
    %v3403 = vpow.pop %v3402
    %v3404 = vmul.f32 %v3118, 1.442695
    %v3405 = vpow.pop %v3404
    %v3406 = vmul.f32 %v3119, 1.442695
    %v3407 = vpow.pop %v3406
    %v3408 = vmul.f32 %v3120, 1.442695
    %v3409 = vpow.pop %v3408
    %v3410 = vmul.f32 %v3121, 1.442695
    %v3411 = vpow.pop %v3410
    %v3412 = vmul.f32 %v3122, 1.442695
    %v3413 = vpow.pop %v3412
    %v3414 = vmul.f32 %v3123, 1.442695
    %v3415 = vpow.pop %v3414
    %v3416 = vmul.f32 %v3124, 1.442695
    %v3417 = vpow.pop %v3416
    %v3418 = vmul.f32 %v3125, 1.442695
    %v3419 = vpow.pop %v3418
    %v3420 = vmul.f32 %v3126, 1.442695
    %v3421 = vpow.pop %v3420
    %v3422 = vmul.f32 %v3127, 1.442695
    %v3423 = vpow.pop %v3422
    %v3424 = vmul.f32 %v3128, 1.442695
    %v3425 = vpow.pop %v3424
    %v3426 = vmul.f32 %v3129, 1.442695
    %v3427 = vpow.pop %v3426
    %v3428 = vmul.f32 %v3130, 1.442695
    %v3429 = vpow.pop %v3428
    %v3430 = vmul.f32 %v3131, 1.442695
    %v3431 = vpow.pop %v3430
    %v3432 = vmul.f32 %v3132, 1.442695
    %v3433 = vpow.pop %v3432
    %v3434 = vmul.f32 %v3133, 1.442695
    %v3435 = vpow.pop %v3434
    %v3436 = vmul.f32 %v3134, 1.442695
    %v3437 = vpow.pop %v3436
    %v3438 = vmul.f32 %v3135, 1.442695
    %v3439 = vpow.pop %v3438
    %v3440 = vmul.f32 %v3136, 1.442695
    %v3441 = vpow.pop %v3440
    %v3442 = vmul.f32 %v3137, 1.442695
    %v3443 = vpow.pop %v3442
    %v3444 = vmul.f32 %v3138, 1.442695
    %v3445 = vpow.pop %v3444
    %v3446 = vmul.f32 %v3139, 1.442695
    %v3447 = vpow.pop %v3446
    %v3448 = vmul.f32 %v3140, 1.442695
    %v3449 = vpow.pop %v3448
    %v3450 = vmul.f32 %v3141, 1.442695
    %v3451 = vpow.pop %v3450
    %v3452 = vmul.f32 %v3142, 1.442695
    %v3453 = vpow.pop %v3452
    %v3454 = vmul.f32 %v3143, 1.442695
    %v3455 = vpow.pop %v3454
    %v3456 = vmul.f32 %v3144, 1.442695
    %v3457 = vpow.pop %v3456
    %v3458 = vmul.f32 %v3145, 1.442695
    %v3459 = vpow.pop %v3458
    %v3460 = vmul.f32 %v3146, 1.442695
    %v3461 = vpow.pop %v3460
    %v3462 = vmul.f32 %v3147, 1.442695
    %v3463 = vpow.pop %v3462
    %v3464 = vmul.f32 %v3148, 1.442695
    %v3465 = vpow.pop %v3464
    %v3466 = vmul.f32 %v3149, 1.442695
    %v3467 = vpow.pop %v3466
    %v3468 = vmul.f32 %v3150, 1.442695
    %v3469 = vpow.pop %v3468
    %v3470 = vmul.f32 %v3151, 1.442695
    %v3471 = vpow.pop %v3470
    %v3472 = vmul.f32 %v3152, 1.442695
    %v3473 = vpow.pop %v3472
    %v3474 = vmul.f32 %v3153, 1.442695
    %v3475 = vpow.pop %v3474
    %v3476 = vmul.f32 %v3154, 1.442695
    %v3477 = vpow.pop %v3476
    %v3478 = vmul.f32 %v3155, 1.442695
    %v3479 = vpow.pop %v3478
    %v3480 = vmul.f32 %v3156, 1.442695
    %v3481 = vpow.pop %v3480
    %v3482 = vmul.f32 %v3157, 1.442695
    %v3483 = vpow.pop %v3482
    %v3484 = vmul.f32 %v3158, 1.442695
    %v3485 = vpow.pop %v3484
    %v3486 = vmul.f32 %v3159, 1.442695
    %v3487 = vpow.pop %v3486
    %v3488 = vmul.f32 %v3160, 1.442695
    %v3489 = vpow.pop %v3488
    %v3490 = vmul.f32 %v3161, 1.442695
    %v3491 = vpow.pop %v3490
    %v3492 = vmul.f32 %v3162, 1.442695
    %v3493 = vpow.pop %v3492
    %v3494 = vmul.f32 %v3163, 1.442695
    %v3495 = vpow.pop %v3494
    %v3496 = vmul.f32 %v3164, 1.442695
    %v3497 = vpow.pop %v3496
    %v3498 = vmul.f32 %v3165, 1.442695
    %v3499 = vpow.pop %v3498
    %v3500 = vmul.f32 %v3166, 1.442695
    %v3501 = vpow.pop %v3500
    %v3502 = vmul.f32 %v3167, 1.442695
    %v3503 = vpow.pop %v3502
    %v3504 = vmul.f32 %v3168, 1.442695
    %v3505 = vpow.pop %v3504
    %v3506 = vmul.f32 %v3169, 1.442695
    %v3507 = vpow.pop %v3506
    %v3508 = vmul.f32 %v3170, 1.442695
    %v3509 = vpow.pop %v3508
    %v3510 = vmul.f32 %v3171, 1.442695
    %v3511 = vpow.pop %v3510
    %v3512 = vmul.f32 %v3172, 1.442695
    %v3513 = vpow.pop %v3512
    %v3514 = vmul.f32 %v3173, 1.442695
    %v3515 = vpow.pop %v3514
    %v3516 = vmul.f32 %v3174, 1.442695
    %v3517 = vpow.pop %v3516
    %v3518 = vmul.f32 %v3175, 1.442695
    %v3519 = vpow.pop %v3518
    %v3520 = vmul.f32 %v3176, 1.442695
    %v3521 = vpow.pop %v3520
    %v3522 = vmul.f32 %v3177, 1.442695
    %v3523 = vpow.pop %v3522
    %v3524 = vmul.f32 %v3178, 1.442695
    %v3525 = vpow.pop %v3524
    %v3526 = vmul.f32 %v3179, 1.442695
    %v3527 = vpow.pop %v3526
    %v3528 = vmul.f32 %v3180, 1.442695
    %v3529 = vpow.pop %v3528
    %v3530 = vmul.f32 %v3181, 1.442695
    %v3531 = vpow.pop %v3530
    %v3532 = vmul.f32 %v3182, 1.442695
    %v3533 = vpow.pop %v3532
    %v3534 = vmul.f32 %v3183, 1.442695
    %v3535 = vpow.pop %v3534
    %v3536 = vmul.f32 %v3184, 1.442695
    %v3537 = vpow.pop %v3536
    %v3538 = vmul.f32 %v3185, 1.442695
    %v3539 = vpow.pop %v3538
    %v3540 = vmul.f32 %v3186, 1.442695
    %v3541 = vpow.pop %v3540
    %v3542 = vmul.f32 %v3187, 1.442695
    %v3543 = vpow.pop %v3542
    %v3544 = vmul.f32 %v3188, 1.442695
    %v3545 = vpow.pop %v3544
    %v3546 = vmul.f32 %v3189, 1.442695
    %v3547 = vpow.pop %v3546
    %v3548 = vmul.f32 %v3190, 1.442695
    %v3549 = vpow.pop %v3548
    %v3550 = vmul.f32 %v3191, 1.442695
    %v3551 = vpow.pop %v3550
    %v3552 = vmul.f32 %v3192, 1.442695
    %v3553 = vpow.pop %v3552
    %v3554 = vmul.f32 %v3193, 1.442695
    %v3555 = vpow.pop %v3554
    %v3556 = vmul.f32 %v3194, 1.442695
    %v3557 = vpow.pop %v3556
    %v3558 = vmul.f32 %v3195, 1.442695
    %v3559 = vpow.pop %v3558
    %v3560 = vmul.f32 %v3196, 1.442695
    %v3561 = vpow.pop %v3560
    %v3562 = vmul.f32 %v3197, 1.442695
    %v3563 = vpow.pop %v3562
    %v3564 = vmul.f32 %v3198, 1.442695
    %v3565 = vpow.pop %v3564
    %v3566 = vmul.f32 %v3199, 1.442695
    %v3567 = vpow.pop %v3566
    %v3568 = vmul.f32 %v3200, 1.442695
    %v3569 = vpow.pop %v3568
    %v3570 = vmul.f32 %v3201, 1.442695
    %v3571 = vpow.pop %v3570
    %v3572 = vmul.f32 %v3202, 1.442695
    %v3573 = vpow.pop %v3572
    %v3574 = vmul.f32 %v3203, 1.442695
    %v3575 = vpow.pop %v3574
    %v3576 = vmul.f32 %v3204, 1.442695
    %v3577 = vpow.pop %v3576
    %v3578 = vmul.f32 %v3205, 1.442695
    %v3579 = vpow.pop %v3578
    %v3580 = vmul.f32 %v3206, 1.442695
    %v3581 = vpow.pop %v3580
    %v3582 = vmul.f32 %v3207, 1.442695
    %v3583 = vpow.pop %v3582
    %v3584 = vmul.f32 %v3208, 1.442695
    %v3585 = vpow.pop %v3584
    %v3586 = vmul.f32 %v3209, 1.442695
    %v3587 = vpow.pop %v3586
    %v3588 = vmul.f32 %v3210, 1.442695
    %v3589 = vpow.pop %v3588
    %v3590 = vmul.f32 %v3211, 1.442695
    %v3591 = vpow.pop %v3590
    %v3592 = vmul.f32 %v3212, 1.442695
    %v3593 = vpow.pop %v3592
    %v3594 = vmul.f32 %v3213, 1.442695
    %v3595 = vpow.pop %v3594
    %v3596 = vmul.f32 %v3214, 1.442695
    %v3597 = vpow.pop %v3596
    %v3598 = vmul.f32 %v3215, 1.442695
    %v3599 = vpow.pop %v3598
    %v3600 = vmul.f32 %v3216, 1.442695
    %v3601 = vpow.pop %v3600
    %v3602 = vmul.f32 %v3217, 1.442695
    %v3603 = vpow.pop %v3602
    %v3604 = vmul.f32 %v3218, 1.442695
    %v3605 = vpow.pop %v3604
    %v3606 = vmul.f32 %v3219, 1.442695
    %v3607 = vpow.pop %v3606
    %v3608 = vmul.f32 %v3220, 1.442695
    %v3609 = vpow.pop %v3608
    %v3610 = vmul.f32 %v3221, 1.442695
    %v3611 = vpow.pop %v3610
    %v3612 = vmul.f32 %v3222, 1.442695
    %v3613 = vpow.pop %v3612
    %v3614 = vmul.f32 %v3223, 1.442695
    %v3615 = vpow.pop %v3614
    %v3616 = vmul.f32 %v3224, 1.442695
    %v3617 = vpow.pop %v3616
    %v3618 = vmul.f32 %v3225, 1.442695
    %v3619 = vpow.pop %v3618
    %v3620 = vmul.f32 %v3226, 1.442695
    %v3621 = vpow.pop %v3620
    %v3622 = vmul.f32 %v3227, 1.442695
    %v3623 = vpow.pop %v3622
    %v3624 = vmul.f32 %v3228, 1.442695
    %v3625 = vpow.pop %v3624
    %v3626 = vmul.f32 %v3229, 1.442695
    %v3627 = vpow.pop %v3626
    %v3628 = vmul.f32 %v3230, 1.442695
    %v3629 = vpow.pop %v3628
    %v3630 = vmul.f32 %v3231, 1.442695
    %v3631 = vpow.pop %v3630
    %v3632 = vmul.f32 %v3232, 1.442695
    %v3633 = vpow.pop %v3632
    %v3634 = vmul.f32 %v3233, 1.442695
    %v3635 = vpow.pop %v3634
    %v3636 = vmul.f32 %v3234, 1.442695
    %v3637 = vpow.pop %v3636
    %v3638 = vmul.f32 %v3235, 1.442695
    %v3639 = vpow.pop %v3638
    %v3640 = vmul.f32 %v3236, 1.442695
    %v3641 = vpow.pop %v3640
    %v3642 = vmul.f32 %v3237, 1.442695
    %v3643 = vpow.pop %v3642
    %v3644 = vmul.f32 %v3238, 1.442695
    %v3645 = vpow.pop %v3644
    %v3646 = vmul.f32 %v3239, 1.442695
    %v3647 = vpow.pop %v3646
    %v3648 = vmul.f32 %v3240, 1.442695
    %v3649 = vpow.pop %v3648
    %v3650 = vmul.f32 %v3241, 1.442695
    %v3651 = vpow.pop %v3650
    %v3652 = vmul.f32 %v3242, 1.442695
    %v3653 = vpow.pop %v3652
    %v3654 = vmul.f32 %v3243, 1.442695
    %v3655 = vpow.pop %v3654
    %v3656 = vmul.f32 %v3244, 1.442695
    %v3657 = vpow.pop %v3656
    %v3658 = vmul.f32 %v3245, 1.442695
    %v3659 = vpow.pop %v3658
    %v3660 = vmul.f32 %v3246, 1.442695
    %v3661 = vpow.pop %v3660
    %v3662 = vmul.f32 %v3247, 1.442695
    %v3663 = vpow.pop %v3662
    %v3664 = vmul.f32 %v3248, 1.442695
    %v3665 = vpow.pop %v3664
    %v3666 = vmul.f32 %v3249, 1.442695
    %v3667 = vpow.pop %v3666
    %v3668 = vmul.f32 %v3250, 1.442695
    %v3669 = vpow.pop %v3668
    %v3670 = vmul.f32 %v3251, 1.442695
    %v3671 = vpow.pop %v3670
    %v3672 = vmul.f32 %v3252, 1.442695
    %v3673 = vpow.pop %v3672
    %v3674 = vmul.f32 %v3253, 1.442695
    %v3675 = vpow.pop %v3674
    %v3676 = vmul.f32 %v3254, 1.442695
    %v3677 = vpow.pop %v3676
    %v3678 = vmul.f32 %v3255, 1.442695
    %v3679 = vpow.pop %v3678
    %v3680 = vmul.f32 %v3256, 1.442695
    %v3681 = vpow.pop %v3680
    %v3682 = vmul.f32 %v3257, 1.442695
    %v3683 = vpow.pop %v3682
    %v3684 = vmul.f32 %v3258, 1.442695
    %v3685 = vpow.pop %v3684
    %v3686 = vmul.f32 %v3259, 1.442695
    %v3687 = vpow.pop %v3686
    %v3688 = vmul.f32 %v3260, 1.442695
    %v3689 = vpow.pop %v3688
    %v3690 = vmul.f32 %v3261, 1.442695
    %v3691 = vpow.pop %v3690
    %v3692 = vmul.f32 %v3262, 1.442695
    %v3693 = vpow.pop %v3692
    %v3694 = vmul.f32 %v3263, 1.442695
    %v3695 = vpow.pop %v3694
    %v3696 = vmul.f32 %v3264, 1.442695
    %v3697 = vpow.pop %v3696
    %v3698 = vmul.f32 %v3265, 1.442695
    %v3699 = vpow.pop %v3698
    %v3700 = vmul.f32 %v3266, 1.442695
    %v3701 = vpow.pop %v3700
    %v3702 = vmul.f32 %v3267, 1.442695
    %v3703 = vpow.pop %v3702
    %v3704 = vmul.f32 %v3268, 1.442695
    %v3705 = vpow.pop %v3704
    %v3706 = vmul.f32 %v3269, 1.442695
    %v3707 = vpow.pop %v3706
    %v3708 = vmul.f32 %v3270, 1.442695
    %v3709 = vpow.pop %v3708
    %v3710 = vmul.f32 %v3271, 1.442695
    %v3711 = vpow.pop %v3710
    %v3712 = vmul.f32 %v3272, 1.442695
    %v3713 = vpow.pop %v3712
    %v3714 = vmul.f32 %v3273, 1.442695
    %v3715 = vpow.pop %v3714
    %v3716 = vmul.f32 %v3274, 1.442695
    %v3717 = vpow.pop %v3716
    %v3718 = vmul.f32 %v3275, 1.442695
    %v3719 = vpow.pop %v3718
    %v3720 = vmul.f32 %v3276, 1.442695
    %v3721 = vpow.pop %v3720
    %v3722 = vmul.f32 %v3277, 1.442695
    %v3723 = vpow.pop %v3722
    %v3724 = vmul.f32 %v3278, 1.442695
    %v3725 = vpow.pop %v3724
    %v3726 = vmul.f32 %v3279, 1.442695
    %v3727 = vpow.pop %v3726
    %v3728 = vmul.f32 %v3280, 1.442695
    %v3729 = vpow.pop %v3728
    %v3730 = vmul.f32 %v3281, 1.442695
    %v3731 = vpow.pop %v3730
    %v3732 = vmul.f32 %v3282, 1.442695
    %v3733 = vpow.pop %v3732
    %v3734 = vmul.f32 %v3283, 1.442695
    %v3735 = vpow.pop %v3734
    %v3736 = vmul.f32 %v3284, 1.442695
    %v3737 = vpow.pop %v3736
    %v3738 = vmul.f32 %v3285, 1.442695
    %v3739 = vpow.pop %v3738
    %v3740 = vmul.f32 %v3286, 1.442695
    %v3741 = vpow.pop %v3740
    %v3742 = vmul.f32 %v3287, 1.442695
    %v3743 = vpow.pop %v3742
    %v3744 = vmul.f32 %v3288, 1.442695
    %v3745 = vpow.pop %v3744
    %v3746 = vmul.f32 %v3289, 1.442695
    %v3747 = vpow.pop %v3746
    %v3748 = vmul.f32 %v3290, 1.442695
    %v3749 = vpow.pop %v3748
    %v3750 = vmul.f32 %v3291, 1.442695
    %v3751 = vpow.pop %v3750
    %v3752 = vmul.f32 %v3292, 1.442695
    %v3753 = vpow.pop %v3752
    %v3754 = vmul.f32 %v3293, 1.442695
    %v3755 = vpow.pop %v3754
    %v3756 = vmul.f32 %v3294, 1.442695
    %v3757 = vpow.pop %v3756
    %v3758 = vmul.f32 %v3295, 1.442695
    %v3759 = vpow.pop %v3758
    %v3760 = vmul.f32 %v3296, 1.442695
    %v3761 = vpow.pop %v3760
    %v3762 = vmul.f32 %v3297, 1.442695
    %v3763 = vpow.pop %v3762
    %v3764 = vmul.f32 %v3298, 1.442695
    %v3765 = vpow.pop %v3764
    %v3766 = vmul.f32 %v3299, 1.442695
    %v3767 = vpow.pop %v3766
    %v3768 = vmul.f32 %v3300, 1.442695
    %v3769 = vpow.pop %v3768
    %v3770 = vmul.f32 %v3301, 1.442695
    %v3771 = vpow.pop %v3770
    %v3772 = vmul.f32 %v3302, 1.442695
    %v3773 = vpow.pop %v3772
    %v3774 = vmul.f32 %v3303, 1.442695
    %v3775 = vpow.pop %v3774
    %v3776 = vmul.f32 %v3304, 1.442695
    %v3777 = vpow.pop %v3776
    %v3778 = vmul.f32 %v3305, 1.442695
    %v3779 = vpow.pop %v3778
    %v3780 = vmul.f32 %v3306, 1.442695
    %v3781 = vpow.pop %v3780
    %v3782 = vmul.f32 %v3307, 1.442695
    %v3783 = vpow.pop %v3782
    %v3784 = vmul.f32 %v3308, 1.442695
    %v3785 = vpow.pop %v3784
    %v3786 = vmul.f32 %v3309, 1.442695
    %v3787 = vpow.pop %v3786
    %v3788 = vmul.f32 %v3310, 1.442695
    %v3789 = vpow.pop %v3788
    %v3790 = vmul.f32 %v3311, 1.442695
    %v3791 = vpow.pop %v3790
    %v3792 = vmul.f32 %v3312, 1.442695
    %v3793 = vpow.pop %v3792
    %v3794 = vmul.f32 %v3313, 1.442695
    %v3795 = vpow.pop %v3794
    %v3796 = vmul.f32 %v3314, 1.442695
    %v3797 = vpow.pop %v3796
    %v3798 = vmul.f32 %v3315, 1.442695
    %v3799 = vpow.pop %v3798
    %v3800 = vmul.f32 %v3316, 1.442695
    %v3801 = vpow.pop %v3800
    %v3802 = vmul.f32 %v3317, 1.442695
    %v3803 = vpow.pop %v3802
    %v3804 = vmul.f32 %v3318, 1.442695
    %v3805 = vpow.pop %v3804
    %v3806 = vmul.f32 %v3319, 1.442695
    %v3807 = vpow.pop %v3806
    %v3808 = vmul.f32 %v3320, 1.442695
    %v3809 = vpow.pop %v3808
    %v3810 = vmul.f32 %v3321, 1.442695
    %v3811 = vpow.pop %v3810
    %v3812 = vmul.f32 %v3322, 1.442695
    %v3813 = vpow.pop %v3812
    %v3814 = vmul.f32 %v3323, 1.442695
    %v3815 = vpow.pop %v3814
    %v3816 = vmul.f32 %v3324, 1.442695
    %v3817 = vpow.pop %v3816
    %v3818 = vmul.f32 %v3325, 1.442695
    %v3819 = vpow.pop %v3818
    %v3820 = vmul.f32 %v3326, 1.442695
    %v3821 = vpow.pop %v3820
    %v3822 = vmul.f32 %v3327, 1.442695
    %v3823 = vpow.pop %v3822
    %v3824 = vmul.f32 %v3328, 1.442695
    %v3825 = vpow.pop %v3824
    %v3826 = vmul.f32 %v3329, 1.442695
    %v3827 = vpow.pop %v3826
    %v3828 = vmul.f32 %v3330, 1.442695
    %v3829 = vpow.pop %v3828
    %v3830 = vmul.f32 %v3331, 1.442695
    %v3831 = vpow.pop %v3830
    %v3832 = vmul.f32 %v3332, 1.442695
    %v3833 = vpow.pop %v3832
    %v3834 = vmul.f32 %v3333, 1.442695
    %v3835 = vpow.pop %v3834
    %v3836 = vmul.f32 %v3334, 1.442695
    %v3837 = vpow.pop %v3836
    %v3838 = vmul.f32 %v3335, 1.442695
    %v3839 = vpow.pop %v3838
    %v3840 = vmul.f32 %v3336, 1.442695
    %v3841 = vpow.pop %v3840
    %v3842 = vmul.f32 %v3337, 1.442695
    %v3843 = vpow.pop %v3842
    %v3844 = vmul.f32 %v3338, 1.442695
    %v3845 = vpow.pop %v3844
    %v3846 = vmul.f32 %v3339, 1.442695
    %v3847 = vpow.pop %v3846
    %v3848 = vmul.f32 %v3340, 1.442695
    %v3849 = vpow.pop %v3848
    %v3850 = vmul.f32 %v3341, 1.442695
    %v3851 = vpow.pop %v3850
    %v3852 = vmul.f32 %v3342, 1.442695
    %v3853 = vpow.pop %v3852
    %v3854 = vmul.f32 %v3343, 1.442695
    %v3855 = vpow.pop %v3854
    %v3858 = vcombine.high %v488, %v488
    %v3860 = vunpack.c.l.s4 1966171168
    %v3861 = vunpack.c.0.s8 %v3860
    %v3862 = vlaneseq
    %v3863 = vshrl.u32 %v3862, 7
    %v3864 = vsub.s32 %v3861, %v3863
    %v3865 = vrot.slane %v488, %v3864
    %v3867 = vunpack.c.l.s4 1966171168
    %v3868 = vunpack.c.0.s8 %v3867
    %v3869 = vlaneseq
    %v3870 = vshrl.u32 %v3869, 7
    %v3871 = vsub.s32 %v3868, %v3870
    %v3872 = vrot.slane %v3858, %v3871
    %v3873 = vcombine.high %v3865, %v3865
    %v3874 = vcombine.high %v3872, %v3872
    %v3876 = vunpack.c.l.s4 1966171168
    %v3877 = vunpack.c.0.s8 %v3876
    %v3878 = vlaneseq
    %v3879 = vshrl.u32 %v3878, 7
    %v3880 = vsub.s32 %v3877, %v3879
    %v3881 = vrot.slane %v3865, %v3880
    %v3883 = vunpack.c.l.s4 1966171168
    %v3884 = vunpack.c.0.s8 %v3883
    %v3885 = vlaneseq
    %v3886 = vshrl.u32 %v3885, 7
    %v3887 = vsub.s32 %v3884, %v3886
    %v3888 = vrot.slane %v3872, %v3887
    %v3890 = vunpack.c.l.s4 1966171168
    %v3891 = vunpack.c.0.s8 %v3890
    %v3892 = vlaneseq
    %v3893 = vshrl.u32 %v3892, 7
    %v3894 = vsub.s32 %v3891, %v3893
    %v3895 = vrot.slane %v3873, %v3894
    %v3897 = vunpack.c.l.s4 1966171168
    %v3898 = vunpack.c.0.s8 %v3897
    %v3899 = vlaneseq
    %v3900 = vshrl.u32 %v3899, 7
    %v3901 = vsub.s32 %v3898, %v3900
    %v3902 = vrot.slane %v3874, %v3901
    %v3903 = vcombine.high %v3881, %v3881
    %v3904 = vcombine.high %v3888, %v3888
    %v3905 = vcombine.high %v3895, %v3895
    %v3906 = vcombine.high %v3902, %v3902
    %v3907 = vcombine.high %v491, %v491
    %v3909 = vunpack.c.l.s4 1966171168
    %v3910 = vunpack.c.0.s8 %v3909
    %v3911 = vlaneseq
    %v3912 = vshrl.u32 %v3911, 7
    %v3913 = vsub.s32 %v3910, %v3912
    %v3914 = vrot.slane %v491, %v3913
    %v3916 = vunpack.c.l.s4 1966171168
    %v3917 = vunpack.c.0.s8 %v3916
    %v3918 = vlaneseq
    %v3919 = vshrl.u32 %v3918, 7
    %v3920 = vsub.s32 %v3917, %v3919
    %v3921 = vrot.slane %v3907, %v3920
    %v3922 = vcombine.high %v3914, %v3914
    %v3923 = vcombine.high %v3921, %v3921
    %v3925 = vunpack.c.l.s4 1966171168
    %v3926 = vunpack.c.0.s8 %v3925
    %v3927 = vlaneseq
    %v3928 = vshrl.u32 %v3927, 7
    %v3929 = vsub.s32 %v3926, %v3928
    %v3930 = vrot.slane %v3914, %v3929
    %v3932 = vunpack.c.l.s4 1966171168
    %v3933 = vunpack.c.0.s8 %v3932
    %v3934 = vlaneseq
    %v3935 = vshrl.u32 %v3934, 7
    %v3936 = vsub.s32 %v3933, %v3935
    %v3937 = vrot.slane %v3921, %v3936
    %v3939 = vunpack.c.l.s4 1966171168
    %v3940 = vunpack.c.0.s8 %v3939
    %v3941 = vlaneseq
    %v3942 = vshrl.u32 %v3941, 7
    %v3943 = vsub.s32 %v3940, %v3942
    %v3944 = vrot.slane %v3922, %v3943
    %v3946 = vunpack.c.l.s4 1966171168
    %v3947 = vunpack.c.0.s8 %v3946
    %v3948 = vlaneseq
    %v3949 = vshrl.u32 %v3948, 7
    %v3950 = vsub.s32 %v3947, %v3949
    %v3951 = vrot.slane %v3923, %v3950
    %v3952 = vcombine.high %v3930, %v3930
    %v3953 = vcombine.high %v3937, %v3937
    %v3954 = vcombine.high %v3944, %v3944
    %v3955 = vcombine.high %v3951, %v3951
    %v3956 = vlaneseq
    %v3957 = vshrl.u32 %v3956, 7
    %v3958 = vsub.s32 0, %v3957
    %v3959 = vrot.slane %v3881, %v3958
    %v3960 = vlaneseq
    %v3961 = vshrl.u32 %v3960, 7
    %v3962 = vsub.s32 0, %v3961
    %v3963 = vrot.slane %v3895, %v3962
    %v3964 = vlaneseq
    %v3965 = vshrl.u32 %v3964, 7
    %v3966 = vsub.s32 0, %v3965
    %v3967 = vrot.slane %v3903, %v3966
    %v3968 = vlaneseq
    %v3969 = vshrl.u32 %v3968, 7
    %v3970 = vsub.s32 0, %v3969
    %v3971 = vrot.slane %v3905, %v3970
    %v3972 = vlaneseq
    %v3973 = vshrl.u32 %v3972, 7
    %v3974 = vsub.s32 0, %v3973
    %v3975 = vrot.slane %v3888, %v3974
    %v3976 = vlaneseq
    %v3977 = vshrl.u32 %v3976, 7
    %v3978 = vsub.s32 0, %v3977
    %v3979 = vrot.slane %v3902, %v3978
    %v3980 = vlaneseq
    %v3981 = vshrl.u32 %v3980, 7
    %v3982 = vsub.s32 0, %v3981
    %v3983 = vrot.slane %v3904, %v3982
    %v3984 = vlaneseq
    %v3985 = vshrl.u32 %v3984, 7
    %v3986 = vsub.s32 0, %v3985
    %v3987 = vrot.slane %v3906, %v3986
    %v3988 = vlaneseq
    %v3989 = vshrl.u32 %v3988, 7
    %v3990 = vsub.s32 0, %v3989
    %v3991 = vrot.slane %v3930, %v3990
    %v3992 = vlaneseq
    %v3993 = vshrl.u32 %v3992, 7
    %v3994 = vsub.s32 0, %v3993
    %v3995 = vrot.slane %v3944, %v3994
    %v3996 = vlaneseq
    %v3997 = vshrl.u32 %v3996, 7
    %v3998 = vsub.s32 0, %v3997
    %v3999 = vrot.slane %v3952, %v3998
    %v4000 = vlaneseq
    %v4001 = vshrl.u32 %v4000, 7
    %v4002 = vsub.s32 0, %v4001
    %v4003 = vrot.slane %v3954, %v4002
    %v4004 = vlaneseq
    %v4005 = vshrl.u32 %v4004, 7
    %v4006 = vsub.s32 0, %v4005
    %v4007 = vrot.slane %v3937, %v4006
    %v4008 = vlaneseq
    %v4009 = vshrl.u32 %v4008, 7
    %v4010 = vsub.s32 0, %v4009
    %v4011 = vrot.slane %v3951, %v4010
    %v4012 = vlaneseq
    %v4013 = vshrl.u32 %v4012, 7
    %v4014 = vsub.s32 0, %v4013
    %v4015 = vrot.slane %v3953, %v4014
    %v4016 = vlaneseq
    %v4017 = vshrl.u32 %v4016, 7
    %v4018 = vsub.s32 0, %v4017
    %v4019 = vrot.slane %v3955, %v4018
    %v4036 = vmul.f32 %v3345, %v3959
    %v4037 = vmul.f32 %v3347, %v3959
    %v4038 = vmul.f32 %v3349, %v3959
    %v4039 = vmul.f32 %v3351, %v3959
    %v4040 = vmul.f32 %v3353, %v3959
    %v4041 = vmul.f32 %v3355, %v3959
    %v4042 = vmul.f32 %v3357, %v3959
    %v4043 = vmul.f32 %v3359, %v3959
    %v4044 = vmul.f32 %v3361, %v3959
    %v4045 = vmul.f32 %v3363, %v3959
    %v4046 = vmul.f32 %v3365, %v3959
    %v4047 = vmul.f32 %v3367, %v3959
    %v4048 = vmul.f32 %v3369, %v3959
    %v4049 = vmul.f32 %v3371, %v3959
    %v4050 = vmul.f32 %v3373, %v3959
    %v4051 = vmul.f32 %v3375, %v3959
    %v4052 = vmul.f32 %v3377, %v3963
    %v4053 = vmul.f32 %v3379, %v3963
    %v4054 = vmul.f32 %v3381, %v3963
    %v4055 = vmul.f32 %v3383, %v3963
    %v4056 = vmul.f32 %v3385, %v3963
    %v4057 = vmul.f32 %v3387, %v3963
    %v4058 = vmul.f32 %v3389, %v3963
    %v4059 = vmul.f32 %v3391, %v3963
    %v4060 = vmul.f32 %v3393, %v3963
    %v4061 = vmul.f32 %v3395, %v3963
    %v4062 = vmul.f32 %v3397, %v3963
    %v4063 = vmul.f32 %v3399, %v3963
    %v4064 = vmul.f32 %v3401, %v3963
    %v4065 = vmul.f32 %v3403, %v3963
    %v4066 = vmul.f32 %v3405, %v3963
    %v4067 = vmul.f32 %v3407, %v3963
    %v4068 = vmul.f32 %v3409, %v3967
    %v4069 = vmul.f32 %v3411, %v3967
    %v4070 = vmul.f32 %v3413, %v3967
    %v4071 = vmul.f32 %v3415, %v3967
    %v4072 = vmul.f32 %v3417, %v3967
    %v4073 = vmul.f32 %v3419, %v3967
    %v4074 = vmul.f32 %v3421, %v3967
    %v4075 = vmul.f32 %v3423, %v3967
    %v4076 = vmul.f32 %v3425, %v3967
    %v4077 = vmul.f32 %v3427, %v3967
    %v4078 = vmul.f32 %v3429, %v3967
    %v4079 = vmul.f32 %v3431, %v3967
    %v4080 = vmul.f32 %v3433, %v3967
    %v4081 = vmul.f32 %v3435, %v3967
    %v4082 = vmul.f32 %v3437, %v3967
    %v4083 = vmul.f32 %v3439, %v3967
    %v4084 = vmul.f32 %v3441, %v3971
    %v4085 = vmul.f32 %v3443, %v3971
    %v4086 = vmul.f32 %v3445, %v3971
    %v4087 = vmul.f32 %v3447, %v3971
    %v4088 = vmul.f32 %v3449, %v3971
    %v4089 = vmul.f32 %v3451, %v3971
    %v4090 = vmul.f32 %v3453, %v3971
    %v4091 = vmul.f32 %v3455, %v3971
    %v4092 = vmul.f32 %v3457, %v3971
    %v4093 = vmul.f32 %v3459, %v3971
    %v4094 = vmul.f32 %v3461, %v3971
    %v4095 = vmul.f32 %v3463, %v3971
    %v4096 = vmul.f32 %v3465, %v3971
    %v4097 = vmul.f32 %v3467, %v3971
    %v4098 = vmul.f32 %v3469, %v3971
    %v4099 = vmul.f32 %v3471, %v3971
    %v4100 = vmul.f32 %v3473, %v3975
    %v4101 = vmul.f32 %v3475, %v3975
    %v4102 = vmul.f32 %v3477, %v3975
    %v4103 = vmul.f32 %v3479, %v3975
    %v4104 = vmul.f32 %v3481, %v3975
    %v4105 = vmul.f32 %v3483, %v3975
    %v4106 = vmul.f32 %v3485, %v3975
    %v4107 = vmul.f32 %v3487, %v3975
    %v4108 = vmul.f32 %v3489, %v3975
    %v4109 = vmul.f32 %v3491, %v3975
    %v4110 = vmul.f32 %v3493, %v3975
    %v4111 = vmul.f32 %v3495, %v3975
    %v4112 = vmul.f32 %v3497, %v3975
    %v4113 = vmul.f32 %v3499, %v3975
    %v4114 = vmul.f32 %v3501, %v3975
    %v4115 = vmul.f32 %v3503, %v3975
    %v4116 = vmul.f32 %v3505, %v3979
    %v4117 = vmul.f32 %v3507, %v3979
    %v4118 = vmul.f32 %v3509, %v3979
    %v4119 = vmul.f32 %v3511, %v3979
    %v4120 = vmul.f32 %v3513, %v3979
    %v4121 = vmul.f32 %v3515, %v3979
    %v4122 = vmul.f32 %v3517, %v3979
    %v4123 = vmul.f32 %v3519, %v3979
    %v4124 = vmul.f32 %v3521, %v3979
    %v4125 = vmul.f32 %v3523, %v3979
    %v4126 = vmul.f32 %v3525, %v3979
    %v4127 = vmul.f32 %v3527, %v3979
    %v4128 = vmul.f32 %v3529, %v3979
    %v4129 = vmul.f32 %v3531, %v3979
    %v4130 = vmul.f32 %v3533, %v3979
    %v4131 = vmul.f32 %v3535, %v3979
    %v4132 = vmul.f32 %v3537, %v3983
    %v4133 = vmul.f32 %v3539, %v3983
    %v4134 = vmul.f32 %v3541, %v3983
    %v4135 = vmul.f32 %v3543, %v3983
    %v4136 = vmul.f32 %v3545, %v3983
    %v4137 = vmul.f32 %v3547, %v3983
    %v4138 = vmul.f32 %v3549, %v3983
    %v4139 = vmul.f32 %v3551, %v3983
    %v4140 = vmul.f32 %v3553, %v3983
    %v4141 = vmul.f32 %v3555, %v3983
    %v4142 = vmul.f32 %v3557, %v3983
    %v4143 = vmul.f32 %v3559, %v3983
    %v4144 = vmul.f32 %v3561, %v3983
    %v4145 = vmul.f32 %v3563, %v3983
    %v4146 = vmul.f32 %v3565, %v3983
    %v4147 = vmul.f32 %v3567, %v3983
    %v4148 = vmul.f32 %v3569, %v3987
    %v4149 = vmul.f32 %v3571, %v3987
    %v4150 = vmul.f32 %v3573, %v3987
    %v4151 = vmul.f32 %v3575, %v3987
    %v4152 = vmul.f32 %v3577, %v3987
    %v4153 = vmul.f32 %v3579, %v3987
    %v4154 = vmul.f32 %v3581, %v3987
    %v4155 = vmul.f32 %v3583, %v3987
    %v4156 = vmul.f32 %v3585, %v3987
    %v4157 = vmul.f32 %v3587, %v3987
    %v4158 = vmul.f32 %v3589, %v3987
    %v4159 = vmul.f32 %v3591, %v3987
    %v4160 = vmul.f32 %v3593, %v3987
    %v4161 = vmul.f32 %v3595, %v3987
    %v4162 = vmul.f32 %v3597, %v3987
    %v4163 = vmul.f32 %v3599, %v3987
    %v4164 = vmul.f32 %v3601, %v3991
    %v4165 = vmul.f32 %v3603, %v3991
    %v4166 = vmul.f32 %v3605, %v3991
    %v4167 = vmul.f32 %v3607, %v3991
    %v4168 = vmul.f32 %v3609, %v3991
    %v4169 = vmul.f32 %v3611, %v3991
    %v4170 = vmul.f32 %v3613, %v3991
    %v4171 = vmul.f32 %v3615, %v3991
    %v4172 = vmul.f32 %v3617, %v3991
    %v4173 = vmul.f32 %v3619, %v3991
    %v4174 = vmul.f32 %v3621, %v3991
    %v4175 = vmul.f32 %v3623, %v3991
    %v4176 = vmul.f32 %v3625, %v3991
    %v4177 = vmul.f32 %v3627, %v3991
    %v4178 = vmul.f32 %v3629, %v3991
    %v4179 = vmul.f32 %v3631, %v3991
    %v4180 = vmul.f32 %v3633, %v3995
    %v4181 = vmul.f32 %v3635, %v3995
    %v4182 = vmul.f32 %v3637, %v3995
    %v4183 = vmul.f32 %v3639, %v3995
    %v4184 = vmul.f32 %v3641, %v3995
    %v4185 = vmul.f32 %v3643, %v3995
    %v4186 = vmul.f32 %v3645, %v3995
    %v4187 = vmul.f32 %v3647, %v3995
    %v4188 = vmul.f32 %v3649, %v3995
    %v4189 = vmul.f32 %v3651, %v3995
    %v4190 = vmul.f32 %v3653, %v3995
    %v4191 = vmul.f32 %v3655, %v3995
    %v4192 = vmul.f32 %v3657, %v3995
    %v4193 = vmul.f32 %v3659, %v3995
    %v4194 = vmul.f32 %v3661, %v3995
    %v4195 = vmul.f32 %v3663, %v3995
    %v4196 = vmul.f32 %v3665, %v3999
    %v4197 = vmul.f32 %v3667, %v3999
    %v4198 = vmul.f32 %v3669, %v3999
    %v4199 = vmul.f32 %v3671, %v3999
    %v4200 = vmul.f32 %v3673, %v3999
    %v4201 = vmul.f32 %v3675, %v3999
    %v4202 = vmul.f32 %v3677, %v3999
    %v4203 = vmul.f32 %v3679, %v3999
    %v4204 = vmul.f32 %v3681, %v3999
    %v4205 = vmul.f32 %v3683, %v3999
    %v4206 = vmul.f32 %v3685, %v3999
    %v4207 = vmul.f32 %v3687, %v3999
    %v4208 = vmul.f32 %v3689, %v3999
    %v4209 = vmul.f32 %v3691, %v3999
    %v4210 = vmul.f32 %v3693, %v3999
    %v4211 = vmul.f32 %v3695, %v3999
    %v4212 = vmul.f32 %v3697, %v4003
    %v4213 = vmul.f32 %v3699, %v4003
    %v4214 = vmul.f32 %v3701, %v4003
    %v4215 = vmul.f32 %v3703, %v4003
    %v4216 = vmul.f32 %v3705, %v4003
    %v4217 = vmul.f32 %v3707, %v4003
    %v4218 = vmul.f32 %v3709, %v4003
    %v4219 = vmul.f32 %v3711, %v4003
    %v4220 = vmul.f32 %v3713, %v4003
    %v4221 = vmul.f32 %v3715, %v4003
    %v4222 = vmul.f32 %v3717, %v4003
    %v4223 = vmul.f32 %v3719, %v4003
    %v4224 = vmul.f32 %v3721, %v4003
    %v4225 = vmul.f32 %v3723, %v4003
    %v4226 = vmul.f32 %v3725, %v4003
    %v4227 = vmul.f32 %v3727, %v4003
    %v4228 = vmul.f32 %v3729, %v4007
    %v4229 = vmul.f32 %v3731, %v4007
    %v4230 = vmul.f32 %v3733, %v4007
    %v4231 = vmul.f32 %v3735, %v4007
    %v4232 = vmul.f32 %v3737, %v4007
    %v4233 = vmul.f32 %v3739, %v4007
    %v4234 = vmul.f32 %v3741, %v4007
    %v4235 = vmul.f32 %v3743, %v4007
    %v4236 = vmul.f32 %v3745, %v4007
    %v4237 = vmul.f32 %v3747, %v4007
    %v4238 = vmul.f32 %v3749, %v4007
    %v4239 = vmul.f32 %v3751, %v4007
    %v4240 = vmul.f32 %v3753, %v4007
    %v4241 = vmul.f32 %v3755, %v4007
    %v4242 = vmul.f32 %v3757, %v4007
    %v4243 = vmul.f32 %v3759, %v4007
    %v4244 = vmul.f32 %v3761, %v4011
    %v4245 = vmul.f32 %v3763, %v4011
    %v4246 = vmul.f32 %v3765, %v4011
    %v4247 = vmul.f32 %v3767, %v4011
    %v4248 = vmul.f32 %v3769, %v4011
    %v4249 = vmul.f32 %v3771, %v4011
    %v4250 = vmul.f32 %v3773, %v4011
    %v4251 = vmul.f32 %v3775, %v4011
    %v4252 = vmul.f32 %v3777, %v4011
    %v4253 = vmul.f32 %v3779, %v4011
    %v4254 = vmul.f32 %v3781, %v4011
    %v4255 = vmul.f32 %v3783, %v4011
    %v4256 = vmul.f32 %v3785, %v4011
    %v4257 = vmul.f32 %v3787, %v4011
    %v4258 = vmul.f32 %v3789, %v4011
    %v4259 = vmul.f32 %v3791, %v4011
    %v4260 = vmul.f32 %v3793, %v4015
    %v4261 = vmul.f32 %v3795, %v4015
    %v4262 = vmul.f32 %v3797, %v4015
    %v4263 = vmul.f32 %v3799, %v4015
    %v4264 = vmul.f32 %v3801, %v4015
    %v4265 = vmul.f32 %v3803, %v4015
    %v4266 = vmul.f32 %v3805, %v4015
    %v4267 = vmul.f32 %v3807, %v4015
    %v4268 = vmul.f32 %v3809, %v4015
    %v4269 = vmul.f32 %v3811, %v4015
    %v4270 = vmul.f32 %v3813, %v4015
    %v4271 = vmul.f32 %v3815, %v4015
    %v4272 = vmul.f32 %v3817, %v4015
    %v4273 = vmul.f32 %v3819, %v4015
    %v4274 = vmul.f32 %v3821, %v4015
    %v4275 = vmul.f32 %v3823, %v4015
    %v4276 = vmul.f32 %v3825, %v4019
    %v4277 = vmul.f32 %v3827, %v4019
    %v4278 = vmul.f32 %v3829, %v4019
    %v4279 = vmul.f32 %v3831, %v4019
    %v4280 = vmul.f32 %v3833, %v4019
    %v4281 = vmul.f32 %v3835, %v4019
    %v4282 = vmul.f32 %v3837, %v4019
    %v4283 = vmul.f32 %v3839, %v4019
    %v4284 = vmul.f32 %v3841, %v4019
    %v4285 = vmul.f32 %v3843, %v4019
    %v4286 = vmul.f32 %v3845, %v4019
    %v4287 = vmul.f32 %v3847, %v4019
    %v4288 = vmul.f32 %v3849, %v4019
    %v4289 = vmul.f32 %v3851, %v4019
    %v4290 = vmul.f32 %v3853, %v4019
    %v4291 = vmul.f32 %v3855, %v4019
    %4292 = vadd.xlane.f32.xlu0 %v4036
    %v4293 = vpop.xlane.xlu0 %4292
    %4294 = vadd.xlane.f32.xlu0 %v4037
    %v4295 = vpop.xlane.xlu0 %4294
    %4296 = vadd.xlane.f32.xlu0 %v4038
    %v4297 = vpop.xlane.xlu0 %4296
    %4298 = vadd.xlane.f32.xlu0 %v4039
    %v4299 = vpop.xlane.xlu0 %4298
    %4300 = vadd.xlane.f32.xlu0 %v4040
    %v4301 = vpop.xlane.xlu0 %4300
    %4302 = vadd.xlane.f32.xlu0 %v4041
    %v4303 = vpop.xlane.xlu0 %4302
    %4304 = vadd.xlane.f32.xlu0 %v4042
    %v4305 = vpop.xlane.xlu0 %4304
    %4306 = vadd.xlane.f32.xlu0 %v4043
    %v4307 = vpop.xlane.xlu0 %4306
    %4308 = vadd.xlane.f32.xlu0 %v4044
    %v4309 = vpop.xlane.xlu0 %4308
    %4310 = vadd.xlane.f32.xlu0 %v4045
    %v4311 = vpop.xlane.xlu0 %4310
    %4312 = vadd.xlane.f32.xlu0 %v4046
    %v4313 = vpop.xlane.xlu0 %4312
    %4314 = vadd.xlane.f32.xlu0 %v4047
    %v4315 = vpop.xlane.xlu0 %4314
    %4316 = vadd.xlane.f32.xlu0 %v4048
    %v4317 = vpop.xlane.xlu0 %4316
    %4318 = vadd.xlane.f32.xlu0 %v4049
    %v4319 = vpop.xlane.xlu0 %4318
    %4320 = vadd.xlane.f32.xlu0 %v4050
    %v4321 = vpop.xlane.xlu0 %4320
    %4322 = vadd.xlane.f32.xlu0 %v4051
    %v4323 = vpop.xlane.xlu0 %4322
    %4324 = vadd.xlane.f32.xlu0 %v4052
    %v4325 = vpop.xlane.xlu0 %4324
    %4326 = vadd.xlane.f32.xlu0 %v4053
    %v4327 = vpop.xlane.xlu0 %4326
    %4328 = vadd.xlane.f32.xlu0 %v4054
    %v4329 = vpop.xlane.xlu0 %4328
    %4330 = vadd.xlane.f32.xlu0 %v4055
    %v4331 = vpop.xlane.xlu0 %4330
    %4332 = vadd.xlane.f32.xlu0 %v4056
    %v4333 = vpop.xlane.xlu0 %4332
    %4334 = vadd.xlane.f32.xlu0 %v4057
    %v4335 = vpop.xlane.xlu0 %4334
    %4336 = vadd.xlane.f32.xlu0 %v4058
    %v4337 = vpop.xlane.xlu0 %4336
    %4338 = vadd.xlane.f32.xlu0 %v4059
    %v4339 = vpop.xlane.xlu0 %4338
    %4340 = vadd.xlane.f32.xlu0 %v4060
    %v4341 = vpop.xlane.xlu0 %4340
    %4342 = vadd.xlane.f32.xlu0 %v4061
    %v4343 = vpop.xlane.xlu0 %4342
    %4344 = vadd.xlane.f32.xlu0 %v4062
    %v4345 = vpop.xlane.xlu0 %4344
    %4346 = vadd.xlane.f32.xlu0 %v4063
    %v4347 = vpop.xlane.xlu0 %4346
    %4348 = vadd.xlane.f32.xlu0 %v4064
    %v4349 = vpop.xlane.xlu0 %4348
    %4350 = vadd.xlane.f32.xlu0 %v4065
    %v4351 = vpop.xlane.xlu0 %4350
    %4352 = vadd.xlane.f32.xlu0 %v4066
    %v4353 = vpop.xlane.xlu0 %4352
    %4354 = vadd.xlane.f32.xlu0 %v4067
    %v4355 = vpop.xlane.xlu0 %4354
    %4356 = vadd.xlane.f32.xlu0 %v4068
    %v4357 = vpop.xlane.xlu0 %4356
    %4358 = vadd.xlane.f32.xlu0 %v4069
    %v4359 = vpop.xlane.xlu0 %4358
    %4360 = vadd.xlane.f32.xlu0 %v4070
    %v4361 = vpop.xlane.xlu0 %4360
    %4362 = vadd.xlane.f32.xlu0 %v4071
    %v4363 = vpop.xlane.xlu0 %4362
    %4364 = vadd.xlane.f32.xlu0 %v4072
    %v4365 = vpop.xlane.xlu0 %4364
    %4366 = vadd.xlane.f32.xlu0 %v4073
    %v4367 = vpop.xlane.xlu0 %4366
    %4368 = vadd.xlane.f32.xlu0 %v4074
    %v4369 = vpop.xlane.xlu0 %4368
    %4370 = vadd.xlane.f32.xlu0 %v4075
    %v4371 = vpop.xlane.xlu0 %4370
    %4372 = vadd.xlane.f32.xlu0 %v4076
    %v4373 = vpop.xlane.xlu0 %4372
    %4374 = vadd.xlane.f32.xlu0 %v4077
    %v4375 = vpop.xlane.xlu0 %4374
    %4376 = vadd.xlane.f32.xlu0 %v4078
    %v4377 = vpop.xlane.xlu0 %4376
    %4378 = vadd.xlane.f32.xlu0 %v4079
    %v4379 = vpop.xlane.xlu0 %4378
    %4380 = vadd.xlane.f32.xlu0 %v4080
    %v4381 = vpop.xlane.xlu0 %4380
    %4382 = vadd.xlane.f32.xlu0 %v4081
    %v4383 = vpop.xlane.xlu0 %4382
    %4384 = vadd.xlane.f32.xlu0 %v4082
    %v4385 = vpop.xlane.xlu0 %4384
    %4386 = vadd.xlane.f32.xlu0 %v4083
    %v4387 = vpop.xlane.xlu0 %4386
    %4388 = vadd.xlane.f32.xlu0 %v4084
    %v4389 = vpop.xlane.xlu0 %4388
    %4390 = vadd.xlane.f32.xlu0 %v4085
    %v4391 = vpop.xlane.xlu0 %4390
    %4392 = vadd.xlane.f32.xlu0 %v4086
    %v4393 = vpop.xlane.xlu0 %4392
    %4394 = vadd.xlane.f32.xlu0 %v4087
    %v4395 = vpop.xlane.xlu0 %4394
    %4396 = vadd.xlane.f32.xlu0 %v4088
    %v4397 = vpop.xlane.xlu0 %4396
    %4398 = vadd.xlane.f32.xlu0 %v4089
    %v4399 = vpop.xlane.xlu0 %4398
    %4400 = vadd.xlane.f32.xlu0 %v4090
    %v4401 = vpop.xlane.xlu0 %4400
    %4402 = vadd.xlane.f32.xlu0 %v4091
    %v4403 = vpop.xlane.xlu0 %4402
    %4404 = vadd.xlane.f32.xlu0 %v4092
    %v4405 = vpop.xlane.xlu0 %4404
    %4406 = vadd.xlane.f32.xlu0 %v4093
    %v4407 = vpop.xlane.xlu0 %4406
    %4408 = vadd.xlane.f32.xlu0 %v4094
    %v4409 = vpop.xlane.xlu0 %4408
    %4410 = vadd.xlane.f32.xlu0 %v4095
    %v4411 = vpop.xlane.xlu0 %4410
    %4412 = vadd.xlane.f32.xlu0 %v4096
    %v4413 = vpop.xlane.xlu0 %4412
    %4414 = vadd.xlane.f32.xlu0 %v4097
    %v4415 = vpop.xlane.xlu0 %4414
    %4416 = vadd.xlane.f32.xlu0 %v4098
    %v4417 = vpop.xlane.xlu0 %4416
    %4418 = vadd.xlane.f32.xlu0 %v4099
    %v4419 = vpop.xlane.xlu0 %4418
    %4420 = vadd.xlane.f32.xlu0 %v4100
    %v4421 = vpop.xlane.xlu0 %4420
    %4422 = vadd.xlane.f32.xlu0 %v4101
    %v4423 = vpop.xlane.xlu0 %4422
    %4424 = vadd.xlane.f32.xlu0 %v4102
    %v4425 = vpop.xlane.xlu0 %4424
    %4426 = vadd.xlane.f32.xlu0 %v4103
    %v4427 = vpop.xlane.xlu0 %4426
    %4428 = vadd.xlane.f32.xlu0 %v4104
    %v4429 = vpop.xlane.xlu0 %4428
    %4430 = vadd.xlane.f32.xlu0 %v4105
    %v4431 = vpop.xlane.xlu0 %4430
    %4432 = vadd.xlane.f32.xlu0 %v4106
    %v4433 = vpop.xlane.xlu0 %4432
    %4434 = vadd.xlane.f32.xlu0 %v4107
    %v4435 = vpop.xlane.xlu0 %4434
    %4436 = vadd.xlane.f32.xlu0 %v4108
    %v4437 = vpop.xlane.xlu0 %4436
    %4438 = vadd.xlane.f32.xlu0 %v4109
    %v4439 = vpop.xlane.xlu0 %4438
    %4440 = vadd.xlane.f32.xlu0 %v4110
    %v4441 = vpop.xlane.xlu0 %4440
    %4442 = vadd.xlane.f32.xlu0 %v4111
    %v4443 = vpop.xlane.xlu0 %4442
    %4444 = vadd.xlane.f32.xlu0 %v4112
    %v4445 = vpop.xlane.xlu0 %4444
    %4446 = vadd.xlane.f32.xlu0 %v4113
    %v4447 = vpop.xlane.xlu0 %4446
    %4448 = vadd.xlane.f32.xlu0 %v4114
    %v4449 = vpop.xlane.xlu0 %4448
    %4450 = vadd.xlane.f32.xlu0 %v4115
    %v4451 = vpop.xlane.xlu0 %4450
    %4452 = vadd.xlane.f32.xlu0 %v4116
    %v4453 = vpop.xlane.xlu0 %4452
    %4454 = vadd.xlane.f32.xlu0 %v4117
    %v4455 = vpop.xlane.xlu0 %4454
    %4456 = vadd.xlane.f32.xlu0 %v4118
    %v4457 = vpop.xlane.xlu0 %4456
    %4458 = vadd.xlane.f32.xlu0 %v4119
    %v4459 = vpop.xlane.xlu0 %4458
    %4460 = vadd.xlane.f32.xlu0 %v4120
    %v4461 = vpop.xlane.xlu0 %4460
    %4462 = vadd.xlane.f32.xlu0 %v4121
    %v4463 = vpop.xlane.xlu0 %4462
    %4464 = vadd.xlane.f32.xlu0 %v4122
    %v4465 = vpop.xlane.xlu0 %4464
    %4466 = vadd.xlane.f32.xlu0 %v4123
    %v4467 = vpop.xlane.xlu0 %4466
    %4468 = vadd.xlane.f32.xlu0 %v4124
    %v4469 = vpop.xlane.xlu0 %4468
    %4470 = vadd.xlane.f32.xlu0 %v4125
    %v4471 = vpop.xlane.xlu0 %4470
    %4472 = vadd.xlane.f32.xlu0 %v4126
    %v4473 = vpop.xlane.xlu0 %4472
    %4474 = vadd.xlane.f32.xlu0 %v4127
    %v4475 = vpop.xlane.xlu0 %4474
    %4476 = vadd.xlane.f32.xlu0 %v4128
    %v4477 = vpop.xlane.xlu0 %4476
    %4478 = vadd.xlane.f32.xlu0 %v4129
    %v4479 = vpop.xlane.xlu0 %4478
    %4480 = vadd.xlane.f32.xlu0 %v4130
    %v4481 = vpop.xlane.xlu0 %4480
    %4482 = vadd.xlane.f32.xlu0 %v4131
    %v4483 = vpop.xlane.xlu0 %4482
    %4484 = vadd.xlane.f32.xlu0 %v4132
    %v4485 = vpop.xlane.xlu0 %4484
    %4486 = vadd.xlane.f32.xlu0 %v4133
    %v4487 = vpop.xlane.xlu0 %4486
    %4488 = vadd.xlane.f32.xlu0 %v4134
    %v4489 = vpop.xlane.xlu0 %4488
    %4490 = vadd.xlane.f32.xlu0 %v4135
    %v4491 = vpop.xlane.xlu0 %4490
    %4492 = vadd.xlane.f32.xlu0 %v4136
    %v4493 = vpop.xlane.xlu0 %4492
    %4494 = vadd.xlane.f32.xlu0 %v4137
    %v4495 = vpop.xlane.xlu0 %4494
    %4496 = vadd.xlane.f32.xlu0 %v4138
    %v4497 = vpop.xlane.xlu0 %4496
    %4498 = vadd.xlane.f32.xlu0 %v4139
    %v4499 = vpop.xlane.xlu0 %4498
    %4500 = vadd.xlane.f32.xlu0 %v4140
    %v4501 = vpop.xlane.xlu0 %4500
    %4502 = vadd.xlane.f32.xlu0 %v4141
    %v4503 = vpop.xlane.xlu0 %4502
    %4504 = vadd.xlane.f32.xlu0 %v4142
    %v4505 = vpop.xlane.xlu0 %4504
    %4506 = vadd.xlane.f32.xlu0 %v4143
    %v4507 = vpop.xlane.xlu0 %4506
    %4508 = vadd.xlane.f32.xlu0 %v4144
    %v4509 = vpop.xlane.xlu0 %4508
    %4510 = vadd.xlane.f32.xlu0 %v4145
    %v4511 = vpop.xlane.xlu0 %4510
    %4512 = vadd.xlane.f32.xlu0 %v4146
    %v4513 = vpop.xlane.xlu0 %4512
    %4514 = vadd.xlane.f32.xlu0 %v4147
    %v4515 = vpop.xlane.xlu0 %4514
    %4516 = vadd.xlane.f32.xlu0 %v4148
    %v4517 = vpop.xlane.xlu0 %4516
    %4518 = vadd.xlane.f32.xlu0 %v4149
    %v4519 = vpop.xlane.xlu0 %4518
    %4520 = vadd.xlane.f32.xlu0 %v4150
    %v4521 = vpop.xlane.xlu0 %4520
    %4522 = vadd.xlane.f32.xlu0 %v4151
    %v4523 = vpop.xlane.xlu0 %4522
    %4524 = vadd.xlane.f32.xlu0 %v4152
    %v4525 = vpop.xlane.xlu0 %4524
    %4526 = vadd.xlane.f32.xlu0 %v4153
    %v4527 = vpop.xlane.xlu0 %4526
    %4528 = vadd.xlane.f32.xlu0 %v4154
    %v4529 = vpop.xlane.xlu0 %4528
    %4530 = vadd.xlane.f32.xlu0 %v4155
    %v4531 = vpop.xlane.xlu0 %4530
    %4532 = vadd.xlane.f32.xlu0 %v4156
    %v4533 = vpop.xlane.xlu0 %4532
    %4534 = vadd.xlane.f32.xlu0 %v4157
    %v4535 = vpop.xlane.xlu0 %4534
    %4536 = vadd.xlane.f32.xlu0 %v4158
    %v4537 = vpop.xlane.xlu0 %4536
    %4538 = vadd.xlane.f32.xlu0 %v4159
    %v4539 = vpop.xlane.xlu0 %4538
    %4540 = vadd.xlane.f32.xlu0 %v4160
    %v4541 = vpop.xlane.xlu0 %4540
    %4542 = vadd.xlane.f32.xlu0 %v4161
    %v4543 = vpop.xlane.xlu0 %4542
    %4544 = vadd.xlane.f32.xlu0 %v4162
    %v4545 = vpop.xlane.xlu0 %4544
    %4546 = vadd.xlane.f32.xlu0 %v4163
    %v4547 = vpop.xlane.xlu0 %4546
    %4548 = vadd.xlane.f32.xlu0 %v4164
    %v4549 = vpop.xlane.xlu0 %4548
    %4550 = vadd.xlane.f32.xlu0 %v4165
    %v4551 = vpop.xlane.xlu0 %4550
    %4552 = vadd.xlane.f32.xlu0 %v4166
    %v4553 = vpop.xlane.xlu0 %4552
    %4554 = vadd.xlane.f32.xlu0 %v4167
    %v4555 = vpop.xlane.xlu0 %4554
    %4556 = vadd.xlane.f32.xlu0 %v4168
    %v4557 = vpop.xlane.xlu0 %4556
    %4558 = vadd.xlane.f32.xlu0 %v4169
    %v4559 = vpop.xlane.xlu0 %4558
    %4560 = vadd.xlane.f32.xlu0 %v4170
    %v4561 = vpop.xlane.xlu0 %4560
    %4562 = vadd.xlane.f32.xlu0 %v4171
    %v4563 = vpop.xlane.xlu0 %4562
    %4564 = vadd.xlane.f32.xlu0 %v4172
    %v4565 = vpop.xlane.xlu0 %4564
    %4566 = vadd.xlane.f32.xlu0 %v4173
    %v4567 = vpop.xlane.xlu0 %4566
    %4568 = vadd.xlane.f32.xlu0 %v4174
    %v4569 = vpop.xlane.xlu0 %4568
    %4570 = vadd.xlane.f32.xlu0 %v4175
    %v4571 = vpop.xlane.xlu0 %4570
    %4572 = vadd.xlane.f32.xlu0 %v4176
    %v4573 = vpop.xlane.xlu0 %4572
    %4574 = vadd.xlane.f32.xlu0 %v4177
    %v4575 = vpop.xlane.xlu0 %4574
    %4576 = vadd.xlane.f32.xlu0 %v4178
    %v4577 = vpop.xlane.xlu0 %4576
    %4578 = vadd.xlane.f32.xlu0 %v4179
    %v4579 = vpop.xlane.xlu0 %4578
    %4580 = vadd.xlane.f32.xlu0 %v4180
    %v4581 = vpop.xlane.xlu0 %4580
    %4582 = vadd.xlane.f32.xlu0 %v4181
    %v4583 = vpop.xlane.xlu0 %4582
    %4584 = vadd.xlane.f32.xlu0 %v4182
    %v4585 = vpop.xlane.xlu0 %4584
    %4586 = vadd.xlane.f32.xlu0 %v4183
    %v4587 = vpop.xlane.xlu0 %4586
    %4588 = vadd.xlane.f32.xlu0 %v4184
    %v4589 = vpop.xlane.xlu0 %4588
    %4590 = vadd.xlane.f32.xlu0 %v4185
    %v4591 = vpop.xlane.xlu0 %4590
    %4592 = vadd.xlane.f32.xlu0 %v4186
    %v4593 = vpop.xlane.xlu0 %4592
    %4594 = vadd.xlane.f32.xlu0 %v4187
    %v4595 = vpop.xlane.xlu0 %4594
    %4596 = vadd.xlane.f32.xlu0 %v4188
    %v4597 = vpop.xlane.xlu0 %4596
    %4598 = vadd.xlane.f32.xlu0 %v4189
    %v4599 = vpop.xlane.xlu0 %4598
    %4600 = vadd.xlane.f32.xlu0 %v4190
    %v4601 = vpop.xlane.xlu0 %4600
    %4602 = vadd.xlane.f32.xlu0 %v4191
    %v4603 = vpop.xlane.xlu0 %4602
    %4604 = vadd.xlane.f32.xlu0 %v4192
    %v4605 = vpop.xlane.xlu0 %4604
    %4606 = vadd.xlane.f32.xlu0 %v4193
    %v4607 = vpop.xlane.xlu0 %4606
    %4608 = vadd.xlane.f32.xlu0 %v4194
    %v4609 = vpop.xlane.xlu0 %4608
    %4610 = vadd.xlane.f32.xlu0 %v4195
    %v4611 = vpop.xlane.xlu0 %4610
    %4612 = vadd.xlane.f32.xlu0 %v4196
    %v4613 = vpop.xlane.xlu0 %4612
    %4614 = vadd.xlane.f32.xlu0 %v4197
    %v4615 = vpop.xlane.xlu0 %4614
    %4616 = vadd.xlane.f32.xlu0 %v4198
    %v4617 = vpop.xlane.xlu0 %4616
    %4618 = vadd.xlane.f32.xlu0 %v4199
    %v4619 = vpop.xlane.xlu0 %4618
    %4620 = vadd.xlane.f32.xlu0 %v4200
    %v4621 = vpop.xlane.xlu0 %4620
    %4622 = vadd.xlane.f32.xlu0 %v4201
    %v4623 = vpop.xlane.xlu0 %4622
    %4624 = vadd.xlane.f32.xlu0 %v4202
    %v4625 = vpop.xlane.xlu0 %4624
    %4626 = vadd.xlane.f32.xlu0 %v4203
    %v4627 = vpop.xlane.xlu0 %4626
    %4628 = vadd.xlane.f32.xlu0 %v4204
    %v4629 = vpop.xlane.xlu0 %4628
    %4630 = vadd.xlane.f32.xlu0 %v4205
    %v4631 = vpop.xlane.xlu0 %4630
    %4632 = vadd.xlane.f32.xlu0 %v4206
    %v4633 = vpop.xlane.xlu0 %4632
    %4634 = vadd.xlane.f32.xlu0 %v4207
    %v4635 = vpop.xlane.xlu0 %4634
    %4636 = vadd.xlane.f32.xlu0 %v4208
    %v4637 = vpop.xlane.xlu0 %4636
    %4638 = vadd.xlane.f32.xlu0 %v4209
    %v4639 = vpop.xlane.xlu0 %4638
    %4640 = vadd.xlane.f32.xlu0 %v4210
    %v4641 = vpop.xlane.xlu0 %4640
    %4642 = vadd.xlane.f32.xlu0 %v4211
    %v4643 = vpop.xlane.xlu0 %4642
    %4644 = vadd.xlane.f32.xlu0 %v4212
    %v4645 = vpop.xlane.xlu0 %4644
    %4646 = vadd.xlane.f32.xlu0 %v4213
    %v4647 = vpop.xlane.xlu0 %4646
    %4648 = vadd.xlane.f32.xlu0 %v4214
    %v4649 = vpop.xlane.xlu0 %4648
    %4650 = vadd.xlane.f32.xlu0 %v4215
    %v4651 = vpop.xlane.xlu0 %4650
    %4652 = vadd.xlane.f32.xlu0 %v4216
    %v4653 = vpop.xlane.xlu0 %4652
    %4654 = vadd.xlane.f32.xlu0 %v4217
    %v4655 = vpop.xlane.xlu0 %4654
    %4656 = vadd.xlane.f32.xlu0 %v4218
    %v4657 = vpop.xlane.xlu0 %4656
    %4658 = vadd.xlane.f32.xlu0 %v4219
    %v4659 = vpop.xlane.xlu0 %4658
    %4660 = vadd.xlane.f32.xlu0 %v4220
    %v4661 = vpop.xlane.xlu0 %4660
    %4662 = vadd.xlane.f32.xlu0 %v4221
    %v4663 = vpop.xlane.xlu0 %4662
    %4664 = vadd.xlane.f32.xlu0 %v4222
    %v4665 = vpop.xlane.xlu0 %4664
    %4666 = vadd.xlane.f32.xlu0 %v4223
    %v4667 = vpop.xlane.xlu0 %4666
    %4668 = vadd.xlane.f32.xlu0 %v4224
    %v4669 = vpop.xlane.xlu0 %4668
    %4670 = vadd.xlane.f32.xlu0 %v4225
    %v4671 = vpop.xlane.xlu0 %4670
    %4672 = vadd.xlane.f32.xlu0 %v4226
    %v4673 = vpop.xlane.xlu0 %4672
    %4674 = vadd.xlane.f32.xlu0 %v4227
    %v4675 = vpop.xlane.xlu0 %4674
    %4676 = vadd.xlane.f32.xlu0 %v4228
    %v4677 = vpop.xlane.xlu0 %4676
    %4678 = vadd.xlane.f32.xlu0 %v4229
    %v4679 = vpop.xlane.xlu0 %4678
    %4680 = vadd.xlane.f32.xlu0 %v4230
    %v4681 = vpop.xlane.xlu0 %4680
    %4682 = vadd.xlane.f32.xlu0 %v4231
    %v4683 = vpop.xlane.xlu0 %4682
    %4684 = vadd.xlane.f32.xlu0 %v4232
    %v4685 = vpop.xlane.xlu0 %4684
    %4686 = vadd.xlane.f32.xlu0 %v4233
    %v4687 = vpop.xlane.xlu0 %4686
    %4688 = vadd.xlane.f32.xlu0 %v4234
    %v4689 = vpop.xlane.xlu0 %4688
    %4690 = vadd.xlane.f32.xlu0 %v4235
    %v4691 = vpop.xlane.xlu0 %4690
    %4692 = vadd.xlane.f32.xlu0 %v4236
    %v4693 = vpop.xlane.xlu0 %4692
    %4694 = vadd.xlane.f32.xlu0 %v4237
    %v4695 = vpop.xlane.xlu0 %4694
    %4696 = vadd.xlane.f32.xlu0 %v4238
    %v4697 = vpop.xlane.xlu0 %4696
    %4698 = vadd.xlane.f32.xlu0 %v4239
    %v4699 = vpop.xlane.xlu0 %4698
    %4700 = vadd.xlane.f32.xlu0 %v4240
    %v4701 = vpop.xlane.xlu0 %4700
    %4702 = vadd.xlane.f32.xlu0 %v4241
    %v4703 = vpop.xlane.xlu0 %4702
    %4704 = vadd.xlane.f32.xlu0 %v4242
    %v4705 = vpop.xlane.xlu0 %4704
    %4706 = vadd.xlane.f32.xlu0 %v4243
    %v4707 = vpop.xlane.xlu0 %4706
    %4708 = vadd.xlane.f32.xlu0 %v4244
    %v4709 = vpop.xlane.xlu0 %4708
    %4710 = vadd.xlane.f32.xlu0 %v4245
    %v4711 = vpop.xlane.xlu0 %4710
    %4712 = vadd.xlane.f32.xlu0 %v4246
    %v4713 = vpop.xlane.xlu0 %4712
    %4714 = vadd.xlane.f32.xlu0 %v4247
    %v4715 = vpop.xlane.xlu0 %4714
    %4716 = vadd.xlane.f32.xlu0 %v4248
    %v4717 = vpop.xlane.xlu0 %4716
    %4718 = vadd.xlane.f32.xlu0 %v4249
    %v4719 = vpop.xlane.xlu0 %4718
    %4720 = vadd.xlane.f32.xlu0 %v4250
    %v4721 = vpop.xlane.xlu0 %4720
    %4722 = vadd.xlane.f32.xlu0 %v4251
    %v4723 = vpop.xlane.xlu0 %4722
    %4724 = vadd.xlane.f32.xlu0 %v4252
    %v4725 = vpop.xlane.xlu0 %4724
    %4726 = vadd.xlane.f32.xlu0 %v4253
    %v4727 = vpop.xlane.xlu0 %4726
    %4728 = vadd.xlane.f32.xlu0 %v4254
    %v4729 = vpop.xlane.xlu0 %4728
    %4730 = vadd.xlane.f32.xlu0 %v4255
    %v4731 = vpop.xlane.xlu0 %4730
    %4732 = vadd.xlane.f32.xlu0 %v4256
    %v4733 = vpop.xlane.xlu0 %4732
    %4734 = vadd.xlane.f32.xlu0 %v4257
    %v4735 = vpop.xlane.xlu0 %4734
    %4736 = vadd.xlane.f32.xlu0 %v4258
    %v4737 = vpop.xlane.xlu0 %4736
    %4738 = vadd.xlane.f32.xlu0 %v4259
    %v4739 = vpop.xlane.xlu0 %4738
    %4740 = vadd.xlane.f32.xlu0 %v4260
    %v4741 = vpop.xlane.xlu0 %4740
    %4742 = vadd.xlane.f32.xlu0 %v4261
    %v4743 = vpop.xlane.xlu0 %4742
    %4744 = vadd.xlane.f32.xlu0 %v4262
    %v4745 = vpop.xlane.xlu0 %4744
    %4746 = vadd.xlane.f32.xlu0 %v4263
    %v4747 = vpop.xlane.xlu0 %4746
    %4748 = vadd.xlane.f32.xlu0 %v4264
    %v4749 = vpop.xlane.xlu0 %4748
    %4750 = vadd.xlane.f32.xlu0 %v4265
    %v4751 = vpop.xlane.xlu0 %4750
    %4752 = vadd.xlane.f32.xlu0 %v4266
    %v4753 = vpop.xlane.xlu0 %4752
    %4754 = vadd.xlane.f32.xlu0 %v4267
    %v4755 = vpop.xlane.xlu0 %4754
    %4756 = vadd.xlane.f32.xlu0 %v4268
    %v4757 = vpop.xlane.xlu0 %4756
    %4758 = vadd.xlane.f32.xlu0 %v4269
    %v4759 = vpop.xlane.xlu0 %4758
    %4760 = vadd.xlane.f32.xlu0 %v4270
    %v4761 = vpop.xlane.xlu0 %4760
    %4762 = vadd.xlane.f32.xlu0 %v4271
    %v4763 = vpop.xlane.xlu0 %4762
    %4764 = vadd.xlane.f32.xlu0 %v4272
    %v4765 = vpop.xlane.xlu0 %4764
    %4766 = vadd.xlane.f32.xlu0 %v4273
    %v4767 = vpop.xlane.xlu0 %4766
    %4768 = vadd.xlane.f32.xlu0 %v4274
    %v4769 = vpop.xlane.xlu0 %4768
    %4770 = vadd.xlane.f32.xlu0 %v4275
    %v4771 = vpop.xlane.xlu0 %4770
    %4772 = vadd.xlane.f32.xlu0 %v4276
    %v4773 = vpop.xlane.xlu0 %4772
    %4774 = vadd.xlane.f32.xlu0 %v4277
    %v4775 = vpop.xlane.xlu0 %4774
    %4776 = vadd.xlane.f32.xlu0 %v4278
    %v4777 = vpop.xlane.xlu0 %4776
    %4778 = vadd.xlane.f32.xlu0 %v4279
    %v4779 = vpop.xlane.xlu0 %4778
    %4780 = vadd.xlane.f32.xlu0 %v4280
    %v4781 = vpop.xlane.xlu0 %4780
    %4782 = vadd.xlane.f32.xlu0 %v4281
    %v4783 = vpop.xlane.xlu0 %4782
    %4784 = vadd.xlane.f32.xlu0 %v4282
    %v4785 = vpop.xlane.xlu0 %4784
    %4786 = vadd.xlane.f32.xlu0 %v4283
    %v4787 = vpop.xlane.xlu0 %4786
    %4788 = vadd.xlane.f32.xlu0 %v4284
    %v4789 = vpop.xlane.xlu0 %4788
    %4790 = vadd.xlane.f32.xlu0 %v4285
    %v4791 = vpop.xlane.xlu0 %4790
    %4792 = vadd.xlane.f32.xlu0 %v4286
    %v4793 = vpop.xlane.xlu0 %4792
    %4794 = vadd.xlane.f32.xlu0 %v4287
    %v4795 = vpop.xlane.xlu0 %4794
    %4796 = vadd.xlane.f32.xlu0 %v4288
    %v4797 = vpop.xlane.xlu0 %4796
    %4798 = vadd.xlane.f32.xlu0 %v4289
    %v4799 = vpop.xlane.xlu0 %4798
    %4800 = vadd.xlane.f32.xlu0 %v4290
    %v4801 = vpop.xlane.xlu0 %4800
    %4802 = vadd.xlane.f32.xlu0 %v4291
    %v4803 = vpop.xlane.xlu0 %4802
    %4804 = vadd.xlane.f32.xlu0 %v3345
    %v4805 = vpop.xlane.xlu0 %4804
    %4806 = vadd.xlane.f32.xlu0 %v3347
    %v4807 = vpop.xlane.xlu0 %4806
    %4808 = vadd.xlane.f32.xlu0 %v3349
    %v4809 = vpop.xlane.xlu0 %4808
    %4810 = vadd.xlane.f32.xlu0 %v3351
    %v4811 = vpop.xlane.xlu0 %4810
    %4812 = vadd.xlane.f32.xlu0 %v3353
    %v4813 = vpop.xlane.xlu0 %4812
    %4814 = vadd.xlane.f32.xlu0 %v3355
    %v4815 = vpop.xlane.xlu0 %4814
    %4816 = vadd.xlane.f32.xlu0 %v3357
    %v4817 = vpop.xlane.xlu0 %4816
    %4818 = vadd.xlane.f32.xlu0 %v3359
    %v4819 = vpop.xlane.xlu0 %4818
    %4820 = vadd.xlane.f32.xlu0 %v3361
    %v4821 = vpop.xlane.xlu0 %4820
    %4822 = vadd.xlane.f32.xlu0 %v3363
    %v4823 = vpop.xlane.xlu0 %4822
    %4824 = vadd.xlane.f32.xlu0 %v3365
    %v4825 = vpop.xlane.xlu0 %4824
    %4826 = vadd.xlane.f32.xlu0 %v3367
    %v4827 = vpop.xlane.xlu0 %4826
    %4828 = vadd.xlane.f32.xlu0 %v3369
    %v4829 = vpop.xlane.xlu0 %4828
    %4830 = vadd.xlane.f32.xlu0 %v3371
    %v4831 = vpop.xlane.xlu0 %4830
    %4832 = vadd.xlane.f32.xlu0 %v3373
    %v4833 = vpop.xlane.xlu0 %4832
    %4834 = vadd.xlane.f32.xlu0 %v3375
    %v4835 = vpop.xlane.xlu0 %4834
    %4836 = vadd.xlane.f32.xlu0 %v3377
    %v4837 = vpop.xlane.xlu0 %4836
    %4838 = vadd.xlane.f32.xlu0 %v3379
    %v4839 = vpop.xlane.xlu0 %4838
    %4840 = vadd.xlane.f32.xlu0 %v3381
    %v4841 = vpop.xlane.xlu0 %4840
    %4842 = vadd.xlane.f32.xlu0 %v3383
    %v4843 = vpop.xlane.xlu0 %4842
    %4844 = vadd.xlane.f32.xlu0 %v3385
    %v4845 = vpop.xlane.xlu0 %4844
    %4846 = vadd.xlane.f32.xlu0 %v3387
    %v4847 = vpop.xlane.xlu0 %4846
    %4848 = vadd.xlane.f32.xlu0 %v3389
    %v4849 = vpop.xlane.xlu0 %4848
    %4850 = vadd.xlane.f32.xlu0 %v3391
    %v4851 = vpop.xlane.xlu0 %4850
    %4852 = vadd.xlane.f32.xlu0 %v3393
    %v4853 = vpop.xlane.xlu0 %4852
    %4854 = vadd.xlane.f32.xlu0 %v3395
    %v4855 = vpop.xlane.xlu0 %4854
    %4856 = vadd.xlane.f32.xlu0 %v3397
    %v4857 = vpop.xlane.xlu0 %4856
    %4858 = vadd.xlane.f32.xlu0 %v3399
    %v4859 = vpop.xlane.xlu0 %4858
    %4860 = vadd.xlane.f32.xlu0 %v3401
    %v4861 = vpop.xlane.xlu0 %4860
    %4862 = vadd.xlane.f32.xlu0 %v3403
    %v4863 = vpop.xlane.xlu0 %4862
    %4864 = vadd.xlane.f32.xlu0 %v3405
    %v4865 = vpop.xlane.xlu0 %4864
    %4866 = vadd.xlane.f32.xlu0 %v3407
    %v4867 = vpop.xlane.xlu0 %4866
    %4868 = vadd.xlane.f32.xlu0 %v3409
    %v4869 = vpop.xlane.xlu0 %4868
    %4870 = vadd.xlane.f32.xlu0 %v3411
    %v4871 = vpop.xlane.xlu0 %4870
    %4872 = vadd.xlane.f32.xlu0 %v3413
    %v4873 = vpop.xlane.xlu0 %4872
    %4874 = vadd.xlane.f32.xlu0 %v3415
    %v4875 = vpop.xlane.xlu0 %4874
    %4876 = vadd.xlane.f32.xlu0 %v3417
    %v4877 = vpop.xlane.xlu0 %4876
    %4878 = vadd.xlane.f32.xlu0 %v3419
    %v4879 = vpop.xlane.xlu0 %4878
    %4880 = vadd.xlane.f32.xlu0 %v3421
    %v4881 = vpop.xlane.xlu0 %4880
    %4882 = vadd.xlane.f32.xlu0 %v3423
    %v4883 = vpop.xlane.xlu0 %4882
    %4884 = vadd.xlane.f32.xlu0 %v3425
    %v4885 = vpop.xlane.xlu0 %4884
    %4886 = vadd.xlane.f32.xlu0 %v3427
    %v4887 = vpop.xlane.xlu0 %4886
    %4888 = vadd.xlane.f32.xlu0 %v3429
    %v4889 = vpop.xlane.xlu0 %4888
    %4890 = vadd.xlane.f32.xlu0 %v3431
    %v4891 = vpop.xlane.xlu0 %4890
    %4892 = vadd.xlane.f32.xlu0 %v3433
    %v4893 = vpop.xlane.xlu0 %4892
    %4894 = vadd.xlane.f32.xlu0 %v3435
    %v4895 = vpop.xlane.xlu0 %4894
    %4896 = vadd.xlane.f32.xlu0 %v3437
    %v4897 = vpop.xlane.xlu0 %4896
    %4898 = vadd.xlane.f32.xlu0 %v3439
    %v4899 = vpop.xlane.xlu0 %4898
    %4900 = vadd.xlane.f32.xlu0 %v3441
    %v4901 = vpop.xlane.xlu0 %4900
    %4902 = vadd.xlane.f32.xlu0 %v3443
    %v4903 = vpop.xlane.xlu0 %4902
    %4904 = vadd.xlane.f32.xlu0 %v3445
    %v4905 = vpop.xlane.xlu0 %4904
    %4906 = vadd.xlane.f32.xlu0 %v3447
    %v4907 = vpop.xlane.xlu0 %4906
    %4908 = vadd.xlane.f32.xlu0 %v3449
    %v4909 = vpop.xlane.xlu0 %4908
    %4910 = vadd.xlane.f32.xlu0 %v3451
    %v4911 = vpop.xlane.xlu0 %4910
    %4912 = vadd.xlane.f32.xlu0 %v3453
    %v4913 = vpop.xlane.xlu0 %4912
    %4914 = vadd.xlane.f32.xlu0 %v3455
    %v4915 = vpop.xlane.xlu0 %4914
    %4916 = vadd.xlane.f32.xlu0 %v3457
    %v4917 = vpop.xlane.xlu0 %4916
    %4918 = vadd.xlane.f32.xlu0 %v3459
    %v4919 = vpop.xlane.xlu0 %4918
    %4920 = vadd.xlane.f32.xlu0 %v3461
    %v4921 = vpop.xlane.xlu0 %4920
    %4922 = vadd.xlane.f32.xlu0 %v3463
    %v4923 = vpop.xlane.xlu0 %4922
    %4924 = vadd.xlane.f32.xlu0 %v3465
    %v4925 = vpop.xlane.xlu0 %4924
    %4926 = vadd.xlane.f32.xlu0 %v3467
    %v4927 = vpop.xlane.xlu0 %4926
    %4928 = vadd.xlane.f32.xlu0 %v3469
    %v4929 = vpop.xlane.xlu0 %4928
    %4930 = vadd.xlane.f32.xlu0 %v3471
    %v4931 = vpop.xlane.xlu0 %4930
    %4932 = vadd.xlane.f32.xlu0 %v3473
    %v4933 = vpop.xlane.xlu0 %4932
    %4934 = vadd.xlane.f32.xlu0 %v3475
    %v4935 = vpop.xlane.xlu0 %4934
    %4936 = vadd.xlane.f32.xlu0 %v3477
    %v4937 = vpop.xlane.xlu0 %4936
    %4938 = vadd.xlane.f32.xlu0 %v3479
    %v4939 = vpop.xlane.xlu0 %4938
    %4940 = vadd.xlane.f32.xlu0 %v3481
    %v4941 = vpop.xlane.xlu0 %4940
    %4942 = vadd.xlane.f32.xlu0 %v3483
    %v4943 = vpop.xlane.xlu0 %4942
    %4944 = vadd.xlane.f32.xlu0 %v3485
    %v4945 = vpop.xlane.xlu0 %4944
    %4946 = vadd.xlane.f32.xlu0 %v3487
    %v4947 = vpop.xlane.xlu0 %4946
    %4948 = vadd.xlane.f32.xlu0 %v3489
    %v4949 = vpop.xlane.xlu0 %4948
    %4950 = vadd.xlane.f32.xlu0 %v3491
    %v4951 = vpop.xlane.xlu0 %4950
    %4952 = vadd.xlane.f32.xlu0 %v3493
    %v4953 = vpop.xlane.xlu0 %4952
    %4954 = vadd.xlane.f32.xlu0 %v3495
    %v4955 = vpop.xlane.xlu0 %4954
    %4956 = vadd.xlane.f32.xlu0 %v3497
    %v4957 = vpop.xlane.xlu0 %4956
    %4958 = vadd.xlane.f32.xlu0 %v3499
    %v4959 = vpop.xlane.xlu0 %4958
    %4960 = vadd.xlane.f32.xlu0 %v3501
    %v4961 = vpop.xlane.xlu0 %4960
    %4962 = vadd.xlane.f32.xlu0 %v3503
    %v4963 = vpop.xlane.xlu0 %4962
    %4964 = vadd.xlane.f32.xlu0 %v3505
    %v4965 = vpop.xlane.xlu0 %4964
    %4966 = vadd.xlane.f32.xlu0 %v3507
    %v4967 = vpop.xlane.xlu0 %4966
    %4968 = vadd.xlane.f32.xlu0 %v3509
    %v4969 = vpop.xlane.xlu0 %4968
    %4970 = vadd.xlane.f32.xlu0 %v3511
    %v4971 = vpop.xlane.xlu0 %4970
    %4972 = vadd.xlane.f32.xlu0 %v3513
    %v4973 = vpop.xlane.xlu0 %4972
    %4974 = vadd.xlane.f32.xlu0 %v3515
    %v4975 = vpop.xlane.xlu0 %4974
    %4976 = vadd.xlane.f32.xlu0 %v3517
    %v4977 = vpop.xlane.xlu0 %4976
    %4978 = vadd.xlane.f32.xlu0 %v3519
    %v4979 = vpop.xlane.xlu0 %4978
    %4980 = vadd.xlane.f32.xlu0 %v3521
    %v4981 = vpop.xlane.xlu0 %4980
    %4982 = vadd.xlane.f32.xlu0 %v3523
    %v4983 = vpop.xlane.xlu0 %4982
    %4984 = vadd.xlane.f32.xlu0 %v3525
    %v4985 = vpop.xlane.xlu0 %4984
    %4986 = vadd.xlane.f32.xlu0 %v3527
    %v4987 = vpop.xlane.xlu0 %4986
    %4988 = vadd.xlane.f32.xlu0 %v3529
    %v4989 = vpop.xlane.xlu0 %4988
    %4990 = vadd.xlane.f32.xlu0 %v3531
    %v4991 = vpop.xlane.xlu0 %4990
    %4992 = vadd.xlane.f32.xlu0 %v3533
    %v4993 = vpop.xlane.xlu0 %4992
    %4994 = vadd.xlane.f32.xlu0 %v3535
    %v4995 = vpop.xlane.xlu0 %4994
    %4996 = vadd.xlane.f32.xlu0 %v3537
    %v4997 = vpop.xlane.xlu0 %4996
    %4998 = vadd.xlane.f32.xlu0 %v3539
    %v4999 = vpop.xlane.xlu0 %4998
    %5000 = vadd.xlane.f32.xlu0 %v3541
    %v5001 = vpop.xlane.xlu0 %5000
    %5002 = vadd.xlane.f32.xlu0 %v3543
    %v5003 = vpop.xlane.xlu0 %5002
    %5004 = vadd.xlane.f32.xlu0 %v3545
    %v5005 = vpop.xlane.xlu0 %5004
    %5006 = vadd.xlane.f32.xlu0 %v3547
    %v5007 = vpop.xlane.xlu0 %5006
    %5008 = vadd.xlane.f32.xlu0 %v3549
    %v5009 = vpop.xlane.xlu0 %5008
    %5010 = vadd.xlane.f32.xlu0 %v3551
    %v5011 = vpop.xlane.xlu0 %5010
    %5012 = vadd.xlane.f32.xlu0 %v3553
    %v5013 = vpop.xlane.xlu0 %5012
    %5014 = vadd.xlane.f32.xlu0 %v3555
    %v5015 = vpop.xlane.xlu0 %5014
    %5016 = vadd.xlane.f32.xlu0 %v3557
    %v5017 = vpop.xlane.xlu0 %5016
    %5018 = vadd.xlane.f32.xlu0 %v3559
    %v5019 = vpop.xlane.xlu0 %5018
    %5020 = vadd.xlane.f32.xlu0 %v3561
    %v5021 = vpop.xlane.xlu0 %5020
    %5022 = vadd.xlane.f32.xlu0 %v3563
    %v5023 = vpop.xlane.xlu0 %5022
    %5024 = vadd.xlane.f32.xlu0 %v3565
    %v5025 = vpop.xlane.xlu0 %5024
    %5026 = vadd.xlane.f32.xlu0 %v3567
    %v5027 = vpop.xlane.xlu0 %5026
    %5028 = vadd.xlane.f32.xlu0 %v3569
    %v5029 = vpop.xlane.xlu0 %5028
    %5030 = vadd.xlane.f32.xlu0 %v3571
    %v5031 = vpop.xlane.xlu0 %5030
    %5032 = vadd.xlane.f32.xlu0 %v3573
    %v5033 = vpop.xlane.xlu0 %5032
    %5034 = vadd.xlane.f32.xlu0 %v3575
    %v5035 = vpop.xlane.xlu0 %5034
    %5036 = vadd.xlane.f32.xlu0 %v3577
    %v5037 = vpop.xlane.xlu0 %5036
    %5038 = vadd.xlane.f32.xlu0 %v3579
    %v5039 = vpop.xlane.xlu0 %5038
    %5040 = vadd.xlane.f32.xlu0 %v3581
    %v5041 = vpop.xlane.xlu0 %5040
    %5042 = vadd.xlane.f32.xlu0 %v3583
    %v5043 = vpop.xlane.xlu0 %5042
    %5044 = vadd.xlane.f32.xlu0 %v3585
    %v5045 = vpop.xlane.xlu0 %5044
    %5046 = vadd.xlane.f32.xlu0 %v3587
    %v5047 = vpop.xlane.xlu0 %5046
    %5048 = vadd.xlane.f32.xlu0 %v3589
    %v5049 = vpop.xlane.xlu0 %5048
    %5050 = vadd.xlane.f32.xlu0 %v3591
    %v5051 = vpop.xlane.xlu0 %5050
    %5052 = vadd.xlane.f32.xlu0 %v3593
    %v5053 = vpop.xlane.xlu0 %5052
    %5054 = vadd.xlane.f32.xlu0 %v3595
    %v5055 = vpop.xlane.xlu0 %5054
    %5056 = vadd.xlane.f32.xlu0 %v3597
    %v5057 = vpop.xlane.xlu0 %5056
    %5058 = vadd.xlane.f32.xlu0 %v3599
    %v5059 = vpop.xlane.xlu0 %5058
    %5060 = vadd.xlane.f32.xlu0 %v3601
    %v5061 = vpop.xlane.xlu0 %5060
    %5062 = vadd.xlane.f32.xlu0 %v3603
    %v5063 = vpop.xlane.xlu0 %5062
    %5064 = vadd.xlane.f32.xlu0 %v3605
    %v5065 = vpop.xlane.xlu0 %5064
    %5066 = vadd.xlane.f32.xlu0 %v3607
    %v5067 = vpop.xlane.xlu0 %5066
    %5068 = vadd.xlane.f32.xlu0 %v3609
    %v5069 = vpop.xlane.xlu0 %5068
    %5070 = vadd.xlane.f32.xlu0 %v3611
    %v5071 = vpop.xlane.xlu0 %5070
    %5072 = vadd.xlane.f32.xlu0 %v3613
    %v5073 = vpop.xlane.xlu0 %5072
    %5074 = vadd.xlane.f32.xlu0 %v3615
    %v5075 = vpop.xlane.xlu0 %5074
    %5076 = vadd.xlane.f32.xlu0 %v3617
    %v5077 = vpop.xlane.xlu0 %5076
    %5078 = vadd.xlane.f32.xlu0 %v3619
    %v5079 = vpop.xlane.xlu0 %5078
    %5080 = vadd.xlane.f32.xlu0 %v3621
    %v5081 = vpop.xlane.xlu0 %5080
    %5082 = vadd.xlane.f32.xlu0 %v3623
    %v5083 = vpop.xlane.xlu0 %5082
    %5084 = vadd.xlane.f32.xlu0 %v3625
    %v5085 = vpop.xlane.xlu0 %5084
    %5086 = vadd.xlane.f32.xlu0 %v3627
    %v5087 = vpop.xlane.xlu0 %5086
    %5088 = vadd.xlane.f32.xlu0 %v3629
    %v5089 = vpop.xlane.xlu0 %5088
    %5090 = vadd.xlane.f32.xlu0 %v3631
    %v5091 = vpop.xlane.xlu0 %5090
    %5092 = vadd.xlane.f32.xlu0 %v3633
    %v5093 = vpop.xlane.xlu0 %5092
    %5094 = vadd.xlane.f32.xlu0 %v3635
    %v5095 = vpop.xlane.xlu0 %5094
    %5096 = vadd.xlane.f32.xlu0 %v3637
    %v5097 = vpop.xlane.xlu0 %5096
    %5098 = vadd.xlane.f32.xlu0 %v3639
    %v5099 = vpop.xlane.xlu0 %5098
    %5100 = vadd.xlane.f32.xlu0 %v3641
    %v5101 = vpop.xlane.xlu0 %5100
    %5102 = vadd.xlane.f32.xlu0 %v3643
    %v5103 = vpop.xlane.xlu0 %5102
    %5104 = vadd.xlane.f32.xlu0 %v3645
    %v5105 = vpop.xlane.xlu0 %5104
    %5106 = vadd.xlane.f32.xlu0 %v3647
    %v5107 = vpop.xlane.xlu0 %5106
    %5108 = vadd.xlane.f32.xlu0 %v3649
    %v5109 = vpop.xlane.xlu0 %5108
    %5110 = vadd.xlane.f32.xlu0 %v3651
    %v5111 = vpop.xlane.xlu0 %5110
    %5112 = vadd.xlane.f32.xlu0 %v3653
    %v5113 = vpop.xlane.xlu0 %5112
    %5114 = vadd.xlane.f32.xlu0 %v3655
    %v5115 = vpop.xlane.xlu0 %5114
    %5116 = vadd.xlane.f32.xlu0 %v3657
    %v5117 = vpop.xlane.xlu0 %5116
    %5118 = vadd.xlane.f32.xlu0 %v3659
    %v5119 = vpop.xlane.xlu0 %5118
    %5120 = vadd.xlane.f32.xlu0 %v3661
    %v5121 = vpop.xlane.xlu0 %5120
    %5122 = vadd.xlane.f32.xlu0 %v3663
    %v5123 = vpop.xlane.xlu0 %5122
    %5124 = vadd.xlane.f32.xlu0 %v3665
    %v5125 = vpop.xlane.xlu0 %5124
    %5126 = vadd.xlane.f32.xlu0 %v3667
    %v5127 = vpop.xlane.xlu0 %5126
    %5128 = vadd.xlane.f32.xlu0 %v3669
    %v5129 = vpop.xlane.xlu0 %5128
    %5130 = vadd.xlane.f32.xlu0 %v3671
    %v5131 = vpop.xlane.xlu0 %5130
    %5132 = vadd.xlane.f32.xlu0 %v3673
    %v5133 = vpop.xlane.xlu0 %5132
    %5134 = vadd.xlane.f32.xlu0 %v3675
    %v5135 = vpop.xlane.xlu0 %5134
    %5136 = vadd.xlane.f32.xlu0 %v3677
    %v5137 = vpop.xlane.xlu0 %5136
    %5138 = vadd.xlane.f32.xlu0 %v3679
    %v5139 = vpop.xlane.xlu0 %5138
    %5140 = vadd.xlane.f32.xlu0 %v3681
    %v5141 = vpop.xlane.xlu0 %5140
    %5142 = vadd.xlane.f32.xlu0 %v3683
    %v5143 = vpop.xlane.xlu0 %5142
    %5144 = vadd.xlane.f32.xlu0 %v3685
    %v5145 = vpop.xlane.xlu0 %5144
    %5146 = vadd.xlane.f32.xlu0 %v3687
    %v5147 = vpop.xlane.xlu0 %5146
    %5148 = vadd.xlane.f32.xlu0 %v3689
    %v5149 = vpop.xlane.xlu0 %5148
    %5150 = vadd.xlane.f32.xlu0 %v3691
    %v5151 = vpop.xlane.xlu0 %5150
    %5152 = vadd.xlane.f32.xlu0 %v3693
    %v5153 = vpop.xlane.xlu0 %5152
    %5154 = vadd.xlane.f32.xlu0 %v3695
    %v5155 = vpop.xlane.xlu0 %5154
    %5156 = vadd.xlane.f32.xlu0 %v3697
    %v5157 = vpop.xlane.xlu0 %5156
    %5158 = vadd.xlane.f32.xlu0 %v3699
    %v5159 = vpop.xlane.xlu0 %5158
    %5160 = vadd.xlane.f32.xlu0 %v3701
    %v5161 = vpop.xlane.xlu0 %5160
    %5162 = vadd.xlane.f32.xlu0 %v3703
    %v5163 = vpop.xlane.xlu0 %5162
    %5164 = vadd.xlane.f32.xlu0 %v3705
    %v5165 = vpop.xlane.xlu0 %5164
    %5166 = vadd.xlane.f32.xlu0 %v3707
    %v5167 = vpop.xlane.xlu0 %5166
    %5168 = vadd.xlane.f32.xlu0 %v3709
    %v5169 = vpop.xlane.xlu0 %5168
    %5170 = vadd.xlane.f32.xlu0 %v3711
    %v5171 = vpop.xlane.xlu0 %5170
    %5172 = vadd.xlane.f32.xlu0 %v3713
    %v5173 = vpop.xlane.xlu0 %5172
    %5174 = vadd.xlane.f32.xlu0 %v3715
    %v5175 = vpop.xlane.xlu0 %5174
    %5176 = vadd.xlane.f32.xlu0 %v3717
    %v5177 = vpop.xlane.xlu0 %5176
    %5178 = vadd.xlane.f32.xlu0 %v3719
    %v5179 = vpop.xlane.xlu0 %5178
    %5180 = vadd.xlane.f32.xlu0 %v3721
    %v5181 = vpop.xlane.xlu0 %5180
    %5182 = vadd.xlane.f32.xlu0 %v3723
    %v5183 = vpop.xlane.xlu0 %5182
    %5184 = vadd.xlane.f32.xlu0 %v3725
    %v5185 = vpop.xlane.xlu0 %5184
    %5186 = vadd.xlane.f32.xlu0 %v3727
    %v5187 = vpop.xlane.xlu0 %5186
    %5188 = vadd.xlane.f32.xlu0 %v3729
    %v5189 = vpop.xlane.xlu0 %5188
    %5190 = vadd.xlane.f32.xlu0 %v3731
    %v5191 = vpop.xlane.xlu0 %5190
    %5192 = vadd.xlane.f32.xlu0 %v3733
    %v5193 = vpop.xlane.xlu0 %5192
    %5194 = vadd.xlane.f32.xlu0 %v3735
    %v5195 = vpop.xlane.xlu0 %5194
    %5196 = vadd.xlane.f32.xlu0 %v3737
    %v5197 = vpop.xlane.xlu0 %5196
    %5198 = vadd.xlane.f32.xlu0 %v3739
    %v5199 = vpop.xlane.xlu0 %5198
    %5200 = vadd.xlane.f32.xlu0 %v3741
    %v5201 = vpop.xlane.xlu0 %5200
    %5202 = vadd.xlane.f32.xlu0 %v3743
    %v5203 = vpop.xlane.xlu0 %5202
    %5204 = vadd.xlane.f32.xlu0 %v3745
    %v5205 = vpop.xlane.xlu0 %5204
    %5206 = vadd.xlane.f32.xlu0 %v3747
    %v5207 = vpop.xlane.xlu0 %5206
    %5208 = vadd.xlane.f32.xlu0 %v3749
    %v5209 = vpop.xlane.xlu0 %5208
    %5210 = vadd.xlane.f32.xlu0 %v3751
    %v5211 = vpop.xlane.xlu0 %5210
    %5212 = vadd.xlane.f32.xlu0 %v3753
    %v5213 = vpop.xlane.xlu0 %5212
    %5214 = vadd.xlane.f32.xlu0 %v3755
    %v5215 = vpop.xlane.xlu0 %5214
    %5216 = vadd.xlane.f32.xlu0 %v3757
    %v5217 = vpop.xlane.xlu0 %5216
    %5218 = vadd.xlane.f32.xlu0 %v3759
    %v5219 = vpop.xlane.xlu0 %5218
    %5220 = vadd.xlane.f32.xlu0 %v3761
    %v5221 = vpop.xlane.xlu0 %5220
    %5222 = vadd.xlane.f32.xlu0 %v3763
    %v5223 = vpop.xlane.xlu0 %5222
    %5224 = vadd.xlane.f32.xlu0 %v3765
    %v5225 = vpop.xlane.xlu0 %5224
    %5226 = vadd.xlane.f32.xlu0 %v3767
    %v5227 = vpop.xlane.xlu0 %5226
    %5228 = vadd.xlane.f32.xlu0 %v3769
    %v5229 = vpop.xlane.xlu0 %5228
    %5230 = vadd.xlane.f32.xlu0 %v3771
    %v5231 = vpop.xlane.xlu0 %5230
    %5232 = vadd.xlane.f32.xlu0 %v3773
    %v5233 = vpop.xlane.xlu0 %5232
    %5234 = vadd.xlane.f32.xlu0 %v3775
    %v5235 = vpop.xlane.xlu0 %5234
    %5236 = vadd.xlane.f32.xlu0 %v3777
    %v5237 = vpop.xlane.xlu0 %5236
    %5238 = vadd.xlane.f32.xlu0 %v3779
    %v5239 = vpop.xlane.xlu0 %5238
    %5240 = vadd.xlane.f32.xlu0 %v3781
    %v5241 = vpop.xlane.xlu0 %5240
    %5242 = vadd.xlane.f32.xlu0 %v3783
    %v5243 = vpop.xlane.xlu0 %5242
    %5244 = vadd.xlane.f32.xlu0 %v3785
    %v5245 = vpop.xlane.xlu0 %5244
    %5246 = vadd.xlane.f32.xlu0 %v3787
    %v5247 = vpop.xlane.xlu0 %5246
    %5248 = vadd.xlane.f32.xlu0 %v3789
    %v5249 = vpop.xlane.xlu0 %5248
    %5250 = vadd.xlane.f32.xlu0 %v3791
    %v5251 = vpop.xlane.xlu0 %5250
    %5252 = vadd.xlane.f32.xlu0 %v3793
    %v5253 = vpop.xlane.xlu0 %5252
    %5254 = vadd.xlane.f32.xlu0 %v3795
    %v5255 = vpop.xlane.xlu0 %5254
    %5256 = vadd.xlane.f32.xlu0 %v3797
    %v5257 = vpop.xlane.xlu0 %5256
    %5258 = vadd.xlane.f32.xlu0 %v3799
    %v5259 = vpop.xlane.xlu0 %5258
    %5260 = vadd.xlane.f32.xlu0 %v3801
    %v5261 = vpop.xlane.xlu0 %5260
    %5262 = vadd.xlane.f32.xlu0 %v3803
    %v5263 = vpop.xlane.xlu0 %5262
    %5264 = vadd.xlane.f32.xlu0 %v3805
    %v5265 = vpop.xlane.xlu0 %5264
    %5266 = vadd.xlane.f32.xlu0 %v3807
    %v5267 = vpop.xlane.xlu0 %5266
    %5268 = vadd.xlane.f32.xlu0 %v3809
    %v5269 = vpop.xlane.xlu0 %5268
    %5270 = vadd.xlane.f32.xlu0 %v3811
    %v5271 = vpop.xlane.xlu0 %5270
    %5272 = vadd.xlane.f32.xlu0 %v3813
    %v5273 = vpop.xlane.xlu0 %5272
    %5274 = vadd.xlane.f32.xlu0 %v3815
    %v5275 = vpop.xlane.xlu0 %5274
    %5276 = vadd.xlane.f32.xlu0 %v3817
    %v5277 = vpop.xlane.xlu0 %5276
    %5278 = vadd.xlane.f32.xlu0 %v3819
    %v5279 = vpop.xlane.xlu0 %5278
    %5280 = vadd.xlane.f32.xlu0 %v3821
    %v5281 = vpop.xlane.xlu0 %5280
    %5282 = vadd.xlane.f32.xlu0 %v3823
    %v5283 = vpop.xlane.xlu0 %5282
    %5284 = vadd.xlane.f32.xlu0 %v3825
    %v5285 = vpop.xlane.xlu0 %5284
    %5286 = vadd.xlane.f32.xlu0 %v3827
    %v5287 = vpop.xlane.xlu0 %5286
    %5288 = vadd.xlane.f32.xlu0 %v3829
    %v5289 = vpop.xlane.xlu0 %5288
    %5290 = vadd.xlane.f32.xlu0 %v3831
    %v5291 = vpop.xlane.xlu0 %5290
    %5292 = vadd.xlane.f32.xlu0 %v3833
    %v5293 = vpop.xlane.xlu0 %5292
    %5294 = vadd.xlane.f32.xlu0 %v3835
    %v5295 = vpop.xlane.xlu0 %5294
    %5296 = vadd.xlane.f32.xlu0 %v3837
    %v5297 = vpop.xlane.xlu0 %5296
    %5298 = vadd.xlane.f32.xlu0 %v3839
    %v5299 = vpop.xlane.xlu0 %5298
    %5300 = vadd.xlane.f32.xlu0 %v3841
    %v5301 = vpop.xlane.xlu0 %5300
    %5302 = vadd.xlane.f32.xlu0 %v3843
    %v5303 = vpop.xlane.xlu0 %5302
    %5304 = vadd.xlane.f32.xlu0 %v3845
    %v5305 = vpop.xlane.xlu0 %5304
    %5306 = vadd.xlane.f32.xlu0 %v3847
    %v5307 = vpop.xlane.xlu0 %5306
    %5308 = vadd.xlane.f32.xlu0 %v3849
    %v5309 = vpop.xlane.xlu0 %5308
    %5310 = vadd.xlane.f32.xlu0 %v3851
    %v5311 = vpop.xlane.xlu0 %5310
    %5312 = vadd.xlane.f32.xlu0 %v3853
    %v5313 = vpop.xlane.xlu0 %5312
    %5314 = vadd.xlane.f32.xlu0 %v3855
    %v5315 = vpop.xlane.xlu0 %5314
    %v5316 = vrcp.pop %v4805
    %v5317 = vrcp.pop %v4807
    %v5318 = vrcp.pop %v4809
    %v5319 = vrcp.pop %v4811
    %v5320 = vrcp.pop %v4813
    %v5321 = vrcp.pop %v4815
    %v5322 = vrcp.pop %v4817
    %v5323 = vrcp.pop %v4819
    %v5324 = vrcp.pop %v4821
    %v5325 = vrcp.pop %v4823
    %v5326 = vrcp.pop %v4825
    %v5327 = vrcp.pop %v4827
    %v5328 = vrcp.pop %v4829
    %v5329 = vrcp.pop %v4831
    %v5330 = vrcp.pop %v4833
    %v5331 = vrcp.pop %v4835
    %v5332 = vrcp.pop %v4837
    %v5333 = vrcp.pop %v4839
    %v5334 = vrcp.pop %v4841
    %v5335 = vrcp.pop %v4843
    %v5336 = vrcp.pop %v4845
    %v5337 = vrcp.pop %v4847
    %v5338 = vrcp.pop %v4849
    %v5339 = vrcp.pop %v4851
    %v5340 = vrcp.pop %v4853
    %v5341 = vrcp.pop %v4855
    %v5342 = vrcp.pop %v4857
    %v5343 = vrcp.pop %v4859
    %v5344 = vrcp.pop %v4861
    %v5345 = vrcp.pop %v4863
    %v5346 = vrcp.pop %v4865
    %v5347 = vrcp.pop %v4867
    %v5348 = vrcp.pop %v4869
    %v5349 = vrcp.pop %v4871
    %v5350 = vrcp.pop %v4873
    %v5351 = vrcp.pop %v4875
    %v5352 = vrcp.pop %v4877
    %v5353 = vrcp.pop %v4879
    %v5354 = vrcp.pop %v4881
    %v5355 = vrcp.pop %v4883
    %v5356 = vrcp.pop %v4885
    %v5357 = vrcp.pop %v4887
    %v5358 = vrcp.pop %v4889
    %v5359 = vrcp.pop %v4891
    %v5360 = vrcp.pop %v4893
    %v5361 = vrcp.pop %v4895
    %v5362 = vrcp.pop %v4897
    %v5363 = vrcp.pop %v4899
    %v5364 = vrcp.pop %v4901
    %v5365 = vrcp.pop %v4903
    %v5366 = vrcp.pop %v4905
    %v5367 = vrcp.pop %v4907
    %v5368 = vrcp.pop %v4909
    %v5369 = vrcp.pop %v4911
    %v5370 = vrcp.pop %v4913
    %v5371 = vrcp.pop %v4915
    %v5372 = vrcp.pop %v4917
    %v5373 = vrcp.pop %v4919
    %v5374 = vrcp.pop %v4921
    %v5375 = vrcp.pop %v4923
    %v5376 = vrcp.pop %v4925
    %v5377 = vrcp.pop %v4927
    %v5378 = vrcp.pop %v4929
    %v5379 = vrcp.pop %v4931
    %v5380 = vrcp.pop %v4933
    %v5381 = vrcp.pop %v4935
    %v5382 = vrcp.pop %v4937
    %v5383 = vrcp.pop %v4939
    %v5384 = vrcp.pop %v4941
    %v5385 = vrcp.pop %v4943
    %v5386 = vrcp.pop %v4945
    %v5387 = vrcp.pop %v4947
    %v5388 = vrcp.pop %v4949
    %v5389 = vrcp.pop %v4951
    %v5390 = vrcp.pop %v4953
    %v5391 = vrcp.pop %v4955
    %v5392 = vrcp.pop %v4957
    %v5393 = vrcp.pop %v4959
    %v5394 = vrcp.pop %v4961
    %v5395 = vrcp.pop %v4963
    %v5396 = vrcp.pop %v4965
    %v5397 = vrcp.pop %v4967
    %v5398 = vrcp.pop %v4969
    %v5399 = vrcp.pop %v4971
    %v5400 = vrcp.pop %v4973
    %v5401 = vrcp.pop %v4975
    %v5402 = vrcp.pop %v4977
    %v5403 = vrcp.pop %v4979
    %v5404 = vrcp.pop %v4981
    %v5405 = vrcp.pop %v4983
    %v5406 = vrcp.pop %v4985
    %v5407 = vrcp.pop %v4987
    %v5408 = vrcp.pop %v4989
    %v5409 = vrcp.pop %v4991
    %v5410 = vrcp.pop %v4993
    %v5411 = vrcp.pop %v4995
    %v5412 = vrcp.pop %v4997
    %v5413 = vrcp.pop %v4999
    %v5414 = vrcp.pop %v5001
    %v5415 = vrcp.pop %v5003
    %v5416 = vrcp.pop %v5005
    %v5417 = vrcp.pop %v5007
    %v5418 = vrcp.pop %v5009
    %v5419 = vrcp.pop %v5011
    %v5420 = vrcp.pop %v5013
    %v5421 = vrcp.pop %v5015
    %v5422 = vrcp.pop %v5017
    %v5423 = vrcp.pop %v5019
    %v5424 = vrcp.pop %v5021
    %v5425 = vrcp.pop %v5023
    %v5426 = vrcp.pop %v5025
    %v5427 = vrcp.pop %v5027
    %v5428 = vrcp.pop %v5029
    %v5429 = vrcp.pop %v5031
    %v5430 = vrcp.pop %v5033
    %v5431 = vrcp.pop %v5035
    %v5432 = vrcp.pop %v5037
    %v5433 = vrcp.pop %v5039
    %v5434 = vrcp.pop %v5041
    %v5435 = vrcp.pop %v5043
    %v5436 = vrcp.pop %v5045
    %v5437 = vrcp.pop %v5047
    %v5438 = vrcp.pop %v5049
    %v5439 = vrcp.pop %v5051
    %v5440 = vrcp.pop %v5053
    %v5441 = vrcp.pop %v5055
    %v5442 = vrcp.pop %v5057
    %v5443 = vrcp.pop %v5059
    %v5444 = vrcp.pop %v5061
    %v5445 = vrcp.pop %v5063
    %v5446 = vrcp.pop %v5065
    %v5447 = vrcp.pop %v5067
    %v5448 = vrcp.pop %v5069
    %v5449 = vrcp.pop %v5071
    %v5450 = vrcp.pop %v5073
    %v5451 = vrcp.pop %v5075
    %v5452 = vrcp.pop %v5077
    %v5453 = vrcp.pop %v5079
    %v5454 = vrcp.pop %v5081
    %v5455 = vrcp.pop %v5083
    %v5456 = vrcp.pop %v5085
    %v5457 = vrcp.pop %v5087
    %v5458 = vrcp.pop %v5089
    %v5459 = vrcp.pop %v5091
    %v5460 = vrcp.pop %v5093
    %v5461 = vrcp.pop %v5095
    %v5462 = vrcp.pop %v5097
    %v5463 = vrcp.pop %v5099
    %v5464 = vrcp.pop %v5101
    %v5465 = vrcp.pop %v5103
    %v5466 = vrcp.pop %v5105
    %v5467 = vrcp.pop %v5107
    %v5468 = vrcp.pop %v5109
    %v5469 = vrcp.pop %v5111
    %v5470 = vrcp.pop %v5113
    %v5471 = vrcp.pop %v5115
    %v5472 = vrcp.pop %v5117
    %v5473 = vrcp.pop %v5119
    %v5474 = vrcp.pop %v5121
    %v5475 = vrcp.pop %v5123
    %v5476 = vrcp.pop %v5125
    %v5477 = vrcp.pop %v5127
    %v5478 = vrcp.pop %v5129
    %v5479 = vrcp.pop %v5131
    %v5480 = vrcp.pop %v5133
    %v5481 = vrcp.pop %v5135
    %v5482 = vrcp.pop %v5137
    %v5483 = vrcp.pop %v5139
    %v5484 = vrcp.pop %v5141
    %v5485 = vrcp.pop %v5143
    %v5486 = vrcp.pop %v5145
    %v5487 = vrcp.pop %v5147
    %v5488 = vrcp.pop %v5149
    %v5489 = vrcp.pop %v5151
    %v5490 = vrcp.pop %v5153
    %v5491 = vrcp.pop %v5155
    %v5492 = vrcp.pop %v5157
    %v5493 = vrcp.pop %v5159
    %v5494 = vrcp.pop %v5161
    %v5495 = vrcp.pop %v5163
    %v5496 = vrcp.pop %v5165
    %v5497 = vrcp.pop %v5167
    %v5498 = vrcp.pop %v5169
    %v5499 = vrcp.pop %v5171
    %v5500 = vrcp.pop %v5173
    %v5501 = vrcp.pop %v5175
    %v5502 = vrcp.pop %v5177
    %v5503 = vrcp.pop %v5179
    %v5504 = vrcp.pop %v5181
    %v5505 = vrcp.pop %v5183
    %v5506 = vrcp.pop %v5185
    %v5507 = vrcp.pop %v5187
    %v5508 = vrcp.pop %v5189
    %v5509 = vrcp.pop %v5191
    %v5510 = vrcp.pop %v5193
    %v5511 = vrcp.pop %v5195
    %v5512 = vrcp.pop %v5197
    %v5513 = vrcp.pop %v5199
    %v5514 = vrcp.pop %v5201
    %v5515 = vrcp.pop %v5203
    %v5516 = vrcp.pop %v5205
    %v5517 = vrcp.pop %v5207
    %v5518 = vrcp.pop %v5209
    %v5519 = vrcp.pop %v5211
    %v5520 = vrcp.pop %v5213
    %v5521 = vrcp.pop %v5215
    %v5522 = vrcp.pop %v5217
    %v5523 = vrcp.pop %v5219
    %v5524 = vrcp.pop %v5221
    %v5525 = vrcp.pop %v5223
    %v5526 = vrcp.pop %v5225
    %v5527 = vrcp.pop %v5227
    %v5528 = vrcp.pop %v5229
    %v5529 = vrcp.pop %v5231
    %v5530 = vrcp.pop %v5233
    %v5531 = vrcp.pop %v5235
    %v5532 = vrcp.pop %v5237
    %v5533 = vrcp.pop %v5239
    %v5534 = vrcp.pop %v5241
    %v5535 = vrcp.pop %v5243
    %v5536 = vrcp.pop %v5245
    %v5537 = vrcp.pop %v5247
    %v5538 = vrcp.pop %v5249
    %v5539 = vrcp.pop %v5251
    %v5540 = vrcp.pop %v5253
    %v5541 = vrcp.pop %v5255
    %v5542 = vrcp.pop %v5257
    %v5543 = vrcp.pop %v5259
    %v5544 = vrcp.pop %v5261
    %v5545 = vrcp.pop %v5263
    %v5546 = vrcp.pop %v5265
    %v5547 = vrcp.pop %v5267
    %v5548 = vrcp.pop %v5269
    %v5549 = vrcp.pop %v5271
    %v5550 = vrcp.pop %v5273
    %v5551 = vrcp.pop %v5275
    %v5552 = vrcp.pop %v5277
    %v5553 = vrcp.pop %v5279
    %v5554 = vrcp.pop %v5281
    %v5555 = vrcp.pop %v5283
    %v5556 = vrcp.pop %v5285
    %v5557 = vrcp.pop %v5287
    %v5558 = vrcp.pop %v5289
    %v5559 = vrcp.pop %v5291
    %v5560 = vrcp.pop %v5293
    %v5561 = vrcp.pop %v5295
    %v5562 = vrcp.pop %v5297
    %v5563 = vrcp.pop %v5299
    %v5564 = vrcp.pop %v5301
    %v5565 = vrcp.pop %v5303
    %v5566 = vrcp.pop %v5305
    %v5567 = vrcp.pop %v5307
    %v5568 = vrcp.pop %v5309
    %v5569 = vrcp.pop %v5311
    %v5570 = vrcp.pop %v5313
    %v5571 = vrcp.pop %v5315
    %v5572 = vmul.f32 %v4293, %v5316
    %v5573 = vmul.f32 %v4295, %v5317
    %v5574 = vmul.f32 %v4297, %v5318
    %v5575 = vmul.f32 %v4299, %v5319
    %v5576 = vmul.f32 %v4301, %v5320
    %v5577 = vmul.f32 %v4303, %v5321
    %v5578 = vmul.f32 %v4305, %v5322
    %v5579 = vmul.f32 %v4307, %v5323
    %v5580 = vmul.f32 %v4309, %v5324
    %v5581 = vmul.f32 %v4311, %v5325
    %v5582 = vmul.f32 %v4313, %v5326
    %v5583 = vmul.f32 %v4315, %v5327
    %v5584 = vmul.f32 %v4317, %v5328
    %v5585 = vmul.f32 %v4319, %v5329
    %v5586 = vmul.f32 %v4321, %v5330
    %v5587 = vmul.f32 %v4323, %v5331
    %v5588 = vmul.f32 %v4325, %v5332
    %v5589 = vmul.f32 %v4327, %v5333
    %v5590 = vmul.f32 %v4329, %v5334
    %v5591 = vmul.f32 %v4331, %v5335
    %v5592 = vmul.f32 %v4333, %v5336
    %v5593 = vmul.f32 %v4335, %v5337
    %v5594 = vmul.f32 %v4337, %v5338
    %v5595 = vmul.f32 %v4339, %v5339
    %v5596 = vmul.f32 %v4341, %v5340
    %v5597 = vmul.f32 %v4343, %v5341
    %v5598 = vmul.f32 %v4345, %v5342
    %v5599 = vmul.f32 %v4347, %v5343
    %v5600 = vmul.f32 %v4349, %v5344
    %v5601 = vmul.f32 %v4351, %v5345
    %v5602 = vmul.f32 %v4353, %v5346
    %v5603 = vmul.f32 %v4355, %v5347
    %v5604 = vmul.f32 %v4357, %v5348
    %v5605 = vmul.f32 %v4359, %v5349
    %v5606 = vmul.f32 %v4361, %v5350
    %v5607 = vmul.f32 %v4363, %v5351
    %v5608 = vmul.f32 %v4365, %v5352
    %v5609 = vmul.f32 %v4367, %v5353
    %v5610 = vmul.f32 %v4369, %v5354
    %v5611 = vmul.f32 %v4371, %v5355
    %v5612 = vmul.f32 %v4373, %v5356
    %v5613 = vmul.f32 %v4375, %v5357
    %v5614 = vmul.f32 %v4377, %v5358
    %v5615 = vmul.f32 %v4379, %v5359
    %v5616 = vmul.f32 %v4381, %v5360
    %v5617 = vmul.f32 %v4383, %v5361
    %v5618 = vmul.f32 %v4385, %v5362
    %v5619 = vmul.f32 %v4387, %v5363
    %v5620 = vmul.f32 %v4389, %v5364
    %v5621 = vmul.f32 %v4391, %v5365
    %v5622 = vmul.f32 %v4393, %v5366
    %v5623 = vmul.f32 %v4395, %v5367
    %v5624 = vmul.f32 %v4397, %v5368
    %v5625 = vmul.f32 %v4399, %v5369
    %v5626 = vmul.f32 %v4401, %v5370
    %v5627 = vmul.f32 %v4403, %v5371
    %v5628 = vmul.f32 %v4405, %v5372
    %v5629 = vmul.f32 %v4407, %v5373
    %v5630 = vmul.f32 %v4409, %v5374
    %v5631 = vmul.f32 %v4411, %v5375
    %v5632 = vmul.f32 %v4413, %v5376
    %v5633 = vmul.f32 %v4415, %v5377
    %v5634 = vmul.f32 %v4417, %v5378
    %v5635 = vmul.f32 %v4419, %v5379
    %v5636 = vmul.f32 %v4421, %v5380
    %v5637 = vmul.f32 %v4423, %v5381
    %v5638 = vmul.f32 %v4425, %v5382
    %v5639 = vmul.f32 %v4427, %v5383
    %v5640 = vmul.f32 %v4429, %v5384
    %v5641 = vmul.f32 %v4431, %v5385
    %v5642 = vmul.f32 %v4433, %v5386
    %v5643 = vmul.f32 %v4435, %v5387
    %v5644 = vmul.f32 %v4437, %v5388
    %v5645 = vmul.f32 %v4439, %v5389
    %v5646 = vmul.f32 %v4441, %v5390
    %v5647 = vmul.f32 %v4443, %v5391
    %v5648 = vmul.f32 %v4445, %v5392
    %v5649 = vmul.f32 %v4447, %v5393
    %v5650 = vmul.f32 %v4449, %v5394
    %v5651 = vmul.f32 %v4451, %v5395
    %v5652 = vmul.f32 %v4453, %v5396
    %v5653 = vmul.f32 %v4455, %v5397
    %v5654 = vmul.f32 %v4457, %v5398
    %v5655 = vmul.f32 %v4459, %v5399
    %v5656 = vmul.f32 %v4461, %v5400
    %v5657 = vmul.f32 %v4463, %v5401
    %v5658 = vmul.f32 %v4465, %v5402
    %v5659 = vmul.f32 %v4467, %v5403
    %v5660 = vmul.f32 %v4469, %v5404
    %v5661 = vmul.f32 %v4471, %v5405
    %v5662 = vmul.f32 %v4473, %v5406
    %v5663 = vmul.f32 %v4475, %v5407
    %v5664 = vmul.f32 %v4477, %v5408
    %v5665 = vmul.f32 %v4479, %v5409
    %v5666 = vmul.f32 %v4481, %v5410
    %v5667 = vmul.f32 %v4483, %v5411
    %v5668 = vmul.f32 %v4485, %v5412
    %v5669 = vmul.f32 %v4487, %v5413
    %v5670 = vmul.f32 %v4489, %v5414
    %v5671 = vmul.f32 %v4491, %v5415
    %v5672 = vmul.f32 %v4493, %v5416
    %v5673 = vmul.f32 %v4495, %v5417
    %v5674 = vmul.f32 %v4497, %v5418
    %v5675 = vmul.f32 %v4499, %v5419
    %v5676 = vmul.f32 %v4501, %v5420
    %v5677 = vmul.f32 %v4503, %v5421
    %v5678 = vmul.f32 %v4505, %v5422
    %v5679 = vmul.f32 %v4507, %v5423
    %v5680 = vmul.f32 %v4509, %v5424
    %v5681 = vmul.f32 %v4511, %v5425
    %v5682 = vmul.f32 %v4513, %v5426
    %v5683 = vmul.f32 %v4515, %v5427
    %v5684 = vmul.f32 %v4517, %v5428
    %v5685 = vmul.f32 %v4519, %v5429
    %v5686 = vmul.f32 %v4521, %v5430
    %v5687 = vmul.f32 %v4523, %v5431
    %v5688 = vmul.f32 %v4525, %v5432
    %v5689 = vmul.f32 %v4527, %v5433
    %v5690 = vmul.f32 %v4529, %v5434
    %v5691 = vmul.f32 %v4531, %v5435
    %v5692 = vmul.f32 %v4533, %v5436
    %v5693 = vmul.f32 %v4535, %v5437
    %v5694 = vmul.f32 %v4537, %v5438
    %v5695 = vmul.f32 %v4539, %v5439
    %v5696 = vmul.f32 %v4541, %v5440
    %v5697 = vmul.f32 %v4543, %v5441
    %v5698 = vmul.f32 %v4545, %v5442
    %v5699 = vmul.f32 %v4547, %v5443
    %v5700 = vmul.f32 %v4549, %v5444
    %v5701 = vmul.f32 %v4551, %v5445
    %v5702 = vmul.f32 %v4553, %v5446
    %v5703 = vmul.f32 %v4555, %v5447
    %v5704 = vmul.f32 %v4557, %v5448
    %v5705 = vmul.f32 %v4559, %v5449
    %v5706 = vmul.f32 %v4561, %v5450
    %v5707 = vmul.f32 %v4563, %v5451
    %v5708 = vmul.f32 %v4565, %v5452
    %v5709 = vmul.f32 %v4567, %v5453
    %v5710 = vmul.f32 %v4569, %v5454
    %v5711 = vmul.f32 %v4571, %v5455
    %v5712 = vmul.f32 %v4573, %v5456
    %v5713 = vmul.f32 %v4575, %v5457
    %v5714 = vmul.f32 %v4577, %v5458
    %v5715 = vmul.f32 %v4579, %v5459
    %v5716 = vmul.f32 %v4581, %v5460
    %v5717 = vmul.f32 %v4583, %v5461
    %v5718 = vmul.f32 %v4585, %v5462
    %v5719 = vmul.f32 %v4587, %v5463
    %v5720 = vmul.f32 %v4589, %v5464
    %v5721 = vmul.f32 %v4591, %v5465
    %v5722 = vmul.f32 %v4593, %v5466
    %v5723 = vmul.f32 %v4595, %v5467
    %v5724 = vmul.f32 %v4597, %v5468
    %v5725 = vmul.f32 %v4599, %v5469
    %v5726 = vmul.f32 %v4601, %v5470
    %v5727 = vmul.f32 %v4603, %v5471
    %v5728 = vmul.f32 %v4605, %v5472
    %v5729 = vmul.f32 %v4607, %v5473
    %v5730 = vmul.f32 %v4609, %v5474
    %v5731 = vmul.f32 %v4611, %v5475
    %v5732 = vmul.f32 %v4613, %v5476
    %v5733 = vmul.f32 %v4615, %v5477
    %v5734 = vmul.f32 %v4617, %v5478
    %v5735 = vmul.f32 %v4619, %v5479
    %v5736 = vmul.f32 %v4621, %v5480
    %v5737 = vmul.f32 %v4623, %v5481
    %v5738 = vmul.f32 %v4625, %v5482
    %v5739 = vmul.f32 %v4627, %v5483
    %v5740 = vmul.f32 %v4629, %v5484
    %v5741 = vmul.f32 %v4631, %v5485
    %v5742 = vmul.f32 %v4633, %v5486
    %v5743 = vmul.f32 %v4635, %v5487
    %v5744 = vmul.f32 %v4637, %v5488
    %v5745 = vmul.f32 %v4639, %v5489
    %v5746 = vmul.f32 %v4641, %v5490
    %v5747 = vmul.f32 %v4643, %v5491
    %v5748 = vmul.f32 %v4645, %v5492
    %v5749 = vmul.f32 %v4647, %v5493
    %v5750 = vmul.f32 %v4649, %v5494
    %v5751 = vmul.f32 %v4651, %v5495
    %v5752 = vmul.f32 %v4653, %v5496
    %v5753 = vmul.f32 %v4655, %v5497
    %v5754 = vmul.f32 %v4657, %v5498
    %v5755 = vmul.f32 %v4659, %v5499
    %v5756 = vmul.f32 %v4661, %v5500
    %v5757 = vmul.f32 %v4663, %v5501
    %v5758 = vmul.f32 %v4665, %v5502
    %v5759 = vmul.f32 %v4667, %v5503
    %v5760 = vmul.f32 %v4669, %v5504
    %v5761 = vmul.f32 %v4671, %v5505
    %v5762 = vmul.f32 %v4673, %v5506
    %v5763 = vmul.f32 %v4675, %v5507
    %v5764 = vmul.f32 %v4677, %v5508
    %v5765 = vmul.f32 %v4679, %v5509
    %v5766 = vmul.f32 %v4681, %v5510
    %v5767 = vmul.f32 %v4683, %v5511
    %v5768 = vmul.f32 %v4685, %v5512
    %v5769 = vmul.f32 %v4687, %v5513
    %v5770 = vmul.f32 %v4689, %v5514
    %v5771 = vmul.f32 %v4691, %v5515
    %v5772 = vmul.f32 %v4693, %v5516
    %v5773 = vmul.f32 %v4695, %v5517
    %v5774 = vmul.f32 %v4697, %v5518
    %v5775 = vmul.f32 %v4699, %v5519
    %v5776 = vmul.f32 %v4701, %v5520
    %v5777 = vmul.f32 %v4703, %v5521
    %v5778 = vmul.f32 %v4705, %v5522
    %v5779 = vmul.f32 %v4707, %v5523
    %v5780 = vmul.f32 %v4709, %v5524
    %v5781 = vmul.f32 %v4711, %v5525
    %v5782 = vmul.f32 %v4713, %v5526
    %v5783 = vmul.f32 %v4715, %v5527
    %v5784 = vmul.f32 %v4717, %v5528
    %v5785 = vmul.f32 %v4719, %v5529
    %v5786 = vmul.f32 %v4721, %v5530
    %v5787 = vmul.f32 %v4723, %v5531
    %v5788 = vmul.f32 %v4725, %v5532
    %v5789 = vmul.f32 %v4727, %v5533
    %v5790 = vmul.f32 %v4729, %v5534
    %v5791 = vmul.f32 %v4731, %v5535
    %v5792 = vmul.f32 %v4733, %v5536
    %v5793 = vmul.f32 %v4735, %v5537
    %v5794 = vmul.f32 %v4737, %v5538
    %v5795 = vmul.f32 %v4739, %v5539
    %v5796 = vmul.f32 %v4741, %v5540
    %v5797 = vmul.f32 %v4743, %v5541
    %v5798 = vmul.f32 %v4745, %v5542
    %v5799 = vmul.f32 %v4747, %v5543
    %v5800 = vmul.f32 %v4749, %v5544
    %v5801 = vmul.f32 %v4751, %v5545
    %v5802 = vmul.f32 %v4753, %v5546
    %v5803 = vmul.f32 %v4755, %v5547
    %v5804 = vmul.f32 %v4757, %v5548
    %v5805 = vmul.f32 %v4759, %v5549
    %v5806 = vmul.f32 %v4761, %v5550
    %v5807 = vmul.f32 %v4763, %v5551
    %v5808 = vmul.f32 %v4765, %v5552
    %v5809 = vmul.f32 %v4767, %v5553
    %v5810 = vmul.f32 %v4769, %v5554
    %v5811 = vmul.f32 %v4771, %v5555
    %v5812 = vmul.f32 %v4773, %v5556
    %v5813 = vmul.f32 %v4775, %v5557
    %v5814 = vmul.f32 %v4777, %v5558
    %v5815 = vmul.f32 %v4779, %v5559
    %v5816 = vmul.f32 %v4781, %v5560
    %v5817 = vmul.f32 %v4783, %v5561
    %v5818 = vmul.f32 %v4785, %v5562
    %v5819 = vmul.f32 %v4787, %v5563
    %v5820 = vmul.f32 %v4789, %v5564
    %v5821 = vmul.f32 %v4791, %v5565
    %v5822 = vmul.f32 %v4793, %v5566
    %v5823 = vmul.f32 %v4795, %v5567
    %v5824 = vmul.f32 %v4797, %v5568
    %v5825 = vmul.f32 %v4799, %v5569
    %v5826 = vmul.f32 %v4801, %v5570
    %v5827 = vmul.f32 %v4803, %v5571
    %s5828 = sld [smem:[#allocation2]]
    %s5829 = sld [smem:[#allocation2 + $0x1]]
    %v5830 = vstv %s5828
    %v5831 = vmul.f32 %v5830, %v269
    %v5832 = vmul.f32 %v5830, %v272
    %v5833 = vstv %s5829
    %v5834 = vmul.f32 %v5833, %v5572
    %v5835 = vmul.f32 %v5833, %v5573
    %v5836 = vmul.f32 %v5833, %v5574
    %v5837 = vmul.f32 %v5833, %v5575
    %v5838 = vmul.f32 %v5833, %v5576
    %v5839 = vmul.f32 %v5833, %v5577
    %v5840 = vmul.f32 %v5833, %v5578
    %v5841 = vmul.f32 %v5833, %v5579
    %v5842 = vmul.f32 %v5833, %v5580
    %v5843 = vmul.f32 %v5833, %v5581
    %v5844 = vmul.f32 %v5833, %v5582
    %v5845 = vmul.f32 %v5833, %v5583
    %v5846 = vmul.f32 %v5833, %v5584
    %v5847 = vmul.f32 %v5833, %v5585
    %v5848 = vmul.f32 %v5833, %v5586
    %v5849 = vmul.f32 %v5833, %v5587
    %v5850 = vmul.f32 %v5833, %v5588
    %v5851 = vmul.f32 %v5833, %v5589
    %v5852 = vmul.f32 %v5833, %v5590
    %v5853 = vmul.f32 %v5833, %v5591
    %v5854 = vmul.f32 %v5833, %v5592
    %v5855 = vmul.f32 %v5833, %v5593
    %v5856 = vmul.f32 %v5833, %v5594
    %v5857 = vmul.f32 %v5833, %v5595
    %v5858 = vmul.f32 %v5833, %v5596
    %v5859 = vmul.f32 %v5833, %v5597
    %v5860 = vmul.f32 %v5833, %v5598
    %v5861 = vmul.f32 %v5833, %v5599
    %v5862 = vmul.f32 %v5833, %v5600
    %v5863 = vmul.f32 %v5833, %v5601
    %v5864 = vmul.f32 %v5833, %v5602
    %v5865 = vmul.f32 %v5833, %v5603
    %v5866 = vmul.f32 %v5833, %v5604
    %v5867 = vmul.f32 %v5833, %v5605
    %v5868 = vmul.f32 %v5833, %v5606
    %v5869 = vmul.f32 %v5833, %v5607
    %v5870 = vmul.f32 %v5833, %v5608
    %v5871 = vmul.f32 %v5833, %v5609
    %v5872 = vmul.f32 %v5833, %v5610
    %v5873 = vmul.f32 %v5833, %v5611
    %v5874 = vmul.f32 %v5833, %v5612
    %v5875 = vmul.f32 %v5833, %v5613
    %v5876 = vmul.f32 %v5833, %v5614
    %v5877 = vmul.f32 %v5833, %v5615
    %v5878 = vmul.f32 %v5833, %v5616
    %v5879 = vmul.f32 %v5833, %v5617
    %v5880 = vmul.f32 %v5833, %v5618
    %v5881 = vmul.f32 %v5833, %v5619
    %v5882 = vmul.f32 %v5833, %v5620
    %v5883 = vmul.f32 %v5833, %v5621
    %v5884 = vmul.f32 %v5833, %v5622
    %v5885 = vmul.f32 %v5833, %v5623
    %v5886 = vmul.f32 %v5833, %v5624
    %v5887 = vmul.f32 %v5833, %v5625
    %v5888 = vmul.f32 %v5833, %v5626
    %v5889 = vmul.f32 %v5833, %v5627
    %v5890 = vmul.f32 %v5833, %v5628
    %v5891 = vmul.f32 %v5833, %v5629
    %v5892 = vmul.f32 %v5833, %v5630
    %v5893 = vmul.f32 %v5833, %v5631
    %v5894 = vmul.f32 %v5833, %v5632
    %v5895 = vmul.f32 %v5833, %v5633
    %v5896 = vmul.f32 %v5833, %v5634
    %v5897 = vmul.f32 %v5833, %v5635
    %v5898 = vmul.f32 %v5833, %v5636
    %v5899 = vmul.f32 %v5833, %v5637
    %v5900 = vmul.f32 %v5833, %v5638
    %v5901 = vmul.f32 %v5833, %v5639
    %v5902 = vmul.f32 %v5833, %v5640
    %v5903 = vmul.f32 %v5833, %v5641
    %v5904 = vmul.f32 %v5833, %v5642
    %v5905 = vmul.f32 %v5833, %v5643
    %v5906 = vmul.f32 %v5833, %v5644
    %v5907 = vmul.f32 %v5833, %v5645
    %v5908 = vmul.f32 %v5833, %v5646
    %v5909 = vmul.f32 %v5833, %v5647
    %v5910 = vmul.f32 %v5833, %v5648
    %v5911 = vmul.f32 %v5833, %v5649
    %v5912 = vmul.f32 %v5833, %v5650
    %v5913 = vmul.f32 %v5833, %v5651
    %v5914 = vmul.f32 %v5833, %v5652
    %v5915 = vmul.f32 %v5833, %v5653
    %v5916 = vmul.f32 %v5833, %v5654
    %v5917 = vmul.f32 %v5833, %v5655
    %v5918 = vmul.f32 %v5833, %v5656
    %v5919 = vmul.f32 %v5833, %v5657
    %v5920 = vmul.f32 %v5833, %v5658
    %v5921 = vmul.f32 %v5833, %v5659
    %v5922 = vmul.f32 %v5833, %v5660
    %v5923 = vmul.f32 %v5833, %v5661
    %v5924 = vmul.f32 %v5833, %v5662
    %v5925 = vmul.f32 %v5833, %v5663
    %v5926 = vmul.f32 %v5833, %v5664
    %v5927 = vmul.f32 %v5833, %v5665
    %v5928 = vmul.f32 %v5833, %v5666
    %v5929 = vmul.f32 %v5833, %v5667
    %v5930 = vmul.f32 %v5833, %v5668
    %v5931 = vmul.f32 %v5833, %v5669
    %v5932 = vmul.f32 %v5833, %v5670
    %v5933 = vmul.f32 %v5833, %v5671
    %v5934 = vmul.f32 %v5833, %v5672
    %v5935 = vmul.f32 %v5833, %v5673
    %v5936 = vmul.f32 %v5833, %v5674
    %v5937 = vmul.f32 %v5833, %v5675
    %v5938 = vmul.f32 %v5833, %v5676
    %v5939 = vmul.f32 %v5833, %v5677
    %v5940 = vmul.f32 %v5833, %v5678
    %v5941 = vmul.f32 %v5833, %v5679
    %v5942 = vmul.f32 %v5833, %v5680
    %v5943 = vmul.f32 %v5833, %v5681
    %v5944 = vmul.f32 %v5833, %v5682
    %v5945 = vmul.f32 %v5833, %v5683
    %v5946 = vmul.f32 %v5833, %v5684
    %v5947 = vmul.f32 %v5833, %v5685
    %v5948 = vmul.f32 %v5833, %v5686
    %v5949 = vmul.f32 %v5833, %v5687
    %v5950 = vmul.f32 %v5833, %v5688
    %v5951 = vmul.f32 %v5833, %v5689
    %v5952 = vmul.f32 %v5833, %v5690
    %v5953 = vmul.f32 %v5833, %v5691
    %v5954 = vmul.f32 %v5833, %v5692
    %v5955 = vmul.f32 %v5833, %v5693
    %v5956 = vmul.f32 %v5833, %v5694
    %v5957 = vmul.f32 %v5833, %v5695
    %v5958 = vmul.f32 %v5833, %v5696
    %v5959 = vmul.f32 %v5833, %v5697
    %v5960 = vmul.f32 %v5833, %v5698
    %v5961 = vmul.f32 %v5833, %v5699
    %v5962 = vmul.f32 %v5833, %v5700
    %v5963 = vmul.f32 %v5833, %v5701
    %v5964 = vmul.f32 %v5833, %v5702
    %v5965 = vmul.f32 %v5833, %v5703
    %v5966 = vmul.f32 %v5833, %v5704
    %v5967 = vmul.f32 %v5833, %v5705
    %v5968 = vmul.f32 %v5833, %v5706
    %v5969 = vmul.f32 %v5833, %v5707
    %v5970 = vmul.f32 %v5833, %v5708
    %v5971 = vmul.f32 %v5833, %v5709
    %v5972 = vmul.f32 %v5833, %v5710
    %v5973 = vmul.f32 %v5833, %v5711
    %v5974 = vmul.f32 %v5833, %v5712
    %v5975 = vmul.f32 %v5833, %v5713
    %v5976 = vmul.f32 %v5833, %v5714
    %v5977 = vmul.f32 %v5833, %v5715
    %v5978 = vmul.f32 %v5833, %v5716
    %v5979 = vmul.f32 %v5833, %v5717
    %v5980 = vmul.f32 %v5833, %v5718
    %v5981 = vmul.f32 %v5833, %v5719
    %v5982 = vmul.f32 %v5833, %v5720
    %v5983 = vmul.f32 %v5833, %v5721
    %v5984 = vmul.f32 %v5833, %v5722
    %v5985 = vmul.f32 %v5833, %v5723
    %v5986 = vmul.f32 %v5833, %v5724
    %v5987 = vmul.f32 %v5833, %v5725
    %v5988 = vmul.f32 %v5833, %v5726
    %v5989 = vmul.f32 %v5833, %v5727
    %v5990 = vmul.f32 %v5833, %v5728
    %v5991 = vmul.f32 %v5833, %v5729
    %v5992 = vmul.f32 %v5833, %v5730
    %v5993 = vmul.f32 %v5833, %v5731
    %v5994 = vmul.f32 %v5833, %v5732
    %v5995 = vmul.f32 %v5833, %v5733
    %v5996 = vmul.f32 %v5833, %v5734
    %v5997 = vmul.f32 %v5833, %v5735
    %v5998 = vmul.f32 %v5833, %v5736
    %v5999 = vmul.f32 %v5833, %v5737
    %v6000 = vmul.f32 %v5833, %v5738
    %v6001 = vmul.f32 %v5833, %v5739
    %v6002 = vmul.f32 %v5833, %v5740
    %v6003 = vmul.f32 %v5833, %v5741
    %v6004 = vmul.f32 %v5833, %v5742
    %v6005 = vmul.f32 %v5833, %v5743
    %v6006 = vmul.f32 %v5833, %v5744
    %v6007 = vmul.f32 %v5833, %v5745
    %v6008 = vmul.f32 %v5833, %v5746
    %v6009 = vmul.f32 %v5833, %v5747
    %v6010 = vmul.f32 %v5833, %v5748
    %v6011 = vmul.f32 %v5833, %v5749
    %v6012 = vmul.f32 %v5833, %v5750
    %v6013 = vmul.f32 %v5833, %v5751
    %v6014 = vmul.f32 %v5833, %v5752
    %v6015 = vmul.f32 %v5833, %v5753
    %v6016 = vmul.f32 %v5833, %v5754
    %v6017 = vmul.f32 %v5833, %v5755
    %v6018 = vmul.f32 %v5833, %v5756
    %v6019 = vmul.f32 %v5833, %v5757
    %v6020 = vmul.f32 %v5833, %v5758
    %v6021 = vmul.f32 %v5833, %v5759
    %v6022 = vmul.f32 %v5833, %v5760
    %v6023 = vmul.f32 %v5833, %v5761
    %v6024 = vmul.f32 %v5833, %v5762
    %v6025 = vmul.f32 %v5833, %v5763
    %v6026 = vmul.f32 %v5833, %v5764
    %v6027 = vmul.f32 %v5833, %v5765
    %v6028 = vmul.f32 %v5833, %v5766
    %v6029 = vmul.f32 %v5833, %v5767
    %v6030 = vmul.f32 %v5833, %v5768
    %v6031 = vmul.f32 %v5833, %v5769
    %v6032 = vmul.f32 %v5833, %v5770
    %v6033 = vmul.f32 %v5833, %v5771
    %v6034 = vmul.f32 %v5833, %v5772
    %v6035 = vmul.f32 %v5833, %v5773
    %v6036 = vmul.f32 %v5833, %v5774
    %v6037 = vmul.f32 %v5833, %v5775
    %v6038 = vmul.f32 %v5833, %v5776
    %v6039 = vmul.f32 %v5833, %v5777
    %v6040 = vmul.f32 %v5833, %v5778
    %v6041 = vmul.f32 %v5833, %v5779
    %v6042 = vmul.f32 %v5833, %v5780
    %v6043 = vmul.f32 %v5833, %v5781
    %v6044 = vmul.f32 %v5833, %v5782
    %v6045 = vmul.f32 %v5833, %v5783
    %v6046 = vmul.f32 %v5833, %v5784
    %v6047 = vmul.f32 %v5833, %v5785
    %v6048 = vmul.f32 %v5833, %v5786
    %v6049 = vmul.f32 %v5833, %v5787
    %v6050 = vmul.f32 %v5833, %v5788
    %v6051 = vmul.f32 %v5833, %v5789
    %v6052 = vmul.f32 %v5833, %v5790
    %v6053 = vmul.f32 %v5833, %v5791
    %v6054 = vmul.f32 %v5833, %v5792
    %v6055 = vmul.f32 %v5833, %v5793
    %v6056 = vmul.f32 %v5833, %v5794
    %v6057 = vmul.f32 %v5833, %v5795
    %v6058 = vmul.f32 %v5833, %v5796
    %v6059 = vmul.f32 %v5833, %v5797
    %v6060 = vmul.f32 %v5833, %v5798
    %v6061 = vmul.f32 %v5833, %v5799
    %v6062 = vmul.f32 %v5833, %v5800
    %v6063 = vmul.f32 %v5833, %v5801
    %v6064 = vmul.f32 %v5833, %v5802
    %v6065 = vmul.f32 %v5833, %v5803
    %v6066 = vmul.f32 %v5833, %v5804
    %v6067 = vmul.f32 %v5833, %v5805
    %v6068 = vmul.f32 %v5833, %v5806
    %v6069 = vmul.f32 %v5833, %v5807
    %v6070 = vmul.f32 %v5833, %v5808
    %v6071 = vmul.f32 %v5833, %v5809
    %v6072 = vmul.f32 %v5833, %v5810
    %v6073 = vmul.f32 %v5833, %v5811
    %v6074 = vmul.f32 %v5833, %v5812
    %v6075 = vmul.f32 %v5833, %v5813
    %v6076 = vmul.f32 %v5833, %v5814
    %v6077 = vmul.f32 %v5833, %v5815
    %v6078 = vmul.f32 %v5833, %v5816
    %v6079 = vmul.f32 %v5833, %v5817
    %v6080 = vmul.f32 %v5833, %v5818
    %v6081 = vmul.f32 %v5833, %v5819
    %v6082 = vmul.f32 %v5833, %v5820
    %v6083 = vmul.f32 %v5833, %v5821
    %v6084 = vmul.f32 %v5833, %v5822
    %v6085 = vmul.f32 %v5833, %v5823
    %v6086 = vmul.f32 %v5833, %v5824
    %v6087 = vmul.f32 %v5833, %v5825
    %v6088 = vmul.f32 %v5833, %v5826
    %v6089 = vmul.f32 %v5833, %v5827
    %v6346 = vlaneseq
    %v6347 = vand.u32 %v6346, 127
    %v6348 = vlaneseq
    %v6349 = vshrl.u32 %v6348, 7
    %v6350 = vsub.s32 %v6347, %v6349
    %v6351 = vrot.slane %v5834, %v6350
    %v6352 = vadd.s32 %v6347, 4294967288
    %v6353 = vlaneseq
    %v6354 = vshrl.u32 %v6353, 7
    %v6355 = vsub.s32 %v6352, %v6354
    %v6356 = vrot.slane %v5835, %v6355
    %vm6357 = vcmask 130112
    %v6358 = vsel %vm6357, %v6356, %v6351
    %v6359 = vadd.s32 %v6347, 4294967280
    %v6360 = vlaneseq
    %v6361 = vshrl.u32 %v6360, 7
    %v6362 = vsub.s32 %v6359, %v6361
    %v6363 = vrot.slane %v5836, %v6362
    %vm6364 = vcmask 195712
    %v6365 = vsel %vm6364, %v6363, %v6358
    %v6366 = vadd.s32 %v6347, 4294967272
    %v6367 = vlaneseq
    %v6368 = vshrl.u32 %v6367, 7
    %v6369 = vsub.s32 %v6366, %v6368
    %v6370 = vrot.slane %v5837, %v6369
    %vm6371 = vcmask 261312
    %v6372 = vsel %vm6371, %v6370, %v6365
    %v6373 = vadd.s32 %v6347, 4294967264
    %v6374 = vlaneseq
    %v6375 = vshrl.u32 %v6374, 7
    %v6376 = vsub.s32 %v6373, %v6375
    %v6377 = vrot.slane %v5838, %v6376
    %vm6378 = vcmask 326912
    %v6379 = vsel %vm6378, %v6377, %v6372
    %v6380 = vadd.s32 %v6347, 4294967256
    %v6381 = vlaneseq
    %v6382 = vshrl.u32 %v6381, 7
    %v6383 = vsub.s32 %v6380, %v6382
    %v6384 = vrot.slane %v5839, %v6383
    %vm6385 = vcmask 392512
    %v6386 = vsel %vm6385, %v6384, %v6379
    %v6387 = vadd.s32 %v6347, 4294967248
    %v6388 = vlaneseq
    %v6389 = vshrl.u32 %v6388, 7
    %v6390 = vsub.s32 %v6387, %v6389
    %v6391 = vrot.slane %v5840, %v6390
    %vm6392 = vcmask 458112
    %v6393 = vsel %vm6392, %v6391, %v6386
    %v6394 = vadd.s32 %v6347, 4294967240
    %v6395 = vlaneseq
    %v6396 = vshrl.u32 %v6395, 7
    %v6397 = vsub.s32 %v6394, %v6396
    %v6398 = vrot.slane %v5841, %v6397
    %vm6399 = vcmask 523712
    %v6400 = vsel %vm6399, %v6398, %v6393
    %v6401 = vadd.s32 %v6347, 4294967232
    %v6402 = vlaneseq
    %v6403 = vshrl.u32 %v6402, 7
    %v6404 = vsub.s32 %v6401, %v6403
    %v6405 = vrot.slane %v5842, %v6404
    %vm6406 = vcmask 589312
    %v6407 = vsel %vm6406, %v6405, %v6400
    %v6408 = vadd.s32 %v6347, 4294967224
    %v6409 = vlaneseq
    %v6410 = vshrl.u32 %v6409, 7
    %v6411 = vsub.s32 %v6408, %v6410
    %v6412 = vrot.slane %v5843, %v6411
    %vm6413 = vcmask 654912
    %v6414 = vsel %vm6413, %v6412, %v6407
    %v6415 = vadd.s32 %v6347, 4294967216
    %v6416 = vlaneseq
    %v6417 = vshrl.u32 %v6416, 7
    %v6418 = vsub.s32 %v6415, %v6417
    %v6419 = vrot.slane %v5844, %v6418
    %vm6420 = vcmask 720512
    %v6421 = vsel %vm6420, %v6419, %v6414
    %v6422 = vadd.s32 %v6347, 4294967208
    %v6423 = vlaneseq
    %v6424 = vshrl.u32 %v6423, 7
    %v6425 = vsub.s32 %v6422, %v6424
    %v6426 = vrot.slane %v5845, %v6425
    %vm6427 = vcmask 786112
    %v6428 = vsel %vm6427, %v6426, %v6421
    %v6429 = vadd.s32 %v6347, 4294967200
    %v6430 = vlaneseq
    %v6431 = vshrl.u32 %v6430, 7
    %v6432 = vsub.s32 %v6429, %v6431
    %v6433 = vrot.slane %v5846, %v6432
    %vm6434 = vcmask 851712
    %v6435 = vsel %vm6434, %v6433, %v6428
    %v6436 = vadd.s32 %v6347, 4294967192
    %v6437 = vlaneseq
    %v6438 = vshrl.u32 %v6437, 7
    %v6439 = vsub.s32 %v6436, %v6438
    %v6440 = vrot.slane %v5847, %v6439
    %vm6441 = vcmask 917312
    %v6442 = vsel %vm6441, %v6440, %v6435
    %v6443 = vadd.s32 %v6347, 4294967184
    %v6444 = vlaneseq
    %v6445 = vshrl.u32 %v6444, 7
    %v6446 = vsub.s32 %v6443, %v6445
    %v6447 = vrot.slane %v5848, %v6446
    %vm6448 = vcmask 982912
    %v6449 = vsel %vm6448, %v6447, %v6442
    %v6450 = vadd.s32 %v6347, 4294967176
    %v6451 = vlaneseq
    %v6452 = vshrl.u32 %v6451, 7
    %v6453 = vsub.s32 %v6450, %v6452
    %v6454 = vrot.slane %v5849, %v6453
    %vm6455 = vcmask 1048512
    %v6456 = vsel %vm6455, %v6454, %v6449
    %v6457 = vlaneseq
    %v6458 = vshrl.u32 %v6457, 7
    %v6459 = vsub.s32 %v6347, %v6458
    %v6460 = vrot.slane %v5850, %v6459
    %v6461 = vlaneseq
    %v6462 = vshrl.u32 %v6461, 7
    %v6463 = vsub.s32 %v6352, %v6462
    %v6464 = vrot.slane %v5851, %v6463
    %v6465 = vsel %vm6357, %v6464, %v6460
    %v6466 = vlaneseq
    %v6467 = vshrl.u32 %v6466, 7
    %v6468 = vsub.s32 %v6359, %v6467
    %v6469 = vrot.slane %v5852, %v6468
    %v6470 = vsel %vm6364, %v6469, %v6465
    %v6471 = vlaneseq
    %v6472 = vshrl.u32 %v6471, 7
    %v6473 = vsub.s32 %v6366, %v6472
    %v6474 = vrot.slane %v5853, %v6473
    %v6475 = vsel %vm6371, %v6474, %v6470
    %v6476 = vlaneseq
    %v6477 = vshrl.u32 %v6476, 7
    %v6478 = vsub.s32 %v6373, %v6477
    %v6479 = vrot.slane %v5854, %v6478
    %v6480 = vsel %vm6378, %v6479, %v6475
    %v6481 = vlaneseq
    %v6482 = vshrl.u32 %v6481, 7
    %v6483 = vsub.s32 %v6380, %v6482
    %v6484 = vrot.slane %v5855, %v6483
    %v6485 = vsel %vm6385, %v6484, %v6480
    %v6486 = vlaneseq
    %v6487 = vshrl.u32 %v6486, 7
    %v6488 = vsub.s32 %v6387, %v6487
    %v6489 = vrot.slane %v5856, %v6488
    %v6490 = vsel %vm6392, %v6489, %v6485
    %v6491 = vlaneseq
    %v6492 = vshrl.u32 %v6491, 7
    %v6493 = vsub.s32 %v6394, %v6492
    %v6494 = vrot.slane %v5857, %v6493
    %v6495 = vsel %vm6399, %v6494, %v6490
    %v6496 = vlaneseq
    %v6497 = vshrl.u32 %v6496, 7
    %v6498 = vsub.s32 %v6401, %v6497
    %v6499 = vrot.slane %v5858, %v6498
    %v6500 = vsel %vm6406, %v6499, %v6495
    %v6501 = vlaneseq
    %v6502 = vshrl.u32 %v6501, 7
    %v6503 = vsub.s32 %v6408, %v6502
    %v6504 = vrot.slane %v5859, %v6503
    %v6505 = vsel %vm6413, %v6504, %v6500
    %v6506 = vlaneseq
    %v6507 = vshrl.u32 %v6506, 7
    %v6508 = vsub.s32 %v6415, %v6507
    %v6509 = vrot.slane %v5860, %v6508
    %v6510 = vsel %vm6420, %v6509, %v6505
    %v6511 = vlaneseq
    %v6512 = vshrl.u32 %v6511, 7
    %v6513 = vsub.s32 %v6422, %v6512
    %v6514 = vrot.slane %v5861, %v6513
    %v6515 = vsel %vm6427, %v6514, %v6510
    %v6516 = vlaneseq
    %v6517 = vshrl.u32 %v6516, 7
    %v6518 = vsub.s32 %v6429, %v6517
    %v6519 = vrot.slane %v5862, %v6518
    %v6520 = vsel %vm6434, %v6519, %v6515
    %v6521 = vlaneseq
    %v6522 = vshrl.u32 %v6521, 7
    %v6523 = vsub.s32 %v6436, %v6522
    %v6524 = vrot.slane %v5863, %v6523
    %v6525 = vsel %vm6441, %v6524, %v6520
    %v6526 = vlaneseq
    %v6527 = vshrl.u32 %v6526, 7
    %v6528 = vsub.s32 %v6443, %v6527
    %v6529 = vrot.slane %v5864, %v6528
    %v6530 = vsel %vm6448, %v6529, %v6525
    %v6531 = vlaneseq
    %v6532 = vshrl.u32 %v6531, 7
    %v6533 = vsub.s32 %v6450, %v6532
    %v6534 = vrot.slane %v5865, %v6533
    %v6535 = vsel %vm6455, %v6534, %v6530
    %v6536 = vlaneseq
    %v6537 = vshrl.u32 %v6536, 7
    %v6538 = vsub.s32 %v6347, %v6537
    %v6539 = vrot.slane %v5866, %v6538
    %v6540 = vlaneseq
    %v6541 = vshrl.u32 %v6540, 7
    %v6542 = vsub.s32 %v6352, %v6541
    %v6543 = vrot.slane %v5867, %v6542
    %v6544 = vsel %vm6357, %v6543, %v6539
    %v6545 = vlaneseq
    %v6546 = vshrl.u32 %v6545, 7
    %v6547 = vsub.s32 %v6359, %v6546
    %v6548 = vrot.slane %v5868, %v6547
    %v6549 = vsel %vm6364, %v6548, %v6544
    %v6550 = vlaneseq
    %v6551 = vshrl.u32 %v6550, 7
    %v6552 = vsub.s32 %v6366, %v6551
    %v6553 = vrot.slane %v5869, %v6552
    %v6554 = vsel %vm6371, %v6553, %v6549
    %v6555 = vlaneseq
    %v6556 = vshrl.u32 %v6555, 7
    %v6557 = vsub.s32 %v6373, %v6556
    %v6558 = vrot.slane %v5870, %v6557
    %v6559 = vsel %vm6378, %v6558, %v6554
    %v6560 = vlaneseq
    %v6561 = vshrl.u32 %v6560, 7
    %v6562 = vsub.s32 %v6380, %v6561
    %v6563 = vrot.slane %v5871, %v6562
    %v6564 = vsel %vm6385, %v6563, %v6559
    %v6565 = vlaneseq
    %v6566 = vshrl.u32 %v6565, 7
    %v6567 = vsub.s32 %v6387, %v6566
    %v6568 = vrot.slane %v5872, %v6567
    %v6569 = vsel %vm6392, %v6568, %v6564
    %v6570 = vlaneseq
    %v6571 = vshrl.u32 %v6570, 7
    %v6572 = vsub.s32 %v6394, %v6571
    %v6573 = vrot.slane %v5873, %v6572
    %v6574 = vsel %vm6399, %v6573, %v6569
    %v6575 = vlaneseq
    %v6576 = vshrl.u32 %v6575, 7
    %v6577 = vsub.s32 %v6401, %v6576
    %v6578 = vrot.slane %v5874, %v6577
    %v6579 = vsel %vm6406, %v6578, %v6574
    %v6580 = vlaneseq
    %v6581 = vshrl.u32 %v6580, 7
    %v6582 = vsub.s32 %v6408, %v6581
    %v6583 = vrot.slane %v5875, %v6582
    %v6584 = vsel %vm6413, %v6583, %v6579
    %v6585 = vlaneseq
    %v6586 = vshrl.u32 %v6585, 7
    %v6587 = vsub.s32 %v6415, %v6586
    %v6588 = vrot.slane %v5876, %v6587
    %v6589 = vsel %vm6420, %v6588, %v6584
    %v6590 = vlaneseq
    %v6591 = vshrl.u32 %v6590, 7
    %v6592 = vsub.s32 %v6422, %v6591
    %v6593 = vrot.slane %v5877, %v6592
    %v6594 = vsel %vm6427, %v6593, %v6589
    %v6595 = vlaneseq
    %v6596 = vshrl.u32 %v6595, 7
    %v6597 = vsub.s32 %v6429, %v6596
    %v6598 = vrot.slane %v5878, %v6597
    %v6599 = vsel %vm6434, %v6598, %v6594
    %v6600 = vlaneseq
    %v6601 = vshrl.u32 %v6600, 7
    %v6602 = vsub.s32 %v6436, %v6601
    %v6603 = vrot.slane %v5879, %v6602
    %v6604 = vsel %vm6441, %v6603, %v6599
    %v6605 = vlaneseq
    %v6606 = vshrl.u32 %v6605, 7
    %v6607 = vsub.s32 %v6443, %v6606
    %v6608 = vrot.slane %v5880, %v6607
    %v6609 = vsel %vm6448, %v6608, %v6604
    %v6610 = vlaneseq
    %v6611 = vshrl.u32 %v6610, 7
    %v6612 = vsub.s32 %v6450, %v6611
    %v6613 = vrot.slane %v5881, %v6612
    %v6614 = vsel %vm6455, %v6613, %v6609
    %v6615 = vlaneseq
    %v6616 = vshrl.u32 %v6615, 7
    %v6617 = vsub.s32 %v6347, %v6616
    %v6618 = vrot.slane %v5882, %v6617
    %v6619 = vlaneseq
    %v6620 = vshrl.u32 %v6619, 7
    %v6621 = vsub.s32 %v6352, %v6620
    %v6622 = vrot.slane %v5883, %v6621
    %v6623 = vsel %vm6357, %v6622, %v6618
    %v6624 = vlaneseq
    %v6625 = vshrl.u32 %v6624, 7
    %v6626 = vsub.s32 %v6359, %v6625
    %v6627 = vrot.slane %v5884, %v6626
    %v6628 = vsel %vm6364, %v6627, %v6623
    %v6629 = vlaneseq
    %v6630 = vshrl.u32 %v6629, 7
    %v6631 = vsub.s32 %v6366, %v6630
    %v6632 = vrot.slane %v5885, %v6631
    %v6633 = vsel %vm6371, %v6632, %v6628
    %v6634 = vlaneseq
    %v6635 = vshrl.u32 %v6634, 7
    %v6636 = vsub.s32 %v6373, %v6635
    %v6637 = vrot.slane %v5886, %v6636
    %v6638 = vsel %vm6378, %v6637, %v6633
    %v6639 = vlaneseq
    %v6640 = vshrl.u32 %v6639, 7
    %v6641 = vsub.s32 %v6380, %v6640
    %v6642 = vrot.slane %v5887, %v6641
    %v6643 = vsel %vm6385, %v6642, %v6638
    %v6644 = vlaneseq
    %v6645 = vshrl.u32 %v6644, 7
    %v6646 = vsub.s32 %v6387, %v6645
    %v6647 = vrot.slane %v5888, %v6646
    %v6648 = vsel %vm6392, %v6647, %v6643
    %v6649 = vlaneseq
    %v6650 = vshrl.u32 %v6649, 7
    %v6651 = vsub.s32 %v6394, %v6650
    %v6652 = vrot.slane %v5889, %v6651
    %v6653 = vsel %vm6399, %v6652, %v6648
    %v6654 = vlaneseq
    %v6655 = vshrl.u32 %v6654, 7
    %v6656 = vsub.s32 %v6401, %v6655
    %v6657 = vrot.slane %v5890, %v6656
    %v6658 = vsel %vm6406, %v6657, %v6653
    %v6659 = vlaneseq
    %v6660 = vshrl.u32 %v6659, 7
    %v6661 = vsub.s32 %v6408, %v6660
    %v6662 = vrot.slane %v5891, %v6661
    %v6663 = vsel %vm6413, %v6662, %v6658
    %v6664 = vlaneseq
    %v6665 = vshrl.u32 %v6664, 7
    %v6666 = vsub.s32 %v6415, %v6665
    %v6667 = vrot.slane %v5892, %v6666
    %v6668 = vsel %vm6420, %v6667, %v6663
    %v6669 = vlaneseq
    %v6670 = vshrl.u32 %v6669, 7
    %v6671 = vsub.s32 %v6422, %v6670
    %v6672 = vrot.slane %v5893, %v6671
    %v6673 = vsel %vm6427, %v6672, %v6668
    %v6674 = vlaneseq
    %v6675 = vshrl.u32 %v6674, 7
    %v6676 = vsub.s32 %v6429, %v6675
    %v6677 = vrot.slane %v5894, %v6676
    %v6678 = vsel %vm6434, %v6677, %v6673
    %v6679 = vlaneseq
    %v6680 = vshrl.u32 %v6679, 7
    %v6681 = vsub.s32 %v6436, %v6680
    %v6682 = vrot.slane %v5895, %v6681
    %v6683 = vsel %vm6441, %v6682, %v6678
    %v6684 = vlaneseq
    %v6685 = vshrl.u32 %v6684, 7
    %v6686 = vsub.s32 %v6443, %v6685
    %v6687 = vrot.slane %v5896, %v6686
    %v6688 = vsel %vm6448, %v6687, %v6683
    %v6689 = vlaneseq
    %v6690 = vshrl.u32 %v6689, 7
    %v6691 = vsub.s32 %v6450, %v6690
    %v6692 = vrot.slane %v5897, %v6691
    %v6693 = vsel %vm6455, %v6692, %v6688
    %v6694 = vlaneseq
    %v6695 = vshrl.u32 %v6694, 7
    %v6696 = vsub.s32 %v6347, %v6695
    %v6697 = vrot.slane %v5898, %v6696
    %v6698 = vlaneseq
    %v6699 = vshrl.u32 %v6698, 7
    %v6700 = vsub.s32 %v6352, %v6699
    %v6701 = vrot.slane %v5899, %v6700
    %v6702 = vsel %vm6357, %v6701, %v6697
    %v6703 = vlaneseq
    %v6704 = vshrl.u32 %v6703, 7
    %v6705 = vsub.s32 %v6359, %v6704
    %v6706 = vrot.slane %v5900, %v6705
    %v6707 = vsel %vm6364, %v6706, %v6702
    %v6708 = vlaneseq
    %v6709 = vshrl.u32 %v6708, 7
    %v6710 = vsub.s32 %v6366, %v6709
    %v6711 = vrot.slane %v5901, %v6710
    %v6712 = vsel %vm6371, %v6711, %v6707
    %v6713 = vlaneseq
    %v6714 = vshrl.u32 %v6713, 7
    %v6715 = vsub.s32 %v6373, %v6714
    %v6716 = vrot.slane %v5902, %v6715
    %v6717 = vsel %vm6378, %v6716, %v6712
    %v6718 = vlaneseq
    %v6719 = vshrl.u32 %v6718, 7
    %v6720 = vsub.s32 %v6380, %v6719
    %v6721 = vrot.slane %v5903, %v6720
    %v6722 = vsel %vm6385, %v6721, %v6717
    %v6723 = vlaneseq
    %v6724 = vshrl.u32 %v6723, 7
    %v6725 = vsub.s32 %v6387, %v6724
    %v6726 = vrot.slane %v5904, %v6725
    %v6727 = vsel %vm6392, %v6726, %v6722
    %v6728 = vlaneseq
    %v6729 = vshrl.u32 %v6728, 7
    %v6730 = vsub.s32 %v6394, %v6729
    %v6731 = vrot.slane %v5905, %v6730
    %v6732 = vsel %vm6399, %v6731, %v6727
    %v6733 = vlaneseq
    %v6734 = vshrl.u32 %v6733, 7
    %v6735 = vsub.s32 %v6401, %v6734
    %v6736 = vrot.slane %v5906, %v6735
    %v6737 = vsel %vm6406, %v6736, %v6732
    %v6738 = vlaneseq
    %v6739 = vshrl.u32 %v6738, 7
    %v6740 = vsub.s32 %v6408, %v6739
    %v6741 = vrot.slane %v5907, %v6740
    %v6742 = vsel %vm6413, %v6741, %v6737
    %v6743 = vlaneseq
    %v6744 = vshrl.u32 %v6743, 7
    %v6745 = vsub.s32 %v6415, %v6744
    %v6746 = vrot.slane %v5908, %v6745
    %v6747 = vsel %vm6420, %v6746, %v6742
    %v6748 = vlaneseq
    %v6749 = vshrl.u32 %v6748, 7
    %v6750 = vsub.s32 %v6422, %v6749
    %v6751 = vrot.slane %v5909, %v6750
    %v6752 = vsel %vm6427, %v6751, %v6747
    %v6753 = vlaneseq
    %v6754 = vshrl.u32 %v6753, 7
    %v6755 = vsub.s32 %v6429, %v6754
    %v6756 = vrot.slane %v5910, %v6755
    %v6757 = vsel %vm6434, %v6756, %v6752
    %v6758 = vlaneseq
    %v6759 = vshrl.u32 %v6758, 7
    %v6760 = vsub.s32 %v6436, %v6759
    %v6761 = vrot.slane %v5911, %v6760
    %v6762 = vsel %vm6441, %v6761, %v6757
    %v6763 = vlaneseq
    %v6764 = vshrl.u32 %v6763, 7
    %v6765 = vsub.s32 %v6443, %v6764
    %v6766 = vrot.slane %v5912, %v6765
    %v6767 = vsel %vm6448, %v6766, %v6762
    %v6768 = vlaneseq
    %v6769 = vshrl.u32 %v6768, 7
    %v6770 = vsub.s32 %v6450, %v6769
    %v6771 = vrot.slane %v5913, %v6770
    %v6772 = vsel %vm6455, %v6771, %v6767
    %v6773 = vlaneseq
    %v6774 = vshrl.u32 %v6773, 7
    %v6775 = vsub.s32 %v6347, %v6774
    %v6776 = vrot.slane %v5914, %v6775
    %v6777 = vlaneseq
    %v6778 = vshrl.u32 %v6777, 7
    %v6779 = vsub.s32 %v6352, %v6778
    %v6780 = vrot.slane %v5915, %v6779
    %v6781 = vsel %vm6357, %v6780, %v6776
    %v6782 = vlaneseq
    %v6783 = vshrl.u32 %v6782, 7
    %v6784 = vsub.s32 %v6359, %v6783
    %v6785 = vrot.slane %v5916, %v6784
    %v6786 = vsel %vm6364, %v6785, %v6781
    %v6787 = vlaneseq
    %v6788 = vshrl.u32 %v6787, 7
    %v6789 = vsub.s32 %v6366, %v6788
    %v6790 = vrot.slane %v5917, %v6789
    %v6791 = vsel %vm6371, %v6790, %v6786
    %v6792 = vlaneseq
    %v6793 = vshrl.u32 %v6792, 7
    %v6794 = vsub.s32 %v6373, %v6793
    %v6795 = vrot.slane %v5918, %v6794
    %v6796 = vsel %vm6378, %v6795, %v6791
    %v6797 = vlaneseq
    %v6798 = vshrl.u32 %v6797, 7
    %v6799 = vsub.s32 %v6380, %v6798
    %v6800 = vrot.slane %v5919, %v6799
    %v6801 = vsel %vm6385, %v6800, %v6796
    %v6802 = vlaneseq
    %v6803 = vshrl.u32 %v6802, 7
    %v6804 = vsub.s32 %v6387, %v6803
    %v6805 = vrot.slane %v5920, %v6804
    %v6806 = vsel %vm6392, %v6805, %v6801
    %v6807 = vlaneseq
    %v6808 = vshrl.u32 %v6807, 7
    %v6809 = vsub.s32 %v6394, %v6808
    %v6810 = vrot.slane %v5921, %v6809
    %v6811 = vsel %vm6399, %v6810, %v6806
    %v6812 = vlaneseq
    %v6813 = vshrl.u32 %v6812, 7
    %v6814 = vsub.s32 %v6401, %v6813
    %v6815 = vrot.slane %v5922, %v6814
    %v6816 = vsel %vm6406, %v6815, %v6811
    %v6817 = vlaneseq
    %v6818 = vshrl.u32 %v6817, 7
    %v6819 = vsub.s32 %v6408, %v6818
    %v6820 = vrot.slane %v5923, %v6819
    %v6821 = vsel %vm6413, %v6820, %v6816
    %v6822 = vlaneseq
    %v6823 = vshrl.u32 %v6822, 7
    %v6824 = vsub.s32 %v6415, %v6823
    %v6825 = vrot.slane %v5924, %v6824
    %v6826 = vsel %vm6420, %v6825, %v6821
    %v6827 = vlaneseq
    %v6828 = vshrl.u32 %v6827, 7
    %v6829 = vsub.s32 %v6422, %v6828
    %v6830 = vrot.slane %v5925, %v6829
    %v6831 = vsel %vm6427, %v6830, %v6826
    %v6832 = vlaneseq
    %v6833 = vshrl.u32 %v6832, 7
    %v6834 = vsub.s32 %v6429, %v6833
    %v6835 = vrot.slane %v5926, %v6834
    %v6836 = vsel %vm6434, %v6835, %v6831
    %v6837 = vlaneseq
    %v6838 = vshrl.u32 %v6837, 7
    %v6839 = vsub.s32 %v6436, %v6838
    %v6840 = vrot.slane %v5927, %v6839
    %v6841 = vsel %vm6441, %v6840, %v6836
    %v6842 = vlaneseq
    %v6843 = vshrl.u32 %v6842, 7
    %v6844 = vsub.s32 %v6443, %v6843
    %v6845 = vrot.slane %v5928, %v6844
    %v6846 = vsel %vm6448, %v6845, %v6841
    %v6847 = vlaneseq
    %v6848 = vshrl.u32 %v6847, 7
    %v6849 = vsub.s32 %v6450, %v6848
    %v6850 = vrot.slane %v5929, %v6849
    %v6851 = vsel %vm6455, %v6850, %v6846
    %v6852 = vlaneseq
    %v6853 = vshrl.u32 %v6852, 7
    %v6854 = vsub.s32 %v6347, %v6853
    %v6855 = vrot.slane %v5930, %v6854
    %v6856 = vlaneseq
    %v6857 = vshrl.u32 %v6856, 7
    %v6858 = vsub.s32 %v6352, %v6857
    %v6859 = vrot.slane %v5931, %v6858
    %v6860 = vsel %vm6357, %v6859, %v6855
    %v6861 = vlaneseq
    %v6862 = vshrl.u32 %v6861, 7
    %v6863 = vsub.s32 %v6359, %v6862
    %v6864 = vrot.slane %v5932, %v6863
    %v6865 = vsel %vm6364, %v6864, %v6860
    %v6866 = vlaneseq
    %v6867 = vshrl.u32 %v6866, 7
    %v6868 = vsub.s32 %v6366, %v6867
    %v6869 = vrot.slane %v5933, %v6868
    %v6870 = vsel %vm6371, %v6869, %v6865
    %v6871 = vlaneseq
    %v6872 = vshrl.u32 %v6871, 7
    %v6873 = vsub.s32 %v6373, %v6872
    %v6874 = vrot.slane %v5934, %v6873
    %v6875 = vsel %vm6378, %v6874, %v6870
    %v6876 = vlaneseq
    %v6877 = vshrl.u32 %v6876, 7
    %v6878 = vsub.s32 %v6380, %v6877
    %v6879 = vrot.slane %v5935, %v6878
    %v6880 = vsel %vm6385, %v6879, %v6875
    %v6881 = vlaneseq
    %v6882 = vshrl.u32 %v6881, 7
    %v6883 = vsub.s32 %v6387, %v6882
    %v6884 = vrot.slane %v5936, %v6883
    %v6885 = vsel %vm6392, %v6884, %v6880
    %v6886 = vlaneseq
    %v6887 = vshrl.u32 %v6886, 7
    %v6888 = vsub.s32 %v6394, %v6887
    %v6889 = vrot.slane %v5937, %v6888
    %v6890 = vsel %vm6399, %v6889, %v6885
    %v6891 = vlaneseq
    %v6892 = vshrl.u32 %v6891, 7
    %v6893 = vsub.s32 %v6401, %v6892
    %v6894 = vrot.slane %v5938, %v6893
    %v6895 = vsel %vm6406, %v6894, %v6890
    %v6896 = vlaneseq
    %v6897 = vshrl.u32 %v6896, 7
    %v6898 = vsub.s32 %v6408, %v6897
    %v6899 = vrot.slane %v5939, %v6898
    %v6900 = vsel %vm6413, %v6899, %v6895
    %v6901 = vlaneseq
    %v6902 = vshrl.u32 %v6901, 7
    %v6903 = vsub.s32 %v6415, %v6902
    %v6904 = vrot.slane %v5940, %v6903
    %v6905 = vsel %vm6420, %v6904, %v6900
    %v6906 = vlaneseq
    %v6907 = vshrl.u32 %v6906, 7
    %v6908 = vsub.s32 %v6422, %v6907
    %v6909 = vrot.slane %v5941, %v6908
    %v6910 = vsel %vm6427, %v6909, %v6905
    %v6911 = vlaneseq
    %v6912 = vshrl.u32 %v6911, 7
    %v6913 = vsub.s32 %v6429, %v6912
    %v6914 = vrot.slane %v5942, %v6913
    %v6915 = vsel %vm6434, %v6914, %v6910
    %v6916 = vlaneseq
    %v6917 = vshrl.u32 %v6916, 7
    %v6918 = vsub.s32 %v6436, %v6917
    %v6919 = vrot.slane %v5943, %v6918
    %v6920 = vsel %vm6441, %v6919, %v6915
    %v6921 = vlaneseq
    %v6922 = vshrl.u32 %v6921, 7
    %v6923 = vsub.s32 %v6443, %v6922
    %v6924 = vrot.slane %v5944, %v6923
    %v6925 = vsel %vm6448, %v6924, %v6920
    %v6926 = vlaneseq
    %v6927 = vshrl.u32 %v6926, 7
    %v6928 = vsub.s32 %v6450, %v6927
    %v6929 = vrot.slane %v5945, %v6928
    %v6930 = vsel %vm6455, %v6929, %v6925
    %v6931 = vlaneseq
    %v6932 = vshrl.u32 %v6931, 7
    %v6933 = vsub.s32 %v6347, %v6932
    %v6934 = vrot.slane %v5946, %v6933
    %v6935 = vlaneseq
    %v6936 = vshrl.u32 %v6935, 7
    %v6937 = vsub.s32 %v6352, %v6936
    %v6938 = vrot.slane %v5947, %v6937
    %v6939 = vsel %vm6357, %v6938, %v6934
    %v6940 = vlaneseq
    %v6941 = vshrl.u32 %v6940, 7
    %v6942 = vsub.s32 %v6359, %v6941
    %v6943 = vrot.slane %v5948, %v6942
    %v6944 = vsel %vm6364, %v6943, %v6939
    %v6945 = vlaneseq
    %v6946 = vshrl.u32 %v6945, 7
    %v6947 = vsub.s32 %v6366, %v6946
    %v6948 = vrot.slane %v5949, %v6947
    %v6949 = vsel %vm6371, %v6948, %v6944
    %v6950 = vlaneseq
    %v6951 = vshrl.u32 %v6950, 7
    %v6952 = vsub.s32 %v6373, %v6951
    %v6953 = vrot.slane %v5950, %v6952
    %v6954 = vsel %vm6378, %v6953, %v6949
    %v6955 = vlaneseq
    %v6956 = vshrl.u32 %v6955, 7
    %v6957 = vsub.s32 %v6380, %v6956
    %v6958 = vrot.slane %v5951, %v6957
    %v6959 = vsel %vm6385, %v6958, %v6954
    %v6960 = vlaneseq
    %v6961 = vshrl.u32 %v6960, 7
    %v6962 = vsub.s32 %v6387, %v6961
    %v6963 = vrot.slane %v5952, %v6962
    %v6964 = vsel %vm6392, %v6963, %v6959
    %v6965 = vlaneseq
    %v6966 = vshrl.u32 %v6965, 7
    %v6967 = vsub.s32 %v6394, %v6966
    %v6968 = vrot.slane %v5953, %v6967
    %v6969 = vsel %vm6399, %v6968, %v6964
    %v6970 = vlaneseq
    %v6971 = vshrl.u32 %v6970, 7
    %v6972 = vsub.s32 %v6401, %v6971
    %v6973 = vrot.slane %v5954, %v6972
    %v6974 = vsel %vm6406, %v6973, %v6969
    %v6975 = vlaneseq
    %v6976 = vshrl.u32 %v6975, 7
    %v6977 = vsub.s32 %v6408, %v6976
    %v6978 = vrot.slane %v5955, %v6977
    %v6979 = vsel %vm6413, %v6978, %v6974
    %v6980 = vlaneseq
    %v6981 = vshrl.u32 %v6980, 7
    %v6982 = vsub.s32 %v6415, %v6981
    %v6983 = vrot.slane %v5956, %v6982
    %v6984 = vsel %vm6420, %v6983, %v6979
    %v6985 = vlaneseq
    %v6986 = vshrl.u32 %v6985, 7
    %v6987 = vsub.s32 %v6422, %v6986
    %v6988 = vrot.slane %v5957, %v6987
    %v6989 = vsel %vm6427, %v6988, %v6984
    %v6990 = vlaneseq
    %v6991 = vshrl.u32 %v6990, 7
    %v6992 = vsub.s32 %v6429, %v6991
    %v6993 = vrot.slane %v5958, %v6992
    %v6994 = vsel %vm6434, %v6993, %v6989
    %v6995 = vlaneseq
    %v6996 = vshrl.u32 %v6995, 7
    %v6997 = vsub.s32 %v6436, %v6996
    %v6998 = vrot.slane %v5959, %v6997
    %v6999 = vsel %vm6441, %v6998, %v6994
    %v7000 = vlaneseq
    %v7001 = vshrl.u32 %v7000, 7
    %v7002 = vsub.s32 %v6443, %v7001
    %v7003 = vrot.slane %v5960, %v7002
    %v7004 = vsel %vm6448, %v7003, %v6999
    %v7005 = vlaneseq
    %v7006 = vshrl.u32 %v7005, 7
    %v7007 = vsub.s32 %v6450, %v7006
    %v7008 = vrot.slane %v5961, %v7007
    %v7009 = vsel %vm6455, %v7008, %v7004
    %v7010 = vlaneseq
    %v7011 = vshrl.u32 %v7010, 7
    %v7012 = vsub.s32 %v6347, %v7011
    %v7013 = vrot.slane %v5962, %v7012
    %v7014 = vlaneseq
    %v7015 = vshrl.u32 %v7014, 7
    %v7016 = vsub.s32 %v6352, %v7015
    %v7017 = vrot.slane %v5963, %v7016
    %v7018 = vsel %vm6357, %v7017, %v7013
    %v7019 = vlaneseq
    %v7020 = vshrl.u32 %v7019, 7
    %v7021 = vsub.s32 %v6359, %v7020
    %v7022 = vrot.slane %v5964, %v7021
    %v7023 = vsel %vm6364, %v7022, %v7018
    %v7024 = vlaneseq
    %v7025 = vshrl.u32 %v7024, 7
    %v7026 = vsub.s32 %v6366, %v7025
    %v7027 = vrot.slane %v5965, %v7026
    %v7028 = vsel %vm6371, %v7027, %v7023
    %v7029 = vlaneseq
    %v7030 = vshrl.u32 %v7029, 7
    %v7031 = vsub.s32 %v6373, %v7030
    %v7032 = vrot.slane %v5966, %v7031
    %v7033 = vsel %vm6378, %v7032, %v7028
    %v7034 = vlaneseq
    %v7035 = vshrl.u32 %v7034, 7
    %v7036 = vsub.s32 %v6380, %v7035
    %v7037 = vrot.slane %v5967, %v7036
    %v7038 = vsel %vm6385, %v7037, %v7033
    %v7039 = vlaneseq
    %v7040 = vshrl.u32 %v7039, 7
    %v7041 = vsub.s32 %v6387, %v7040
    %v7042 = vrot.slane %v5968, %v7041
    %v7043 = vsel %vm6392, %v7042, %v7038
    %v7044 = vlaneseq
    %v7045 = vshrl.u32 %v7044, 7
    %v7046 = vsub.s32 %v6394, %v7045
    %v7047 = vrot.slane %v5969, %v7046
    %v7048 = vsel %vm6399, %v7047, %v7043
    %v7049 = vlaneseq
    %v7050 = vshrl.u32 %v7049, 7
    %v7051 = vsub.s32 %v6401, %v7050
    %v7052 = vrot.slane %v5970, %v7051
    %v7053 = vsel %vm6406, %v7052, %v7048
    %v7054 = vlaneseq
    %v7055 = vshrl.u32 %v7054, 7
    %v7056 = vsub.s32 %v6408, %v7055
    %v7057 = vrot.slane %v5971, %v7056
    %v7058 = vsel %vm6413, %v7057, %v7053
    %v7059 = vlaneseq
    %v7060 = vshrl.u32 %v7059, 7
    %v7061 = vsub.s32 %v6415, %v7060
    %v7062 = vrot.slane %v5972, %v7061
    %v7063 = vsel %vm6420, %v7062, %v7058
    %v7064 = vlaneseq
    %v7065 = vshrl.u32 %v7064, 7
    %v7066 = vsub.s32 %v6422, %v7065
    %v7067 = vrot.slane %v5973, %v7066
    %v7068 = vsel %vm6427, %v7067, %v7063
    %v7069 = vlaneseq
    %v7070 = vshrl.u32 %v7069, 7
    %v7071 = vsub.s32 %v6429, %v7070
    %v7072 = vrot.slane %v5974, %v7071
    %v7073 = vsel %vm6434, %v7072, %v7068
    %v7074 = vlaneseq
    %v7075 = vshrl.u32 %v7074, 7
    %v7076 = vsub.s32 %v6436, %v7075
    %v7077 = vrot.slane %v5975, %v7076
    %v7078 = vsel %vm6441, %v7077, %v7073
    %v7079 = vlaneseq
    %v7080 = vshrl.u32 %v7079, 7
    %v7081 = vsub.s32 %v6443, %v7080
    %v7082 = vrot.slane %v5976, %v7081
    %v7083 = vsel %vm6448, %v7082, %v7078
    %v7084 = vlaneseq
    %v7085 = vshrl.u32 %v7084, 7
    %v7086 = vsub.s32 %v6450, %v7085
    %v7087 = vrot.slane %v5977, %v7086
    %v7088 = vsel %vm6455, %v7087, %v7083
    %v7089 = vlaneseq
    %v7090 = vshrl.u32 %v7089, 7
    %v7091 = vsub.s32 %v6347, %v7090
    %v7092 = vrot.slane %v5978, %v7091
    %v7093 = vlaneseq
    %v7094 = vshrl.u32 %v7093, 7
    %v7095 = vsub.s32 %v6352, %v7094
    %v7096 = vrot.slane %v5979, %v7095
    %v7097 = vsel %vm6357, %v7096, %v7092
    %v7098 = vlaneseq
    %v7099 = vshrl.u32 %v7098, 7
    %v7100 = vsub.s32 %v6359, %v7099
    %v7101 = vrot.slane %v5980, %v7100
    %v7102 = vsel %vm6364, %v7101, %v7097
    %v7103 = vlaneseq
    %v7104 = vshrl.u32 %v7103, 7
    %v7105 = vsub.s32 %v6366, %v7104
    %v7106 = vrot.slane %v5981, %v7105
    %v7107 = vsel %vm6371, %v7106, %v7102
    %v7108 = vlaneseq
    %v7109 = vshrl.u32 %v7108, 7
    %v7110 = vsub.s32 %v6373, %v7109
    %v7111 = vrot.slane %v5982, %v7110
    %v7112 = vsel %vm6378, %v7111, %v7107
    %v7113 = vlaneseq
    %v7114 = vshrl.u32 %v7113, 7
    %v7115 = vsub.s32 %v6380, %v7114
    %v7116 = vrot.slane %v5983, %v7115
    %v7117 = vsel %vm6385, %v7116, %v7112
    %v7118 = vlaneseq
    %v7119 = vshrl.u32 %v7118, 7
    %v7120 = vsub.s32 %v6387, %v7119
    %v7121 = vrot.slane %v5984, %v7120
    %v7122 = vsel %vm6392, %v7121, %v7117
    %v7123 = vlaneseq
    %v7124 = vshrl.u32 %v7123, 7
    %v7125 = vsub.s32 %v6394, %v7124
    %v7126 = vrot.slane %v5985, %v7125
    %v7127 = vsel %vm6399, %v7126, %v7122
    %v7128 = vlaneseq
    %v7129 = vshrl.u32 %v7128, 7
    %v7130 = vsub.s32 %v6401, %v7129
    %v7131 = vrot.slane %v5986, %v7130
    %v7132 = vsel %vm6406, %v7131, %v7127
    %v7133 = vlaneseq
    %v7134 = vshrl.u32 %v7133, 7
    %v7135 = vsub.s32 %v6408, %v7134
    %v7136 = vrot.slane %v5987, %v7135
    %v7137 = vsel %vm6413, %v7136, %v7132
    %v7138 = vlaneseq
    %v7139 = vshrl.u32 %v7138, 7
    %v7140 = vsub.s32 %v6415, %v7139
    %v7141 = vrot.slane %v5988, %v7140
    %v7142 = vsel %vm6420, %v7141, %v7137
    %v7143 = vlaneseq
    %v7144 = vshrl.u32 %v7143, 7
    %v7145 = vsub.s32 %v6422, %v7144
    %v7146 = vrot.slane %v5989, %v7145
    %v7147 = vsel %vm6427, %v7146, %v7142
    %v7148 = vlaneseq
    %v7149 = vshrl.u32 %v7148, 7
    %v7150 = vsub.s32 %v6429, %v7149
    %v7151 = vrot.slane %v5990, %v7150
    %v7152 = vsel %vm6434, %v7151, %v7147
    %v7153 = vlaneseq
    %v7154 = vshrl.u32 %v7153, 7
    %v7155 = vsub.s32 %v6436, %v7154
    %v7156 = vrot.slane %v5991, %v7155
    %v7157 = vsel %vm6441, %v7156, %v7152
    %v7158 = vlaneseq
    %v7159 = vshrl.u32 %v7158, 7
    %v7160 = vsub.s32 %v6443, %v7159
    %v7161 = vrot.slane %v5992, %v7160
    %v7162 = vsel %vm6448, %v7161, %v7157
    %v7163 = vlaneseq
    %v7164 = vshrl.u32 %v7163, 7
    %v7165 = vsub.s32 %v6450, %v7164
    %v7166 = vrot.slane %v5993, %v7165
    %v7167 = vsel %vm6455, %v7166, %v7162
    %v7168 = vlaneseq
    %v7169 = vshrl.u32 %v7168, 7
    %v7170 = vsub.s32 %v6347, %v7169
    %v7171 = vrot.slane %v5994, %v7170
    %v7172 = vlaneseq
    %v7173 = vshrl.u32 %v7172, 7
    %v7174 = vsub.s32 %v6352, %v7173
    %v7175 = vrot.slane %v5995, %v7174
    %v7176 = vsel %vm6357, %v7175, %v7171
    %v7177 = vlaneseq
    %v7178 = vshrl.u32 %v7177, 7
    %v7179 = vsub.s32 %v6359, %v7178
    %v7180 = vrot.slane %v5996, %v7179
    %v7181 = vsel %vm6364, %v7180, %v7176
    %v7182 = vlaneseq
    %v7183 = vshrl.u32 %v7182, 7
    %v7184 = vsub.s32 %v6366, %v7183
    %v7185 = vrot.slane %v5997, %v7184
    %v7186 = vsel %vm6371, %v7185, %v7181
    %v7187 = vlaneseq
    %v7188 = vshrl.u32 %v7187, 7
    %v7189 = vsub.s32 %v6373, %v7188
    %v7190 = vrot.slane %v5998, %v7189
    %v7191 = vsel %vm6378, %v7190, %v7186
    %v7192 = vlaneseq
    %v7193 = vshrl.u32 %v7192, 7
    %v7194 = vsub.s32 %v6380, %v7193
    %v7195 = vrot.slane %v5999, %v7194
    %v7196 = vsel %vm6385, %v7195, %v7191
    %v7197 = vlaneseq
    %v7198 = vshrl.u32 %v7197, 7
    %v7199 = vsub.s32 %v6387, %v7198
    %v7200 = vrot.slane %v6000, %v7199
    %v7201 = vsel %vm6392, %v7200, %v7196
    %v7202 = vlaneseq
    %v7203 = vshrl.u32 %v7202, 7
    %v7204 = vsub.s32 %v6394, %v7203
    %v7205 = vrot.slane %v6001, %v7204
    %v7206 = vsel %vm6399, %v7205, %v7201
    %v7207 = vlaneseq
    %v7208 = vshrl.u32 %v7207, 7
    %v7209 = vsub.s32 %v6401, %v7208
    %v7210 = vrot.slane %v6002, %v7209
    %v7211 = vsel %vm6406, %v7210, %v7206
    %v7212 = vlaneseq
    %v7213 = vshrl.u32 %v7212, 7
    %v7214 = vsub.s32 %v6408, %v7213
    %v7215 = vrot.slane %v6003, %v7214
    %v7216 = vsel %vm6413, %v7215, %v7211
    %v7217 = vlaneseq
    %v7218 = vshrl.u32 %v7217, 7
    %v7219 = vsub.s32 %v6415, %v7218
    %v7220 = vrot.slane %v6004, %v7219
    %v7221 = vsel %vm6420, %v7220, %v7216
    %v7222 = vlaneseq
    %v7223 = vshrl.u32 %v7222, 7
    %v7224 = vsub.s32 %v6422, %v7223
    %v7225 = vrot.slane %v6005, %v7224
    %v7226 = vsel %vm6427, %v7225, %v7221
    %v7227 = vlaneseq
    %v7228 = vshrl.u32 %v7227, 7
    %v7229 = vsub.s32 %v6429, %v7228
    %v7230 = vrot.slane %v6006, %v7229
    %v7231 = vsel %vm6434, %v7230, %v7226
    %v7232 = vlaneseq
    %v7233 = vshrl.u32 %v7232, 7
    %v7234 = vsub.s32 %v6436, %v7233
    %v7235 = vrot.slane %v6007, %v7234
    %v7236 = vsel %vm6441, %v7235, %v7231
    %v7237 = vlaneseq
    %v7238 = vshrl.u32 %v7237, 7
    %v7239 = vsub.s32 %v6443, %v7238
    %v7240 = vrot.slane %v6008, %v7239
    %v7241 = vsel %vm6448, %v7240, %v7236
    %v7242 = vlaneseq
    %v7243 = vshrl.u32 %v7242, 7
    %v7244 = vsub.s32 %v6450, %v7243
    %v7245 = vrot.slane %v6009, %v7244
    %v7246 = vsel %vm6455, %v7245, %v7241
    %v7247 = vlaneseq
    %v7248 = vshrl.u32 %v7247, 7
    %v7249 = vsub.s32 %v6347, %v7248
    %v7250 = vrot.slane %v6010, %v7249
    %v7251 = vlaneseq
    %v7252 = vshrl.u32 %v7251, 7
    %v7253 = vsub.s32 %v6352, %v7252
    %v7254 = vrot.slane %v6011, %v7253
    %v7255 = vsel %vm6357, %v7254, %v7250
    %v7256 = vlaneseq
    %v7257 = vshrl.u32 %v7256, 7
    %v7258 = vsub.s32 %v6359, %v7257
    %v7259 = vrot.slane %v6012, %v7258
    %v7260 = vsel %vm6364, %v7259, %v7255
    %v7261 = vlaneseq
    %v7262 = vshrl.u32 %v7261, 7
    %v7263 = vsub.s32 %v6366, %v7262
    %v7264 = vrot.slane %v6013, %v7263
    %v7265 = vsel %vm6371, %v7264, %v7260
    %v7266 = vlaneseq
    %v7267 = vshrl.u32 %v7266, 7
    %v7268 = vsub.s32 %v6373, %v7267
    %v7269 = vrot.slane %v6014, %v7268
    %v7270 = vsel %vm6378, %v7269, %v7265
    %v7271 = vlaneseq
    %v7272 = vshrl.u32 %v7271, 7
    %v7273 = vsub.s32 %v6380, %v7272
    %v7274 = vrot.slane %v6015, %v7273
    %v7275 = vsel %vm6385, %v7274, %v7270
    %v7276 = vlaneseq
    %v7277 = vshrl.u32 %v7276, 7
    %v7278 = vsub.s32 %v6387, %v7277
    %v7279 = vrot.slane %v6016, %v7278
    %v7280 = vsel %vm6392, %v7279, %v7275
    %v7281 = vlaneseq
    %v7282 = vshrl.u32 %v7281, 7
    %v7283 = vsub.s32 %v6394, %v7282
    %v7284 = vrot.slane %v6017, %v7283
    %v7285 = vsel %vm6399, %v7284, %v7280
    %v7286 = vlaneseq
    %v7287 = vshrl.u32 %v7286, 7
    %v7288 = vsub.s32 %v6401, %v7287
    %v7289 = vrot.slane %v6018, %v7288
    %v7290 = vsel %vm6406, %v7289, %v7285
    %v7291 = vlaneseq
    %v7292 = vshrl.u32 %v7291, 7
    %v7293 = vsub.s32 %v6408, %v7292
    %v7294 = vrot.slane %v6019, %v7293
    %v7295 = vsel %vm6413, %v7294, %v7290
    %v7296 = vlaneseq
    %v7297 = vshrl.u32 %v7296, 7
    %v7298 = vsub.s32 %v6415, %v7297
    %v7299 = vrot.slane %v6020, %v7298
    %v7300 = vsel %vm6420, %v7299, %v7295
    %v7301 = vlaneseq
    %v7302 = vshrl.u32 %v7301, 7
    %v7303 = vsub.s32 %v6422, %v7302
    %v7304 = vrot.slane %v6021, %v7303
    %v7305 = vsel %vm6427, %v7304, %v7300
    %v7306 = vlaneseq
    %v7307 = vshrl.u32 %v7306, 7
    %v7308 = vsub.s32 %v6429, %v7307
    %v7309 = vrot.slane %v6022, %v7308
    %v7310 = vsel %vm6434, %v7309, %v7305
    %v7311 = vlaneseq
    %v7312 = vshrl.u32 %v7311, 7
    %v7313 = vsub.s32 %v6436, %v7312
    %v7314 = vrot.slane %v6023, %v7313
    %v7315 = vsel %vm6441, %v7314, %v7310
    %v7316 = vlaneseq
    %v7317 = vshrl.u32 %v7316, 7
    %v7318 = vsub.s32 %v6443, %v7317
    %v7319 = vrot.slane %v6024, %v7318
    %v7320 = vsel %vm6448, %v7319, %v7315
    %v7321 = vlaneseq
    %v7322 = vshrl.u32 %v7321, 7
    %v7323 = vsub.s32 %v6450, %v7322
    %v7324 = vrot.slane %v6025, %v7323
    %v7325 = vsel %vm6455, %v7324, %v7320
    %v7326 = vlaneseq
    %v7327 = vshrl.u32 %v7326, 7
    %v7328 = vsub.s32 %v6347, %v7327
    %v7329 = vrot.slane %v6026, %v7328
    %v7330 = vlaneseq
    %v7331 = vshrl.u32 %v7330, 7
    %v7332 = vsub.s32 %v6352, %v7331
    %v7333 = vrot.slane %v6027, %v7332
    %v7334 = vsel %vm6357, %v7333, %v7329
    %v7335 = vlaneseq
    %v7336 = vshrl.u32 %v7335, 7
    %v7337 = vsub.s32 %v6359, %v7336
    %v7338 = vrot.slane %v6028, %v7337
    %v7339 = vsel %vm6364, %v7338, %v7334
    %v7340 = vlaneseq
    %v7341 = vshrl.u32 %v7340, 7
    %v7342 = vsub.s32 %v6366, %v7341
    %v7343 = vrot.slane %v6029, %v7342
    %v7344 = vsel %vm6371, %v7343, %v7339
    %v7345 = vlaneseq
    %v7346 = vshrl.u32 %v7345, 7
    %v7347 = vsub.s32 %v6373, %v7346
    %v7348 = vrot.slane %v6030, %v7347
    %v7349 = vsel %vm6378, %v7348, %v7344
    %v7350 = vlaneseq
    %v7351 = vshrl.u32 %v7350, 7
    %v7352 = vsub.s32 %v6380, %v7351
    %v7353 = vrot.slane %v6031, %v7352
    %v7354 = vsel %vm6385, %v7353, %v7349
    %v7355 = vlaneseq
    %v7356 = vshrl.u32 %v7355, 7
    %v7357 = vsub.s32 %v6387, %v7356
    %v7358 = vrot.slane %v6032, %v7357
    %v7359 = vsel %vm6392, %v7358, %v7354
    %v7360 = vlaneseq
    %v7361 = vshrl.u32 %v7360, 7
    %v7362 = vsub.s32 %v6394, %v7361
    %v7363 = vrot.slane %v6033, %v7362
    %v7364 = vsel %vm6399, %v7363, %v7359
    %v7365 = vlaneseq
    %v7366 = vshrl.u32 %v7365, 7
    %v7367 = vsub.s32 %v6401, %v7366
    %v7368 = vrot.slane %v6034, %v7367
    %v7369 = vsel %vm6406, %v7368, %v7364
    %v7370 = vlaneseq
    %v7371 = vshrl.u32 %v7370, 7
    %v7372 = vsub.s32 %v6408, %v7371
    %v7373 = vrot.slane %v6035, %v7372
    %v7374 = vsel %vm6413, %v7373, %v7369
    %v7375 = vlaneseq
    %v7376 = vshrl.u32 %v7375, 7
    %v7377 = vsub.s32 %v6415, %v7376
    %v7378 = vrot.slane %v6036, %v7377
    %v7379 = vsel %vm6420, %v7378, %v7374
    %v7380 = vlaneseq
    %v7381 = vshrl.u32 %v7380, 7
    %v7382 = vsub.s32 %v6422, %v7381
    %v7383 = vrot.slane %v6037, %v7382
    %v7384 = vsel %vm6427, %v7383, %v7379
    %v7385 = vlaneseq
    %v7386 = vshrl.u32 %v7385, 7
    %v7387 = vsub.s32 %v6429, %v7386
    %v7388 = vrot.slane %v6038, %v7387
    %v7389 = vsel %vm6434, %v7388, %v7384
    %v7390 = vlaneseq
    %v7391 = vshrl.u32 %v7390, 7
    %v7392 = vsub.s32 %v6436, %v7391
    %v7393 = vrot.slane %v6039, %v7392
    %v7394 = vsel %vm6441, %v7393, %v7389
    %v7395 = vlaneseq
    %v7396 = vshrl.u32 %v7395, 7
    %v7397 = vsub.s32 %v6443, %v7396
    %v7398 = vrot.slane %v6040, %v7397
    %v7399 = vsel %vm6448, %v7398, %v7394
    %v7400 = vlaneseq
    %v7401 = vshrl.u32 %v7400, 7
    %v7402 = vsub.s32 %v6450, %v7401
    %v7403 = vrot.slane %v6041, %v7402
    %v7404 = vsel %vm6455, %v7403, %v7399
    %v7405 = vlaneseq
    %v7406 = vshrl.u32 %v7405, 7
    %v7407 = vsub.s32 %v6347, %v7406
    %v7408 = vrot.slane %v6042, %v7407
    %v7409 = vlaneseq
    %v7410 = vshrl.u32 %v7409, 7
    %v7411 = vsub.s32 %v6352, %v7410
    %v7412 = vrot.slane %v6043, %v7411
    %v7413 = vsel %vm6357, %v7412, %v7408
    %v7414 = vlaneseq
    %v7415 = vshrl.u32 %v7414, 7
    %v7416 = vsub.s32 %v6359, %v7415
    %v7417 = vrot.slane %v6044, %v7416
    %v7418 = vsel %vm6364, %v7417, %v7413
    %v7419 = vlaneseq
    %v7420 = vshrl.u32 %v7419, 7
    %v7421 = vsub.s32 %v6366, %v7420
    %v7422 = vrot.slane %v6045, %v7421
    %v7423 = vsel %vm6371, %v7422, %v7418
    %v7424 = vlaneseq
    %v7425 = vshrl.u32 %v7424, 7
    %v7426 = vsub.s32 %v6373, %v7425
    %v7427 = vrot.slane %v6046, %v7426
    %v7428 = vsel %vm6378, %v7427, %v7423
    %v7429 = vlaneseq
    %v7430 = vshrl.u32 %v7429, 7
    %v7431 = vsub.s32 %v6380, %v7430
    %v7432 = vrot.slane %v6047, %v7431
    %v7433 = vsel %vm6385, %v7432, %v7428
    %v7434 = vlaneseq
    %v7435 = vshrl.u32 %v7434, 7
    %v7436 = vsub.s32 %v6387, %v7435
    %v7437 = vrot.slane %v6048, %v7436
    %v7438 = vsel %vm6392, %v7437, %v7433
    %v7439 = vlaneseq
    %v7440 = vshrl.u32 %v7439, 7
    %v7441 = vsub.s32 %v6394, %v7440
    %v7442 = vrot.slane %v6049, %v7441
    %v7443 = vsel %vm6399, %v7442, %v7438
    %v7444 = vlaneseq
    %v7445 = vshrl.u32 %v7444, 7
    %v7446 = vsub.s32 %v6401, %v7445
    %v7447 = vrot.slane %v6050, %v7446
    %v7448 = vsel %vm6406, %v7447, %v7443
    %v7449 = vlaneseq
    %v7450 = vshrl.u32 %v7449, 7
    %v7451 = vsub.s32 %v6408, %v7450
    %v7452 = vrot.slane %v6051, %v7451
    %v7453 = vsel %vm6413, %v7452, %v7448
    %v7454 = vlaneseq
    %v7455 = vshrl.u32 %v7454, 7
    %v7456 = vsub.s32 %v6415, %v7455
    %v7457 = vrot.slane %v6052, %v7456
    %v7458 = vsel %vm6420, %v7457, %v7453
    %v7459 = vlaneseq
    %v7460 = vshrl.u32 %v7459, 7
    %v7461 = vsub.s32 %v6422, %v7460
    %v7462 = vrot.slane %v6053, %v7461
    %v7463 = vsel %vm6427, %v7462, %v7458
    %v7464 = vlaneseq
    %v7465 = vshrl.u32 %v7464, 7
    %v7466 = vsub.s32 %v6429, %v7465
    %v7467 = vrot.slane %v6054, %v7466
    %v7468 = vsel %vm6434, %v7467, %v7463
    %v7469 = vlaneseq
    %v7470 = vshrl.u32 %v7469, 7
    %v7471 = vsub.s32 %v6436, %v7470
    %v7472 = vrot.slane %v6055, %v7471
    %v7473 = vsel %vm6441, %v7472, %v7468
    %v7474 = vlaneseq
    %v7475 = vshrl.u32 %v7474, 7
    %v7476 = vsub.s32 %v6443, %v7475
    %v7477 = vrot.slane %v6056, %v7476
    %v7478 = vsel %vm6448, %v7477, %v7473
    %v7479 = vlaneseq
    %v7480 = vshrl.u32 %v7479, 7
    %v7481 = vsub.s32 %v6450, %v7480
    %v7482 = vrot.slane %v6057, %v7481
    %v7483 = vsel %vm6455, %v7482, %v7478
    %v7484 = vlaneseq
    %v7485 = vshrl.u32 %v7484, 7
    %v7486 = vsub.s32 %v6347, %v7485
    %v7487 = vrot.slane %v6058, %v7486
    %v7488 = vlaneseq
    %v7489 = vshrl.u32 %v7488, 7
    %v7490 = vsub.s32 %v6352, %v7489
    %v7491 = vrot.slane %v6059, %v7490
    %v7492 = vsel %vm6357, %v7491, %v7487
    %v7493 = vlaneseq
    %v7494 = vshrl.u32 %v7493, 7
    %v7495 = vsub.s32 %v6359, %v7494
    %v7496 = vrot.slane %v6060, %v7495
    %v7497 = vsel %vm6364, %v7496, %v7492
    %v7498 = vlaneseq
    %v7499 = vshrl.u32 %v7498, 7
    %v7500 = vsub.s32 %v6366, %v7499
    %v7501 = vrot.slane %v6061, %v7500
    %v7502 = vsel %vm6371, %v7501, %v7497
    %v7503 = vlaneseq
    %v7504 = vshrl.u32 %v7503, 7
    %v7505 = vsub.s32 %v6373, %v7504
    %v7506 = vrot.slane %v6062, %v7505
    %v7507 = vsel %vm6378, %v7506, %v7502
    %v7508 = vlaneseq
    %v7509 = vshrl.u32 %v7508, 7
    %v7510 = vsub.s32 %v6380, %v7509
    %v7511 = vrot.slane %v6063, %v7510
    %v7512 = vsel %vm6385, %v7511, %v7507
    %v7513 = vlaneseq
    %v7514 = vshrl.u32 %v7513, 7
    %v7515 = vsub.s32 %v6387, %v7514
    %v7516 = vrot.slane %v6064, %v7515
    %v7517 = vsel %vm6392, %v7516, %v7512
    %v7518 = vlaneseq
    %v7519 = vshrl.u32 %v7518, 7
    %v7520 = vsub.s32 %v6394, %v7519
    %v7521 = vrot.slane %v6065, %v7520
    %v7522 = vsel %vm6399, %v7521, %v7517
    %v7523 = vlaneseq
    %v7524 = vshrl.u32 %v7523, 7
    %v7525 = vsub.s32 %v6401, %v7524
    %v7526 = vrot.slane %v6066, %v7525
    %v7527 = vsel %vm6406, %v7526, %v7522
    %v7528 = vlaneseq
    %v7529 = vshrl.u32 %v7528, 7
    %v7530 = vsub.s32 %v6408, %v7529
    %v7531 = vrot.slane %v6067, %v7530
    %v7532 = vsel %vm6413, %v7531, %v7527
    %v7533 = vlaneseq
    %v7534 = vshrl.u32 %v7533, 7
    %v7535 = vsub.s32 %v6415, %v7534
    %v7536 = vrot.slane %v6068, %v7535
    %v7537 = vsel %vm6420, %v7536, %v7532
    %v7538 = vlaneseq
    %v7539 = vshrl.u32 %v7538, 7
    %v7540 = vsub.s32 %v6422, %v7539
    %v7541 = vrot.slane %v6069, %v7540
    %v7542 = vsel %vm6427, %v7541, %v7537
    %v7543 = vlaneseq
    %v7544 = vshrl.u32 %v7543, 7
    %v7545 = vsub.s32 %v6429, %v7544
    %v7546 = vrot.slane %v6070, %v7545
    %v7547 = vsel %vm6434, %v7546, %v7542
    %v7548 = vlaneseq
    %v7549 = vshrl.u32 %v7548, 7
    %v7550 = vsub.s32 %v6436, %v7549
    %v7551 = vrot.slane %v6071, %v7550
    %v7552 = vsel %vm6441, %v7551, %v7547
    %v7553 = vlaneseq
    %v7554 = vshrl.u32 %v7553, 7
    %v7555 = vsub.s32 %v6443, %v7554
    %v7556 = vrot.slane %v6072, %v7555
    %v7557 = vsel %vm6448, %v7556, %v7552
    %v7558 = vlaneseq
    %v7559 = vshrl.u32 %v7558, 7
    %v7560 = vsub.s32 %v6450, %v7559
    %v7561 = vrot.slane %v6073, %v7560
    %v7562 = vsel %vm6455, %v7561, %v7557
    %v7563 = vlaneseq
    %v7564 = vshrl.u32 %v7563, 7
    %v7565 = vsub.s32 %v6347, %v7564
    %v7566 = vrot.slane %v6074, %v7565
    %v7567 = vlaneseq
    %v7568 = vshrl.u32 %v7567, 7
    %v7569 = vsub.s32 %v6352, %v7568
    %v7570 = vrot.slane %v6075, %v7569
    %v7571 = vsel %vm6357, %v7570, %v7566
    %v7572 = vlaneseq
    %v7573 = vshrl.u32 %v7572, 7
    %v7574 = vsub.s32 %v6359, %v7573
    %v7575 = vrot.slane %v6076, %v7574
    %v7576 = vsel %vm6364, %v7575, %v7571
    %v7577 = vlaneseq
    %v7578 = vshrl.u32 %v7577, 7
    %v7579 = vsub.s32 %v6366, %v7578
    %v7580 = vrot.slane %v6077, %v7579
    %v7581 = vsel %vm6371, %v7580, %v7576
    %v7582 = vlaneseq
    %v7583 = vshrl.u32 %v7582, 7
    %v7584 = vsub.s32 %v6373, %v7583
    %v7585 = vrot.slane %v6078, %v7584
    %v7586 = vsel %vm6378, %v7585, %v7581
    %v7587 = vlaneseq
    %v7588 = vshrl.u32 %v7587, 7
    %v7589 = vsub.s32 %v6380, %v7588
    %v7590 = vrot.slane %v6079, %v7589
    %v7591 = vsel %vm6385, %v7590, %v7586
    %v7592 = vlaneseq
    %v7593 = vshrl.u32 %v7592, 7
    %v7594 = vsub.s32 %v6387, %v7593
    %v7595 = vrot.slane %v6080, %v7594
    %v7596 = vsel %vm6392, %v7595, %v7591
    %v7597 = vlaneseq
    %v7598 = vshrl.u32 %v7597, 7
    %v7599 = vsub.s32 %v6394, %v7598
    %v7600 = vrot.slane %v6081, %v7599
    %v7601 = vsel %vm6399, %v7600, %v7596
    %v7602 = vlaneseq
    %v7603 = vshrl.u32 %v7602, 7
    %v7604 = vsub.s32 %v6401, %v7603
    %v7605 = vrot.slane %v6082, %v7604
    %v7606 = vsel %vm6406, %v7605, %v7601
    %v7607 = vlaneseq
    %v7608 = vshrl.u32 %v7607, 7
    %v7609 = vsub.s32 %v6408, %v7608
    %v7610 = vrot.slane %v6083, %v7609
    %v7611 = vsel %vm6413, %v7610, %v7606
    %v7612 = vlaneseq
    %v7613 = vshrl.u32 %v7612, 7
    %v7614 = vsub.s32 %v6415, %v7613
    %v7615 = vrot.slane %v6084, %v7614
    %v7616 = vsel %vm6420, %v7615, %v7611
    %v7617 = vlaneseq
    %v7618 = vshrl.u32 %v7617, 7
    %v7619 = vsub.s32 %v6422, %v7618
    %v7620 = vrot.slane %v6085, %v7619
    %v7621 = vsel %vm6427, %v7620, %v7616
    %v7622 = vlaneseq
    %v7623 = vshrl.u32 %v7622, 7
    %v7624 = vsub.s32 %v6429, %v7623
    %v7625 = vrot.slane %v6086, %v7624
    %v7626 = vsel %vm6434, %v7625, %v7621
    %v7627 = vlaneseq
    %v7628 = vshrl.u32 %v7627, 7
    %v7629 = vsub.s32 %v6436, %v7628
    %v7630 = vrot.slane %v6087, %v7629
    %v7631 = vsel %vm6441, %v7630, %v7626
    %v7632 = vlaneseq
    %v7633 = vshrl.u32 %v7632, 7
    %v7634 = vsub.s32 %v6443, %v7633
    %v7635 = vrot.slane %v6088, %v7634
    %v7636 = vsel %vm6448, %v7635, %v7631
    %v7637 = vlaneseq
    %v7638 = vshrl.u32 %v7637, 7
    %v7639 = vsub.s32 %v6450, %v7638
    %v7640 = vrot.slane %v6089, %v7639
    %v7641 = vsel %vm6455, %v7640, %v7636
    %vm7642 = vcmask 1041409
    %v7643 = vsel %vm7642, %v6535, %v6456
    %vm7644 = vcmask 1042434
    %v7645 = vsel %vm7644, %v6614, %v7643
    %vm7646 = vcmask 1043459
    %v7647 = vsel %vm7646, %v6693, %v7645
    %vm7648 = vcmask 1044484
    %v7649 = vsel %vm7648, %v6772, %v7647
    %vm7650 = vcmask 1045509
    %v7651 = vsel %vm7650, %v6851, %v7649
    %vm7652 = vcmask 1046534
    %v7653 = vsel %vm7652, %v6930, %v7651
    %vm7654 = vcmask 1047559
    %v7655 = vsel %vm7654, %v7009, %v7653
    %v7656 = vsel %vm7642, %v7167, %v7088
    %v7657 = vsel %vm7644, %v7246, %v7656
    %v7658 = vsel %vm7646, %v7325, %v7657
    %v7659 = vsel %vm7648, %v7404, %v7658
    %v7660 = vsel %vm7650, %v7483, %v7659
    %v7661 = vsel %vm7652, %v7562, %v7660
    %v7662 = vsel %vm7654, %v7641, %v7661
    %v7665 = vadd.f32 %v5831, %v7655
    %v7666 = vadd.f32 %v5832, %v7662
    %v7667 = vmul.f32 %v7665, %v7665
    %v7668 = vmul.f32 %v7666, %v7666
    %7669 = vadd.xlane.f32.xlu0 %v7667
    %v7670 = vpop.xlane.xlu0 %7669
    %7671 = vadd.xlane.f32.xlu0 %v7668
    %v7672 = vpop.xlane.xlu0 %7671
    %v7673 = vadd.f32 %v7670, 1e-24
    %v7674 = vadd.f32 %v7672, 1e-24
    %v7675 = vrsqrt.pop %v7673
    %v7676 = vrsqrt.pop %v7674
    %v7677 = vmul.f32 %v7665, %v7675
    %v7678 = vmul.f32 %v7666, %v7676
    %7679 = vst [vmem:[%s14] sm:$0xff] %v7677
    %7680 = vst [vmem:[%s14 + $0x8] sm:$0xff] %v7678
    // Predicated region
    $region62: #{sasoiclr_forward.2} parent=1 // pred_check
      _
    $region63: #{sasoiclr_forward.2} parent=1 // pred_check_branch
      %7682 = sbr.rel (0) target = $region65
    $region64: #{sasoiclr_forward.2} parent=1 // pred_region
      _
    $region65: #{sasoiclr_forward.2} parent=1 // pred_fallthru
      _
    // Predicated region
    $region66: #{sasoiclr_forward.2} parent=1 // pred_check
      _
    $region67: #{sasoiclr_forward.2} parent=1 // pred_check_branch
      %7684 = sbr.rel (0) target = $region69
    $region68: #{sasoiclr_forward.2} parent=1 // pred_region
      _
    $region69: #{sasoiclr_forward.2} parent=1 // pred_fallthru
      _
    %7685 = vsyncpa [#allocation3], 1

</llo_original>
